<compile_context>
chip_gen: v7x
topology: tpu7x:2x2x1
jax: 0.10.0
libtpu: 0.0.40
codegen_flags: <defaults>
</compile_context>

<pallas_src>
import math

import jax
import jax.numpy as jnp
import numpy as np
from jax.experimental import pallas as pl
from jax.experimental.pallas import tpu as pltpu

# Full-f32 matmul/conv precision so the XLA reference matches the in-kernel
# f32 MXU accumulation tightly (TPU default truncates f32 matmuls to bf16).
jax.config.update("jax_default_matmul_precision", "highest")

# Safe on every generation: matches the scoped default on v6e/v7x and raises
# v5e's 16 MiB default.  Per-step working sets below are well under this.
_VMEM_LIMIT = 32 * 1024 * 1024


# ----------------------------- Pallas kernels ------------------------------

def _conv1x1_kernel(x_ref, wT_ref, b_ref, o_ref):
    # x_ref: (1, Cin, T) channel-major pixel columns of one image.
    # out[co, p] = sum_ci wT[co, ci] * x[ci, p] + b[co]
    o_ref[0] = (
        jnp.dot(wT_ref[...], x_ref[0], preferred_element_type=jnp.float32)
        + b_ref[...]
    )


def _esa_gate_kernel(x_ref, c3_ref, mxbd_ref, wxT_ref, b_ref, o_ref):
    # Fused conv_f + conv4 + bilinear W-upsample + sigmoid + gating multiply.
    #   logits = wxT @ x                (composed w1@wf@w4 applied to x)
    #          + c3g @ MXbd             (W-direction bilinear upsample of the
    #                                    w4-folded, H-pre-upsampled low-res map)
    #          + b
    #   out    = x * sigmoid(logits)
    xb = x_ref[0]                                                  # (C, T)
    t1 = jnp.dot(wxT_ref[...], xb, preferred_element_type=jnp.float32)
    t2 = jnp.dot(c3_ref[0], mxbd_ref[...],
                 preferred_element_type=jnp.float32)               # (C, T)
    logits = t1 + t2 + b_ref[...]
    o_ref[0] = xb * (1.0 / (1.0 + jnp.exp(-logits)))               # sigmoid


# ------------------------------ tiling helper -------------------------------

def _choose_col_block(H, W, Wl, *, lane_target=8192, kron_bytes=4 << 20):
    """Pixel columns per block for the NCHW kernels.

    Blocks cover whole image rows (so the fused upsample tile is aligned), the
    lane width is a multiple of 128 (or the full H*W), and the resident
    block-diagonal interpolation matrix (th*Wl, th*W) stays small.
    """
    HW = H * W
    step = 128 // math.gcd(W, 128)          # min rows giving a %128-wide block
    if step > H:
        return HW                           # one block per image (full dim ok)
    th = step
    while True:
        nxt = th + step
        if (nxt > H or nxt * W > lane_target
                or (nxt * Wl) * (nxt * W) * 4 > kron_bytes):
            break
        th = nxt
    return th * W


# ------------------------------ Pallas wrappers ------------------------------

def conv1x1_nchw(x3, w, b, *, col_block):
    """1x1 conv in NCHW layout: x3 (N, Cin, H*W) -> (N, Cout, H*W) float32."""
    N, Cin, HW = x3.shape
    Cout = w.shape[1]
    TW = min(col_block, HW)
    nB = pl.cdiv(HW, TW)                      # ragged last block is fine
    wT = jnp.asarray(w, jnp.float32).T        # (Cout, Cin), resident
    bc = jnp.asarray(b, jnp.float32).reshape(Cout, 1)
    return pl.pallas_call(
        _conv1x1_kernel,
        out_shape=jax.ShapeDtypeStruct((N, Cout, HW), jnp.float32),
        grid=(N, nB),
        in_specs=[
            pl.BlockSpec((1, Cin, TW), lambda n, i: (n, 0, i)),
            pl.BlockSpec((Cout, Cin), lambda n, i: (0, 0)),
            pl.BlockSpec((Cout, 1), lambda n, i: (0, 0)),
        ],
        out_specs=pl.BlockSpec((1, Cout, TW), lambda n, i: (n, 0, i)),
        compiler_params=pltpu.CompilerParams(
            dimension_semantics=("parallel", "parallel"),
            vmem_limit_bytes=_VMEM_LIMIT,
        ),
    )(x3, wT, bc)


def esa_gate_nchw(x3, c3h4, mx, w_x, b_tot, *, col_block):
    """Fused conv_f + conv4 + bilinear upsample + sigmoid + x*m  (NCHW).

    x3    : (N, C, H*W)    full-res input, channel-major pixel columns
    c3h4  : (N, C, H, Wl)  low-res map, w4-folded and H-pre-upsampled (tiny)
    mx    : (W, Wl)        bilinear interpolation matrix for the W axis
    w_x   : (C, C)         composed  w1 @ wf @ w4
    b_tot : (C,)           composed  (b1 @ wf + bf) @ w4 + b4
    """
    N, C, HW = x3.shape
    _, _, H, Wl = c3h4.shape
    W = mx.shape[0]
    TW = min(col_block, HW)
    th = TW // W                              # image rows per block
    nB = pl.cdiv(H, th)

    # Rearrange the tiny low-res map so each grid step's slice is one
    # contiguous lane-dim block: (N*nB, C, th*Wl).  Low-res only -- the
    # full-resolution operands are never padded or copied.
    Hp = nB * th
    if Hp != H:
        c3h4 = jnp.pad(c3h4, ((0, 0), (0, 0), (0, Hp - H), (0, 0)))
    c3g = (c3h4.astype(jnp.float32)
           .reshape(N, C, nB, th, Wl)
           .transpose(0, 2, 1, 3, 4)
           .reshape(N * nB, C, th * Wl))

    # Block-diagonal W-interpolation matrix (th*Wl, th*W), resident in VMEM.
    # TODO(synk): for very large W, switch to a per-block (C*th, Wl)@(Wl, W)
    # dot (natural 4-D layout) to avoid the kron's FLOP/VMEM inflation.
    mxbd = jnp.kron(jnp.eye(th, dtype=jnp.float32),
                    jnp.asarray(mx, jnp.float32).T)
    wxT = jnp.asarray(w_x, jnp.float32).T                 # (C, C)
    bc = jnp.asarray(b_tot, jnp.float32).reshape(C, 1)

    K = th * Wl
    return pl.pallas_call(
        _esa_gate_kernel,
        out_shape=jax.ShapeDtypeStruct((N, C, HW), jnp.float32),
        grid=(N, nB),
        in_specs=[
            pl.BlockSpec((1, C, TW), lambda n, i: (n, 0, i)),
            pl.BlockSpec((1, C, K), lambda n, i: (n * nB + i, 0, 0)),
            pl.BlockSpec((K, TW), lambda n, i: (0, 0)),
            pl.BlockSpec((C, C), lambda n, i: (0, 0)),
            pl.BlockSpec((C, 1), lambda n, i: (0, 0)),
        ],
        out_specs=pl.BlockSpec((1, C, TW), lambda n, i: (n, 0, i)),
        compiler_params=pltpu.CompilerParams(
            dimension_semantics=("parallel", "parallel"),
            vmem_limit_bytes=_VMEM_LIMIT,
        ),
    )(x3, c3g, mxbd, wxT, bc)


# --------------------------- plain-XLA helpers ------------------------------

def _conv_nchw(x, w, b, stride=1, pad=0):
    """XLA conv on NCHW data; w is HWIO (or (Cin, Cout) for a 1x1 conv)."""
    if w.ndim == 2:
        w = w.reshape(1, 1, *w.shape)
    y = jax.lax.conv_general_dilated(
        x, w, (stride, stride), [(pad, pad), (pad, pad)],
        dimension_numbers=("NCHW", "HWIO", "NCHW"))
    return y + b.reshape(1, -1, 1, 1)


def _bilinear_matrix(out_size, in_size):
    """PyTorch F.interpolate(bilinear, align_corners=False) weight matrix."""
    i = jnp.arange(out_size, dtype=jnp.float32)
    src = (i + 0.5) * (in_size / out_size) - 0.5
    src = jnp.maximum(src, 0.0)                      # PyTorch clamps negatives
    i0 = jnp.minimum(jnp.floor(src).astype(jnp.int32), in_size - 1)
    i1 = jnp.minimum(i0 + 1, in_size - 1)
    w1 = src - i0.astype(jnp.float32)
    w0 = 1.0 - w1
    return (w0[:, None] * jax.nn.one_hot(i0, in_size, dtype=jnp.float32)
            + w1[:, None] * jax.nn.one_hot(i1, in_size, dtype=jnp.float32))


# ------------------------------- ESA forward --------------------------------

def esa_forward(x_nchw, p):
    N, C, H, W = x_nchw.shape
    f = C // 4
    x = x_nchw.astype(jnp.float32)
    x3 = x.reshape(N, C, H * W)          # free view -- NCHW kept end-to-end

    # conv1 (1x1, C->f) at full resolution: Pallas channel-mix, NCHW layout.
    tw1 = _choose_col_block(H, W, 1)
    c1_3 = conv1x1_nchw(x3, p["w1"], p["b1"], col_block=tw1)        # (N,f,HW)
    c1_ = c1_3.reshape(N, f, H, W)

    # Tiny downsampled branch: plain XLA (per perf review, per-op Pallas
    # launches on a few-KB tensor are pure overhead).
    # TODO(synk): a halo-tiled Pallas conv2 fused with conv1 would drop the
    # c1_ HBM round trip; left as XLA glue for robustness.
    c1 = _conv_nchw(c1_, p["w2"], p["b2"], stride=2, pad=0)
    v_max = jax.lax.reduce_window(c1, -jnp.inf, jax.lax.max,
                                  (1, 1, 7, 7), (1, 1, 3, 3), "VALID")
    v_range = jax.nn.gelu(_conv_nchw(v_max, p["wmax"], p["bmax"], 1, 1),
                          approximate=False)
    c3 = jax.nn.gelu(_conv_nchw(v_range, p["w3"], p["b3"], 1, 1),
                     approximate=False)
    c3 = _conv_nchw(c3, p["w3_"], p["b3_"], 1, 1)                   # (N,f,Hl,Wl)
    Hl, Wl = c3.shape[2], c3.shape[3]

    # Fold conv4 into the low-res map and pre-upsample along H (tiny tensors):
    # 1x1 convs commute with bilinear interpolation, so conv4's weight is
    # applied at low resolution; only the W direction is expanded inside the
    # fused gate kernel, so no full-res c3 ever touches HBM.
    my = _bilinear_matrix(H, Hl)                                    # (H, Hl)
    mx = _bilinear_matrix(W, Wl)                                    # (W, Wl)
    c3l4 = jnp.einsum("njab,jc->ncab", c3, p["w4"].astype(jnp.float32))
    c3h4 = jnp.einsum("ha,ncab->nchb", my, c3l4)                    # (N,C,H,Wl)

    # Composed gate weights: conv_f and conv4 folded onto x.
    w_x = (p["w1"].astype(jnp.float32) @ p["wf"].astype(jnp.float32)
           @ p["w4"].astype(jnp.float32))                           # (C, C)
    b_tot = ((p["b1"].astype(jnp.float32) @ p["wf"].astype(jnp.float32)
              + p["bf"].astype(jnp.float32)) @ p["w4"].astype(jnp.float32)
             + p["b4"].astype(jnp.float32))                         # (C,)

    # Fused conv_f + conv4 + W-upsample + sigmoid + gate: one Pallas kernel.
    twg = _choose_col_block(H, W, Wl)
    out3 = esa_gate_nchw(x3, c3h4, mx, w_x, b_tot, col_block=twg)
    return out3.reshape(N, C, H, W)                                 # NCHW


# -------------------------- pure-JAX reference ------------------------------

def esa_reference(x_nchw, p):
    x = x_nchw.astype(jnp.float32)
    N, C, H, W = x.shape
    c1_ = _conv_nchw(x, p["w1"], p["b1"])
    c1 = _conv_nchw(c1_, p["w2"], p["b2"], stride=2, pad=0)
    v_max = jax.lax.reduce_window(c1, -jnp.inf, jax.lax.max,
                                  (1, 1, 7, 7), (1, 1, 3, 3), "VALID")
    v_range = jax.nn.gelu(_conv_nchw(v_max, p["wmax"], p["bmax"], 1, 1),
                          approximate=False)
    c3 = jax.nn.gelu(_conv_nchw(v_range, p["w3"], p["b3"], 1, 1),
                     approximate=False)
    c3 = _conv_nchw(c3, p["w3_"], p["b3_"], 1, 1)
    my = _bilinear_matrix(H, c3.shape[2])
    mx = _bilinear_matrix(W, c3.shape[3])
    c3 = jnp.einsum("Ha,ncab,Wb->ncHW", my, c3, mx)
    cf = _conv_nchw(c1_, p["wf"], p["bf"])
    c4 = _conv_nchw(c3 + cf, p["w4"], p["b4"])
    return x * jax.nn.sigmoid(c4)


# --------------------------------- main --------------------------------------

def _init_conv(key, kh, kw, cin, cout):
    k1, k2 = jax.random.split(key)
    bound = 1.0 / math.sqrt(kh * kw * cin)
    w = jax.random.uniform(k1, (kh, kw, cin, cout), jnp.float32, -bound, bound)
    b = jax.random.uniform(k2, (cout,), jnp.float32, -bound, bound)
    if kh == 1 and kw == 1:
        w = w.reshape(cin, cout)
    return w, b


if __name__ == "__main__":
    N, C, H, W = 2, 16, 32, 32          # n_feats = 16  ->  f = 4
    f = C // 4

    key = jax.random.PRNGKey(0)
    kx, k1, k2, k3, k4, k5, k6, k7 = jax.random.split(key, 8)
    x = jax.random.normal(kx, (N, C, H, W), jnp.float32)

    params = {}
    params["w1"], params["b1"] = _init_conv(k1, 1, 1, C, f)      # conv1
    params["wf"], params["bf"] = _init_conv(k2, 1, 1, f, f)      # conv_f
    params["wmax"], params["bmax"] = _init_conv(k3, 3, 3, f, f)  # conv_max
    params["w2"], params["b2"] = _init_conv(k4, 3, 3, f, f)      # conv2
    params["w3"], params["b3"] = _init_conv(k5, 3, 3, f, f)      # conv3
    params["w3_"], params["b3_"] = _init_conv(k6, 3, 3, f, f)    # conv3_
    params["w4"], params["b4"] = _init_conv(k7, 1, 1, f, C)      # conv4

    out = jax.jit(esa_forward)(x, params)
    out = jax.block_until_ready(out)

    ref = jax.block_until_ready(jax.jit(esa_reference)(x, params))
    assert out.shape == (N, C, H, W)
    np.testing.assert_allclose(np.asarray(out), np.asarray(ref),
                               rtol=1e-4, atol=1e-4)
    print("KERNEL_OK")
</pallas_src>

<mosaic_0001>
module attributes {stable_mosaic.version = 11 : i64} {
  func.func @_conv1x1_kernel(%arg0: i32, %arg1: i32, %arg2: memref<1x16x1024xf32, #tpu.memory_space<vmem>>, %arg3: memref<4x16xf32, #tpu.memory_space<vmem>>, %arg4: memref<4x1xf32, #tpu.memory_space<vmem>>, %arg5: memref<1x4x1024xf32, #tpu.memory_space<vmem>>) attributes {dimension_semantics = [#tpu.dimension_semantics<parallel>, #tpu.dimension_semantics<parallel>], iteration_bounds = array<i64: 2, 1>, scalar_prefetch = 0 : i64, scratch_operands = 0 : i64, tpu.core_type = #tpu.core_type<tc>, window_params = [{transform_indices = @transform_0, window_bounds = array<i64: 1, 16, 1024>}, {pipeline_mode = #tpu.pipeline_mode<synchronous>, transform_indices = @transform_1, window_bounds = array<i64: 4, 16>}, {pipeline_mode = #tpu.pipeline_mode<synchronous>, transform_indices = @transform_2, window_bounds = array<i64: 4, 1>}, {transform_indices = @transform_3, window_bounds = array<i64: 1, 4, 1024>}]} {
    %c0 = arith.constant 0 : index
    %c0_0 = arith.constant 0 : index
    %0 = vector.load %arg3[%c0, %c0_0] : memref<4x16xf32, #tpu.memory_space<vmem>>, vector<4x16xf32>
    %c0_1 = arith.constant 0 : index
    %c0_2 = arith.constant 0 : index
    %c0_3 = arith.constant 0 : index
    %1 = vector.load %arg2[%c0_1, %c0_2, %c0_3] : memref<1x16x1024xf32, #tpu.memory_space<vmem>>, vector<1x16x1024xf32>
    %2 = vector.shape_cast %1 : vector<1x16x1024xf32> to vector<16x1024xf32>
    %cst = arith.constant dense<0.000000e+00> : vector<4x1024xf32>
    %3 = tpu.matmul %0, %2, %cst {dimension_numbers = #tpu.dot_dimension_numbers<[1], [0], [0], [1], [0, 0, 1, 1], [], []>, precision = #tpu.contract_precision<fp32>} : vector<4x16xf32>, vector<16x1024xf32>, vector<4x1024xf32> -> vector<4x1024xf32>
    %c0_4 = arith.constant 0 : index
    %c0_5 = arith.constant 0 : index
    %4 = vector.load %arg4[%c0_4, %c0_5] : memref<4x1xf32, #tpu.memory_space<vmem>>, vector<4x1xf32>
    %5 = vector.broadcast %4 : vector<4x1xf32> to vector<4x1024xf32>
    %6 = arith.addf %3, %5 : vector<4x1024xf32>
    %c0_6 = arith.constant 0 : index
    %c0_7 = arith.constant 0 : index
    %c0_8 = arith.constant 0 : index
    %7 = vector.load %arg5[%c0_6, %c0_7, %c0_8] : memref<1x4x1024xf32, #tpu.memory_space<vmem>>, vector<1x4x1024xf32>
    %8 = vector.shape_cast %7 : vector<1x4x1024xf32> to vector<4x1024xf32>
    %9 = vector.shape_cast %6 : vector<4x1024xf32> to vector<1x4x1024xf32>
    tpu.vector_store %arg5[%c0_6, %c0_7, %c0_8], %9 {strides = array<i32>} : memref<1x4x1024xf32, #tpu.memory_space<vmem>>, vector<1x4x1024xf32>,
    return
  }
  func.func @transform_0(%arg0: i32, %arg1: i32) -> (i32, i32, i32) {
    %c0_i32 = arith.constant 0 : i32
    %c0_i32_0 = arith.constant 0 : i32
    return %arg0, %c0_i32, %arg1 : i32, i32, i32
  }
  func.func @transform_1(%arg0: i32, %arg1: i32) -> (i32, i32) {
    %c0_i32 = arith.constant 0 : i32
    %c0_i32_0 = arith.constant 0 : i32
    %c0_i32_1 = arith.constant 0 : i32
    return %c0_i32, %c0_i32_0 : i32, i32
  }
  func.func @transform_2(%arg0: i32, %arg1: i32) -> (i32, i32) {
    %c0_i32 = arith.constant 0 : i32
    %c0_i32_0 = arith.constant 0 : i32
    %c0_i32_1 = arith.constant 0 : i32
    return %c0_i32, %c0_i32_0 : i32, i32
  }
  func.func @transform_3(%arg0: i32, %arg1: i32) -> (i32, i32, i32) {
    %c0_i32 = arith.constant 0 : i32
    %c0_i32_0 = arith.constant 0 : i32
    return %arg0, %c0_i32, %arg1 : i32, i32, i32
  }
}

module attributes {stable_mosaic.version = 11 : i64} {
  func.func @_esa_gate_kernel(%arg0: i32, %arg1: i32, %arg2: memref<1x16x1024xf32, #tpu.memory_space<vmem>>, %arg3: memref<1x16x96xf32, #tpu.memory_space<vmem>>, %arg4: memref<96x1024xf32, #tpu.memory_space<vmem>>, %arg5: memref<16x16xf32, #tpu.memory_space<vmem>>, %arg6: memref<16x1xf32, #tpu.memory_space<vmem>>, %arg7: memref<1x16x1024xf32, #tpu.memory_space<vmem>>) attributes {dimension_semantics = [#tpu.dimension_semantics<parallel>, #tpu.dimension_semantics<parallel>], iteration_bounds = array<i64: 2, 1>, scalar_prefetch = 0 : i64, scratch_operands = 0 : i64, tpu.core_type = #tpu.core_type<tc>, window_params = [{transform_indices = @transform_0, window_bounds = array<i64: 1, 16, 1024>}, {transform_indices = @transform_1, window_bounds = array<i64: 1, 16, 96>}, {pipeline_mode = #tpu.pipeline_mode<synchronous>, transform_indices = @transform_2, window_bounds = array<i64: 96, 1024>}, {pipeline_mode = #tpu.pipeline_mode<synchronous>, transform_indices = @transform_3, window_bounds = array<i64: 16, 16>}, {pipeline_mode = #tpu.pipeline_mode<synchronous>, transform_indices = @transform_4, window_bounds = array<i64: 16, 1>}, {transform_indices = @transform_5, window_bounds = array<i64: 1, 16, 1024>}]} {
    %c0 = arith.constant 0 : index
    %c0_0 = arith.constant 0 : index
    %c0_1 = arith.constant 0 : index
    %0 = vector.load %arg2[%c0, %c0_0, %c0_1] : memref<1x16x1024xf32, #tpu.memory_space<vmem>>, vector<1x16x1024xf32>
    %1 = vector.shape_cast %0 : vector<1x16x1024xf32> to vector<16x1024xf32>
    %c0_2 = arith.constant 0 : index
    %c0_3 = arith.constant 0 : index
    %2 = vector.load %arg5[%c0_2, %c0_3] : memref<16x16xf32, #tpu.memory_space<vmem>>, vector<16x16xf32>
    %cst = arith.constant dense<0.000000e+00> : vector<16x1024xf32>
    %3 = tpu.matmul %2, %1, %cst {dimension_numbers = #tpu.dot_dimension_numbers<[1], [0], [0], [1], [0, 0, 1, 1], [], []>, precision = #tpu.contract_precision<fp32>} : vector<16x16xf32>, vector<16x1024xf32>, vector<16x1024xf32> -> vector<16x1024xf32>
    %c0_4 = arith.constant 0 : index
    %c0_5 = arith.constant 0 : index
    %c0_6 = arith.constant 0 : index
    %4 = vector.load %arg3[%c0_4, %c0_5, %c0_6] : memref<1x16x96xf32, #tpu.memory_space<vmem>>, vector<1x16x96xf32>
    %5 = vector.shape_cast %4 : vector<1x16x96xf32> to vector<16x96xf32>
    %c0_7 = arith.constant 0 : index
    %c0_8 = arith.constant 0 : index
    %6 = vector.load %arg4[%c0_7, %c0_8] : memref<96x1024xf32, #tpu.memory_space<vmem>>, vector<96x1024xf32>
    %cst_9 = arith.constant dense<0.000000e+00> : vector<16x1024xf32>
    %7 = tpu.matmul %5, %6, %cst_9 {dimension_numbers = #tpu.dot_dimension_numbers<[1], [0], [0], [1], [0, 0, 1, 1], [], []>, precision = #tpu.contract_precision<fp32>} : vector<16x96xf32>, vector<96x1024xf32>, vector<16x1024xf32> -> vector<16x1024xf32>
    %8 = arith.addf %3, %7 : vector<16x1024xf32>
    %c0_10 = arith.constant 0 : index
    %c0_11 = arith.constant 0 : index
    %9 = vector.load %arg6[%c0_10, %c0_11] : memref<16x1xf32, #tpu.memory_space<vmem>>, vector<16x1xf32>
    %10 = vector.broadcast %9 : vector<16x1xf32> to vector<16x1024xf32>
    %11 = arith.addf %8, %10 : vector<16x1024xf32>
    %cst_12 = arith.constant 0.000000e+00 : f32
    %12 = vector.broadcast %cst_12 : f32 to vector<16x1024xf32>
    %13 = arith.subf %12, %11 : vector<16x1024xf32>
    %14 = math.exp %13 : vector<16x1024xf32>
    %cst_13 = arith.constant 1.000000e+00 : f32
    %15 = vector.broadcast %cst_13 : f32 to vector<16x1024xf32>
    %16 = arith.addf %15, %14 : vector<16x1024xf32>
    %cst_14 = arith.constant 1.000000e+00 : f32
    %17 = vector.broadcast %cst_14 : f32 to vector<16x1024xf32>
    %18 = arith.divf %17, %16 : vector<16x1024xf32>
    %19 = arith.mulf %1, %18 : vector<16x1024xf32>
    %c0_15 = arith.constant 0 : index
    %c0_16 = arith.constant 0 : index
    %c0_17 = arith.constant 0 : index
    %20 = vector.load %arg7[%c0_15, %c0_16, %c0_17] : memref<1x16x1024xf32, #tpu.memory_space<vmem>>, vector<1x16x1024xf32>
    %21 = vector.shape_cast %20 : vector<1x16x1024xf32> to vector<16x1024xf32>
    %22 = vector.shape_cast %19 : vector<16x1024xf32> to vector<1x16x1024xf32>
    tpu.vector_store %arg7[%c0_15, %c0_16, %c0_17], %22 {strides = array<i32>} : memref<1x16x1024xf32, #tpu.memory_space<vmem>>, vector<1x16x1024xf32>,
    return
  }
  func.func @transform_0(%arg0: i32, %arg1: i32) -> (i32, i32, i32) {
    %c0_i32 = arith.constant 0 : i32
    %c0_i32_0 = arith.constant 0 : i32
    return %arg0, %c0_i32, %arg1 : i32, i32, i32
  }
  func.func @transform_1(%arg0: i32, %arg1: i32) -> (i32, i32, i32) {
    %c1_i32 = arith.constant 1 : i32
    %0 = arith.muli %arg0, %c1_i32 : i32
    %1 = arith.addi %0, %arg1 : i32
    %c0_i32 = arith.constant 0 : i32
    %c0_i32_0 = arith.constant 0 : i32
    %c0_i32_1 = arith.constant 0 : i32
    return %1, %c0_i32, %c0_i32_0 : i32, i32, i32
  }
  func.func @transform_2(%arg0: i32, %arg1: i32) -> (i32, i32) {
    %c0_i32 = arith.constant 0 : i32
    %c0_i32_0 = arith.constant 0 : i32
    %c0_i32_1 = arith.constant 0 : i32
    return %c0_i32, %c0_i32_0 : i32, i32
  }
  func.func @transform_3(%arg0: i32, %arg1: i32) -> (i32, i32) {
    %c0_i32 = arith.constant 0 : i32
    %c0_i32_0 = arith.constant 0 : i32
    %c0_i32_1 = arith.constant 0 : i32
    return %c0_i32, %c0_i32_0 : i32, i32
  }
  func.func @transform_4(%arg0: i32, %arg1: i32) -> (i32, i32) {
    %c0_i32 = arith.constant 0 : i32
    %c0_i32_0 = arith.constant 0 : i32
    %c0_i32_1 = arith.constant 0 : i32
    return %c0_i32, %c0_i32_0 : i32, i32
  }
  func.func @transform_5(%arg0: i32, %arg1: i32) -> (i32, i32, i32) {
    %c0_i32 = arith.constant 0 : i32
    %c0_i32_0 = arith.constant 0 : i32
    return %arg0, %c0_i32, %arg1 : i32, i32, i32
  }
}

</mosaic_0001>

<llo_original>
// kernel: esa_forward.2
$region0: #{esa_forward.2}
  #allocation0 [shape = 'u32[]', space=smem, size = 0x4, offset = 0x4, fixed_abs, tag = 'smem constant byte address 0x4 - core index']
  #allocation1 [shape = 'u32[144,128]{1,0:T(1,128)}', space=vmem, size = 0x12000, scoped, tag = 'internal scratch']
  %s0 = inlined_call_operand.vmem [shape: f32[2,16,1024], index: 0, kind: input, shape index: {}]
  %s1 = inlined_call_operand.hbm [shape: f32[4,16], index: 1, kind: input, shape index: {}]
  %s2 = inlined_call_operand.vmem [shape: f32[4,1], index: 2, kind: input, shape index: {}]
  %s3 = inlined_call_operand.vmem [shape: f32[2,4,1024], index: 3, kind: output, shape index: {}]
  %s4 = sld [smem:[#allocation0]]
  $region49: #{esa_forward.2} parent=0
    _
  %s6 = ssub.s32 1, %s4
  %s7 = scalar_select 0, %s6, %s4
  $region1: #{esa_forward.2} parent=0
    #allocation2 [shape = 'u8[2048]{0}', space=vmem, size = 0x800, scoped, tag = 'input window, operand 1, single buffered']
    #allocation3 [shape = 's32[2]{0}', space=sflag, size = 0x8, scoped, tag = 'scoped memory for esa_forward.2']
    %8 = vsyncpa [#allocation3], 0
    loop: start=0, step=1, limit=4
    $region2: #{esa_forward.2} parent=1 // loop_pre_header
      _
    $region3: #{esa_forward.2} parent=1 // loop_header
      %s10 = sphi 0, %s14
      %p11 = scmp.ge.s32.totalorder %s10, 4
      %s17 = sphi 0, %s29
      %s18 = sphi 0, %s25
      %s19 = sphi 0, %s17
      %s20 = sphi 0, %s18
      %s21 = sphi 0, %s19
      %s22 = sphi 0, %s20
      %s34 = sphi 0, %s36
      %s37 = sphi 0, %s34
      %s38 = sphi 0, %s37
      %s54 = sphi 0, %s38
      %s58 = sphi 0, %s58
      %s60 = sphi 0, %s58
      %s61 = sphi 0, %s60
      %s75 = sphi 0, %s61
      %s79 = sphi 0, %s79
      %s81 = sphi 0, %s79
      %s82 = sphi 0, %s81
      %s96 = sphi 0, %s82
      %s104 = sphi 0, %s106
      %s107 = sphi 0, %s104
      %s108 = sphi 0, %s107
      %s124 = sphi 0, %s108
    $region4: #{esa_forward.2} parent=1 // loop_header_branch
      %13 = sbr.rel (%p11) target = $region8
    $region5: #{esa_forward.2} parent=1 // loop_body
      %s15 = ssub.s32 %s10, 1
      %s16 = ssub.s32 %s10, 2
      %s23 = sadd.s32 1, %s18
      %p24 = scmp.ge.s32.totalorder %s23, 1
      %s25 = scalar_select %p24, 0, %s23
      %s26 = sadd.s32 1, %s17
      %s27 = scalar_select %p24, %s26, %s17
      %p28 = scmp.ge.s32.totalorder %s27, 2
      %s29 = scalar_select %p28, 0, %s27
      %s30 = ssub.s32 %s17, %s29
      %s31 = ssub.s32 %s18, %s25
      %s32 = sor.u32 %s30, %s31
      %p33 = scmp.eq.s32.totalorder %s32, 0
      %s35 = sadd.s32 %s34, 1
      %s36 = scalar_select %p33, %s34, %s35
      %p39 = pneg %p33
      %p40 = scmp.eq.s32.totalorder %s10, 1
      %p41 = por %p39, %p40
      %p42 = scmp.ne.s32.totalorder %s34, %s37
      %p43 = scmp.eq.s32.totalorder %s10, 0
      %p44 = por %p42, %p43
      %p45 = scmp.ne.s32.totalorder %s34, %s37
      %p46 = scmp.eq.s32.totalorder %s15, 1
      %p47 = por %p45, %p46
      %p48 = scmp.ne.s32.totalorder %s37, %s38
      %p49 = scmp.eq.s32.totalorder %s15, 0
      %p50 = por %p48, %p49
      %p51 = scmp.ne.s32.totalorder %s37, %s38
      %p52 = scmp.eq.s32.totalorder %s16, 1
      %p53 = por %p51, %p52
      %p55 = scmp.ne.s32.totalorder %s38, %s54
      %p56 = scmp.eq.s32.totalorder %s16, 0
      %p57 = por %p55, %p56
      %s59 = sadd.s32 %s58, 1
      %p62 = scmp.eq.s32.totalorder %s10, 1
      %p63 = scmp.ne.s32.totalorder %s58, %s60
      %p64 = scmp.eq.s32.totalorder %s10, 0
      %p65 = por %p63, %p64
      %p66 = scmp.ne.s32.totalorder %s58, %s60
      %p67 = scmp.eq.s32.totalorder %s15, 1
      %p68 = por %p66, %p67
      %p69 = scmp.ne.s32.totalorder %s60, %s61
      %p70 = scmp.eq.s32.totalorder %s15, 0
      %p71 = por %p69, %p70
      %p72 = scmp.ne.s32.totalorder %s60, %s61
      %p73 = scmp.eq.s32.totalorder %s16, 1
      %p74 = por %p72, %p73
      %p76 = scmp.ne.s32.totalorder %s61, %s75
      %p77 = scmp.eq.s32.totalorder %s16, 0
      %p78 = por %p76, %p77
      %s80 = sadd.s32 %s79, 1
      %p83 = scmp.eq.s32.totalorder %s10, 1
      %p84 = scmp.ne.s32.totalorder %s79, %s81
      %p85 = scmp.eq.s32.totalorder %s10, 0
      %p86 = por %p84, %p85
      %p87 = scmp.ne.s32.totalorder %s79, %s81
      %p88 = scmp.eq.s32.totalorder %s15, 1
      %p89 = por %p87, %p88
      %p90 = scmp.ne.s32.totalorder %s81, %s82
      %p91 = scmp.eq.s32.totalorder %s15, 0
      %p92 = por %p90, %p91
      %p93 = scmp.ne.s32.totalorder %s81, %s82
      %p94 = scmp.eq.s32.totalorder %s16, 1
      %p95 = por %p93, %p94
      %p97 = scmp.ne.s32.totalorder %s82, %s96
      %p98 = scmp.eq.s32.totalorder %s16, 0
      %p99 = por %p97, %p98
      %s100 = ssub.s32 %s17, %s29
      %s101 = ssub.s32 %s18, %s25
      %s102 = sor.u32 %s100, %s101
      %p103 = scmp.eq.s32.totalorder %s102, 0
      %s105 = sadd.s32 %s104, 1
      %s106 = scalar_select %p103, %s104, %s105
      %p109 = pneg %p103
      %p110 = scmp.eq.s32.totalorder %s10, 1
      %p111 = por %p109, %p110
      %p112 = scmp.ne.s32.totalorder %s104, %s107
      %p113 = scmp.eq.s32.totalorder %s10, 0
      %p114 = por %p112, %p113
      %p115 = scmp.ne.s32.totalorder %s104, %s107
      %p116 = scmp.eq.s32.totalorder %s15, 1
      %p117 = por %p115, %p116
      %p118 = scmp.ne.s32.totalorder %s107, %s108
      %p119 = scmp.eq.s32.totalorder %s15, 0
      %p120 = por %p118, %p119
      %p121 = scmp.ne.s32.totalorder %s107, %s108
      %p122 = scmp.eq.s32.totalorder %s16, 1
      %p123 = por %p121, %p122
      %p125 = scmp.ne.s32.totalorder %s108, %s124
      %p126 = scmp.eq.s32.totalorder %s16, 0
      %p127 = por %p125, %p126
      %p128 = scmp.le.s32.totalorder 1, %s10
      %p129 = scmp.lt.s32.totalorder %s10, 3
      %p130 = pnand %p128, %p129
      %p131 = pneg %p130
      // Predicated region
      $region9: #{esa_forward.2} parent=5 // pred_check
        _
      $region10: #{esa_forward.2} parent=5 // pred_check_branch
        %133 = sbr.rel (%p130) target = $region12
      $region11: #{esa_forward.2} parent=5 // pred_region
        %s134 = ssub.s32 %s10, 1
        // Predicated region
        $region13: #{esa_forward.2} parent=11 // pred_check
          %p135 = pneg %p71
        $region14: #{esa_forward.2} parent=11 // pred_check_branch
          %137 = sbr.rel (%p135) target = $region16
        $region15: #{esa_forward.2} parent=11 // pred_region
          %s139 = ssub.s32 64, 64
          %140 = vsyncadd [#allocation3], %s139
          %s142 = sshll.u32 [#allocation2], 4
          %s143 = int_to_ptr.vmem [resolvable:$true] %s142
          %145 = dma.hbm_to_vmem [thread:$0]  %s1, 64, %s143, [#allocation3]
        $region16: #{esa_forward.2} parent=11 // pred_fallthru
          _
        // Predicated region
        $region17: #{esa_forward.2} parent=11 // pred_check
          %p146 = pneg %p92
        $region18: #{esa_forward.2} parent=11 // pred_check_branch
          %148 = sbr.rel (%p146) target = $region20
        $region19: #{esa_forward.2} parent=11 // pred_region
          _
        $region20: #{esa_forward.2} parent=11 // pred_fallthru
          _
      $region12: #{esa_forward.2} parent=5 // pred_fallthru
        _
      %p149 = scmp.lt.s32.totalorder %s10, 2
      // Predicated region
      $region21: #{esa_forward.2} parent=5 // pred_check
        %p150 = pneg %p149
      $region22: #{esa_forward.2} parent=5 // pred_check_branch
        %152 = sbr.rel (%p150) target = $region24
      $region23: #{esa_forward.2} parent=5 // pred_region
        // Predicated region
        $region25: #{esa_forward.2} parent=23 // pred_check
          %p153 = pneg %p44
        $region26: #{esa_forward.2} parent=23 // pred_check_branch
          %155 = sbr.rel (%p153) target = $region28
        $region27: #{esa_forward.2} parent=23 // pred_region
          %s156 = smul.u32 8, %s18
          %p157 = scmp.lt.s32.totalorder %s17, 1
          %s158 = scalar_select %p157, %s17, 1
          %p159 = scmp.lt.s32.totalorder %s156, 7
          %s160 = scalar_select %p159, %s156, 7
          %s161 = smul.addr %s158, 16
          %s162 = sadd.s32 %s160, %s161
          %s163 = smul.addr %s162, 8
          %s164 = scalar_lea.vmem %s0, %s163
          %s165 = smul.u32 8, %s18
        $region28: #{esa_forward.2} parent=23 // pred_fallthru
          _
      $region24: #{esa_forward.2} parent=5 // pred_fallthru
        _
      %p166 = scmp.le.s32.totalorder 1, %s10
      %p167 = scmp.lt.s32.totalorder %s10, 3
      %p168 = pnand %p166, %p167
      %p169 = pneg %p168
      // Predicated region
      $region29: #{esa_forward.2} parent=5 // pred_check
        _
      $region30: #{esa_forward.2} parent=5 // pred_check_branch
        %171 = sbr.rel (%p168) target = $region32
      $region31: #{esa_forward.2} parent=5 // pred_region
        %s172 = ssub.s32 %s10, 1
        // Predicated region
        $region33: #{esa_forward.2} parent=31 // pred_check
          %p173 = pneg %p71
        $region34: #{esa_forward.2} parent=31 // pred_check_branch
          %175 = sbr.rel (%p173) target = $region36
        $region35: #{esa_forward.2} parent=31 // pred_region
          %176 = dma.done [#allocation3], 64
        $region36: #{esa_forward.2} parent=31 // pred_fallthru
          _
        %s177 = smul.u32 8, %s20
        %p178 = scmp.lt.s32.totalorder %s19, 1
        %s179 = scalar_select %p178, %s19, 1
        %p180 = scmp.lt.s32.totalorder %s177, 7
        %s181 = scalar_select %p180, %s177, 7
        %s182 = smul.addr %s179, 16
        %s183 = sadd.s32 %s181, %s182
        %s184 = smul.addr %s183, 8
        %s185 = scalar_lea.vmem %s0, %s184
        %p186 = pneg %p50
        %p187 = pneg %p47
        %p188 = pneg %p71
        %p189 = pneg %p68
        %p190 = pneg %p92
        %p191 = pneg %p89
        %p192 = pneg %p120
        %p193 = pneg %p117
        %s194 = smul.u32 8, %s20
        %p195 = scmp.lt.s32.totalorder %s19, 1
        %s196 = scalar_select %p195, %s19, 1
        %p197 = scmp.lt.s32.totalorder %s194, 7
        %s198 = scalar_select %p197, %s194, 7
        %s199 = smul.addr %s196, 8
        %s200 = sadd.s32 %s198, %s199
        %s201 = smul.addr %s200, 4
        %s202 = scalar_lea.vmem %s3, %s201
        %s203 = smul.u32 8, %s20
        %p204 = scmp.lt.s32.totalorder %s19, 1
        %s205 = scalar_select %p204, %s19, 1
        %p206 = scmp.lt.s32.totalorder %s203, 7
        %s207 = scalar_select %p206, %s203, 7
        %s208 = smul.addr %s205, 16
        %s209 = sadd.s32 %s207, %s208
        %s210 = smul.addr %s209, 8
        %s211 = scalar_lea.vmem %s0, %s210
        %s212 = smul.u32 8, %s20
        %s213 = smul.u32 8, %s20
        %p214 = scmp.lt.s32.totalorder %s19, 1
        %s215 = scalar_select %p214, %s19, 1
        %p216 = scmp.lt.s32.totalorder %s213, 7
        %s217 = scalar_select %p216, %s213, 7
        %s218 = smul.addr %s215, 8
        %s219 = sadd.s32 %s217, %s218
        %s220 = smul.addr %s219, 4
        %s221 = scalar_lea.vmem %s3, %s220
        %s222 = smul.u32 8, %s20
        %v223 = vld [vmem:[#allocation2] sm:$0xf]
        %v224 = vld [vmem:[%s211] sm:$0xff]
        %v225 = vld [vmem:[%s211 + $0x8] sm:$0xff]
        %v226 = vld [vmem:[%s211 + $0x10] sm:$0xff]
        %v227 = vld [vmem:[%s211 + $0x18] sm:$0xff]
        %v228 = vld [vmem:[%s211 + $0x20] sm:$0xff]
        %v229 = vld [vmem:[%s211 + $0x28] sm:$0xff]
        %v230 = vld [vmem:[%s211 + $0x30] sm:$0xff]
        %v231 = vld [vmem:[%s211 + $0x38] sm:$0xff]
        %v232 = vld [vmem:[%s211 + $0x40] sm:$0xff]
        %v233 = vld [vmem:[%s211 + $0x48] sm:$0xff]
        %v234 = vld [vmem:[%s211 + $0x50] sm:$0xff]
        %v235 = vld [vmem:[%s211 + $0x58] sm:$0xff]
        %v236 = vld [vmem:[%s211 + $0x60] sm:$0xff]
        %v237 = vld [vmem:[%s211 + $0x68] sm:$0xff]
        %v238 = vld [vmem:[%s211 + $0x70] sm:$0xff]
        %v239 = vld [vmem:[%s211 + $0x78] sm:$0xff]
        %v240 = vld [vmem:[%s2] sm:$0xf]
        %242 = vset.pattern.permute.xlu0 0
        %243 = vperm.xlu0 %242, %v240
        %v244 = vpop.permute.xlu0 %243
        %vm246 = vcmask 130048
        %v248 = vsel %vm246, %v223, 0
        %v250 = vand.u32 %v225, 4294901760
        %251 = vmatprep.subr.mxu0 %v250
        %v252 = vand.u32 %v224, 4294901760
        %253 = vmatpush1.msra.mxu0 %v252
        %v254 = vand.u32 %v233, 4294901760
        %255 = vmatprep.subr.mxu0 %v254
        %v256 = vand.u32 %v232, 4294901760
        %257 = vmatpush1.msra.mxu0 %v256
        %258 = vmatprep.subr.mxu0 0.0
        %259 = vmatpush1.msra.mxu0 0.0
        %260 = vmatprep.subr.mxu0 0.0
        %261 = vmatpush1.msra.mxu0 0.0
        %262 = vmatprep.subr.mxu0 0.0
        %263 = vmatpush1.msra.mxu0 0.0
        %264 = vmatprep.subr.mxu0 0.0
        %265 = vmatpush1.msra.mxu0 0.0
        %266 = vmatprep.subr.mxu0 0.0
        %267 = vmatpush1.msra.mxu0 0.0
        %268 = vmatprep.subr.mxu0 0.0
        %269 = vmatpush1.msra.mxu0 0.0
        %270 = vmatprep.subr.mxu0 0.0
        %271 = vmatpush1.msra.mxu0 0.0
        %272 = vmatprep.subr.mxu0 0.0
        %273 = vmatpush1.msra.mxu0 0.0
        %274 = vmatprep.subr.mxu0 0.0
        %275 = vmatpush1.msra.mxu0 0.0
        %276 = vmatprep.subr.mxu0 0.0
        %277 = vmatpush1.msra.mxu0 0.0
        %278 = vmatprep.subr.mxu0 0.0
        %279 = vmatpush1.msra.mxu0 0.0
        %280 = vmatprep.subr.mxu0 0.0
        %281 = vmatpush1.msra.mxu0 0.0
        %282 = vmatprep.subr.mxu0 0.0
        %283 = vmatpush1.msra.mxu0 0.0
        %284 = vmatprep.subr.mxu0 0.0
        %285 = vmatpush1.msra.mxu0 0.0
        %286 = vmatprep.subr.mxu0 0.0
        %287 = vmatpush1.msra.mxu0 0.0
        %288 = vmatprep.subr.mxu0 0.0
        %289 = vmatpush1.msra.mxu0 0.0
        %290 = vmatprep.subr.mxu0 0.0
        %291 = vmatpush1.msra.mxu0 0.0
        %292 = vmatprep.subr.mxu0 0.0
        %293 = vmatpush1.msra.mxu0 0.0
        %294 = vmatprep.subr.mxu0 0.0
        %295 = vmatpush1.msra.mxu0 0.0
        %296 = vmatprep.subr.mxu0 0.0
        %297 = vmatpush1.msra.mxu0 0.0
        %298 = vmatprep.subr.mxu0 0.0
        %299 = vmatpush1.msra.mxu0 0.0
        %300 = vmatprep.subr.mxu0 0.0
        %301 = vmatpush1.msra.mxu0 0.0
        %302 = vmatprep.subr.mxu0 0.0
        %303 = vmatpush1.msra.mxu0 0.0
        %304 = vmatprep.subr.mxu0 0.0
        %305 = vmatpush1.msra.mxu0 0.0
        %306 = vmatprep.subr.mxu0 0.0
        %307 = vmatpush1.msra.mxu0 0.0
        %308 = vmatprep.subr.mxu0 0.0
        %309 = vmatpush1.msra.mxu0 0.0
        %310 = vmatprep.subr.mxu0 0.0
        %311 = vmatpush1.msra.mxu0 0.0
        %312 = vmatprep.subr.mxu0 0.0
        %313 = vmatpush1.msra.mxu0 0.0
        %314 = vmatprep.subr.mxu0 0.0
        %315 = vmatpush1.msra.mxu0 0.0
        %316 = vmatprep.subr.mxu0 0.0
        %317 = vmatpush1.msra.mxu0 0.0
        %318 = vmatprep.mubr.f32.mxu0 0.0
        %v319 = vand.u32 %v248, 4294901760
        %v320 = vsub.f32 %v248, %v319
        %v321 = vand.u32 %v320, 4294901760
        %v322 = vsub.f32 %v320, %v321
        %v323 = vand.u32 %v322, 4294901760
        %324 = vmatmul.mubr.f32.gmra.mrb[0].mxu0 %v323
        %v325 = vpop.f32.mrb[0].mxu0
        %v326 = vadd.f32 %v244, %v325
        %v327 = vpop.f32.mrb[0].mxu0
        %v328 = vadd.f32 %v244, %v327
        %329 = vdwg.mxu0
        %v330 = vand.u32 %v225, 4294901760
        %v331 = vsub.f32 %v225, %v330
        %v332 = vand.u32 %v331, 4294901760
        %v333 = vsub.f32 %v331, %v332
        %v334 = vand.u32 %v333, 4294901760
        %335 = vmatprep.subr.mxu0 %v334
        %v336 = vand.u32 %v224, 4294901760
        %v337 = vsub.f32 %v224, %v336
        %v338 = vand.u32 %v337, 4294901760
        %v339 = vsub.f32 %v337, %v338
        %v340 = vand.u32 %v339, 4294901760
        %341 = vmatpush1.msra.mxu0 %v340
        %v342 = vand.u32 %v233, 4294901760
        %v343 = vsub.f32 %v233, %v342
        %v344 = vand.u32 %v343, 4294901760
        %v345 = vsub.f32 %v343, %v344
        %v346 = vand.u32 %v345, 4294901760
        %347 = vmatprep.subr.mxu0 %v346
        %v348 = vand.u32 %v232, 4294901760
        %v349 = vsub.f32 %v232, %v348
        %v350 = vand.u32 %v349, 4294901760
        %v351 = vsub.f32 %v349, %v350
        %v352 = vand.u32 %v351, 4294901760
        %353 = vmatpush1.msra.mxu0 %v352
        %354 = vmatprep.subr.mxu0 0.0
        %355 = vmatpush1.msra.mxu0 0.0
        %356 = vmatprep.subr.mxu0 0.0
        %357 = vmatpush1.msra.mxu0 0.0
        %358 = vmatprep.subr.mxu0 0.0
        %359 = vmatpush1.msra.mxu0 0.0
        %360 = vmatprep.subr.mxu0 0.0
        %361 = vmatpush1.msra.mxu0 0.0
        %362 = vmatprep.subr.mxu0 0.0
        %363 = vmatpush1.msra.mxu0 0.0
        %364 = vmatprep.subr.mxu0 0.0
        %365 = vmatpush1.msra.mxu0 0.0
        %366 = vmatprep.subr.mxu0 0.0
        %367 = vmatpush1.msra.mxu0 0.0
        %368 = vmatprep.subr.mxu0 0.0
        %369 = vmatpush1.msra.mxu0 0.0
        %370 = vmatprep.subr.mxu0 0.0
        %371 = vmatpush1.msra.mxu0 0.0
        %372 = vmatprep.subr.mxu0 0.0
        %373 = vmatpush1.msra.mxu0 0.0
        %374 = vmatprep.subr.mxu0 0.0
        %375 = vmatpush1.msra.mxu0 0.0
        %376 = vmatprep.subr.mxu0 0.0
        %377 = vmatpush1.msra.mxu0 0.0
        %378 = vmatprep.subr.mxu0 0.0
        %379 = vmatpush1.msra.mxu0 0.0
        %380 = vmatprep.subr.mxu0 0.0
        %381 = vmatpush1.msra.mxu0 0.0
        %382 = vmatprep.subr.mxu0 0.0
        %383 = vmatpush1.msra.mxu0 0.0
        %384 = vmatprep.subr.mxu0 0.0
        %385 = vmatpush1.msra.mxu0 0.0
        %386 = vmatprep.subr.mxu0 0.0
        %387 = vmatpush1.msra.mxu0 0.0
        %388 = vmatprep.subr.mxu0 0.0
        %389 = vmatpush1.msra.mxu0 0.0
        %390 = vmatprep.subr.mxu0 0.0
        %391 = vmatpush1.msra.mxu0 0.0
        %392 = vmatprep.subr.mxu0 0.0
        %393 = vmatpush1.msra.mxu0 0.0
        %394 = vmatprep.subr.mxu0 0.0
        %395 = vmatpush1.msra.mxu0 0.0
        %396 = vmatprep.subr.mxu0 0.0
        %397 = vmatpush1.msra.mxu0 0.0
        %398 = vmatprep.subr.mxu0 0.0
        %399 = vmatpush1.msra.mxu0 0.0
        %400 = vmatprep.subr.mxu0 0.0
        %401 = vmatpush1.msra.mxu0 0.0
        %402 = vmatprep.subr.mxu0 0.0
        %403 = vmatpush1.msra.mxu0 0.0
        %404 = vmatprep.subr.mxu0 0.0
        %405 = vmatpush1.msra.mxu0 0.0
        %406 = vmatprep.subr.mxu0 0.0
        %407 = vmatpush1.msra.mxu0 0.0
        %408 = vmatprep.subr.mxu0 0.0
        %409 = vmatpush1.msra.mxu0 0.0
        %410 = vmatprep.subr.mxu0 0.0
        %411 = vmatpush1.msra.mxu0 0.0
        %412 = vmatprep.subr.mxu0 0.0
        %413 = vmatpush1.msra.mxu0 0.0
        %414 = vmatprep.mubr.f32.mxu0 0.0
        %v415 = vand.u32 %v248, 4294901760
        %416 = vmatmul.mubr.f32.gmra.mrb[0].mxu0 %v415
        %v417 = vpop.f32.mrb[0].mxu0
        %v418 = vadd.f32 %v326, %v417
        %v419 = vpop.f32.mrb[0].mxu0
        %v420 = vadd.f32 %v328, %v419
        %421 = vdwg.mxu0
        %v422 = vand.u32 %v225, 4294901760
        %v423 = vsub.f32 %v225, %v422
        %424 = vmatprep.subr.mxu0 %v423
        %v425 = vand.u32 %v224, 4294901760
        %v426 = vsub.f32 %v224, %v425
        %427 = vmatpush1.msra.mxu0 %v426
        %v428 = vand.u32 %v233, 4294901760
        %v429 = vsub.f32 %v233, %v428
        %430 = vmatprep.subr.mxu0 %v429
        %v431 = vand.u32 %v232, 4294901760
        %v432 = vsub.f32 %v232, %v431
        %433 = vmatpush1.msra.mxu0 %v432
        %434 = vmatprep.subr.mxu0 0.0
        %435 = vmatpush1.msra.mxu0 0.0
        %436 = vmatprep.subr.mxu0 0.0
        %437 = vmatpush1.msra.mxu0 0.0
        %438 = vmatprep.subr.mxu0 0.0
        %439 = vmatpush1.msra.mxu0 0.0
        %440 = vmatprep.subr.mxu0 0.0
        %441 = vmatpush1.msra.mxu0 0.0
        %442 = vmatprep.subr.mxu0 0.0
        %443 = vmatpush1.msra.mxu0 0.0
        %444 = vmatprep.subr.mxu0 0.0
        %445 = vmatpush1.msra.mxu0 0.0
        %446 = vmatprep.subr.mxu0 0.0
        %447 = vmatpush1.msra.mxu0 0.0
        %448 = vmatprep.subr.mxu0 0.0
        %449 = vmatpush1.msra.mxu0 0.0
        %450 = vmatprep.subr.mxu0 0.0
        %451 = vmatpush1.msra.mxu0 0.0
        %452 = vmatprep.subr.mxu0 0.0
        %453 = vmatpush1.msra.mxu0 0.0
        %454 = vmatprep.subr.mxu0 0.0
        %455 = vmatpush1.msra.mxu0 0.0
        %456 = vmatprep.subr.mxu0 0.0
        %457 = vmatpush1.msra.mxu0 0.0
        %458 = vmatprep.subr.mxu0 0.0
        %459 = vmatpush1.msra.mxu0 0.0
        %460 = vmatprep.subr.mxu0 0.0
        %461 = vmatpush1.msra.mxu0 0.0
        %462 = vmatprep.subr.mxu0 0.0
        %463 = vmatpush1.msra.mxu0 0.0
        %464 = vmatprep.subr.mxu0 0.0
        %465 = vmatpush1.msra.mxu0 0.0
        %466 = vmatprep.subr.mxu0 0.0
        %467 = vmatpush1.msra.mxu0 0.0
        %468 = vmatprep.subr.mxu0 0.0
        %469 = vmatpush1.msra.mxu0 0.0
        %470 = vmatprep.subr.mxu0 0.0
        %471 = vmatpush1.msra.mxu0 0.0
        %472 = vmatprep.subr.mxu0 0.0
        %473 = vmatpush1.msra.mxu0 0.0
        %474 = vmatprep.subr.mxu0 0.0
        %475 = vmatpush1.msra.mxu0 0.0
        %476 = vmatprep.subr.mxu0 0.0
        %477 = vmatpush1.msra.mxu0 0.0
        %478 = vmatprep.subr.mxu0 0.0
        %479 = vmatpush1.msra.mxu0 0.0
        %480 = vmatprep.subr.mxu0 0.0
        %481 = vmatpush1.msra.mxu0 0.0
        %482 = vmatprep.subr.mxu0 0.0
        %483 = vmatpush1.msra.mxu0 0.0
        %484 = vmatprep.subr.mxu0 0.0
        %485 = vmatpush1.msra.mxu0 0.0
        %486 = vmatprep.subr.mxu0 0.0
        %487 = vmatpush1.msra.mxu0 0.0
        %488 = vmatprep.subr.mxu0 0.0
        %489 = vmatpush1.msra.mxu0 0.0
        %490 = vmatprep.subr.mxu0 0.0
        %491 = vmatpush1.msra.mxu0 0.0
        %492 = vmatprep.subr.mxu0 0.0
        %493 = vmatpush1.msra.mxu0 0.0
        %494 = vmatprep.mubr.f32.mxu0 0.0
        %v495 = vand.u32 %v248, 4294901760
        %v496 = vsub.f32 %v248, %v495
        %497 = vmatmul.mubr.f32.gmra.mrb[0].mxu0 %v496
        %v498 = vpop.f32.mrb[0].mxu0
        %v499 = vadd.f32 %v418, %v498
        %v500 = vpop.f32.mrb[0].mxu0
        %v501 = vadd.f32 %v420, %v500
        %502 = vdwg.mxu0
        %v503 = vand.u32 %v225, 4294901760
        %504 = vmatprep.subr.mxu0 %v503
        %v505 = vand.u32 %v224, 4294901760
        %506 = vmatpush1.msra.mxu0 %v505
        %v507 = vand.u32 %v233, 4294901760
        %508 = vmatprep.subr.mxu0 %v507
        %v509 = vand.u32 %v232, 4294901760
        %510 = vmatpush1.msra.mxu0 %v509
        %511 = vmatprep.subr.mxu0 0.0
        %512 = vmatpush1.msra.mxu0 0.0
        %513 = vmatprep.subr.mxu0 0.0
        %514 = vmatpush1.msra.mxu0 0.0
        %515 = vmatprep.subr.mxu0 0.0
        %516 = vmatpush1.msra.mxu0 0.0
        %517 = vmatprep.subr.mxu0 0.0
        %518 = vmatpush1.msra.mxu0 0.0
        %519 = vmatprep.subr.mxu0 0.0
        %520 = vmatpush1.msra.mxu0 0.0
        %521 = vmatprep.subr.mxu0 0.0
        %522 = vmatpush1.msra.mxu0 0.0
        %523 = vmatprep.subr.mxu0 0.0
        %524 = vmatpush1.msra.mxu0 0.0
        %525 = vmatprep.subr.mxu0 0.0
        %526 = vmatpush1.msra.mxu0 0.0
        %527 = vmatprep.subr.mxu0 0.0
        %528 = vmatpush1.msra.mxu0 0.0
        %529 = vmatprep.subr.mxu0 0.0
        %530 = vmatpush1.msra.mxu0 0.0
        %531 = vmatprep.subr.mxu0 0.0
        %532 = vmatpush1.msra.mxu0 0.0
        %533 = vmatprep.subr.mxu0 0.0
        %534 = vmatpush1.msra.mxu0 0.0
        %535 = vmatprep.subr.mxu0 0.0
        %536 = vmatpush1.msra.mxu0 0.0
        %537 = vmatprep.subr.mxu0 0.0
        %538 = vmatpush1.msra.mxu0 0.0
        %539 = vmatprep.subr.mxu0 0.0
        %540 = vmatpush1.msra.mxu0 0.0
        %541 = vmatprep.subr.mxu0 0.0
        %542 = vmatpush1.msra.mxu0 0.0
        %543 = vmatprep.subr.mxu0 0.0
        %544 = vmatpush1.msra.mxu0 0.0
        %545 = vmatprep.subr.mxu0 0.0
        %546 = vmatpush1.msra.mxu0 0.0
        %547 = vmatprep.subr.mxu0 0.0
        %548 = vmatpush1.msra.mxu0 0.0
        %549 = vmatprep.subr.mxu0 0.0
        %550 = vmatpush1.msra.mxu0 0.0
        %551 = vmatprep.subr.mxu0 0.0
        %552 = vmatpush1.msra.mxu0 0.0
        %553 = vmatprep.subr.mxu0 0.0
        %554 = vmatpush1.msra.mxu0 0.0
        %555 = vmatprep.subr.mxu0 0.0
        %556 = vmatpush1.msra.mxu0 0.0
        %557 = vmatprep.subr.mxu0 0.0
        %558 = vmatpush1.msra.mxu0 0.0
        %559 = vmatprep.subr.mxu0 0.0
        %560 = vmatpush1.msra.mxu0 0.0
        %561 = vmatprep.subr.mxu0 0.0
        %562 = vmatpush1.msra.mxu0 0.0
        %563 = vmatprep.subr.mxu0 0.0
        %564 = vmatpush1.msra.mxu0 0.0
        %565 = vmatprep.subr.mxu0 0.0
        %566 = vmatpush1.msra.mxu0 0.0
        %567 = vmatprep.subr.mxu0 0.0
        %568 = vmatpush1.msra.mxu0 0.0
        %569 = vmatprep.subr.mxu0 0.0
        %570 = vmatpush1.msra.mxu0 0.0
        %571 = vmatprep.mubr.f32.mxu0 0.0
        %v572 = vand.u32 %v248, 4294901760
        %v573 = vsub.f32 %v248, %v572
        %v574 = vand.u32 %v573, 4294901760
        %575 = vmatmul.mubr.f32.gmra.mrb[0].mxu0 %v574
        %v576 = vpop.f32.mrb[0].mxu0
        %v577 = vadd.f32 %v499, %v576
        %v578 = vpop.f32.mrb[0].mxu0
        %v579 = vadd.f32 %v501, %v578
        %580 = vdwg.mxu0
        %v581 = vand.u32 %v225, 4294901760
        %v582 = vsub.f32 %v225, %v581
        %v583 = vand.u32 %v582, 4294901760
        %584 = vmatprep.subr.mxu0 %v583
        %v585 = vand.u32 %v224, 4294901760
        %v586 = vsub.f32 %v224, %v585
        %v587 = vand.u32 %v586, 4294901760
        %588 = vmatpush1.msra.mxu0 %v587
        %v589 = vand.u32 %v233, 4294901760
        %v590 = vsub.f32 %v233, %v589
        %v591 = vand.u32 %v590, 4294901760
        %592 = vmatprep.subr.mxu0 %v591
        %v593 = vand.u32 %v232, 4294901760
        %v594 = vsub.f32 %v232, %v593
        %v595 = vand.u32 %v594, 4294901760
        %596 = vmatpush1.msra.mxu0 %v595
        %597 = vmatprep.subr.mxu0 0.0
        %598 = vmatpush1.msra.mxu0 0.0
        %599 = vmatprep.subr.mxu0 0.0
        %600 = vmatpush1.msra.mxu0 0.0
        %601 = vmatprep.subr.mxu0 0.0
        %602 = vmatpush1.msra.mxu0 0.0
        %603 = vmatprep.subr.mxu0 0.0
        %604 = vmatpush1.msra.mxu0 0.0
        %605 = vmatprep.subr.mxu0 0.0
        %606 = vmatpush1.msra.mxu0 0.0
        %607 = vmatprep.subr.mxu0 0.0
        %608 = vmatpush1.msra.mxu0 0.0
        %609 = vmatprep.subr.mxu0 0.0
        %610 = vmatpush1.msra.mxu0 0.0
        %611 = vmatprep.subr.mxu0 0.0
        %612 = vmatpush1.msra.mxu0 0.0
        %613 = vmatprep.subr.mxu0 0.0
        %614 = vmatpush1.msra.mxu0 0.0
        %615 = vmatprep.subr.mxu0 0.0
        %616 = vmatpush1.msra.mxu0 0.0
        %617 = vmatprep.subr.mxu0 0.0
        %618 = vmatpush1.msra.mxu0 0.0
        %619 = vmatprep.subr.mxu0 0.0
        %620 = vmatpush1.msra.mxu0 0.0
        %621 = vmatprep.subr.mxu0 0.0
        %622 = vmatpush1.msra.mxu0 0.0
        %623 = vmatprep.subr.mxu0 0.0
        %624 = vmatpush1.msra.mxu0 0.0
        %625 = vmatprep.subr.mxu0 0.0
        %626 = vmatpush1.msra.mxu0 0.0
        %627 = vmatprep.subr.mxu0 0.0
        %628 = vmatpush1.msra.mxu0 0.0
        %629 = vmatprep.subr.mxu0 0.0
        %630 = vmatpush1.msra.mxu0 0.0
        %631 = vmatprep.subr.mxu0 0.0
        %632 = vmatpush1.msra.mxu0 0.0
        %633 = vmatprep.subr.mxu0 0.0
        %634 = vmatpush1.msra.mxu0 0.0
        %635 = vmatprep.subr.mxu0 0.0
        %636 = vmatpush1.msra.mxu0 0.0
        %637 = vmatprep.subr.mxu0 0.0
        %638 = vmatpush1.msra.mxu0 0.0
        %639 = vmatprep.subr.mxu0 0.0
        %640 = vmatpush1.msra.mxu0 0.0
        %641 = vmatprep.subr.mxu0 0.0
        %642 = vmatpush1.msra.mxu0 0.0
        %643 = vmatprep.subr.mxu0 0.0
        %644 = vmatpush1.msra.mxu0 0.0
        %645 = vmatprep.subr.mxu0 0.0
        %646 = vmatpush1.msra.mxu0 0.0
        %647 = vmatprep.subr.mxu0 0.0
        %648 = vmatpush1.msra.mxu0 0.0
        %649 = vmatprep.subr.mxu0 0.0
        %650 = vmatpush1.msra.mxu0 0.0
        %651 = vmatprep.subr.mxu0 0.0
        %652 = vmatpush1.msra.mxu0 0.0
        %653 = vmatprep.subr.mxu0 0.0
        %654 = vmatpush1.msra.mxu0 0.0
        %655 = vmatprep.subr.mxu0 0.0
        %656 = vmatpush1.msra.mxu0 0.0
        %657 = vmatprep.mubr.f32.mxu0 0.0
        %v658 = vand.u32 %v248, 4294901760
        %659 = vmatmul.mubr.f32.gmra.mrb[0].mxu0 %v658
        %v660 = vpop.f32.mrb[0].mxu0
        %v661 = vadd.f32 %v577, %v660
        %v662 = vpop.f32.mrb[0].mxu0
        %v663 = vadd.f32 %v579, %v662
        %664 = vdwg.mxu0
        %v665 = vand.u32 %v225, 4294901760
        %666 = vmatprep.subr.mxu0 %v665
        %v667 = vand.u32 %v224, 4294901760
        %668 = vmatpush1.msra.mxu0 %v667
        %v669 = vand.u32 %v233, 4294901760
        %670 = vmatprep.subr.mxu0 %v669
        %v671 = vand.u32 %v232, 4294901760
        %672 = vmatpush1.msra.mxu0 %v671
        %673 = vmatprep.subr.mxu0 0.0
        %674 = vmatpush1.msra.mxu0 0.0
        %675 = vmatprep.subr.mxu0 0.0
        %676 = vmatpush1.msra.mxu0 0.0
        %677 = vmatprep.subr.mxu0 0.0
        %678 = vmatpush1.msra.mxu0 0.0
        %679 = vmatprep.subr.mxu0 0.0
        %680 = vmatpush1.msra.mxu0 0.0
        %681 = vmatprep.subr.mxu0 0.0
        %682 = vmatpush1.msra.mxu0 0.0
        %683 = vmatprep.subr.mxu0 0.0
        %684 = vmatpush1.msra.mxu0 0.0
        %685 = vmatprep.subr.mxu0 0.0
        %686 = vmatpush1.msra.mxu0 0.0
        %687 = vmatprep.subr.mxu0 0.0
        %688 = vmatpush1.msra.mxu0 0.0
        %689 = vmatprep.subr.mxu0 0.0
        %690 = vmatpush1.msra.mxu0 0.0
        %691 = vmatprep.subr.mxu0 0.0
        %692 = vmatpush1.msra.mxu0 0.0
        %693 = vmatprep.subr.mxu0 0.0
        %694 = vmatpush1.msra.mxu0 0.0
        %695 = vmatprep.subr.mxu0 0.0
        %696 = vmatpush1.msra.mxu0 0.0
        %697 = vmatprep.subr.mxu0 0.0
        %698 = vmatpush1.msra.mxu0 0.0
        %699 = vmatprep.subr.mxu0 0.0
        %700 = vmatpush1.msra.mxu0 0.0
        %701 = vmatprep.subr.mxu0 0.0
        %702 = vmatpush1.msra.mxu0 0.0
        %703 = vmatprep.subr.mxu0 0.0
        %704 = vmatpush1.msra.mxu0 0.0
        %705 = vmatprep.subr.mxu0 0.0
        %706 = vmatpush1.msra.mxu0 0.0
        %707 = vmatprep.subr.mxu0 0.0
        %708 = vmatpush1.msra.mxu0 0.0
        %709 = vmatprep.subr.mxu0 0.0
        %710 = vmatpush1.msra.mxu0 0.0
        %711 = vmatprep.subr.mxu0 0.0
        %712 = vmatpush1.msra.mxu0 0.0
        %713 = vmatprep.subr.mxu0 0.0
        %714 = vmatpush1.msra.mxu0 0.0
        %715 = vmatprep.subr.mxu0 0.0
        %716 = vmatpush1.msra.mxu0 0.0
        %717 = vmatprep.subr.mxu0 0.0
        %718 = vmatpush1.msra.mxu0 0.0
        %719 = vmatprep.subr.mxu0 0.0
        %720 = vmatpush1.msra.mxu0 0.0
        %721 = vmatprep.subr.mxu0 0.0
        %722 = vmatpush1.msra.mxu0 0.0
        %723 = vmatprep.subr.mxu0 0.0
        %724 = vmatpush1.msra.mxu0 0.0
        %725 = vmatprep.subr.mxu0 0.0
        %726 = vmatpush1.msra.mxu0 0.0
        %727 = vmatprep.subr.mxu0 0.0
        %728 = vmatpush1.msra.mxu0 0.0
        %729 = vmatprep.subr.mxu0 0.0
        %730 = vmatpush1.msra.mxu0 0.0
        %731 = vmatprep.subr.mxu0 0.0
        %732 = vmatpush1.msra.mxu0 0.0
        %733 = vmatprep.mubr.f32.mxu0 0.0
        %v734 = vand.u32 %v248, 4294901760
        %735 = vmatmul.mubr.f32.gmra.mrb[0].mxu0 %v734
        %v736 = vpop.f32.mrb[0].mxu0
        %v737 = vadd.f32 %v661, %v736
        %v738 = vpop.f32.mrb[0].mxu0
        %v739 = vadd.f32 %v663, %v738
        %740 = vdwg.mxu0
        %v741 = vand.u32 %v227, 4294901760
        %742 = vmatprep.subr.mxu0 %v741
        %v743 = vand.u32 %v226, 4294901760
        %744 = vmatpush1.msra.mxu0 %v743
        %v745 = vand.u32 %v235, 4294901760
        %746 = vmatprep.subr.mxu0 %v745
        %v747 = vand.u32 %v234, 4294901760
        %748 = vmatpush1.msra.mxu0 %v747
        %749 = vmatprep.subr.mxu0 0.0
        %750 = vmatpush1.msra.mxu0 0.0
        %751 = vmatprep.subr.mxu0 0.0
        %752 = vmatpush1.msra.mxu0 0.0
        %753 = vmatprep.subr.mxu0 0.0
        %754 = vmatpush1.msra.mxu0 0.0
        %755 = vmatprep.subr.mxu0 0.0
        %756 = vmatpush1.msra.mxu0 0.0
        %757 = vmatprep.subr.mxu0 0.0
        %758 = vmatpush1.msra.mxu0 0.0
        %759 = vmatprep.subr.mxu0 0.0
        %760 = vmatpush1.msra.mxu0 0.0
        %761 = vmatprep.subr.mxu0 0.0
        %762 = vmatpush1.msra.mxu0 0.0
        %763 = vmatprep.subr.mxu0 0.0
        %764 = vmatpush1.msra.mxu0 0.0
        %765 = vmatprep.subr.mxu0 0.0
        %766 = vmatpush1.msra.mxu0 0.0
        %767 = vmatprep.subr.mxu0 0.0
        %768 = vmatpush1.msra.mxu0 0.0
        %769 = vmatprep.subr.mxu0 0.0
        %770 = vmatpush1.msra.mxu0 0.0
        %771 = vmatprep.subr.mxu0 0.0
        %772 = vmatpush1.msra.mxu0 0.0
        %773 = vmatprep.subr.mxu0 0.0
        %774 = vmatpush1.msra.mxu0 0.0
        %775 = vmatprep.subr.mxu0 0.0
        %776 = vmatpush1.msra.mxu0 0.0
        %777 = vmatprep.subr.mxu0 0.0
        %778 = vmatpush1.msra.mxu0 0.0
        %779 = vmatprep.subr.mxu0 0.0
        %780 = vmatpush1.msra.mxu0 0.0
        %781 = vmatprep.subr.mxu0 0.0
        %782 = vmatpush1.msra.mxu0 0.0
        %783 = vmatprep.subr.mxu0 0.0
        %784 = vmatpush1.msra.mxu0 0.0
        %785 = vmatprep.subr.mxu0 0.0
        %786 = vmatpush1.msra.mxu0 0.0
        %787 = vmatprep.subr.mxu0 0.0
        %788 = vmatpush1.msra.mxu0 0.0
        %789 = vmatprep.subr.mxu0 0.0
        %790 = vmatpush1.msra.mxu0 0.0
        %791 = vmatprep.subr.mxu0 0.0
        %792 = vmatpush1.msra.mxu0 0.0
        %793 = vmatprep.subr.mxu0 0.0
        %794 = vmatpush1.msra.mxu0 0.0
        %795 = vmatprep.subr.mxu0 0.0
        %796 = vmatpush1.msra.mxu0 0.0
        %797 = vmatprep.subr.mxu0 0.0
        %798 = vmatpush1.msra.mxu0 0.0
        %799 = vmatprep.subr.mxu0 0.0
        %800 = vmatpush1.msra.mxu0 0.0
        %801 = vmatprep.subr.mxu0 0.0
        %802 = vmatpush1.msra.mxu0 0.0
        %803 = vmatprep.subr.mxu0 0.0
        %804 = vmatpush1.msra.mxu0 0.0
        %805 = vmatprep.subr.mxu0 0.0
        %806 = vmatpush1.msra.mxu0 0.0
        %807 = vmatprep.subr.mxu0 0.0
        %808 = vmatpush1.msra.mxu0 0.0
        %809 = vmatprep.mubr.f32.mxu0 0.0
        %v810 = vand.u32 %v248, 4294901760
        %v811 = vsub.f32 %v248, %v810
        %v812 = vand.u32 %v811, 4294901760
        %v813 = vsub.f32 %v811, %v812
        %v814 = vand.u32 %v813, 4294901760
        %815 = vmatmul.mubr.f32.gmra.mrb[0].mxu0 %v814
        %v816 = vpop.f32.mrb[0].mxu0
        %v817 = vadd.f32 %v244, %v816
        %v818 = vpop.f32.mrb[0].mxu0
        %v819 = vadd.f32 %v244, %v818
        %820 = vdwg.mxu0
        %v821 = vand.u32 %v227, 4294901760
        %v822 = vsub.f32 %v227, %v821
        %v823 = vand.u32 %v822, 4294901760
        %v824 = vsub.f32 %v822, %v823
        %v825 = vand.u32 %v824, 4294901760
        %826 = vmatprep.subr.mxu0 %v825
        %v827 = vand.u32 %v226, 4294901760
        %v828 = vsub.f32 %v226, %v827
        %v829 = vand.u32 %v828, 4294901760
        %v830 = vsub.f32 %v828, %v829
        %v831 = vand.u32 %v830, 4294901760
        %832 = vmatpush1.msra.mxu0 %v831
        %v833 = vand.u32 %v235, 4294901760
        %v834 = vsub.f32 %v235, %v833
        %v835 = vand.u32 %v834, 4294901760
        %v836 = vsub.f32 %v834, %v835
        %v837 = vand.u32 %v836, 4294901760
        %838 = vmatprep.subr.mxu0 %v837
        %v839 = vand.u32 %v234, 4294901760
        %v840 = vsub.f32 %v234, %v839
        %v841 = vand.u32 %v840, 4294901760
        %v842 = vsub.f32 %v840, %v841
        %v843 = vand.u32 %v842, 4294901760
        %844 = vmatpush1.msra.mxu0 %v843
        %845 = vmatprep.subr.mxu0 0.0
        %846 = vmatpush1.msra.mxu0 0.0
        %847 = vmatprep.subr.mxu0 0.0
        %848 = vmatpush1.msra.mxu0 0.0
        %849 = vmatprep.subr.mxu0 0.0
        %850 = vmatpush1.msra.mxu0 0.0
        %851 = vmatprep.subr.mxu0 0.0
        %852 = vmatpush1.msra.mxu0 0.0
        %853 = vmatprep.subr.mxu0 0.0
        %854 = vmatpush1.msra.mxu0 0.0
        %855 = vmatprep.subr.mxu0 0.0
        %856 = vmatpush1.msra.mxu0 0.0
        %857 = vmatprep.subr.mxu0 0.0
        %858 = vmatpush1.msra.mxu0 0.0
        %859 = vmatprep.subr.mxu0 0.0
        %860 = vmatpush1.msra.mxu0 0.0
        %861 = vmatprep.subr.mxu0 0.0
        %862 = vmatpush1.msra.mxu0 0.0
        %863 = vmatprep.subr.mxu0 0.0
        %864 = vmatpush1.msra.mxu0 0.0
        %865 = vmatprep.subr.mxu0 0.0
        %866 = vmatpush1.msra.mxu0 0.0
        %867 = vmatprep.subr.mxu0 0.0
        %868 = vmatpush1.msra.mxu0 0.0
        %869 = vmatprep.subr.mxu0 0.0
        %870 = vmatpush1.msra.mxu0 0.0
        %871 = vmatprep.subr.mxu0 0.0
        %872 = vmatpush1.msra.mxu0 0.0
        %873 = vmatprep.subr.mxu0 0.0
        %874 = vmatpush1.msra.mxu0 0.0
        %875 = vmatprep.subr.mxu0 0.0
        %876 = vmatpush1.msra.mxu0 0.0
        %877 = vmatprep.subr.mxu0 0.0
        %878 = vmatpush1.msra.mxu0 0.0
        %879 = vmatprep.subr.mxu0 0.0
        %880 = vmatpush1.msra.mxu0 0.0
        %881 = vmatprep.subr.mxu0 0.0
        %882 = vmatpush1.msra.mxu0 0.0
        %883 = vmatprep.subr.mxu0 0.0
        %884 = vmatpush1.msra.mxu0 0.0
        %885 = vmatprep.subr.mxu0 0.0
        %886 = vmatpush1.msra.mxu0 0.0
        %887 = vmatprep.subr.mxu0 0.0
        %888 = vmatpush1.msra.mxu0 0.0
        %889 = vmatprep.subr.mxu0 0.0
        %890 = vmatpush1.msra.mxu0 0.0
        %891 = vmatprep.subr.mxu0 0.0
        %892 = vmatpush1.msra.mxu0 0.0
        %893 = vmatprep.subr.mxu0 0.0
        %894 = vmatpush1.msra.mxu0 0.0
        %895 = vmatprep.subr.mxu0 0.0
        %896 = vmatpush1.msra.mxu0 0.0
        %897 = vmatprep.subr.mxu0 0.0
        %898 = vmatpush1.msra.mxu0 0.0
        %899 = vmatprep.subr.mxu0 0.0
        %900 = vmatpush1.msra.mxu0 0.0
        %901 = vmatprep.subr.mxu0 0.0
        %902 = vmatpush1.msra.mxu0 0.0
        %903 = vmatprep.subr.mxu0 0.0
        %904 = vmatpush1.msra.mxu0 0.0
        %905 = vmatprep.mubr.f32.mxu0 0.0
        %v906 = vand.u32 %v248, 4294901760
        %907 = vmatmul.mubr.f32.gmra.mrb[0].mxu0 %v906
        %v908 = vpop.f32.mrb[0].mxu0
        %v909 = vadd.f32 %v817, %v908
        %v910 = vpop.f32.mrb[0].mxu0
        %v911 = vadd.f32 %v819, %v910
        %912 = vdwg.mxu0
        %v913 = vand.u32 %v227, 4294901760
        %v914 = vsub.f32 %v227, %v913
        %915 = vmatprep.subr.mxu0 %v914
        %v916 = vand.u32 %v226, 4294901760
        %v917 = vsub.f32 %v226, %v916
        %918 = vmatpush1.msra.mxu0 %v917
        %v919 = vand.u32 %v235, 4294901760
        %v920 = vsub.f32 %v235, %v919
        %921 = vmatprep.subr.mxu0 %v920
        %v922 = vand.u32 %v234, 4294901760
        %v923 = vsub.f32 %v234, %v922
        %924 = vmatpush1.msra.mxu0 %v923
        %925 = vmatprep.subr.mxu0 0.0
        %926 = vmatpush1.msra.mxu0 0.0
        %927 = vmatprep.subr.mxu0 0.0
        %928 = vmatpush1.msra.mxu0 0.0
        %929 = vmatprep.subr.mxu0 0.0
        %930 = vmatpush1.msra.mxu0 0.0
        %931 = vmatprep.subr.mxu0 0.0
        %932 = vmatpush1.msra.mxu0 0.0
        %933 = vmatprep.subr.mxu0 0.0
        %934 = vmatpush1.msra.mxu0 0.0
        %935 = vmatprep.subr.mxu0 0.0
        %936 = vmatpush1.msra.mxu0 0.0
        %937 = vmatprep.subr.mxu0 0.0
        %938 = vmatpush1.msra.mxu0 0.0
        %939 = vmatprep.subr.mxu0 0.0
        %940 = vmatpush1.msra.mxu0 0.0
        %941 = vmatprep.subr.mxu0 0.0
        %942 = vmatpush1.msra.mxu0 0.0
        %943 = vmatprep.subr.mxu0 0.0
        %944 = vmatpush1.msra.mxu0 0.0
        %945 = vmatprep.subr.mxu0 0.0
        %946 = vmatpush1.msra.mxu0 0.0
        %947 = vmatprep.subr.mxu0 0.0
        %948 = vmatpush1.msra.mxu0 0.0
        %949 = vmatprep.subr.mxu0 0.0
        %950 = vmatpush1.msra.mxu0 0.0
        %951 = vmatprep.subr.mxu0 0.0
        %952 = vmatpush1.msra.mxu0 0.0
        %953 = vmatprep.subr.mxu0 0.0
        %954 = vmatpush1.msra.mxu0 0.0
        %955 = vmatprep.subr.mxu0 0.0
        %956 = vmatpush1.msra.mxu0 0.0
        %957 = vmatprep.subr.mxu0 0.0
        %958 = vmatpush1.msra.mxu0 0.0
        %959 = vmatprep.subr.mxu0 0.0
        %960 = vmatpush1.msra.mxu0 0.0
        %961 = vmatprep.subr.mxu0 0.0
        %962 = vmatpush1.msra.mxu0 0.0
        %963 = vmatprep.subr.mxu0 0.0
        %964 = vmatpush1.msra.mxu0 0.0
        %965 = vmatprep.subr.mxu0 0.0
        %966 = vmatpush1.msra.mxu0 0.0
        %967 = vmatprep.subr.mxu0 0.0
        %968 = vmatpush1.msra.mxu0 0.0
        %969 = vmatprep.subr.mxu0 0.0
        %970 = vmatpush1.msra.mxu0 0.0
        %971 = vmatprep.subr.mxu0 0.0
        %972 = vmatpush1.msra.mxu0 0.0
        %973 = vmatprep.subr.mxu0 0.0
        %974 = vmatpush1.msra.mxu0 0.0
        %975 = vmatprep.subr.mxu0 0.0
        %976 = vmatpush1.msra.mxu0 0.0
        %977 = vmatprep.subr.mxu0 0.0
        %978 = vmatpush1.msra.mxu0 0.0
        %979 = vmatprep.subr.mxu0 0.0
        %980 = vmatpush1.msra.mxu0 0.0
        %981 = vmatprep.subr.mxu0 0.0
        %982 = vmatpush1.msra.mxu0 0.0
        %983 = vmatprep.subr.mxu0 0.0
        %984 = vmatpush1.msra.mxu0 0.0
        %985 = vmatprep.mubr.f32.mxu0 0.0
        %v986 = vand.u32 %v248, 4294901760
        %v987 = vsub.f32 %v248, %v986
        %988 = vmatmul.mubr.f32.gmra.mrb[0].mxu0 %v987
        %v989 = vpop.f32.mrb[0].mxu0
        %v990 = vadd.f32 %v909, %v989
        %v991 = vpop.f32.mrb[0].mxu0
        %v992 = vadd.f32 %v911, %v991
        %993 = vdwg.mxu0
        %v994 = vand.u32 %v227, 4294901760
        %995 = vmatprep.subr.mxu0 %v994
        %v996 = vand.u32 %v226, 4294901760
        %997 = vmatpush1.msra.mxu0 %v996
        %v998 = vand.u32 %v235, 4294901760
        %999 = vmatprep.subr.mxu0 %v998
        %v1000 = vand.u32 %v234, 4294901760
        %1001 = vmatpush1.msra.mxu0 %v1000
        %1002 = vmatprep.subr.mxu0 0.0
        %1003 = vmatpush1.msra.mxu0 0.0
        %1004 = vmatprep.subr.mxu0 0.0
        %1005 = vmatpush1.msra.mxu0 0.0
        %1006 = vmatprep.subr.mxu0 0.0
        %1007 = vmatpush1.msra.mxu0 0.0
        %1008 = vmatprep.subr.mxu0 0.0
        %1009 = vmatpush1.msra.mxu0 0.0
        %1010 = vmatprep.subr.mxu0 0.0
        %1011 = vmatpush1.msra.mxu0 0.0
        %1012 = vmatprep.subr.mxu0 0.0
        %1013 = vmatpush1.msra.mxu0 0.0
        %1014 = vmatprep.subr.mxu0 0.0
        %1015 = vmatpush1.msra.mxu0 0.0
        %1016 = vmatprep.subr.mxu0 0.0
        %1017 = vmatpush1.msra.mxu0 0.0
        %1018 = vmatprep.subr.mxu0 0.0
        %1019 = vmatpush1.msra.mxu0 0.0
        %1020 = vmatprep.subr.mxu0 0.0
        %1021 = vmatpush1.msra.mxu0 0.0
        %1022 = vmatprep.subr.mxu0 0.0
        %1023 = vmatpush1.msra.mxu0 0.0
        %1024 = vmatprep.subr.mxu0 0.0
        %1025 = vmatpush1.msra.mxu0 0.0
        %1026 = vmatprep.subr.mxu0 0.0
        %1027 = vmatpush1.msra.mxu0 0.0
        %1028 = vmatprep.subr.mxu0 0.0
        %1029 = vmatpush1.msra.mxu0 0.0
        %1030 = vmatprep.subr.mxu0 0.0
        %1031 = vmatpush1.msra.mxu0 0.0
        %1032 = vmatprep.subr.mxu0 0.0
        %1033 = vmatpush1.msra.mxu0 0.0
        %1034 = vmatprep.subr.mxu0 0.0
        %1035 = vmatpush1.msra.mxu0 0.0
        %1036 = vmatprep.subr.mxu0 0.0
        %1037 = vmatpush1.msra.mxu0 0.0
        %1038 = vmatprep.subr.mxu0 0.0
        %1039 = vmatpush1.msra.mxu0 0.0
        %1040 = vmatprep.subr.mxu0 0.0
        %1041 = vmatpush1.msra.mxu0 0.0
        %1042 = vmatprep.subr.mxu0 0.0
        %1043 = vmatpush1.msra.mxu0 0.0
        %1044 = vmatprep.subr.mxu0 0.0
        %1045 = vmatpush1.msra.mxu0 0.0
        %1046 = vmatprep.subr.mxu0 0.0
        %1047 = vmatpush1.msra.mxu0 0.0
        %1048 = vmatprep.subr.mxu0 0.0
        %1049 = vmatpush1.msra.mxu0 0.0
        %1050 = vmatprep.subr.mxu0 0.0
        %1051 = vmatpush1.msra.mxu0 0.0
        %1052 = vmatprep.subr.mxu0 0.0
        %1053 = vmatpush1.msra.mxu0 0.0
        %1054 = vmatprep.subr.mxu0 0.0
        %1055 = vmatpush1.msra.mxu0 0.0
        %1056 = vmatprep.subr.mxu0 0.0
        %1057 = vmatpush1.msra.mxu0 0.0
        %1058 = vmatprep.subr.mxu0 0.0
        %1059 = vmatpush1.msra.mxu0 0.0
        %1060 = vmatprep.subr.mxu0 0.0
        %1061 = vmatpush1.msra.mxu0 0.0
        %1062 = vmatprep.mubr.f32.mxu0 0.0
        %v1063 = vand.u32 %v248, 4294901760
        %v1064 = vsub.f32 %v248, %v1063
        %v1065 = vand.u32 %v1064, 4294901760
        %1066 = vmatmul.mubr.f32.gmra.mrb[0].mxu0 %v1065
        %v1067 = vpop.f32.mrb[0].mxu0
        %v1068 = vadd.f32 %v990, %v1067
        %v1069 = vpop.f32.mrb[0].mxu0
        %v1070 = vadd.f32 %v992, %v1069
        %1071 = vdwg.mxu0
        %v1072 = vand.u32 %v227, 4294901760
        %v1073 = vsub.f32 %v227, %v1072
        %v1074 = vand.u32 %v1073, 4294901760
        %1075 = vmatprep.subr.mxu0 %v1074
        %v1076 = vand.u32 %v226, 4294901760
        %v1077 = vsub.f32 %v226, %v1076
        %v1078 = vand.u32 %v1077, 4294901760
        %1079 = vmatpush1.msra.mxu0 %v1078
        %v1080 = vand.u32 %v235, 4294901760
        %v1081 = vsub.f32 %v235, %v1080
        %v1082 = vand.u32 %v1081, 4294901760
        %1083 = vmatprep.subr.mxu0 %v1082
        %v1084 = vand.u32 %v234, 4294901760
        %v1085 = vsub.f32 %v234, %v1084
        %v1086 = vand.u32 %v1085, 4294901760
        %1087 = vmatpush1.msra.mxu0 %v1086
        %1088 = vmatprep.subr.mxu0 0.0
        %1089 = vmatpush1.msra.mxu0 0.0
        %1090 = vmatprep.subr.mxu0 0.0
        %1091 = vmatpush1.msra.mxu0 0.0
        %1092 = vmatprep.subr.mxu0 0.0
        %1093 = vmatpush1.msra.mxu0 0.0
        %1094 = vmatprep.subr.mxu0 0.0
        %1095 = vmatpush1.msra.mxu0 0.0
        %1096 = vmatprep.subr.mxu0 0.0
        %1097 = vmatpush1.msra.mxu0 0.0
        %1098 = vmatprep.subr.mxu0 0.0
        %1099 = vmatpush1.msra.mxu0 0.0
        %1100 = vmatprep.subr.mxu0 0.0
        %1101 = vmatpush1.msra.mxu0 0.0
        %1102 = vmatprep.subr.mxu0 0.0
        %1103 = vmatpush1.msra.mxu0 0.0
        %1104 = vmatprep.subr.mxu0 0.0
        %1105 = vmatpush1.msra.mxu0 0.0
        %1106 = vmatprep.subr.mxu0 0.0
        %1107 = vmatpush1.msra.mxu0 0.0
        %1108 = vmatprep.subr.mxu0 0.0
        %1109 = vmatpush1.msra.mxu0 0.0
        %1110 = vmatprep.subr.mxu0 0.0
        %1111 = vmatpush1.msra.mxu0 0.0
        %1112 = vmatprep.subr.mxu0 0.0
        %1113 = vmatpush1.msra.mxu0 0.0
        %1114 = vmatprep.subr.mxu0 0.0
        %1115 = vmatpush1.msra.mxu0 0.0
        %1116 = vmatprep.subr.mxu0 0.0
        %1117 = vmatpush1.msra.mxu0 0.0
        %1118 = vmatprep.subr.mxu0 0.0
        %1119 = vmatpush1.msra.mxu0 0.0
        %1120 = vmatprep.subr.mxu0 0.0
        %1121 = vmatpush1.msra.mxu0 0.0
        %1122 = vmatprep.subr.mxu0 0.0
        %1123 = vmatpush1.msra.mxu0 0.0
        %1124 = vmatprep.subr.mxu0 0.0
        %1125 = vmatpush1.msra.mxu0 0.0
        %1126 = vmatprep.subr.mxu0 0.0
        %1127 = vmatpush1.msra.mxu0 0.0
        %1128 = vmatprep.subr.mxu0 0.0
        %1129 = vmatpush1.msra.mxu0 0.0
        %1130 = vmatprep.subr.mxu0 0.0
        %1131 = vmatpush1.msra.mxu0 0.0
        %1132 = vmatprep.subr.mxu0 0.0
        %1133 = vmatpush1.msra.mxu0 0.0
        %1134 = vmatprep.subr.mxu0 0.0
        %1135 = vmatpush1.msra.mxu0 0.0
        %1136 = vmatprep.subr.mxu0 0.0
        %1137 = vmatpush1.msra.mxu0 0.0
        %1138 = vmatprep.subr.mxu0 0.0
        %1139 = vmatpush1.msra.mxu0 0.0
        %1140 = vmatprep.subr.mxu0 0.0
        %1141 = vmatpush1.msra.mxu0 0.0
        %1142 = vmatprep.subr.mxu0 0.0
        %1143 = vmatpush1.msra.mxu0 0.0
        %1144 = vmatprep.subr.mxu0 0.0
        %1145 = vmatpush1.msra.mxu0 0.0
        %1146 = vmatprep.subr.mxu0 0.0
        %1147 = vmatpush1.msra.mxu0 0.0
        %1148 = vmatprep.mubr.f32.mxu0 0.0
        %v1149 = vand.u32 %v248, 4294901760
        %1150 = vmatmul.mubr.f32.gmra.mrb[0].mxu0 %v1149
        %v1151 = vpop.f32.mrb[0].mxu0
        %v1152 = vadd.f32 %v1068, %v1151
        %v1153 = vpop.f32.mrb[0].mxu0
        %v1154 = vadd.f32 %v1070, %v1153
        %1155 = vdwg.mxu0
        %v1156 = vand.u32 %v227, 4294901760
        %1157 = vmatprep.subr.mxu0 %v1156
        %v1158 = vand.u32 %v226, 4294901760
        %1159 = vmatpush1.msra.mxu0 %v1158
        %v1160 = vand.u32 %v235, 4294901760
        %1161 = vmatprep.subr.mxu0 %v1160
        %v1162 = vand.u32 %v234, 4294901760
        %1163 = vmatpush1.msra.mxu0 %v1162
        %1164 = vmatprep.subr.mxu0 0.0
        %1165 = vmatpush1.msra.mxu0 0.0
        %1166 = vmatprep.subr.mxu0 0.0
        %1167 = vmatpush1.msra.mxu0 0.0
        %1168 = vmatprep.subr.mxu0 0.0
        %1169 = vmatpush1.msra.mxu0 0.0
        %1170 = vmatprep.subr.mxu0 0.0
        %1171 = vmatpush1.msra.mxu0 0.0
        %1172 = vmatprep.subr.mxu0 0.0
        %1173 = vmatpush1.msra.mxu0 0.0
        %1174 = vmatprep.subr.mxu0 0.0
        %1175 = vmatpush1.msra.mxu0 0.0
        %1176 = vmatprep.subr.mxu0 0.0
        %1177 = vmatpush1.msra.mxu0 0.0
        %1178 = vmatprep.subr.mxu0 0.0
        %1179 = vmatpush1.msra.mxu0 0.0
        %1180 = vmatprep.subr.mxu0 0.0
        %1181 = vmatpush1.msra.mxu0 0.0
        %1182 = vmatprep.subr.mxu0 0.0
        %1183 = vmatpush1.msra.mxu0 0.0
        %1184 = vmatprep.subr.mxu0 0.0
        %1185 = vmatpush1.msra.mxu0 0.0
        %1186 = vmatprep.subr.mxu0 0.0
        %1187 = vmatpush1.msra.mxu0 0.0
        %1188 = vmatprep.subr.mxu0 0.0
        %1189 = vmatpush1.msra.mxu0 0.0
        %1190 = vmatprep.subr.mxu0 0.0
        %1191 = vmatpush1.msra.mxu0 0.0
        %1192 = vmatprep.subr.mxu0 0.0
        %1193 = vmatpush1.msra.mxu0 0.0
        %1194 = vmatprep.subr.mxu0 0.0
        %1195 = vmatpush1.msra.mxu0 0.0
        %1196 = vmatprep.subr.mxu0 0.0
        %1197 = vmatpush1.msra.mxu0 0.0
        %1198 = vmatprep.subr.mxu0 0.0
        %1199 = vmatpush1.msra.mxu0 0.0
        %1200 = vmatprep.subr.mxu0 0.0
        %1201 = vmatpush1.msra.mxu0 0.0
        %1202 = vmatprep.subr.mxu0 0.0
        %1203 = vmatpush1.msra.mxu0 0.0
        %1204 = vmatprep.subr.mxu0 0.0
        %1205 = vmatpush1.msra.mxu0 0.0
        %1206 = vmatprep.subr.mxu0 0.0
        %1207 = vmatpush1.msra.mxu0 0.0
        %1208 = vmatprep.subr.mxu0 0.0
        %1209 = vmatpush1.msra.mxu0 0.0
        %1210 = vmatprep.subr.mxu0 0.0
        %1211 = vmatpush1.msra.mxu0 0.0
        %1212 = vmatprep.subr.mxu0 0.0
        %1213 = vmatpush1.msra.mxu0 0.0
        %1214 = vmatprep.subr.mxu0 0.0
        %1215 = vmatpush1.msra.mxu0 0.0
        %1216 = vmatprep.subr.mxu0 0.0
        %1217 = vmatpush1.msra.mxu0 0.0
        %1218 = vmatprep.subr.mxu0 0.0
        %1219 = vmatpush1.msra.mxu0 0.0
        %1220 = vmatprep.subr.mxu0 0.0
        %1221 = vmatpush1.msra.mxu0 0.0
        %1222 = vmatprep.subr.mxu0 0.0
        %1223 = vmatpush1.msra.mxu0 0.0
        %1224 = vmatprep.mubr.f32.mxu0 0.0
        %v1225 = vand.u32 %v248, 4294901760
        %1226 = vmatmul.mubr.f32.gmra.mrb[0].mxu0 %v1225
        %v1227 = vpop.f32.mrb[0].mxu0
        %v1228 = vadd.f32 %v1152, %v1227
        %v1229 = vpop.f32.mrb[0].mxu0
        %v1230 = vadd.f32 %v1154, %v1229
        %1231 = vdwg.mxu0
        %v1232 = vand.u32 %v229, 4294901760
        %1233 = vmatprep.subr.mxu0 %v1232
        %v1234 = vand.u32 %v228, 4294901760
        %1235 = vmatpush1.msra.mxu0 %v1234
        %v1236 = vand.u32 %v237, 4294901760
        %1237 = vmatprep.subr.mxu0 %v1236
        %v1238 = vand.u32 %v236, 4294901760
        %1239 = vmatpush1.msra.mxu0 %v1238
        %1240 = vmatprep.subr.mxu0 0.0
        %1241 = vmatpush1.msra.mxu0 0.0
        %1242 = vmatprep.subr.mxu0 0.0
        %1243 = vmatpush1.msra.mxu0 0.0
        %1244 = vmatprep.subr.mxu0 0.0
        %1245 = vmatpush1.msra.mxu0 0.0
        %1246 = vmatprep.subr.mxu0 0.0
        %1247 = vmatpush1.msra.mxu0 0.0
        %1248 = vmatprep.subr.mxu0 0.0
        %1249 = vmatpush1.msra.mxu0 0.0
        %1250 = vmatprep.subr.mxu0 0.0
        %1251 = vmatpush1.msra.mxu0 0.0
        %1252 = vmatprep.subr.mxu0 0.0
        %1253 = vmatpush1.msra.mxu0 0.0
        %1254 = vmatprep.subr.mxu0 0.0
        %1255 = vmatpush1.msra.mxu0 0.0
        %1256 = vmatprep.subr.mxu0 0.0
        %1257 = vmatpush1.msra.mxu0 0.0
        %1258 = vmatprep.subr.mxu0 0.0
        %1259 = vmatpush1.msra.mxu0 0.0
        %1260 = vmatprep.subr.mxu0 0.0
        %1261 = vmatpush1.msra.mxu0 0.0
        %1262 = vmatprep.subr.mxu0 0.0
        %1263 = vmatpush1.msra.mxu0 0.0
        %1264 = vmatprep.subr.mxu0 0.0
        %1265 = vmatpush1.msra.mxu0 0.0
        %1266 = vmatprep.subr.mxu0 0.0
        %1267 = vmatpush1.msra.mxu0 0.0
        %1268 = vmatprep.subr.mxu0 0.0
        %1269 = vmatpush1.msra.mxu0 0.0
        %1270 = vmatprep.subr.mxu0 0.0
        %1271 = vmatpush1.msra.mxu0 0.0
        %1272 = vmatprep.subr.mxu0 0.0
        %1273 = vmatpush1.msra.mxu0 0.0
        %1274 = vmatprep.subr.mxu0 0.0
        %1275 = vmatpush1.msra.mxu0 0.0
        %1276 = vmatprep.subr.mxu0 0.0
        %1277 = vmatpush1.msra.mxu0 0.0
        %1278 = vmatprep.subr.mxu0 0.0
        %1279 = vmatpush1.msra.mxu0 0.0
        %1280 = vmatprep.subr.mxu0 0.0
        %1281 = vmatpush1.msra.mxu0 0.0
        %1282 = vmatprep.subr.mxu0 0.0
        %1283 = vmatpush1.msra.mxu0 0.0
        %1284 = vmatprep.subr.mxu0 0.0
        %1285 = vmatpush1.msra.mxu0 0.0
        %1286 = vmatprep.subr.mxu0 0.0
        %1287 = vmatpush1.msra.mxu0 0.0
        %1288 = vmatprep.subr.mxu0 0.0
        %1289 = vmatpush1.msra.mxu0 0.0
        %1290 = vmatprep.subr.mxu0 0.0
        %1291 = vmatpush1.msra.mxu0 0.0
        %1292 = vmatprep.subr.mxu0 0.0
        %1293 = vmatpush1.msra.mxu0 0.0
        %1294 = vmatprep.subr.mxu0 0.0
        %1295 = vmatpush1.msra.mxu0 0.0
        %1296 = vmatprep.subr.mxu0 0.0
        %1297 = vmatpush1.msra.mxu0 0.0
        %1298 = vmatprep.subr.mxu0 0.0
        %1299 = vmatpush1.msra.mxu0 0.0
        %1300 = vmatprep.mubr.f32.mxu0 0.0
        %v1301 = vand.u32 %v248, 4294901760
        %v1302 = vsub.f32 %v248, %v1301
        %v1303 = vand.u32 %v1302, 4294901760
        %v1304 = vsub.f32 %v1302, %v1303
        %v1305 = vand.u32 %v1304, 4294901760
        %1306 = vmatmul.mubr.f32.gmra.mrb[0].mxu0 %v1305
        %v1307 = vpop.f32.mrb[0].mxu0
        %v1308 = vadd.f32 %v244, %v1307
        %v1309 = vpop.f32.mrb[0].mxu0
        %v1310 = vadd.f32 %v244, %v1309
        %1311 = vdwg.mxu0
        %v1312 = vand.u32 %v229, 4294901760
        %v1313 = vsub.f32 %v229, %v1312
        %v1314 = vand.u32 %v1313, 4294901760
        %v1315 = vsub.f32 %v1313, %v1314
        %v1316 = vand.u32 %v1315, 4294901760
        %1317 = vmatprep.subr.mxu0 %v1316
        %v1318 = vand.u32 %v228, 4294901760
        %v1319 = vsub.f32 %v228, %v1318
        %v1320 = vand.u32 %v1319, 4294901760
        %v1321 = vsub.f32 %v1319, %v1320
        %v1322 = vand.u32 %v1321, 4294901760
        %1323 = vmatpush1.msra.mxu0 %v1322
        %v1324 = vand.u32 %v237, 4294901760
        %v1325 = vsub.f32 %v237, %v1324
        %v1326 = vand.u32 %v1325, 4294901760
        %v1327 = vsub.f32 %v1325, %v1326
        %v1328 = vand.u32 %v1327, 4294901760
        %1329 = vmatprep.subr.mxu0 %v1328
        %v1330 = vand.u32 %v236, 4294901760
        %v1331 = vsub.f32 %v236, %v1330
        %v1332 = vand.u32 %v1331, 4294901760
        %v1333 = vsub.f32 %v1331, %v1332
        %v1334 = vand.u32 %v1333, 4294901760
        %1335 = vmatpush1.msra.mxu0 %v1334
        %1336 = vmatprep.subr.mxu0 0.0
        %1337 = vmatpush1.msra.mxu0 0.0
        %1338 = vmatprep.subr.mxu0 0.0
        %1339 = vmatpush1.msra.mxu0 0.0
        %1340 = vmatprep.subr.mxu0 0.0
        %1341 = vmatpush1.msra.mxu0 0.0
        %1342 = vmatprep.subr.mxu0 0.0
        %1343 = vmatpush1.msra.mxu0 0.0
        %1344 = vmatprep.subr.mxu0 0.0
        %1345 = vmatpush1.msra.mxu0 0.0
        %1346 = vmatprep.subr.mxu0 0.0
        %1347 = vmatpush1.msra.mxu0 0.0
        %1348 = vmatprep.subr.mxu0 0.0
        %1349 = vmatpush1.msra.mxu0 0.0
        %1350 = vmatprep.subr.mxu0 0.0
        %1351 = vmatpush1.msra.mxu0 0.0
        %1352 = vmatprep.subr.mxu0 0.0
        %1353 = vmatpush1.msra.mxu0 0.0
        %1354 = vmatprep.subr.mxu0 0.0
        %1355 = vmatpush1.msra.mxu0 0.0
        %1356 = vmatprep.subr.mxu0 0.0
        %1357 = vmatpush1.msra.mxu0 0.0
        %1358 = vmatprep.subr.mxu0 0.0
        %1359 = vmatpush1.msra.mxu0 0.0
        %1360 = vmatprep.subr.mxu0 0.0
        %1361 = vmatpush1.msra.mxu0 0.0
        %1362 = vmatprep.subr.mxu0 0.0
        %1363 = vmatpush1.msra.mxu0 0.0
        %1364 = vmatprep.subr.mxu0 0.0
        %1365 = vmatpush1.msra.mxu0 0.0
        %1366 = vmatprep.subr.mxu0 0.0
        %1367 = vmatpush1.msra.mxu0 0.0
        %1368 = vmatprep.subr.mxu0 0.0
        %1369 = vmatpush1.msra.mxu0 0.0
        %1370 = vmatprep.subr.mxu0 0.0
        %1371 = vmatpush1.msra.mxu0 0.0
        %1372 = vmatprep.subr.mxu0 0.0
        %1373 = vmatpush1.msra.mxu0 0.0
        %1374 = vmatprep.subr.mxu0 0.0
        %1375 = vmatpush1.msra.mxu0 0.0
        %1376 = vmatprep.subr.mxu0 0.0
        %1377 = vmatpush1.msra.mxu0 0.0
        %1378 = vmatprep.subr.mxu0 0.0
        %1379 = vmatpush1.msra.mxu0 0.0
        %1380 = vmatprep.subr.mxu0 0.0
        %1381 = vmatpush1.msra.mxu0 0.0
        %1382 = vmatprep.subr.mxu0 0.0
        %1383 = vmatpush1.msra.mxu0 0.0
        %1384 = vmatprep.subr.mxu0 0.0
        %1385 = vmatpush1.msra.mxu0 0.0
        %1386 = vmatprep.subr.mxu0 0.0
        %1387 = vmatpush1.msra.mxu0 0.0
        %1388 = vmatprep.subr.mxu0 0.0
        %1389 = vmatpush1.msra.mxu0 0.0
        %1390 = vmatprep.subr.mxu0 0.0
        %1391 = vmatpush1.msra.mxu0 0.0
        %1392 = vmatprep.subr.mxu0 0.0
        %1393 = vmatpush1.msra.mxu0 0.0
        %1394 = vmatprep.subr.mxu0 0.0
        %1395 = vmatpush1.msra.mxu0 0.0
        %1396 = vmatprep.mubr.f32.mxu0 0.0
        %v1397 = vand.u32 %v248, 4294901760
        %1398 = vmatmul.mubr.f32.gmra.mrb[0].mxu0 %v1397
        %v1399 = vpop.f32.mrb[0].mxu0
        %v1400 = vadd.f32 %v1308, %v1399
        %v1401 = vpop.f32.mrb[0].mxu0
        %v1402 = vadd.f32 %v1310, %v1401
        %1403 = vdwg.mxu0
        %v1404 = vand.u32 %v229, 4294901760
        %v1405 = vsub.f32 %v229, %v1404
        %1406 = vmatprep.subr.mxu0 %v1405
        %v1407 = vand.u32 %v228, 4294901760
        %v1408 = vsub.f32 %v228, %v1407
        %1409 = vmatpush1.msra.mxu0 %v1408
        %v1410 = vand.u32 %v237, 4294901760
        %v1411 = vsub.f32 %v237, %v1410
        %1412 = vmatprep.subr.mxu0 %v1411
        %v1413 = vand.u32 %v236, 4294901760
        %v1414 = vsub.f32 %v236, %v1413
        %1415 = vmatpush1.msra.mxu0 %v1414
        %1416 = vmatprep.subr.mxu0 0.0
        %1417 = vmatpush1.msra.mxu0 0.0
        %1418 = vmatprep.subr.mxu0 0.0
        %1419 = vmatpush1.msra.mxu0 0.0
        %1420 = vmatprep.subr.mxu0 0.0
        %1421 = vmatpush1.msra.mxu0 0.0
        %1422 = vmatprep.subr.mxu0 0.0
        %1423 = vmatpush1.msra.mxu0 0.0
        %1424 = vmatprep.subr.mxu0 0.0
        %1425 = vmatpush1.msra.mxu0 0.0
        %1426 = vmatprep.subr.mxu0 0.0
        %1427 = vmatpush1.msra.mxu0 0.0
        %1428 = vmatprep.subr.mxu0 0.0
        %1429 = vmatpush1.msra.mxu0 0.0
        %1430 = vmatprep.subr.mxu0 0.0
        %1431 = vmatpush1.msra.mxu0 0.0
        %1432 = vmatprep.subr.mxu0 0.0
        %1433 = vmatpush1.msra.mxu0 0.0
        %1434 = vmatprep.subr.mxu0 0.0
        %1435 = vmatpush1.msra.mxu0 0.0
        %1436 = vmatprep.subr.mxu0 0.0
        %1437 = vmatpush1.msra.mxu0 0.0
        %1438 = vmatprep.subr.mxu0 0.0
        %1439 = vmatpush1.msra.mxu0 0.0
        %1440 = vmatprep.subr.mxu0 0.0
        %1441 = vmatpush1.msra.mxu0 0.0
        %1442 = vmatprep.subr.mxu0 0.0
        %1443 = vmatpush1.msra.mxu0 0.0
        %1444 = vmatprep.subr.mxu0 0.0
        %1445 = vmatpush1.msra.mxu0 0.0
        %1446 = vmatprep.subr.mxu0 0.0
        %1447 = vmatpush1.msra.mxu0 0.0
        %1448 = vmatprep.subr.mxu0 0.0
        %1449 = vmatpush1.msra.mxu0 0.0
        %1450 = vmatprep.subr.mxu0 0.0
        %1451 = vmatpush1.msra.mxu0 0.0
        %1452 = vmatprep.subr.mxu0 0.0
        %1453 = vmatpush1.msra.mxu0 0.0
        %1454 = vmatprep.subr.mxu0 0.0
        %1455 = vmatpush1.msra.mxu0 0.0
        %1456 = vmatprep.subr.mxu0 0.0
        %1457 = vmatpush1.msra.mxu0 0.0
        %1458 = vmatprep.subr.mxu0 0.0
        %1459 = vmatpush1.msra.mxu0 0.0
        %1460 = vmatprep.subr.mxu0 0.0
        %1461 = vmatpush1.msra.mxu0 0.0
        %1462 = vmatprep.subr.mxu0 0.0
        %1463 = vmatpush1.msra.mxu0 0.0
        %1464 = vmatprep.subr.mxu0 0.0
        %1465 = vmatpush1.msra.mxu0 0.0
        %1466 = vmatprep.subr.mxu0 0.0
        %1467 = vmatpush1.msra.mxu0 0.0
        %1468 = vmatprep.subr.mxu0 0.0
        %1469 = vmatpush1.msra.mxu0 0.0
        %1470 = vmatprep.subr.mxu0 0.0
        %1471 = vmatpush1.msra.mxu0 0.0
        %1472 = vmatprep.subr.mxu0 0.0
        %1473 = vmatpush1.msra.mxu0 0.0
        %1474 = vmatprep.subr.mxu0 0.0
        %1475 = vmatpush1.msra.mxu0 0.0
        %1476 = vmatprep.mubr.f32.mxu0 0.0
        %v1477 = vand.u32 %v248, 4294901760
        %v1478 = vsub.f32 %v248, %v1477
        %1479 = vmatmul.mubr.f32.gmra.mrb[0].mxu0 %v1478
        %v1480 = vpop.f32.mrb[0].mxu0
        %v1481 = vadd.f32 %v1400, %v1480
        %v1482 = vpop.f32.mrb[0].mxu0
        %v1483 = vadd.f32 %v1402, %v1482
        %1484 = vdwg.mxu0
        %v1485 = vand.u32 %v229, 4294901760
        %1486 = vmatprep.subr.mxu0 %v1485
        %v1487 = vand.u32 %v228, 4294901760
        %1488 = vmatpush1.msra.mxu0 %v1487
        %v1489 = vand.u32 %v237, 4294901760
        %1490 = vmatprep.subr.mxu0 %v1489
        %v1491 = vand.u32 %v236, 4294901760
        %1492 = vmatpush1.msra.mxu0 %v1491
        %1493 = vmatprep.subr.mxu0 0.0
        %1494 = vmatpush1.msra.mxu0 0.0
        %1495 = vmatprep.subr.mxu0 0.0
        %1496 = vmatpush1.msra.mxu0 0.0
        %1497 = vmatprep.subr.mxu0 0.0
        %1498 = vmatpush1.msra.mxu0 0.0
        %1499 = vmatprep.subr.mxu0 0.0
        %1500 = vmatpush1.msra.mxu0 0.0
        %1501 = vmatprep.subr.mxu0 0.0
        %1502 = vmatpush1.msra.mxu0 0.0
        %1503 = vmatprep.subr.mxu0 0.0
        %1504 = vmatpush1.msra.mxu0 0.0
        %1505 = vmatprep.subr.mxu0 0.0
        %1506 = vmatpush1.msra.mxu0 0.0
        %1507 = vmatprep.subr.mxu0 0.0
        %1508 = vmatpush1.msra.mxu0 0.0
        %1509 = vmatprep.subr.mxu0 0.0
        %1510 = vmatpush1.msra.mxu0 0.0
        %1511 = vmatprep.subr.mxu0 0.0
        %1512 = vmatpush1.msra.mxu0 0.0
        %1513 = vmatprep.subr.mxu0 0.0
        %1514 = vmatpush1.msra.mxu0 0.0
        %1515 = vmatprep.subr.mxu0 0.0
        %1516 = vmatpush1.msra.mxu0 0.0
        %1517 = vmatprep.subr.mxu0 0.0
        %1518 = vmatpush1.msra.mxu0 0.0
        %1519 = vmatprep.subr.mxu0 0.0
        %1520 = vmatpush1.msra.mxu0 0.0
        %1521 = vmatprep.subr.mxu0 0.0
        %1522 = vmatpush1.msra.mxu0 0.0
        %1523 = vmatprep.subr.mxu0 0.0
        %1524 = vmatpush1.msra.mxu0 0.0
        %1525 = vmatprep.subr.mxu0 0.0
        %1526 = vmatpush1.msra.mxu0 0.0
        %1527 = vmatprep.subr.mxu0 0.0
        %1528 = vmatpush1.msra.mxu0 0.0
        %1529 = vmatprep.subr.mxu0 0.0
        %1530 = vmatpush1.msra.mxu0 0.0
        %1531 = vmatprep.subr.mxu0 0.0
        %1532 = vmatpush1.msra.mxu0 0.0
        %1533 = vmatprep.subr.mxu0 0.0
        %1534 = vmatpush1.msra.mxu0 0.0
        %1535 = vmatprep.subr.mxu0 0.0
        %1536 = vmatpush1.msra.mxu0 0.0
        %1537 = vmatprep.subr.mxu0 0.0
        %1538 = vmatpush1.msra.mxu0 0.0
        %1539 = vmatprep.subr.mxu0 0.0
        %1540 = vmatpush1.msra.mxu0 0.0
        %1541 = vmatprep.subr.mxu0 0.0
        %1542 = vmatpush1.msra.mxu0 0.0
        %1543 = vmatprep.subr.mxu0 0.0
        %1544 = vmatpush1.msra.mxu0 0.0
        %1545 = vmatprep.subr.mxu0 0.0
        %1546 = vmatpush1.msra.mxu0 0.0
        %1547 = vmatprep.subr.mxu0 0.0
        %1548 = vmatpush1.msra.mxu0 0.0
        %1549 = vmatprep.subr.mxu0 0.0
        %1550 = vmatpush1.msra.mxu0 0.0
        %1551 = vmatprep.subr.mxu0 0.0
        %1552 = vmatpush1.msra.mxu0 0.0
        %1553 = vmatprep.mubr.f32.mxu0 0.0
        %v1554 = vand.u32 %v248, 4294901760
        %v1555 = vsub.f32 %v248, %v1554
        %v1556 = vand.u32 %v1555, 4294901760
        %1557 = vmatmul.mubr.f32.gmra.mrb[0].mxu0 %v1556
        %v1558 = vpop.f32.mrb[0].mxu0
        %v1559 = vadd.f32 %v1481, %v1558
        %v1560 = vpop.f32.mrb[0].mxu0
        %v1561 = vadd.f32 %v1483, %v1560
        %1562 = vdwg.mxu0
        %v1563 = vand.u32 %v229, 4294901760
        %v1564 = vsub.f32 %v229, %v1563
        %v1565 = vand.u32 %v1564, 4294901760
        %1566 = vmatprep.subr.mxu0 %v1565
        %v1567 = vand.u32 %v228, 4294901760
        %v1568 = vsub.f32 %v228, %v1567
        %v1569 = vand.u32 %v1568, 4294901760
        %1570 = vmatpush1.msra.mxu0 %v1569
        %v1571 = vand.u32 %v237, 4294901760
        %v1572 = vsub.f32 %v237, %v1571
        %v1573 = vand.u32 %v1572, 4294901760
        %1574 = vmatprep.subr.mxu0 %v1573
        %v1575 = vand.u32 %v236, 4294901760
        %v1576 = vsub.f32 %v236, %v1575
        %v1577 = vand.u32 %v1576, 4294901760
        %1578 = vmatpush1.msra.mxu0 %v1577
        %1579 = vmatprep.subr.mxu0 0.0
        %1580 = vmatpush1.msra.mxu0 0.0
        %1581 = vmatprep.subr.mxu0 0.0
        %1582 = vmatpush1.msra.mxu0 0.0
        %1583 = vmatprep.subr.mxu0 0.0
        %1584 = vmatpush1.msra.mxu0 0.0
        %1585 = vmatprep.subr.mxu0 0.0
        %1586 = vmatpush1.msra.mxu0 0.0
        %1587 = vmatprep.subr.mxu0 0.0
        %1588 = vmatpush1.msra.mxu0 0.0
        %1589 = vmatprep.subr.mxu0 0.0
        %1590 = vmatpush1.msra.mxu0 0.0
        %1591 = vmatprep.subr.mxu0 0.0
        %1592 = vmatpush1.msra.mxu0 0.0
        %1593 = vmatprep.subr.mxu0 0.0
        %1594 = vmatpush1.msra.mxu0 0.0
        %1595 = vmatprep.subr.mxu0 0.0
        %1596 = vmatpush1.msra.mxu0 0.0
        %1597 = vmatprep.subr.mxu0 0.0
        %1598 = vmatpush1.msra.mxu0 0.0
        %1599 = vmatprep.subr.mxu0 0.0
        %1600 = vmatpush1.msra.mxu0 0.0
        %1601 = vmatprep.subr.mxu0 0.0
        %1602 = vmatpush1.msra.mxu0 0.0
        %1603 = vmatprep.subr.mxu0 0.0
        %1604 = vmatpush1.msra.mxu0 0.0
        %1605 = vmatprep.subr.mxu0 0.0
        %1606 = vmatpush1.msra.mxu0 0.0
        %1607 = vmatprep.subr.mxu0 0.0
        %1608 = vmatpush1.msra.mxu0 0.0
        %1609 = vmatprep.subr.mxu0 0.0
        %1610 = vmatpush1.msra.mxu0 0.0
        %1611 = vmatprep.subr.mxu0 0.0
        %1612 = vmatpush1.msra.mxu0 0.0
        %1613 = vmatprep.subr.mxu0 0.0
        %1614 = vmatpush1.msra.mxu0 0.0
        %1615 = vmatprep.subr.mxu0 0.0
        %1616 = vmatpush1.msra.mxu0 0.0
        %1617 = vmatprep.subr.mxu0 0.0
        %1618 = vmatpush1.msra.mxu0 0.0
        %1619 = vmatprep.subr.mxu0 0.0
        %1620 = vmatpush1.msra.mxu0 0.0
        %1621 = vmatprep.subr.mxu0 0.0
        %1622 = vmatpush1.msra.mxu0 0.0
        %1623 = vmatprep.subr.mxu0 0.0
        %1624 = vmatpush1.msra.mxu0 0.0
        %1625 = vmatprep.subr.mxu0 0.0
        %1626 = vmatpush1.msra.mxu0 0.0
        %1627 = vmatprep.subr.mxu0 0.0
        %1628 = vmatpush1.msra.mxu0 0.0
        %1629 = vmatprep.subr.mxu0 0.0
        %1630 = vmatpush1.msra.mxu0 0.0
        %1631 = vmatprep.subr.mxu0 0.0
        %1632 = vmatpush1.msra.mxu0 0.0
        %1633 = vmatprep.subr.mxu0 0.0
        %1634 = vmatpush1.msra.mxu0 0.0
        %1635 = vmatprep.subr.mxu0 0.0
        %1636 = vmatpush1.msra.mxu0 0.0
        %1637 = vmatprep.subr.mxu0 0.0
        %1638 = vmatpush1.msra.mxu0 0.0
        %1639 = vmatprep.mubr.f32.mxu0 0.0
        %v1640 = vand.u32 %v248, 4294901760
        %1641 = vmatmul.mubr.f32.gmra.mrb[0].mxu0 %v1640
        %v1642 = vpop.f32.mrb[0].mxu0
        %v1643 = vadd.f32 %v1559, %v1642
        %v1644 = vpop.f32.mrb[0].mxu0
        %v1645 = vadd.f32 %v1561, %v1644
        %1646 = vdwg.mxu0
        %v1647 = vand.u32 %v229, 4294901760
        %1648 = vmatprep.subr.mxu0 %v1647
        %v1649 = vand.u32 %v228, 4294901760
        %1650 = vmatpush1.msra.mxu0 %v1649
        %v1651 = vand.u32 %v237, 4294901760
        %1652 = vmatprep.subr.mxu0 %v1651
        %v1653 = vand.u32 %v236, 4294901760
        %1654 = vmatpush1.msra.mxu0 %v1653
        %1655 = vmatprep.subr.mxu0 0.0
        %1656 = vmatpush1.msra.mxu0 0.0
        %1657 = vmatprep.subr.mxu0 0.0
        %1658 = vmatpush1.msra.mxu0 0.0
        %1659 = vmatprep.subr.mxu0 0.0
        %1660 = vmatpush1.msra.mxu0 0.0
        %1661 = vmatprep.subr.mxu0 0.0
        %1662 = vmatpush1.msra.mxu0 0.0
        %1663 = vmatprep.subr.mxu0 0.0
        %1664 = vmatpush1.msra.mxu0 0.0
        %1665 = vmatprep.subr.mxu0 0.0
        %1666 = vmatpush1.msra.mxu0 0.0
        %1667 = vmatprep.subr.mxu0 0.0
        %1668 = vmatpush1.msra.mxu0 0.0
        %1669 = vmatprep.subr.mxu0 0.0
        %1670 = vmatpush1.msra.mxu0 0.0
        %1671 = vmatprep.subr.mxu0 0.0
        %1672 = vmatpush1.msra.mxu0 0.0
        %1673 = vmatprep.subr.mxu0 0.0
        %1674 = vmatpush1.msra.mxu0 0.0
        %1675 = vmatprep.subr.mxu0 0.0
        %1676 = vmatpush1.msra.mxu0 0.0
        %1677 = vmatprep.subr.mxu0 0.0
        %1678 = vmatpush1.msra.mxu0 0.0
        %1679 = vmatprep.subr.mxu0 0.0
        %1680 = vmatpush1.msra.mxu0 0.0
        %1681 = vmatprep.subr.mxu0 0.0
        %1682 = vmatpush1.msra.mxu0 0.0
        %1683 = vmatprep.subr.mxu0 0.0
        %1684 = vmatpush1.msra.mxu0 0.0
        %1685 = vmatprep.subr.mxu0 0.0
        %1686 = vmatpush1.msra.mxu0 0.0
        %1687 = vmatprep.subr.mxu0 0.0
        %1688 = vmatpush1.msra.mxu0 0.0
        %1689 = vmatprep.subr.mxu0 0.0
        %1690 = vmatpush1.msra.mxu0 0.0
        %1691 = vmatprep.subr.mxu0 0.0
        %1692 = vmatpush1.msra.mxu0 0.0
        %1693 = vmatprep.subr.mxu0 0.0
        %1694 = vmatpush1.msra.mxu0 0.0
        %1695 = vmatprep.subr.mxu0 0.0
        %1696 = vmatpush1.msra.mxu0 0.0
        %1697 = vmatprep.subr.mxu0 0.0
        %1698 = vmatpush1.msra.mxu0 0.0
        %1699 = vmatprep.subr.mxu0 0.0
        %1700 = vmatpush1.msra.mxu0 0.0
        %1701 = vmatprep.subr.mxu0 0.0
        %1702 = vmatpush1.msra.mxu0 0.0
        %1703 = vmatprep.subr.mxu0 0.0
        %1704 = vmatpush1.msra.mxu0 0.0
        %1705 = vmatprep.subr.mxu0 0.0
        %1706 = vmatpush1.msra.mxu0 0.0
        %1707 = vmatprep.subr.mxu0 0.0
        %1708 = vmatpush1.msra.mxu0 0.0
        %1709 = vmatprep.subr.mxu0 0.0
        %1710 = vmatpush1.msra.mxu0 0.0
        %1711 = vmatprep.subr.mxu0 0.0
        %1712 = vmatpush1.msra.mxu0 0.0
        %1713 = vmatprep.subr.mxu0 0.0
        %1714 = vmatpush1.msra.mxu0 0.0
        %1715 = vmatprep.mubr.f32.mxu0 0.0
        %v1716 = vand.u32 %v248, 4294901760
        %1717 = vmatmul.mubr.f32.gmra.mrb[0].mxu0 %v1716
        %v1718 = vpop.f32.mrb[0].mxu0
        %v1719 = vadd.f32 %v1643, %v1718
        %v1720 = vpop.f32.mrb[0].mxu0
        %v1721 = vadd.f32 %v1645, %v1720
        %1722 = vdwg.mxu0
        %v1723 = vand.u32 %v231, 4294901760
        %1724 = vmatprep.subr.mxu0 %v1723
        %v1725 = vand.u32 %v230, 4294901760
        %1726 = vmatpush1.msra.mxu0 %v1725
        %v1727 = vand.u32 %v239, 4294901760
        %1728 = vmatprep.subr.mxu0 %v1727
        %v1729 = vand.u32 %v238, 4294901760
        %1730 = vmatpush1.msra.mxu0 %v1729
        %1731 = vmatprep.subr.mxu0 0.0
        %1732 = vmatpush1.msra.mxu0 0.0
        %1733 = vmatprep.subr.mxu0 0.0
        %1734 = vmatpush1.msra.mxu0 0.0
        %1735 = vmatprep.subr.mxu0 0.0
        %1736 = vmatpush1.msra.mxu0 0.0
        %1737 = vmatprep.subr.mxu0 0.0
        %1738 = vmatpush1.msra.mxu0 0.0
        %1739 = vmatprep.subr.mxu0 0.0
        %1740 = vmatpush1.msra.mxu0 0.0
        %1741 = vmatprep.subr.mxu0 0.0
        %1742 = vmatpush1.msra.mxu0 0.0
        %1743 = vmatprep.subr.mxu0 0.0
        %1744 = vmatpush1.msra.mxu0 0.0
        %1745 = vmatprep.subr.mxu0 0.0
        %1746 = vmatpush1.msra.mxu0 0.0
        %1747 = vmatprep.subr.mxu0 0.0
        %1748 = vmatpush1.msra.mxu0 0.0
        %1749 = vmatprep.subr.mxu0 0.0
        %1750 = vmatpush1.msra.mxu0 0.0
        %1751 = vmatprep.subr.mxu0 0.0
        %1752 = vmatpush1.msra.mxu0 0.0
        %1753 = vmatprep.subr.mxu0 0.0
        %1754 = vmatpush1.msra.mxu0 0.0
        %1755 = vmatprep.subr.mxu0 0.0
        %1756 = vmatpush1.msra.mxu0 0.0
        %1757 = vmatprep.subr.mxu0 0.0
        %1758 = vmatpush1.msra.mxu0 0.0
        %1759 = vmatprep.subr.mxu0 0.0
        %1760 = vmatpush1.msra.mxu0 0.0
        %1761 = vmatprep.subr.mxu0 0.0
        %1762 = vmatpush1.msra.mxu0 0.0
        %1763 = vmatprep.subr.mxu0 0.0
        %1764 = vmatpush1.msra.mxu0 0.0
        %1765 = vmatprep.subr.mxu0 0.0
        %1766 = vmatpush1.msra.mxu0 0.0
        %1767 = vmatprep.subr.mxu0 0.0
        %1768 = vmatpush1.msra.mxu0 0.0
        %1769 = vmatprep.subr.mxu0 0.0
        %1770 = vmatpush1.msra.mxu0 0.0
        %1771 = vmatprep.subr.mxu0 0.0
        %1772 = vmatpush1.msra.mxu0 0.0
        %1773 = vmatprep.subr.mxu0 0.0
        %1774 = vmatpush1.msra.mxu0 0.0
        %1775 = vmatprep.subr.mxu0 0.0
        %1776 = vmatpush1.msra.mxu0 0.0
        %1777 = vmatprep.subr.mxu0 0.0
        %1778 = vmatpush1.msra.mxu0 0.0
        %1779 = vmatprep.subr.mxu0 0.0
        %1780 = vmatpush1.msra.mxu0 0.0
        %1781 = vmatprep.subr.mxu0 0.0
        %1782 = vmatpush1.msra.mxu0 0.0
        %1783 = vmatprep.subr.mxu0 0.0
        %1784 = vmatpush1.msra.mxu0 0.0
        %1785 = vmatprep.subr.mxu0 0.0
        %1786 = vmatpush1.msra.mxu0 0.0
        %1787 = vmatprep.subr.mxu0 0.0
        %1788 = vmatpush1.msra.mxu0 0.0
        %1789 = vmatprep.subr.mxu0 0.0
        %1790 = vmatpush1.msra.mxu0 0.0
        %1791 = vmatprep.mubr.f32.mxu0 0.0
        %v1792 = vand.u32 %v248, 4294901760
        %v1793 = vsub.f32 %v248, %v1792
        %v1794 = vand.u32 %v1793, 4294901760
        %v1795 = vsub.f32 %v1793, %v1794
        %v1796 = vand.u32 %v1795, 4294901760
        %1797 = vmatmul.mubr.f32.gmra.mrb[0].mxu0 %v1796
        %v1798 = vpop.f32.mrb[0].mxu0
        %v1799 = vadd.f32 %v244, %v1798
        %v1800 = vpop.f32.mrb[0].mxu0
        %v1801 = vadd.f32 %v244, %v1800
        %1802 = vdwg.mxu0
        %v1803 = vand.u32 %v231, 4294901760
        %v1804 = vsub.f32 %v231, %v1803
        %v1805 = vand.u32 %v1804, 4294901760
        %v1806 = vsub.f32 %v1804, %v1805
        %v1807 = vand.u32 %v1806, 4294901760
        %1808 = vmatprep.subr.mxu0 %v1807
        %v1809 = vand.u32 %v230, 4294901760
        %v1810 = vsub.f32 %v230, %v1809
        %v1811 = vand.u32 %v1810, 4294901760
        %v1812 = vsub.f32 %v1810, %v1811
        %v1813 = vand.u32 %v1812, 4294901760
        %1814 = vmatpush1.msra.mxu0 %v1813
        %v1815 = vand.u32 %v239, 4294901760
        %v1816 = vsub.f32 %v239, %v1815
        %v1817 = vand.u32 %v1816, 4294901760
        %v1818 = vsub.f32 %v1816, %v1817
        %v1819 = vand.u32 %v1818, 4294901760
        %1820 = vmatprep.subr.mxu0 %v1819
        %v1821 = vand.u32 %v238, 4294901760
        %v1822 = vsub.f32 %v238, %v1821
        %v1823 = vand.u32 %v1822, 4294901760
        %v1824 = vsub.f32 %v1822, %v1823
        %v1825 = vand.u32 %v1824, 4294901760
        %1826 = vmatpush1.msra.mxu0 %v1825
        %1827 = vmatprep.subr.mxu0 0.0
        %1828 = vmatpush1.msra.mxu0 0.0
        %1829 = vmatprep.subr.mxu0 0.0
        %1830 = vmatpush1.msra.mxu0 0.0
        %1831 = vmatprep.subr.mxu0 0.0
        %1832 = vmatpush1.msra.mxu0 0.0
        %1833 = vmatprep.subr.mxu0 0.0
        %1834 = vmatpush1.msra.mxu0 0.0
        %1835 = vmatprep.subr.mxu0 0.0
        %1836 = vmatpush1.msra.mxu0 0.0
        %1837 = vmatprep.subr.mxu0 0.0
        %1838 = vmatpush1.msra.mxu0 0.0
        %1839 = vmatprep.subr.mxu0 0.0
        %1840 = vmatpush1.msra.mxu0 0.0
        %1841 = vmatprep.subr.mxu0 0.0
        %1842 = vmatpush1.msra.mxu0 0.0
        %1843 = vmatprep.subr.mxu0 0.0
        %1844 = vmatpush1.msra.mxu0 0.0
        %1845 = vmatprep.subr.mxu0 0.0
        %1846 = vmatpush1.msra.mxu0 0.0
        %1847 = vmatprep.subr.mxu0 0.0
        %1848 = vmatpush1.msra.mxu0 0.0
        %1849 = vmatprep.subr.mxu0 0.0
        %1850 = vmatpush1.msra.mxu0 0.0
        %1851 = vmatprep.subr.mxu0 0.0
        %1852 = vmatpush1.msra.mxu0 0.0
        %1853 = vmatprep.subr.mxu0 0.0
        %1854 = vmatpush1.msra.mxu0 0.0
        %1855 = vmatprep.subr.mxu0 0.0
        %1856 = vmatpush1.msra.mxu0 0.0
        %1857 = vmatprep.subr.mxu0 0.0
        %1858 = vmatpush1.msra.mxu0 0.0
        %1859 = vmatprep.subr.mxu0 0.0
        %1860 = vmatpush1.msra.mxu0 0.0
        %1861 = vmatprep.subr.mxu0 0.0
        %1862 = vmatpush1.msra.mxu0 0.0
        %1863 = vmatprep.subr.mxu0 0.0
        %1864 = vmatpush1.msra.mxu0 0.0
        %1865 = vmatprep.subr.mxu0 0.0
        %1866 = vmatpush1.msra.mxu0 0.0
        %1867 = vmatprep.subr.mxu0 0.0
        %1868 = vmatpush1.msra.mxu0 0.0
        %1869 = vmatprep.subr.mxu0 0.0
        %1870 = vmatpush1.msra.mxu0 0.0
        %1871 = vmatprep.subr.mxu0 0.0
        %1872 = vmatpush1.msra.mxu0 0.0
        %1873 = vmatprep.subr.mxu0 0.0
        %1874 = vmatpush1.msra.mxu0 0.0
        %1875 = vmatprep.subr.mxu0 0.0
        %1876 = vmatpush1.msra.mxu0 0.0
        %1877 = vmatprep.subr.mxu0 0.0
        %1878 = vmatpush1.msra.mxu0 0.0
        %1879 = vmatprep.subr.mxu0 0.0
        %1880 = vmatpush1.msra.mxu0 0.0
        %1881 = vmatprep.subr.mxu0 0.0
        %1882 = vmatpush1.msra.mxu0 0.0
        %1883 = vmatprep.subr.mxu0 0.0
        %1884 = vmatpush1.msra.mxu0 0.0
        %1885 = vmatprep.subr.mxu0 0.0
        %1886 = vmatpush1.msra.mxu0 0.0
        %1887 = vmatprep.mubr.f32.mxu0 0.0
        %v1888 = vand.u32 %v248, 4294901760
        %1889 = vmatmul.mubr.f32.gmra.mrb[0].mxu0 %v1888
        %v1890 = vpop.f32.mrb[0].mxu0
        %v1891 = vadd.f32 %v1799, %v1890
        %v1892 = vpop.f32.mrb[0].mxu0
        %v1893 = vadd.f32 %v1801, %v1892
        %1894 = vdwg.mxu0
        %v1895 = vand.u32 %v231, 4294901760
        %v1896 = vsub.f32 %v231, %v1895
        %1897 = vmatprep.subr.mxu0 %v1896
        %v1898 = vand.u32 %v230, 4294901760
        %v1899 = vsub.f32 %v230, %v1898
        %1900 = vmatpush1.msra.mxu0 %v1899
        %v1901 = vand.u32 %v239, 4294901760
        %v1902 = vsub.f32 %v239, %v1901
        %1903 = vmatprep.subr.mxu0 %v1902
        %v1904 = vand.u32 %v238, 4294901760
        %v1905 = vsub.f32 %v238, %v1904
        %1906 = vmatpush1.msra.mxu0 %v1905
        %1907 = vmatprep.subr.mxu0 0.0
        %1908 = vmatpush1.msra.mxu0 0.0
        %1909 = vmatprep.subr.mxu0 0.0
        %1910 = vmatpush1.msra.mxu0 0.0
        %1911 = vmatprep.subr.mxu0 0.0
        %1912 = vmatpush1.msra.mxu0 0.0
        %1913 = vmatprep.subr.mxu0 0.0
        %1914 = vmatpush1.msra.mxu0 0.0
        %1915 = vmatprep.subr.mxu0 0.0
        %1916 = vmatpush1.msra.mxu0 0.0
        %1917 = vmatprep.subr.mxu0 0.0
        %1918 = vmatpush1.msra.mxu0 0.0
        %1919 = vmatprep.subr.mxu0 0.0
        %1920 = vmatpush1.msra.mxu0 0.0
        %1921 = vmatprep.subr.mxu0 0.0
        %1922 = vmatpush1.msra.mxu0 0.0
        %1923 = vmatprep.subr.mxu0 0.0
        %1924 = vmatpush1.msra.mxu0 0.0
        %1925 = vmatprep.subr.mxu0 0.0
        %1926 = vmatpush1.msra.mxu0 0.0
        %1927 = vmatprep.subr.mxu0 0.0
        %1928 = vmatpush1.msra.mxu0 0.0
        %1929 = vmatprep.subr.mxu0 0.0
        %1930 = vmatpush1.msra.mxu0 0.0
        %1931 = vmatprep.subr.mxu0 0.0
        %1932 = vmatpush1.msra.mxu0 0.0
        %1933 = vmatprep.subr.mxu0 0.0
        %1934 = vmatpush1.msra.mxu0 0.0
        %1935 = vmatprep.subr.mxu0 0.0
        %1936 = vmatpush1.msra.mxu0 0.0
        %1937 = vmatprep.subr.mxu0 0.0
        %1938 = vmatpush1.msra.mxu0 0.0
        %1939 = vmatprep.subr.mxu0 0.0
        %1940 = vmatpush1.msra.mxu0 0.0
        %1941 = vmatprep.subr.mxu0 0.0
        %1942 = vmatpush1.msra.mxu0 0.0
        %1943 = vmatprep.subr.mxu0 0.0
        %1944 = vmatpush1.msra.mxu0 0.0
        %1945 = vmatprep.subr.mxu0 0.0
        %1946 = vmatpush1.msra.mxu0 0.0
        %1947 = vmatprep.subr.mxu0 0.0
        %1948 = vmatpush1.msra.mxu0 0.0
        %1949 = vmatprep.subr.mxu0 0.0
        %1950 = vmatpush1.msra.mxu0 0.0
        %1951 = vmatprep.subr.mxu0 0.0
        %1952 = vmatpush1.msra.mxu0 0.0
        %1953 = vmatprep.subr.mxu0 0.0
        %1954 = vmatpush1.msra.mxu0 0.0
        %1955 = vmatprep.subr.mxu0 0.0
        %1956 = vmatpush1.msra.mxu0 0.0
        %1957 = vmatprep.subr.mxu0 0.0
        %1958 = vmatpush1.msra.mxu0 0.0
        %1959 = vmatprep.subr.mxu0 0.0
        %1960 = vmatpush1.msra.mxu0 0.0
        %1961 = vmatprep.subr.mxu0 0.0
        %1962 = vmatpush1.msra.mxu0 0.0
        %1963 = vmatprep.subr.mxu0 0.0
        %1964 = vmatpush1.msra.mxu0 0.0
        %1965 = vmatprep.subr.mxu0 0.0
        %1966 = vmatpush1.msra.mxu0 0.0
        %1967 = vmatprep.mubr.f32.mxu0 0.0
        %v1968 = vand.u32 %v248, 4294901760
        %v1969 = vsub.f32 %v248, %v1968
        %1970 = vmatmul.mubr.f32.gmra.mrb[0].mxu0 %v1969
        %v1971 = vpop.f32.mrb[0].mxu0
        %v1972 = vadd.f32 %v1891, %v1971
        %v1973 = vpop.f32.mrb[0].mxu0
        %v1974 = vadd.f32 %v1893, %v1973
        %1975 = vdwg.mxu0
        %v1976 = vand.u32 %v231, 4294901760
        %1977 = vmatprep.subr.mxu0 %v1976
        %v1978 = vand.u32 %v230, 4294901760
        %1979 = vmatpush1.msra.mxu0 %v1978
        %v1980 = vand.u32 %v239, 4294901760
        %1981 = vmatprep.subr.mxu0 %v1980
        %v1982 = vand.u32 %v238, 4294901760
        %1983 = vmatpush1.msra.mxu0 %v1982
        %1984 = vmatprep.subr.mxu0 0.0
        %1985 = vmatpush1.msra.mxu0 0.0
        %1986 = vmatprep.subr.mxu0 0.0
        %1987 = vmatpush1.msra.mxu0 0.0
        %1988 = vmatprep.subr.mxu0 0.0
        %1989 = vmatpush1.msra.mxu0 0.0
        %1990 = vmatprep.subr.mxu0 0.0
        %1991 = vmatpush1.msra.mxu0 0.0
        %1992 = vmatprep.subr.mxu0 0.0
        %1993 = vmatpush1.msra.mxu0 0.0
        %1994 = vmatprep.subr.mxu0 0.0
        %1995 = vmatpush1.msra.mxu0 0.0
        %1996 = vmatprep.subr.mxu0 0.0
        %1997 = vmatpush1.msra.mxu0 0.0
        %1998 = vmatprep.subr.mxu0 0.0
        %1999 = vmatpush1.msra.mxu0 0.0
        %2000 = vmatprep.subr.mxu0 0.0
        %2001 = vmatpush1.msra.mxu0 0.0
        %2002 = vmatprep.subr.mxu0 0.0
        %2003 = vmatpush1.msra.mxu0 0.0
        %2004 = vmatprep.subr.mxu0 0.0
        %2005 = vmatpush1.msra.mxu0 0.0
        %2006 = vmatprep.subr.mxu0 0.0
        %2007 = vmatpush1.msra.mxu0 0.0
        %2008 = vmatprep.subr.mxu0 0.0
        %2009 = vmatpush1.msra.mxu0 0.0
        %2010 = vmatprep.subr.mxu0 0.0
        %2011 = vmatpush1.msra.mxu0 0.0
        %2012 = vmatprep.subr.mxu0 0.0
        %2013 = vmatpush1.msra.mxu0 0.0
        %2014 = vmatprep.subr.mxu0 0.0
        %2015 = vmatpush1.msra.mxu0 0.0
        %2016 = vmatprep.subr.mxu0 0.0
        %2017 = vmatpush1.msra.mxu0 0.0
        %2018 = vmatprep.subr.mxu0 0.0
        %2019 = vmatpush1.msra.mxu0 0.0
        %2020 = vmatprep.subr.mxu0 0.0
        %2021 = vmatpush1.msra.mxu0 0.0
        %2022 = vmatprep.subr.mxu0 0.0
        %2023 = vmatpush1.msra.mxu0 0.0
        %2024 = vmatprep.subr.mxu0 0.0
        %2025 = vmatpush1.msra.mxu0 0.0
        %2026 = vmatprep.subr.mxu0 0.0
        %2027 = vmatpush1.msra.mxu0 0.0
        %2028 = vmatprep.subr.mxu0 0.0
        %2029 = vmatpush1.msra.mxu0 0.0
        %2030 = vmatprep.subr.mxu0 0.0
        %2031 = vmatpush1.msra.mxu0 0.0
        %2032 = vmatprep.subr.mxu0 0.0
        %2033 = vmatpush1.msra.mxu0 0.0
        %2034 = vmatprep.subr.mxu0 0.0
        %2035 = vmatpush1.msra.mxu0 0.0
        %2036 = vmatprep.subr.mxu0 0.0
        %2037 = vmatpush1.msra.mxu0 0.0
        %2038 = vmatprep.subr.mxu0 0.0
        %2039 = vmatpush1.msra.mxu0 0.0
        %2040 = vmatprep.subr.mxu0 0.0
        %2041 = vmatpush1.msra.mxu0 0.0
        %2042 = vmatprep.subr.mxu0 0.0
        %2043 = vmatpush1.msra.mxu0 0.0
        %2044 = vmatprep.mubr.f32.mxu0 0.0
        %v2045 = vand.u32 %v248, 4294901760
        %v2046 = vsub.f32 %v248, %v2045
        %v2047 = vand.u32 %v2046, 4294901760
        %2048 = vmatmul.mubr.f32.gmra.mrb[0].mxu0 %v2047
        %v2049 = vpop.f32.mrb[0].mxu0
        %v2050 = vadd.f32 %v1972, %v2049
        %v2051 = vpop.f32.mrb[0].mxu0
        %v2052 = vadd.f32 %v1974, %v2051
        %2053 = vdwg.mxu0
        %v2054 = vand.u32 %v231, 4294901760
        %v2055 = vsub.f32 %v231, %v2054
        %v2056 = vand.u32 %v2055, 4294901760
        %2057 = vmatprep.subr.mxu0 %v2056
        %v2058 = vand.u32 %v230, 4294901760
        %v2059 = vsub.f32 %v230, %v2058
        %v2060 = vand.u32 %v2059, 4294901760
        %2061 = vmatpush1.msra.mxu0 %v2060
        %v2062 = vand.u32 %v239, 4294901760
        %v2063 = vsub.f32 %v239, %v2062
        %v2064 = vand.u32 %v2063, 4294901760
        %2065 = vmatprep.subr.mxu0 %v2064
        %v2066 = vand.u32 %v238, 4294901760
        %v2067 = vsub.f32 %v238, %v2066
        %v2068 = vand.u32 %v2067, 4294901760
        %2069 = vmatpush1.msra.mxu0 %v2068
        %2070 = vmatprep.subr.mxu0 0.0
        %2071 = vmatpush1.msra.mxu0 0.0
        %2072 = vmatprep.subr.mxu0 0.0
        %2073 = vmatpush1.msra.mxu0 0.0
        %2074 = vmatprep.subr.mxu0 0.0
        %2075 = vmatpush1.msra.mxu0 0.0
        %2076 = vmatprep.subr.mxu0 0.0
        %2077 = vmatpush1.msra.mxu0 0.0
        %2078 = vmatprep.subr.mxu0 0.0
        %2079 = vmatpush1.msra.mxu0 0.0
        %2080 = vmatprep.subr.mxu0 0.0
        %2081 = vmatpush1.msra.mxu0 0.0
        %2082 = vmatprep.subr.mxu0 0.0
        %2083 = vmatpush1.msra.mxu0 0.0
        %2084 = vmatprep.subr.mxu0 0.0
        %2085 = vmatpush1.msra.mxu0 0.0
        %2086 = vmatprep.subr.mxu0 0.0
        %2087 = vmatpush1.msra.mxu0 0.0
        %2088 = vmatprep.subr.mxu0 0.0
        %2089 = vmatpush1.msra.mxu0 0.0
        %2090 = vmatprep.subr.mxu0 0.0
        %2091 = vmatpush1.msra.mxu0 0.0
        %2092 = vmatprep.subr.mxu0 0.0
        %2093 = vmatpush1.msra.mxu0 0.0
        %2094 = vmatprep.subr.mxu0 0.0
        %2095 = vmatpush1.msra.mxu0 0.0
        %2096 = vmatprep.subr.mxu0 0.0
        %2097 = vmatpush1.msra.mxu0 0.0
        %2098 = vmatprep.subr.mxu0 0.0
        %2099 = vmatpush1.msra.mxu0 0.0
        %2100 = vmatprep.subr.mxu0 0.0
        %2101 = vmatpush1.msra.mxu0 0.0
        %2102 = vmatprep.subr.mxu0 0.0
        %2103 = vmatpush1.msra.mxu0 0.0
        %2104 = vmatprep.subr.mxu0 0.0
        %2105 = vmatpush1.msra.mxu0 0.0
        %2106 = vmatprep.subr.mxu0 0.0
        %2107 = vmatpush1.msra.mxu0 0.0
        %2108 = vmatprep.subr.mxu0 0.0
        %2109 = vmatpush1.msra.mxu0 0.0
        %2110 = vmatprep.subr.mxu0 0.0
        %2111 = vmatpush1.msra.mxu0 0.0
        %2112 = vmatprep.subr.mxu0 0.0
        %2113 = vmatpush1.msra.mxu0 0.0
        %2114 = vmatprep.subr.mxu0 0.0
        %2115 = vmatpush1.msra.mxu0 0.0
        %2116 = vmatprep.subr.mxu0 0.0
        %2117 = vmatpush1.msra.mxu0 0.0
        %2118 = vmatprep.subr.mxu0 0.0
        %2119 = vmatpush1.msra.mxu0 0.0
        %2120 = vmatprep.subr.mxu0 0.0
        %2121 = vmatpush1.msra.mxu0 0.0
        %2122 = vmatprep.subr.mxu0 0.0
        %2123 = vmatpush1.msra.mxu0 0.0
        %2124 = vmatprep.subr.mxu0 0.0
        %2125 = vmatpush1.msra.mxu0 0.0
        %2126 = vmatprep.subr.mxu0 0.0
        %2127 = vmatpush1.msra.mxu0 0.0
        %2128 = vmatprep.subr.mxu0 0.0
        %2129 = vmatpush1.msra.mxu0 0.0
        %2130 = vmatprep.mubr.f32.mxu0 0.0
        %v2131 = vand.u32 %v248, 4294901760
        %2132 = vmatmul.mubr.f32.gmra.mrb[0].mxu0 %v2131
        %v2133 = vpop.f32.mrb[0].mxu0
        %v2134 = vadd.f32 %v2050, %v2133
        %v2135 = vpop.f32.mrb[0].mxu0
        %v2136 = vadd.f32 %v2052, %v2135
        %2137 = vdwg.mxu0
        %v2138 = vand.u32 %v231, 4294901760
        %2139 = vmatprep.subr.mxu0 %v2138
        %v2140 = vand.u32 %v230, 4294901760
        %2141 = vmatpush1.msra.mxu0 %v2140
        %v2142 = vand.u32 %v239, 4294901760
        %2143 = vmatprep.subr.mxu0 %v2142
        %v2144 = vand.u32 %v238, 4294901760
        %2145 = vmatpush1.msra.mxu0 %v2144
        %2146 = vmatprep.subr.mxu0 0.0
        %2147 = vmatpush1.msra.mxu0 0.0
        %2148 = vmatprep.subr.mxu0 0.0
        %2149 = vmatpush1.msra.mxu0 0.0
        %2150 = vmatprep.subr.mxu0 0.0
        %2151 = vmatpush1.msra.mxu0 0.0
        %2152 = vmatprep.subr.mxu0 0.0
        %2153 = vmatpush1.msra.mxu0 0.0
        %2154 = vmatprep.subr.mxu0 0.0
        %2155 = vmatpush1.msra.mxu0 0.0
        %2156 = vmatprep.subr.mxu0 0.0
        %2157 = vmatpush1.msra.mxu0 0.0
        %2158 = vmatprep.subr.mxu0 0.0
        %2159 = vmatpush1.msra.mxu0 0.0
        %2160 = vmatprep.subr.mxu0 0.0
        %2161 = vmatpush1.msra.mxu0 0.0
        %2162 = vmatprep.subr.mxu0 0.0
        %2163 = vmatpush1.msra.mxu0 0.0
        %2164 = vmatprep.subr.mxu0 0.0
        %2165 = vmatpush1.msra.mxu0 0.0
        %2166 = vmatprep.subr.mxu0 0.0
        %2167 = vmatpush1.msra.mxu0 0.0
        %2168 = vmatprep.subr.mxu0 0.0
        %2169 = vmatpush1.msra.mxu0 0.0
        %2170 = vmatprep.subr.mxu0 0.0
        %2171 = vmatpush1.msra.mxu0 0.0
        %2172 = vmatprep.subr.mxu0 0.0
        %2173 = vmatpush1.msra.mxu0 0.0
        %2174 = vmatprep.subr.mxu0 0.0
        %2175 = vmatpush1.msra.mxu0 0.0
        %2176 = vmatprep.subr.mxu0 0.0
        %2177 = vmatpush1.msra.mxu0 0.0
        %2178 = vmatprep.subr.mxu0 0.0
        %2179 = vmatpush1.msra.mxu0 0.0
        %2180 = vmatprep.subr.mxu0 0.0
        %2181 = vmatpush1.msra.mxu0 0.0
        %2182 = vmatprep.subr.mxu0 0.0
        %2183 = vmatpush1.msra.mxu0 0.0
        %2184 = vmatprep.subr.mxu0 0.0
        %2185 = vmatpush1.msra.mxu0 0.0
        %2186 = vmatprep.subr.mxu0 0.0
        %2187 = vmatpush1.msra.mxu0 0.0
        %2188 = vmatprep.subr.mxu0 0.0
        %2189 = vmatpush1.msra.mxu0 0.0
        %2190 = vmatprep.subr.mxu0 0.0
        %2191 = vmatpush1.msra.mxu0 0.0
        %2192 = vmatprep.subr.mxu0 0.0
        %2193 = vmatpush1.msra.mxu0 0.0
        %2194 = vmatprep.subr.mxu0 0.0
        %2195 = vmatpush1.msra.mxu0 0.0
        %2196 = vmatprep.subr.mxu0 0.0
        %2197 = vmatpush1.msra.mxu0 0.0
        %2198 = vmatprep.subr.mxu0 0.0
        %2199 = vmatpush1.msra.mxu0 0.0
        %2200 = vmatprep.subr.mxu0 0.0
        %2201 = vmatpush1.msra.mxu0 0.0
        %2202 = vmatprep.subr.mxu0 0.0
        %2203 = vmatpush1.msra.mxu0 0.0
        %2204 = vmatprep.subr.mxu0 0.0
        %2205 = vmatpush1.msra.mxu0 0.0
        %2206 = vmatprep.mubr.f32.mxu0 0.0
        %v2207 = vand.u32 %v248, 4294901760
        %2208 = vmatmul.mubr.f32.gmra.mrb[0].mxu0 %v2207
        %v2209 = vpop.f32.mrb[0].mxu0
        %v2210 = vadd.f32 %v2134, %v2209
        %v2211 = vpop.f32.mrb[0].mxu0
        %v2212 = vadd.f32 %v2136, %v2211
        %2213 = vdwg.mxu0
        %v2222 = vcombine.low %v737, %v739
        %v2223 = vcombine.low %v1228, %v1230
        %v2224 = vcombine.low %v1719, %v1721
        %v2225 = vcombine.low %v2210, %v2212
        %2230 = vst [vmem:[%s221] sm:$0xff] %v2222
        %2231 = vst [vmem:[%s221 + $0x8] sm:$0xff] %v2223
        %2232 = vst [vmem:[%s221 + $0x10] sm:$0xff] %v2224
        %2233 = vst [vmem:[%s221 + $0x18] sm:$0xff] %v2225
        %s2234 = smul.u32 8, %s20
        %p2235 = scmp.lt.s32.totalorder %s19, 1
        %s2236 = scalar_select %p2235, %s19, 1
        %p2237 = scmp.lt.s32.totalorder %s2234, 7
        %s2238 = scalar_select %p2237, %s2234, 7
        %s2239 = smul.addr %s2236, 8
        %s2240 = sadd.s32 %s2238, %s2239
        %s2241 = smul.addr %s2240, 4
        %s2242 = scalar_lea.vmem %s3, %s2241
        // Predicated region
        $region37: #{esa_forward.2} parent=31 // pred_check
          %p2243 = pneg %p117
        $region38: #{esa_forward.2} parent=31 // pred_check_branch
          %2245 = sbr.rel (%p2243) target = $region40
        $region39: #{esa_forward.2} parent=31 // pred_region
          %s2246 = smul.u32 8, %s20
        $region40: #{esa_forward.2} parent=31 // pred_fallthru
          _
      $region32: #{esa_forward.2} parent=5 // pred_fallthru
        _
      %p2247 = scmp.le.s32.totalorder 2, %s10
      // Predicated region
      $region41: #{esa_forward.2} parent=5 // pred_check
        %p2248 = pneg %p2247
      $region42: #{esa_forward.2} parent=5 // pred_check_branch
        %2250 = sbr.rel (%p2248) target = $region44
      $region43: #{esa_forward.2} parent=5 // pred_region
        %s2251 = ssub.s32 %s10, 2
        // Predicated region
        $region45: #{esa_forward.2} parent=43 // pred_check
          %p2252 = pneg %p123
        $region46: #{esa_forward.2} parent=43 // pred_check_branch
          %2254 = sbr.rel (%p2252) target = $region48
        $region47: #{esa_forward.2} parent=43 // pred_region
          %s2255 = smul.u32 8, %s22
          %p2256 = scmp.lt.s32.totalorder %s21, 1
          %s2257 = scalar_select %p2256, %s21, 1
          %p2258 = scmp.lt.s32.totalorder %s2255, 7
          %s2259 = scalar_select %p2258, %s2255, 7
          %s2260 = smul.addr %s2257, 8
          %s2261 = sadd.s32 %s2259, %s2260
          %s2262 = smul.addr %s2261, 4
          %s2263 = scalar_lea.vmem %s3, %s2262
        $region48: #{esa_forward.2} parent=43 // pred_fallthru
          _
      $region44: #{esa_forward.2} parent=5 // pred_fallthru
        _
    $region6: #{esa_forward.2} parent=1 // loop_footer
      %s14 = sadd.s32 1, %s10
    $region7: #{esa_forward.2} parent=1 // loop_footer_branch
      %9 = sbr.rel target = $region3
    $region8: #{esa_forward.2} parent=1 // loop_exit
      _
    %2264 = vsyncpa [#allocation3], 1
    %s2265 = scalar_lea.sflag [#allocation3], 1
    %2266 = vsyncpa %s2265, 1

// kernel: esa_forward.3
$region0: #{esa_forward.3}
  #allocation0 [shape = 'u32[]', space=smem, size = 0x4, offset = 0x4, fixed_abs, tag = 'smem constant byte address 0x4 - core index']
  #allocation1 [shape = 'u32[144,128]{1,0:T(1,128)}', space=vmem, size = 0x12000, scoped, tag = 'internal scratch']
  %s0 = inlined_call_operand.vmem [shape: f32[2,16,1024], index: 0, kind: input, shape index: {}]
  %s1 = inlined_call_operand.vmem [shape: f32[2,16,96], index: 1, kind: input, shape index: {}]
  %s2 = inlined_call_operand.vmem [shape: f32[96,1024], index: 2, kind: input, shape index: {}]
  %s3 = inlined_call_operand.vmem [shape: f32[16,16], index: 3, kind: input, shape index: {}]
  %s4 = inlined_call_operand.vmem [shape: f32[16,1], index: 4, kind: input, shape index: {}]
  %s5 = inlined_call_operand.vmem [shape: f32[2,16,1024], index: 5, kind: output, shape index: {}]
  %s6 = sld [smem:[#allocation0]]
  $region53: #{esa_forward.3} parent=0
    _
  %s8 = ssub.s32 1, %s6
  %s9 = scalar_select 0, %s8, %s6
  loop: start=0, step=1, limit=4
  $region2: #{esa_forward.3} parent=0 // loop_pre_header
    _
  $region3: #{esa_forward.3} parent=0 // loop_header
    %s11 = sphi 0, %s15
    %p12 = scmp.ge.s32.totalorder %s11, 4
    %s18 = sphi 0, %s30
    %s19 = sphi 0, %s26
    %s20 = sphi 0, %s18
    %s21 = sphi 0, %s19
    %s22 = sphi 0, %s20
    %s23 = sphi 0, %s21
    %s35 = sphi 0, %s37
    %s38 = sphi 0, %s35
    %s39 = sphi 0, %s38
    %s55 = sphi 0, %s39
    %s63 = sphi 0, %s65
    %s66 = sphi 0, %s63
    %s67 = sphi 0, %s66
    %s83 = sphi 0, %s67
    %s87 = sphi 0, %s87
    %s89 = sphi 0, %s87
    %s90 = sphi 0, %s89
    %s104 = sphi 0, %s90
    %s108 = sphi 0, %s108
    %s110 = sphi 0, %s108
    %s111 = sphi 0, %s110
    %s125 = sphi 0, %s111
    %s129 = sphi 0, %s129
    %s131 = sphi 0, %s129
    %s132 = sphi 0, %s131
    %s146 = sphi 0, %s132
    %s154 = sphi 0, %s156
    %s157 = sphi 0, %s154
    %s158 = sphi 0, %s157
    %s174 = sphi 0, %s158
  $region4: #{esa_forward.3} parent=0 // loop_header_branch
    %14 = sbr.rel (%p12) target = $region8
  $region5: #{esa_forward.3} parent=0 // loop_body
    %s16 = ssub.s32 %s11, 1
    %s17 = ssub.s32 %s11, 2
    %s24 = sadd.s32 1, %s19
    %p25 = scmp.ge.s32.totalorder %s24, 1
    %s26 = scalar_select %p25, 0, %s24
    %s27 = sadd.s32 1, %s18
    %s28 = scalar_select %p25, %s27, %s18
    %p29 = scmp.ge.s32.totalorder %s28, 2
    %s30 = scalar_select %p29, 0, %s28
    %s31 = ssub.s32 %s18, %s30
    %s32 = ssub.s32 %s19, %s26
    %s33 = sor.u32 %s31, %s32
    %p34 = scmp.eq.s32.totalorder %s33, 0
    %s36 = sadd.s32 %s35, 1
    %s37 = scalar_select %p34, %s35, %s36
    %p40 = pneg %p34
    %p41 = scmp.eq.s32.totalorder %s11, 1
    %p42 = por %p40, %p41
    %p43 = scmp.ne.s32.totalorder %s35, %s38
    %p44 = scmp.eq.s32.totalorder %s11, 0
    %p45 = por %p43, %p44
    %p46 = scmp.ne.s32.totalorder %s35, %s38
    %p47 = scmp.eq.s32.totalorder %s16, 1
    %p48 = por %p46, %p47
    %p49 = scmp.ne.s32.totalorder %s38, %s39
    %p50 = scmp.eq.s32.totalorder %s16, 0
    %p51 = por %p49, %p50
    %p52 = scmp.ne.s32.totalorder %s38, %s39
    %p53 = scmp.eq.s32.totalorder %s17, 1
    %p54 = por %p52, %p53
    %p56 = scmp.ne.s32.totalorder %s39, %s55
    %p57 = scmp.eq.s32.totalorder %s17, 0
    %p58 = por %p56, %p57
    %s59 = sadd.s32 %s18, %s19
    %s60 = sadd.s32 %s30, %s26
    %s61 = ssub.s32 %s59, %s60
    %p62 = scmp.eq.s32.totalorder %s61, 0
    %s64 = sadd.s32 %s63, 1
    %s65 = scalar_select %p62, %s63, %s64
    %p68 = pneg %p62
    %p69 = scmp.eq.s32.totalorder %s11, 1
    %p70 = por %p68, %p69
    %p71 = scmp.ne.s32.totalorder %s63, %s66
    %p72 = scmp.eq.s32.totalorder %s11, 0
    %p73 = por %p71, %p72
    %p74 = scmp.ne.s32.totalorder %s63, %s66
    %p75 = scmp.eq.s32.totalorder %s16, 1
    %p76 = por %p74, %p75
    %p77 = scmp.ne.s32.totalorder %s66, %s67
    %p78 = scmp.eq.s32.totalorder %s16, 0
    %p79 = por %p77, %p78
    %p80 = scmp.ne.s32.totalorder %s66, %s67
    %p81 = scmp.eq.s32.totalorder %s17, 1
    %p82 = por %p80, %p81
    %p84 = scmp.ne.s32.totalorder %s67, %s83
    %p85 = scmp.eq.s32.totalorder %s17, 0
    %p86 = por %p84, %p85
    %s88 = sadd.s32 %s87, 1
    %p91 = scmp.eq.s32.totalorder %s11, 1
    %p92 = scmp.ne.s32.totalorder %s87, %s89
    %p93 = scmp.eq.s32.totalorder %s11, 0
    %p94 = por %p92, %p93
    %p95 = scmp.ne.s32.totalorder %s87, %s89
    %p96 = scmp.eq.s32.totalorder %s16, 1
    %p97 = por %p95, %p96
    %p98 = scmp.ne.s32.totalorder %s89, %s90
    %p99 = scmp.eq.s32.totalorder %s16, 0
    %p100 = por %p98, %p99
    %p101 = scmp.ne.s32.totalorder %s89, %s90
    %p102 = scmp.eq.s32.totalorder %s17, 1
    %p103 = por %p101, %p102
    %p105 = scmp.ne.s32.totalorder %s90, %s104
    %p106 = scmp.eq.s32.totalorder %s17, 0
    %p107 = por %p105, %p106
    %s109 = sadd.s32 %s108, 1
    %p112 = scmp.eq.s32.totalorder %s11, 1
    %p113 = scmp.ne.s32.totalorder %s108, %s110
    %p114 = scmp.eq.s32.totalorder %s11, 0
    %p115 = por %p113, %p114
    %p116 = scmp.ne.s32.totalorder %s108, %s110
    %p117 = scmp.eq.s32.totalorder %s16, 1
    %p118 = por %p116, %p117
    %p119 = scmp.ne.s32.totalorder %s110, %s111
    %p120 = scmp.eq.s32.totalorder %s16, 0
    %p121 = por %p119, %p120
    %p122 = scmp.ne.s32.totalorder %s110, %s111
    %p123 = scmp.eq.s32.totalorder %s17, 1
    %p124 = por %p122, %p123
    %p126 = scmp.ne.s32.totalorder %s111, %s125
    %p127 = scmp.eq.s32.totalorder %s17, 0
    %p128 = por %p126, %p127
    %s130 = sadd.s32 %s129, 1
    %p133 = scmp.eq.s32.totalorder %s11, 1
    %p134 = scmp.ne.s32.totalorder %s129, %s131
    %p135 = scmp.eq.s32.totalorder %s11, 0
    %p136 = por %p134, %p135
    %p137 = scmp.ne.s32.totalorder %s129, %s131
    %p138 = scmp.eq.s32.totalorder %s16, 1
    %p139 = por %p137, %p138
    %p140 = scmp.ne.s32.totalorder %s131, %s132
    %p141 = scmp.eq.s32.totalorder %s16, 0
    %p142 = por %p140, %p141
    %p143 = scmp.ne.s32.totalorder %s131, %s132
    %p144 = scmp.eq.s32.totalorder %s17, 1
    %p145 = por %p143, %p144
    %p147 = scmp.ne.s32.totalorder %s132, %s146
    %p148 = scmp.eq.s32.totalorder %s17, 0
    %p149 = por %p147, %p148
    %s150 = ssub.s32 %s18, %s30
    %s151 = ssub.s32 %s19, %s26
    %s152 = sor.u32 %s150, %s151
    %p153 = scmp.eq.s32.totalorder %s152, 0
    %s155 = sadd.s32 %s154, 1
    %s156 = scalar_select %p153, %s154, %s155
    %p159 = pneg %p153
    %p160 = scmp.eq.s32.totalorder %s11, 1
    %p161 = por %p159, %p160
    %p162 = scmp.ne.s32.totalorder %s154, %s157
    %p163 = scmp.eq.s32.totalorder %s11, 0
    %p164 = por %p162, %p163
    %p165 = scmp.ne.s32.totalorder %s154, %s157
    %p166 = scmp.eq.s32.totalorder %s16, 1
    %p167 = por %p165, %p166
    %p168 = scmp.ne.s32.totalorder %s157, %s158
    %p169 = scmp.eq.s32.totalorder %s16, 0
    %p170 = por %p168, %p169
    %p171 = scmp.ne.s32.totalorder %s157, %s158
    %p172 = scmp.eq.s32.totalorder %s17, 1
    %p173 = por %p171, %p172
    %p175 = scmp.ne.s32.totalorder %s158, %s174
    %p176 = scmp.eq.s32.totalorder %s17, 0
    %p177 = por %p175, %p176
    %p178 = scmp.le.s32.totalorder 1, %s11
    %p179 = scmp.lt.s32.totalorder %s11, 3
    %p180 = pnand %p178, %p179
    %p181 = pneg %p180
    // Predicated region
    $region9: #{esa_forward.3} parent=5 // pred_check
      _
    $region10: #{esa_forward.3} parent=5 // pred_check_branch
      %183 = sbr.rel (%p180) target = $region12
    $region11: #{esa_forward.3} parent=5 // pred_region
      %s184 = ssub.s32 %s11, 1
      // Predicated region
      $region13: #{esa_forward.3} parent=11 // pred_check
        %p185 = pneg %p100
      $region14: #{esa_forward.3} parent=11 // pred_check_branch
        %187 = sbr.rel (%p185) target = $region16
      $region15: #{esa_forward.3} parent=11 // pred_region
        _
      $region16: #{esa_forward.3} parent=11 // pred_fallthru
        _
      // Predicated region
      $region17: #{esa_forward.3} parent=11 // pred_check
        %p188 = pneg %p121
      $region18: #{esa_forward.3} parent=11 // pred_check_branch
        %190 = sbr.rel (%p188) target = $region20
      $region19: #{esa_forward.3} parent=11 // pred_region
        _
      $region20: #{esa_forward.3} parent=11 // pred_fallthru
        _
      // Predicated region
      $region21: #{esa_forward.3} parent=11 // pred_check
        %p191 = pneg %p142
      $region22: #{esa_forward.3} parent=11 // pred_check_branch
        %193 = sbr.rel (%p191) target = $region24
      $region23: #{esa_forward.3} parent=11 // pred_region
        _
      $region24: #{esa_forward.3} parent=11 // pred_fallthru
        _
    $region12: #{esa_forward.3} parent=5 // pred_fallthru
      _
    %p194 = scmp.lt.s32.totalorder %s11, 2
    // Predicated region
    $region25: #{esa_forward.3} parent=5 // pred_check
      %p195 = pneg %p194
    $region26: #{esa_forward.3} parent=5 // pred_check_branch
      %197 = sbr.rel (%p195) target = $region28
    $region27: #{esa_forward.3} parent=5 // pred_region
      // Predicated region
      $region29: #{esa_forward.3} parent=27 // pred_check
        %p198 = pneg %p45
      $region30: #{esa_forward.3} parent=27 // pred_check_branch
        %200 = sbr.rel (%p198) target = $region32
      $region31: #{esa_forward.3} parent=27 // pred_region
        %s201 = smul.u32 8, %s19
        %p202 = scmp.lt.s32.totalorder %s18, 1
        %s203 = scalar_select %p202, %s18, 1
        %p204 = scmp.lt.s32.totalorder %s201, 7
        %s205 = scalar_select %p204, %s201, 7
        %s206 = smul.addr %s203, 16
        %s207 = sadd.s32 %s205, %s206
        %s208 = smul.addr %s207, 8
        %s209 = scalar_lea.vmem %s0, %s208
        %s210 = smul.u32 8, %s19
      $region32: #{esa_forward.3} parent=27 // pred_fallthru
        _
      // Predicated region
      $region33: #{esa_forward.3} parent=27 // pred_check
        %p211 = pneg %p73
      $region34: #{esa_forward.3} parent=27 // pred_check_branch
        %213 = sbr.rel (%p211) target = $region36
      $region35: #{esa_forward.3} parent=27 // pred_region
        %s214 = sadd.s32 %s18, %s19
        %p215 = scmp.lt.s32.totalorder %s214, 1
        %s216 = scalar_select %p215, %s214, 1
        %s217 = smul.addr %s216, 2
        %s218 = smul.addr %s217, 8
        %s219 = scalar_lea.vmem %s1, %s218
        %s220 = sadd.s32 %s18, %s19
      $region36: #{esa_forward.3} parent=27 // pred_fallthru
        _
    $region28: #{esa_forward.3} parent=5 // pred_fallthru
      _
    %p221 = scmp.le.s32.totalorder 1, %s11
    %p222 = scmp.lt.s32.totalorder %s11, 3
    %p223 = pnand %p221, %p222
    %p224 = pneg %p223
    // Predicated region
    $region37: #{esa_forward.3} parent=5 // pred_check
      _
    $region38: #{esa_forward.3} parent=5 // pred_check_branch
      %226 = sbr.rel (%p223) target = $region40
    $region39: #{esa_forward.3} parent=5 // pred_region
      %s227 = ssub.s32 %s11, 1
      %s228 = smul.u32 8, %s21
      %p229 = scmp.lt.s32.totalorder %s20, 1
      %s230 = scalar_select %p229, %s20, 1
      %p231 = scmp.lt.s32.totalorder %s228, 7
      %s232 = scalar_select %p231, %s228, 7
      %s233 = smul.addr %s230, 16
      %s234 = sadd.s32 %s232, %s233
      %s235 = smul.addr %s234, 8
      %s236 = scalar_lea.vmem %s0, %s235
      %p237 = pneg %p51
      %p238 = pneg %p48
      %s239 = sadd.s32 %s20, %s21
      %p240 = scmp.lt.s32.totalorder %s239, 1
      %s241 = scalar_select %p240, %s239, 1
      %s242 = smul.addr %s241, 2
      %s243 = smul.addr %s242, 8
      %s244 = scalar_lea.vmem %s1, %s243
      %p245 = pneg %p79
      %p246 = pneg %p76
      %p247 = pneg %p100
      %p248 = pneg %p97
      %p249 = pneg %p121
      %p250 = pneg %p118
      %p251 = pneg %p142
      %p252 = pneg %p139
      %p253 = pneg %p170
      %p254 = pneg %p167
      %s255 = smul.u32 8, %s21
      %p256 = scmp.lt.s32.totalorder %s20, 1
      %s257 = scalar_select %p256, %s20, 1
      %p258 = scmp.lt.s32.totalorder %s255, 7
      %s259 = scalar_select %p258, %s255, 7
      %s260 = smul.addr %s257, 16
      %s261 = sadd.s32 %s259, %s260
      %s262 = smul.addr %s261, 8
      %s263 = scalar_lea.vmem %s5, %s262
      %s264 = smul.u32 8, %s21
      %p265 = scmp.lt.s32.totalorder %s20, 1
      %s266 = scalar_select %p265, %s20, 1
      %p267 = scmp.lt.s32.totalorder %s264, 7
      %s268 = scalar_select %p267, %s264, 7
      %s269 = smul.addr %s266, 16
      %s270 = sadd.s32 %s268, %s269
      %s271 = smul.addr %s270, 8
      %s272 = scalar_lea.vmem %s0, %s271
      %s273 = smul.u32 8, %s21
      %s274 = sadd.s32 %s20, %s21
      %p275 = scmp.lt.s32.totalorder %s274, 1
      %s276 = scalar_select %p275, %s274, 1
      %s277 = smul.addr %s276, 2
      %s278 = smul.addr %s277, 8
      %s279 = scalar_lea.vmem %s1, %s278
      %s280 = sadd.s32 %s20, %s21
      %s281 = smul.u32 8, %s21
      %p282 = scmp.lt.s32.totalorder %s20, 1
      %s283 = scalar_select %p282, %s20, 1
      %p284 = scmp.lt.s32.totalorder %s281, 7
      %s285 = scalar_select %p284, %s281, 7
      %s286 = smul.addr %s283, 16
      %s287 = sadd.s32 %s285, %s286
      %s288 = smul.addr %s287, 8
      %s289 = scalar_lea.vmem %s5, %s288
      %s290 = smul.u32 8, %s21
      %v291 = vld [vmem:[%s272] sm:$0xff]
      %v292 = vld [vmem:[%s272 + $0x8] sm:$0xff]
      %v293 = vld [vmem:[%s272 + $0x10] sm:$0xff]
      %v294 = vld [vmem:[%s272 + $0x18] sm:$0xff]
      %v295 = vld [vmem:[%s272 + $0x20] sm:$0xff]
      %v296 = vld [vmem:[%s272 + $0x28] sm:$0xff]
      %v297 = vld [vmem:[%s272 + $0x30] sm:$0xff]
      %v298 = vld [vmem:[%s272 + $0x38] sm:$0xff]
      %v299 = vld [vmem:[%s272 + $0x40] sm:$0xff]
      %v300 = vld [vmem:[%s272 + $0x48] sm:$0xff]
      %v301 = vld [vmem:[%s272 + $0x50] sm:$0xff]
      %v302 = vld [vmem:[%s272 + $0x58] sm:$0xff]
      %v303 = vld [vmem:[%s272 + $0x60] sm:$0xff]
      %v304 = vld [vmem:[%s272 + $0x68] sm:$0xff]
      %v305 = vld [vmem:[%s272 + $0x70] sm:$0xff]
      %v306 = vld [vmem:[%s272 + $0x78] sm:$0xff]
      %v307 = vld [vmem:[%s3] sm:$0xff]
      %v308 = vld [vmem:[%s3 + $0x8] sm:$0xff]
      %v309 = vld [vmem:[%s279] sm:$0xff]
      %v310 = vld [vmem:[%s279 + $0x8] sm:$0xff]
      %v311 = vld [vmem:[%s2] sm:$0xff]
      %v312 = vld [vmem:[%s2 + $0x8] sm:$0xff]
      %v313 = vld [vmem:[%s2 + $0x10] sm:$0xff]
      %v314 = vld [vmem:[%s2 + $0x18] sm:$0xff]
      %v315 = vld [vmem:[%s2 + $0x20] sm:$0xff]
      %v316 = vld [vmem:[%s2 + $0x28] sm:$0xff]
      %v317 = vld [vmem:[%s2 + $0x30] sm:$0xff]
      %v318 = vld [vmem:[%s2 + $0x38] sm:$0xff]
      %v319 = vld [vmem:[%s2 + $0x40] sm:$0xff]
      %v320 = vld [vmem:[%s2 + $0x48] sm:$0xff]
      %v321 = vld [vmem:[%s2 + $0x50] sm:$0xff]
      %v322 = vld [vmem:[%s2 + $0x58] sm:$0xff]
      %v323 = vld [vmem:[%s2 + $0x60] sm:$0xff]
      %v324 = vld [vmem:[%s2 + $0x68] sm:$0xff]
      %v325 = vld [vmem:[%s2 + $0x70] sm:$0xff]
      %v326 = vld [vmem:[%s2 + $0x78] sm:$0xff]
      %v327 = vld [vmem:[%s2 + $0x80] sm:$0xff]
      %v328 = vld [vmem:[%s2 + $0x88] sm:$0xff]
      %v329 = vld [vmem:[%s2 + $0x90] sm:$0xff]
      %v330 = vld [vmem:[%s2 + $0x98] sm:$0xff]
      %v331 = vld [vmem:[%s2 + $0xa0] sm:$0xff]
      %v332 = vld [vmem:[%s2 + $0xa8] sm:$0xff]
      %v333 = vld [vmem:[%s2 + $0xb0] sm:$0xff]
      %v334 = vld [vmem:[%s2 + $0xb8] sm:$0xff]
      %v335 = vld [vmem:[%s2 + $0xc0] sm:$0xff]
      %v336 = vld [vmem:[%s2 + $0xc8] sm:$0xff]
      %v337 = vld [vmem:[%s2 + $0xd0] sm:$0xff]
      %v338 = vld [vmem:[%s2 + $0xd8] sm:$0xff]
      %v339 = vld [vmem:[%s2 + $0xe0] sm:$0xff]
      %v340 = vld [vmem:[%s2 + $0xe8] sm:$0xff]
      %v341 = vld [vmem:[%s2 + $0xf0] sm:$0xff]
      %v342 = vld [vmem:[%s2 + $0xf8] sm:$0xff]
      %v343 = vld [vmem:[%s2 + $0x100] sm:$0xff]
      %v344 = vld [vmem:[%s2 + $0x108] sm:$0xff]
      %v345 = vld [vmem:[%s2 + $0x110] sm:$0xff]
      %v346 = vld [vmem:[%s2 + $0x118] sm:$0xff]
      %v347 = vld [vmem:[%s2 + $0x120] sm:$0xff]
      %v348 = vld [vmem:[%s2 + $0x128] sm:$0xff]
      %v349 = vld [vmem:[%s2 + $0x130] sm:$0xff]
      %v350 = vld [vmem:[%s2 + $0x138] sm:$0xff]
      %v351 = vld [vmem:[%s2 + $0x140] sm:$0xff]
      %v352 = vld [vmem:[%s2 + $0x148] sm:$0xff]
      %v353 = vld [vmem:[%s2 + $0x150] sm:$0xff]
      %v354 = vld [vmem:[%s2 + $0x158] sm:$0xff]
      %v355 = vld [vmem:[%s2 + $0x160] sm:$0xff]
      %v356 = vld [vmem:[%s2 + $0x168] sm:$0xff]
      %v357 = vld [vmem:[%s2 + $0x170] sm:$0xff]
      %v358 = vld [vmem:[%s2 + $0x178] sm:$0xff]
      %v359 = vld [vmem:[%s2 + $0x180] sm:$0xff]
      %v360 = vld [vmem:[%s2 + $0x188] sm:$0xff]
      %v361 = vld [vmem:[%s2 + $0x190] sm:$0xff]
      %v362 = vld [vmem:[%s2 + $0x198] sm:$0xff]
      %v363 = vld [vmem:[%s2 + $0x1a0] sm:$0xff]
      %v364 = vld [vmem:[%s2 + $0x1a8] sm:$0xff]
      %v365 = vld [vmem:[%s2 + $0x1b0] sm:$0xff]
      %v366 = vld [vmem:[%s2 + $0x1b8] sm:$0xff]
      %v367 = vld [vmem:[%s2 + $0x1c0] sm:$0xff]
      %v368 = vld [vmem:[%s2 + $0x1c8] sm:$0xff]
      %v369 = vld [vmem:[%s2 + $0x1d0] sm:$0xff]
      %v370 = vld [vmem:[%s2 + $0x1d8] sm:$0xff]
      %v371 = vld [vmem:[%s2 + $0x1e0] sm:$0xff]
      %v372 = vld [vmem:[%s2 + $0x1e8] sm:$0xff]
      %v373 = vld [vmem:[%s2 + $0x1f0] sm:$0xff]
      %v374 = vld [vmem:[%s2 + $0x1f8] sm:$0xff]
      %v375 = vld [vmem:[%s2 + $0x200] sm:$0xff]
      %v376 = vld [vmem:[%s2 + $0x208] sm:$0xff]
      %v377 = vld [vmem:[%s2 + $0x210] sm:$0xff]
      %v378 = vld [vmem:[%s2 + $0x218] sm:$0xff]
      %v379 = vld [vmem:[%s2 + $0x220] sm:$0xff]
      %v380 = vld [vmem:[%s2 + $0x228] sm:$0xff]
      %v381 = vld [vmem:[%s2 + $0x230] sm:$0xff]
      %v382 = vld [vmem:[%s2 + $0x238] sm:$0xff]
      %v383 = vld [vmem:[%s2 + $0x240] sm:$0xff]
      %v384 = vld [vmem:[%s2 + $0x248] sm:$0xff]
      %v385 = vld [vmem:[%s2 + $0x250] sm:$0xff]
      %v386 = vld [vmem:[%s2 + $0x258] sm:$0xff]
      %v387 = vld [vmem:[%s2 + $0x260] sm:$0xff]
      %v388 = vld [vmem:[%s2 + $0x268] sm:$0xff]
      %v389 = vld [vmem:[%s2 + $0x270] sm:$0xff]
      %v390 = vld [vmem:[%s2 + $0x278] sm:$0xff]
      %v391 = vld [vmem:[%s2 + $0x280] sm:$0xff]
      %v392 = vld [vmem:[%s2 + $0x288] sm:$0xff]
      %v393 = vld [vmem:[%s2 + $0x290] sm:$0xff]
      %v394 = vld [vmem:[%s2 + $0x298] sm:$0xff]
      %v395 = vld [vmem:[%s2 + $0x2a0] sm:$0xff]
      %v396 = vld [vmem:[%s2 + $0x2a8] sm:$0xff]
      %v397 = vld [vmem:[%s2 + $0x2b0] sm:$0xff]
      %v398 = vld [vmem:[%s2 + $0x2b8] sm:$0xff]
      %v399 = vld [vmem:[%s2 + $0x2c0] sm:$0xff]
      %v400 = vld [vmem:[%s2 + $0x2c8] sm:$0xff]
      %v401 = vld [vmem:[%s2 + $0x2d0] sm:$0xff]
      %v402 = vld [vmem:[%s2 + $0x2d8] sm:$0xff]
      %v403 = vld [vmem:[%s2 + $0x2e0] sm:$0xff]
      %v404 = vld [vmem:[%s2 + $0x2e8] sm:$0xff]
      %v405 = vld [vmem:[%s2 + $0x2f0] sm:$0xff]
      %v406 = vld [vmem:[%s2 + $0x2f8] sm:$0xff]
      %vm407 = vcmask 785408
      %v409 = vsel %vm407, %v309, 0
      %v412 = vsel %vm407, %v310, 0
      %v414 = vand.u32 %v312, 4294901760
      %415 = vmatprep.subr.mxu0 %v414
      %v416 = vand.u32 %v311, 4294901760
      %417 = vmatpush1.msra.mxu0 %v416
      %v418 = vand.u32 %v320, 4294901760
      %419 = vmatprep.subr.mxu0 %v418
      %v420 = vand.u32 %v319, 4294901760
      %421 = vmatpush1.msra.mxu0 %v420
      %v422 = vand.u32 %v328, 4294901760
      %423 = vmatprep.subr.mxu0 %v422
      %v424 = vand.u32 %v327, 4294901760
      %425 = vmatpush1.msra.mxu0 %v424
      %v426 = vand.u32 %v336, 4294901760
      %427 = vmatprep.subr.mxu0 %v426
      %v428 = vand.u32 %v335, 4294901760
      %429 = vmatpush1.msra.mxu0 %v428
      %v430 = vand.u32 %v344, 4294901760
      %431 = vmatprep.subr.mxu0 %v430
      %v432 = vand.u32 %v343, 4294901760
      %433 = vmatpush1.msra.mxu0 %v432
      %v434 = vand.u32 %v352, 4294901760
      %435 = vmatprep.subr.mxu0 %v434
      %v436 = vand.u32 %v351, 4294901760
      %437 = vmatpush1.msra.mxu0 %v436
      %v438 = vand.u32 %v360, 4294901760
      %439 = vmatprep.subr.mxu0 %v438
      %v440 = vand.u32 %v359, 4294901760
      %441 = vmatpush1.msra.mxu0 %v440
      %v442 = vand.u32 %v368, 4294901760
      %443 = vmatprep.subr.mxu0 %v442
      %v444 = vand.u32 %v367, 4294901760
      %445 = vmatpush1.msra.mxu0 %v444
      %v446 = vand.u32 %v376, 4294901760
      %447 = vmatprep.subr.mxu0 %v446
      %v448 = vand.u32 %v375, 4294901760
      %449 = vmatpush1.msra.mxu0 %v448
      %v450 = vand.u32 %v384, 4294901760
      %451 = vmatprep.subr.mxu0 %v450
      %v452 = vand.u32 %v383, 4294901760
      %453 = vmatpush1.msra.mxu0 %v452
      %v454 = vand.u32 %v392, 4294901760
      %455 = vmatprep.subr.mxu0 %v454
      %v456 = vand.u32 %v391, 4294901760
      %457 = vmatpush1.msra.mxu0 %v456
      %v458 = vand.u32 %v400, 4294901760
      %459 = vmatprep.subr.mxu0 %v458
      %v460 = vand.u32 %v399, 4294901760
      %461 = vmatpush1.msra.mxu0 %v460
      %462 = vmatprep.subr.mxu0 0.0
      %463 = vmatpush1.msra.mxu0 0.0
      %464 = vmatprep.subr.mxu0 0.0
      %465 = vmatpush1.msra.mxu0 0.0
      %466 = vmatprep.subr.mxu0 0.0
      %467 = vmatpush1.msra.mxu0 0.0
      %468 = vmatprep.subr.mxu0 0.0
      %469 = vmatpush1.msra.mxu0 0.0
      %470 = vmatprep.subr.mxu0 0.0
      %471 = vmatpush1.msra.mxu0 0.0
      %472 = vmatprep.subr.mxu0 0.0
      %473 = vmatpush1.msra.mxu0 0.0
      %474 = vmatprep.subr.mxu0 0.0
      %475 = vmatpush1.msra.mxu0 0.0
      %476 = vmatprep.subr.mxu0 0.0
      %477 = vmatpush1.msra.mxu0 0.0
      %478 = vmatprep.subr.mxu0 0.0
      %479 = vmatpush1.msra.mxu0 0.0
      %480 = vmatprep.subr.mxu0 0.0
      %481 = vmatpush1.msra.mxu0 0.0
      %482 = vmatprep.subr.mxu0 0.0
      %483 = vmatpush1.msra.mxu0 0.0
      %484 = vmatprep.subr.mxu0 0.0
      %485 = vmatpush1.msra.mxu0 0.0
      %486 = vmatprep.subr.mxu0 0.0
      %487 = vmatpush1.msra.mxu0 0.0
      %488 = vmatprep.subr.mxu0 0.0
      %489 = vmatpush1.msra.mxu0 0.0
      %490 = vmatprep.subr.mxu0 0.0
      %491 = vmatpush1.msra.mxu0 0.0
      %492 = vmatprep.subr.mxu0 0.0
      %493 = vmatpush1.msra.mxu0 0.0
      %494 = vmatprep.subr.mxu0 0.0
      %495 = vmatpush1.msra.mxu0 0.0
      %496 = vmatprep.subr.mxu0 0.0
      %497 = vmatpush1.msra.mxu0 0.0
      %498 = vmatprep.subr.mxu0 0.0
      %499 = vmatpush1.msra.mxu0 0.0
      %500 = vmatprep.subr.mxu0 0.0
      %501 = vmatpush1.msra.mxu0 0.0
      %502 = vmatprep.mubr.f32.mxu0 0.0
      %v503 = vand.u32 %v409, 4294901760
      %v504 = vsub.f32 %v409, %v503
      %v505 = vand.u32 %v504, 4294901760
      %v506 = vsub.f32 %v504, %v505
      %v507 = vand.u32 %v506, 4294901760
      %508 = vmatmul.mubr.f32.gmra.mrb[0].mxu0 %v507
      %v509 = vpop.f32.mrb[0].mxu0
      %v510 = vadd.f32 0.0, %v509
      %v511 = vpop.f32.mrb[0].mxu0
      %v512 = vadd.f32 0.0, %v511
      %513 = vmatprep.mubr.f32.mxu0 0.0
      %v514 = vand.u32 %v412, 4294901760
      %v515 = vsub.f32 %v412, %v514
      %v516 = vand.u32 %v515, 4294901760
      %v517 = vsub.f32 %v515, %v516
      %v518 = vand.u32 %v517, 4294901760
      %519 = vmatmul.mubr.f32.gmra.mrb[0].mxu0 %v518
      %v520 = vpop.f32.mrb[0].mxu0
      %v521 = vadd.f32 0.0, %v520
      %v522 = vpop.f32.mrb[0].mxu0
      %v523 = vadd.f32 0.0, %v522
      %524 = vdwg.mxu0
      %v525 = vand.u32 %v312, 4294901760
      %v526 = vsub.f32 %v312, %v525
      %v527 = vand.u32 %v526, 4294901760
      %v528 = vsub.f32 %v526, %v527
      %v529 = vand.u32 %v528, 4294901760
      %530 = vmatprep.subr.mxu0 %v529
      %v531 = vand.u32 %v311, 4294901760
      %v532 = vsub.f32 %v311, %v531
      %v533 = vand.u32 %v532, 4294901760
      %v534 = vsub.f32 %v532, %v533
      %v535 = vand.u32 %v534, 4294901760
      %536 = vmatpush1.msra.mxu0 %v535
      %v537 = vand.u32 %v320, 4294901760
      %v538 = vsub.f32 %v320, %v537
      %v539 = vand.u32 %v538, 4294901760
      %v540 = vsub.f32 %v538, %v539
      %v541 = vand.u32 %v540, 4294901760
      %542 = vmatprep.subr.mxu0 %v541
      %v543 = vand.u32 %v319, 4294901760
      %v544 = vsub.f32 %v319, %v543
      %v545 = vand.u32 %v544, 4294901760
      %v546 = vsub.f32 %v544, %v545
      %v547 = vand.u32 %v546, 4294901760
      %548 = vmatpush1.msra.mxu0 %v547
      %v549 = vand.u32 %v328, 4294901760
      %v550 = vsub.f32 %v328, %v549
      %v551 = vand.u32 %v550, 4294901760
      %v552 = vsub.f32 %v550, %v551
      %v553 = vand.u32 %v552, 4294901760
      %554 = vmatprep.subr.mxu0 %v553
      %v555 = vand.u32 %v327, 4294901760
      %v556 = vsub.f32 %v327, %v555
      %v557 = vand.u32 %v556, 4294901760
      %v558 = vsub.f32 %v556, %v557
      %v559 = vand.u32 %v558, 4294901760
      %560 = vmatpush1.msra.mxu0 %v559
      %v561 = vand.u32 %v336, 4294901760
      %v562 = vsub.f32 %v336, %v561
      %v563 = vand.u32 %v562, 4294901760
      %v564 = vsub.f32 %v562, %v563
      %v565 = vand.u32 %v564, 4294901760
      %566 = vmatprep.subr.mxu0 %v565
      %v567 = vand.u32 %v335, 4294901760
      %v568 = vsub.f32 %v335, %v567
      %v569 = vand.u32 %v568, 4294901760
      %v570 = vsub.f32 %v568, %v569
      %v571 = vand.u32 %v570, 4294901760
      %572 = vmatpush1.msra.mxu0 %v571
      %v573 = vand.u32 %v344, 4294901760
      %v574 = vsub.f32 %v344, %v573
      %v575 = vand.u32 %v574, 4294901760
      %v576 = vsub.f32 %v574, %v575
      %v577 = vand.u32 %v576, 4294901760
      %578 = vmatprep.subr.mxu0 %v577
      %v579 = vand.u32 %v343, 4294901760
      %v580 = vsub.f32 %v343, %v579
      %v581 = vand.u32 %v580, 4294901760
      %v582 = vsub.f32 %v580, %v581
      %v583 = vand.u32 %v582, 4294901760
      %584 = vmatpush1.msra.mxu0 %v583
      %v585 = vand.u32 %v352, 4294901760
      %v586 = vsub.f32 %v352, %v585
      %v587 = vand.u32 %v586, 4294901760
      %v588 = vsub.f32 %v586, %v587
      %v589 = vand.u32 %v588, 4294901760
      %590 = vmatprep.subr.mxu0 %v589
      %v591 = vand.u32 %v351, 4294901760
      %v592 = vsub.f32 %v351, %v591
      %v593 = vand.u32 %v592, 4294901760
      %v594 = vsub.f32 %v592, %v593
      %v595 = vand.u32 %v594, 4294901760
      %596 = vmatpush1.msra.mxu0 %v595
      %v597 = vand.u32 %v360, 4294901760
      %v598 = vsub.f32 %v360, %v597
      %v599 = vand.u32 %v598, 4294901760
      %v600 = vsub.f32 %v598, %v599
      %v601 = vand.u32 %v600, 4294901760
      %602 = vmatprep.subr.mxu0 %v601
      %v603 = vand.u32 %v359, 4294901760
      %v604 = vsub.f32 %v359, %v603
      %v605 = vand.u32 %v604, 4294901760
      %v606 = vsub.f32 %v604, %v605
      %v607 = vand.u32 %v606, 4294901760
      %608 = vmatpush1.msra.mxu0 %v607
      %v609 = vand.u32 %v368, 4294901760
      %v610 = vsub.f32 %v368, %v609
      %v611 = vand.u32 %v610, 4294901760
      %v612 = vsub.f32 %v610, %v611
      %v613 = vand.u32 %v612, 4294901760
      %614 = vmatprep.subr.mxu0 %v613
      %v615 = vand.u32 %v367, 4294901760
      %v616 = vsub.f32 %v367, %v615
      %v617 = vand.u32 %v616, 4294901760
      %v618 = vsub.f32 %v616, %v617
      %v619 = vand.u32 %v618, 4294901760
      %620 = vmatpush1.msra.mxu0 %v619
      %v621 = vand.u32 %v376, 4294901760
      %v622 = vsub.f32 %v376, %v621
      %v623 = vand.u32 %v622, 4294901760
      %v624 = vsub.f32 %v622, %v623
      %v625 = vand.u32 %v624, 4294901760
      %626 = vmatprep.subr.mxu0 %v625
      %v627 = vand.u32 %v375, 4294901760
      %v628 = vsub.f32 %v375, %v627
      %v629 = vand.u32 %v628, 4294901760
      %v630 = vsub.f32 %v628, %v629
      %v631 = vand.u32 %v630, 4294901760
      %632 = vmatpush1.msra.mxu0 %v631
      %v633 = vand.u32 %v384, 4294901760
      %v634 = vsub.f32 %v384, %v633
      %v635 = vand.u32 %v634, 4294901760
      %v636 = vsub.f32 %v634, %v635
      %v637 = vand.u32 %v636, 4294901760
      %638 = vmatprep.subr.mxu0 %v637
      %v639 = vand.u32 %v383, 4294901760
      %v640 = vsub.f32 %v383, %v639
      %v641 = vand.u32 %v640, 4294901760
      %v642 = vsub.f32 %v640, %v641
      %v643 = vand.u32 %v642, 4294901760
      %644 = vmatpush1.msra.mxu0 %v643
      %v645 = vand.u32 %v392, 4294901760
      %v646 = vsub.f32 %v392, %v645
      %v647 = vand.u32 %v646, 4294901760
      %v648 = vsub.f32 %v646, %v647
      %v649 = vand.u32 %v648, 4294901760
      %650 = vmatprep.subr.mxu0 %v649
      %v651 = vand.u32 %v391, 4294901760
      %v652 = vsub.f32 %v391, %v651
      %v653 = vand.u32 %v652, 4294901760
      %v654 = vsub.f32 %v652, %v653
      %v655 = vand.u32 %v654, 4294901760
      %656 = vmatpush1.msra.mxu0 %v655
      %v657 = vand.u32 %v400, 4294901760
      %v658 = vsub.f32 %v400, %v657
      %v659 = vand.u32 %v658, 4294901760
      %v660 = vsub.f32 %v658, %v659
      %v661 = vand.u32 %v660, 4294901760
      %662 = vmatprep.subr.mxu0 %v661
      %v663 = vand.u32 %v399, 4294901760
      %v664 = vsub.f32 %v399, %v663
      %v665 = vand.u32 %v664, 4294901760
      %v666 = vsub.f32 %v664, %v665
      %v667 = vand.u32 %v666, 4294901760
      %668 = vmatpush1.msra.mxu0 %v667
      %669 = vmatprep.subr.mxu0 0.0
      %670 = vmatpush1.msra.mxu0 0.0
      %671 = vmatprep.subr.mxu0 0.0
      %672 = vmatpush1.msra.mxu0 0.0
      %673 = vmatprep.subr.mxu0 0.0
      %674 = vmatpush1.msra.mxu0 0.0
      %675 = vmatprep.subr.mxu0 0.0
      %676 = vmatpush1.msra.mxu0 0.0
      %677 = vmatprep.subr.mxu0 0.0
      %678 = vmatpush1.msra.mxu0 0.0
      %679 = vmatprep.subr.mxu0 0.0
      %680 = vmatpush1.msra.mxu0 0.0
      %681 = vmatprep.subr.mxu0 0.0
      %682 = vmatpush1.msra.mxu0 0.0
      %683 = vmatprep.subr.mxu0 0.0
      %684 = vmatpush1.msra.mxu0 0.0
      %685 = vmatprep.subr.mxu0 0.0
      %686 = vmatpush1.msra.mxu0 0.0
      %687 = vmatprep.subr.mxu0 0.0
      %688 = vmatpush1.msra.mxu0 0.0
      %689 = vmatprep.subr.mxu0 0.0
      %690 = vmatpush1.msra.mxu0 0.0
      %691 = vmatprep.subr.mxu0 0.0
      %692 = vmatpush1.msra.mxu0 0.0
      %693 = vmatprep.subr.mxu0 0.0
      %694 = vmatpush1.msra.mxu0 0.0
      %695 = vmatprep.subr.mxu0 0.0
      %696 = vmatpush1.msra.mxu0 0.0
      %697 = vmatprep.subr.mxu0 0.0
      %698 = vmatpush1.msra.mxu0 0.0
      %699 = vmatprep.subr.mxu0 0.0
      %700 = vmatpush1.msra.mxu0 0.0
      %701 = vmatprep.subr.mxu0 0.0
      %702 = vmatpush1.msra.mxu0 0.0
      %703 = vmatprep.subr.mxu0 0.0
      %704 = vmatpush1.msra.mxu0 0.0
      %705 = vmatprep.subr.mxu0 0.0
      %706 = vmatpush1.msra.mxu0 0.0
      %707 = vmatprep.subr.mxu0 0.0
      %708 = vmatpush1.msra.mxu0 0.0
      %709 = vmatprep.mubr.f32.mxu0 0.0
      %v710 = vand.u32 %v409, 4294901760
      %711 = vmatmul.mubr.f32.gmra.mrb[0].mxu0 %v710
      %v712 = vpop.f32.mrb[0].mxu0
      %v713 = vadd.f32 %v510, %v712
      %v714 = vpop.f32.mrb[0].mxu0
      %v715 = vadd.f32 %v512, %v714
      %716 = vmatprep.mubr.f32.mxu0 0.0
      %v717 = vand.u32 %v412, 4294901760
      %718 = vmatmul.mubr.f32.gmra.mrb[0].mxu0 %v717
      %v719 = vpop.f32.mrb[0].mxu0
      %v720 = vadd.f32 %v521, %v719
      %v721 = vpop.f32.mrb[0].mxu0
      %v722 = vadd.f32 %v523, %v721
      %723 = vdwg.mxu0
      %v724 = vand.u32 %v312, 4294901760
      %v725 = vsub.f32 %v312, %v724
      %726 = vmatprep.subr.mxu0 %v725
      %v727 = vand.u32 %v311, 4294901760
      %v728 = vsub.f32 %v311, %v727
      %729 = vmatpush1.msra.mxu0 %v728
      %v730 = vand.u32 %v320, 4294901760
      %v731 = vsub.f32 %v320, %v730
      %732 = vmatprep.subr.mxu0 %v731
      %v733 = vand.u32 %v319, 4294901760
      %v734 = vsub.f32 %v319, %v733
      %735 = vmatpush1.msra.mxu0 %v734
      %v736 = vand.u32 %v328, 4294901760
      %v737 = vsub.f32 %v328, %v736
      %738 = vmatprep.subr.mxu0 %v737
      %v739 = vand.u32 %v327, 4294901760
      %v740 = vsub.f32 %v327, %v739
      %741 = vmatpush1.msra.mxu0 %v740
      %v742 = vand.u32 %v336, 4294901760
      %v743 = vsub.f32 %v336, %v742
      %744 = vmatprep.subr.mxu0 %v743
      %v745 = vand.u32 %v335, 4294901760
      %v746 = vsub.f32 %v335, %v745
      %747 = vmatpush1.msra.mxu0 %v746
      %v748 = vand.u32 %v344, 4294901760
      %v749 = vsub.f32 %v344, %v748
      %750 = vmatprep.subr.mxu0 %v749
      %v751 = vand.u32 %v343, 4294901760
      %v752 = vsub.f32 %v343, %v751
      %753 = vmatpush1.msra.mxu0 %v752
      %v754 = vand.u32 %v352, 4294901760
      %v755 = vsub.f32 %v352, %v754
      %756 = vmatprep.subr.mxu0 %v755
      %v757 = vand.u32 %v351, 4294901760
      %v758 = vsub.f32 %v351, %v757
      %759 = vmatpush1.msra.mxu0 %v758
      %v760 = vand.u32 %v360, 4294901760
      %v761 = vsub.f32 %v360, %v760
      %762 = vmatprep.subr.mxu0 %v761
      %v763 = vand.u32 %v359, 4294901760
      %v764 = vsub.f32 %v359, %v763
      %765 = vmatpush1.msra.mxu0 %v764
      %v766 = vand.u32 %v368, 4294901760
      %v767 = vsub.f32 %v368, %v766
      %768 = vmatprep.subr.mxu0 %v767
      %v769 = vand.u32 %v367, 4294901760
      %v770 = vsub.f32 %v367, %v769
      %771 = vmatpush1.msra.mxu0 %v770
      %v772 = vand.u32 %v376, 4294901760
      %v773 = vsub.f32 %v376, %v772
      %774 = vmatprep.subr.mxu0 %v773
      %v775 = vand.u32 %v375, 4294901760
      %v776 = vsub.f32 %v375, %v775
      %777 = vmatpush1.msra.mxu0 %v776
      %v778 = vand.u32 %v384, 4294901760
      %v779 = vsub.f32 %v384, %v778
      %780 = vmatprep.subr.mxu0 %v779
      %v781 = vand.u32 %v383, 4294901760
      %v782 = vsub.f32 %v383, %v781
      %783 = vmatpush1.msra.mxu0 %v782
      %v784 = vand.u32 %v392, 4294901760
      %v785 = vsub.f32 %v392, %v784
      %786 = vmatprep.subr.mxu0 %v785
      %v787 = vand.u32 %v391, 4294901760
      %v788 = vsub.f32 %v391, %v787
      %789 = vmatpush1.msra.mxu0 %v788
      %v790 = vand.u32 %v400, 4294901760
      %v791 = vsub.f32 %v400, %v790
      %792 = vmatprep.subr.mxu0 %v791
      %v793 = vand.u32 %v399, 4294901760
      %v794 = vsub.f32 %v399, %v793
      %795 = vmatpush1.msra.mxu0 %v794
      %796 = vmatprep.subr.mxu0 0.0
      %797 = vmatpush1.msra.mxu0 0.0
      %798 = vmatprep.subr.mxu0 0.0
      %799 = vmatpush1.msra.mxu0 0.0
      %800 = vmatprep.subr.mxu0 0.0
      %801 = vmatpush1.msra.mxu0 0.0
      %802 = vmatprep.subr.mxu0 0.0
      %803 = vmatpush1.msra.mxu0 0.0
      %804 = vmatprep.subr.mxu0 0.0
      %805 = vmatpush1.msra.mxu0 0.0
      %806 = vmatprep.subr.mxu0 0.0
      %807 = vmatpush1.msra.mxu0 0.0
      %808 = vmatprep.subr.mxu0 0.0
      %809 = vmatpush1.msra.mxu0 0.0
      %810 = vmatprep.subr.mxu0 0.0
      %811 = vmatpush1.msra.mxu0 0.0
      %812 = vmatprep.subr.mxu0 0.0
      %813 = vmatpush1.msra.mxu0 0.0
      %814 = vmatprep.subr.mxu0 0.0
      %815 = vmatpush1.msra.mxu0 0.0
      %816 = vmatprep.subr.mxu0 0.0
      %817 = vmatpush1.msra.mxu0 0.0
      %818 = vmatprep.subr.mxu0 0.0
      %819 = vmatpush1.msra.mxu0 0.0
      %820 = vmatprep.subr.mxu0 0.0
      %821 = vmatpush1.msra.mxu0 0.0
      %822 = vmatprep.subr.mxu0 0.0
      %823 = vmatpush1.msra.mxu0 0.0
      %824 = vmatprep.subr.mxu0 0.0
      %825 = vmatpush1.msra.mxu0 0.0
      %826 = vmatprep.subr.mxu0 0.0
      %827 = vmatpush1.msra.mxu0 0.0
      %828 = vmatprep.subr.mxu0 0.0
      %829 = vmatpush1.msra.mxu0 0.0
      %830 = vmatprep.subr.mxu0 0.0
      %831 = vmatpush1.msra.mxu0 0.0
      %832 = vmatprep.subr.mxu0 0.0
      %833 = vmatpush1.msra.mxu0 0.0
      %834 = vmatprep.subr.mxu0 0.0
      %835 = vmatpush1.msra.mxu0 0.0
      %836 = vmatprep.mubr.f32.mxu0 0.0
      %v837 = vand.u32 %v409, 4294901760
      %v838 = vsub.f32 %v409, %v837
      %839 = vmatmul.mubr.f32.gmra.mrb[0].mxu0 %v838
      %v840 = vpop.f32.mrb[0].mxu0
      %v841 = vadd.f32 %v713, %v840
      %v842 = vpop.f32.mrb[0].mxu0
      %v843 = vadd.f32 %v715, %v842
      %844 = vmatprep.mubr.f32.mxu0 0.0
      %v845 = vand.u32 %v412, 4294901760
      %v846 = vsub.f32 %v412, %v845
      %847 = vmatmul.mubr.f32.gmra.mrb[0].mxu0 %v846
      %v848 = vpop.f32.mrb[0].mxu0
      %v849 = vadd.f32 %v720, %v848
      %v850 = vpop.f32.mrb[0].mxu0
      %v851 = vadd.f32 %v722, %v850
      %852 = vdwg.mxu0
      %v853 = vand.u32 %v312, 4294901760
      %854 = vmatprep.subr.mxu0 %v853
      %v855 = vand.u32 %v311, 4294901760
      %856 = vmatpush1.msra.mxu0 %v855
      %v857 = vand.u32 %v320, 4294901760
      %858 = vmatprep.subr.mxu0 %v857
      %v859 = vand.u32 %v319, 4294901760
      %860 = vmatpush1.msra.mxu0 %v859
      %v861 = vand.u32 %v328, 4294901760
      %862 = vmatprep.subr.mxu0 %v861
      %v863 = vand.u32 %v327, 4294901760
      %864 = vmatpush1.msra.mxu0 %v863
      %v865 = vand.u32 %v336, 4294901760
      %866 = vmatprep.subr.mxu0 %v865
      %v867 = vand.u32 %v335, 4294901760
      %868 = vmatpush1.msra.mxu0 %v867
      %v869 = vand.u32 %v344, 4294901760
      %870 = vmatprep.subr.mxu0 %v869
      %v871 = vand.u32 %v343, 4294901760
      %872 = vmatpush1.msra.mxu0 %v871
      %v873 = vand.u32 %v352, 4294901760
      %874 = vmatprep.subr.mxu0 %v873
      %v875 = vand.u32 %v351, 4294901760
      %876 = vmatpush1.msra.mxu0 %v875
      %v877 = vand.u32 %v360, 4294901760
      %878 = vmatprep.subr.mxu0 %v877
      %v879 = vand.u32 %v359, 4294901760
      %880 = vmatpush1.msra.mxu0 %v879
      %v881 = vand.u32 %v368, 4294901760
      %882 = vmatprep.subr.mxu0 %v881
      %v883 = vand.u32 %v367, 4294901760
      %884 = vmatpush1.msra.mxu0 %v883
      %v885 = vand.u32 %v376, 4294901760
      %886 = vmatprep.subr.mxu0 %v885
      %v887 = vand.u32 %v375, 4294901760
      %888 = vmatpush1.msra.mxu0 %v887
      %v889 = vand.u32 %v384, 4294901760
      %890 = vmatprep.subr.mxu0 %v889
      %v891 = vand.u32 %v383, 4294901760
      %892 = vmatpush1.msra.mxu0 %v891
      %v893 = vand.u32 %v392, 4294901760
      %894 = vmatprep.subr.mxu0 %v893
      %v895 = vand.u32 %v391, 4294901760
      %896 = vmatpush1.msra.mxu0 %v895
      %v897 = vand.u32 %v400, 4294901760
      %898 = vmatprep.subr.mxu0 %v897
      %v899 = vand.u32 %v399, 4294901760
      %900 = vmatpush1.msra.mxu0 %v899
      %901 = vmatprep.subr.mxu0 0.0
      %902 = vmatpush1.msra.mxu0 0.0
      %903 = vmatprep.subr.mxu0 0.0
      %904 = vmatpush1.msra.mxu0 0.0
      %905 = vmatprep.subr.mxu0 0.0
      %906 = vmatpush1.msra.mxu0 0.0
      %907 = vmatprep.subr.mxu0 0.0
      %908 = vmatpush1.msra.mxu0 0.0
      %909 = vmatprep.subr.mxu0 0.0
      %910 = vmatpush1.msra.mxu0 0.0
      %911 = vmatprep.subr.mxu0 0.0
      %912 = vmatpush1.msra.mxu0 0.0
      %913 = vmatprep.subr.mxu0 0.0
      %914 = vmatpush1.msra.mxu0 0.0
      %915 = vmatprep.subr.mxu0 0.0
      %916 = vmatpush1.msra.mxu0 0.0
      %917 = vmatprep.subr.mxu0 0.0
      %918 = vmatpush1.msra.mxu0 0.0
      %919 = vmatprep.subr.mxu0 0.0
      %920 = vmatpush1.msra.mxu0 0.0
      %921 = vmatprep.subr.mxu0 0.0
      %922 = vmatpush1.msra.mxu0 0.0
      %923 = vmatprep.subr.mxu0 0.0
      %924 = vmatpush1.msra.mxu0 0.0
      %925 = vmatprep.subr.mxu0 0.0
      %926 = vmatpush1.msra.mxu0 0.0
      %927 = vmatprep.subr.mxu0 0.0
      %928 = vmatpush1.msra.mxu0 0.0
      %929 = vmatprep.subr.mxu0 0.0
      %930 = vmatpush1.msra.mxu0 0.0
      %931 = vmatprep.subr.mxu0 0.0
      %932 = vmatpush1.msra.mxu0 0.0
      %933 = vmatprep.subr.mxu0 0.0
      %934 = vmatpush1.msra.mxu0 0.0
      %935 = vmatprep.subr.mxu0 0.0
      %936 = vmatpush1.msra.mxu0 0.0
      %937 = vmatprep.subr.mxu0 0.0
      %938 = vmatpush1.msra.mxu0 0.0
      %939 = vmatprep.subr.mxu0 0.0
      %940 = vmatpush1.msra.mxu0 0.0
      %941 = vmatprep.mubr.f32.mxu0 0.0
      %v942 = vand.u32 %v409, 4294901760
      %v943 = vsub.f32 %v409, %v942
      %v944 = vand.u32 %v943, 4294901760
      %945 = vmatmul.mubr.f32.gmra.mrb[0].mxu0 %v944
      %v946 = vpop.f32.mrb[0].mxu0
      %v947 = vadd.f32 %v841, %v946
      %v948 = vpop.f32.mrb[0].mxu0
      %v949 = vadd.f32 %v843, %v948
      %950 = vmatprep.mubr.f32.mxu0 0.0
      %v951 = vand.u32 %v412, 4294901760
      %v952 = vsub.f32 %v412, %v951
      %v953 = vand.u32 %v952, 4294901760
      %954 = vmatmul.mubr.f32.gmra.mrb[0].mxu0 %v953
      %v955 = vpop.f32.mrb[0].mxu0
      %v956 = vadd.f32 %v849, %v955
      %v957 = vpop.f32.mrb[0].mxu0
      %v958 = vadd.f32 %v851, %v957
      %959 = vdwg.mxu0
      %v960 = vand.u32 %v312, 4294901760
      %v961 = vsub.f32 %v312, %v960
      %v962 = vand.u32 %v961, 4294901760
      %963 = vmatprep.subr.mxu0 %v962
      %v964 = vand.u32 %v311, 4294901760
      %v965 = vsub.f32 %v311, %v964
      %v966 = vand.u32 %v965, 4294901760
      %967 = vmatpush1.msra.mxu0 %v966
      %v968 = vand.u32 %v320, 4294901760
      %v969 = vsub.f32 %v320, %v968
      %v970 = vand.u32 %v969, 4294901760
      %971 = vmatprep.subr.mxu0 %v970
      %v972 = vand.u32 %v319, 4294901760
      %v973 = vsub.f32 %v319, %v972
      %v974 = vand.u32 %v973, 4294901760
      %975 = vmatpush1.msra.mxu0 %v974
      %v976 = vand.u32 %v328, 4294901760
      %v977 = vsub.f32 %v328, %v976
      %v978 = vand.u32 %v977, 4294901760
      %979 = vmatprep.subr.mxu0 %v978
      %v980 = vand.u32 %v327, 4294901760
      %v981 = vsub.f32 %v327, %v980
      %v982 = vand.u32 %v981, 4294901760
      %983 = vmatpush1.msra.mxu0 %v982
      %v984 = vand.u32 %v336, 4294901760
      %v985 = vsub.f32 %v336, %v984
      %v986 = vand.u32 %v985, 4294901760
      %987 = vmatprep.subr.mxu0 %v986
      %v988 = vand.u32 %v335, 4294901760
      %v989 = vsub.f32 %v335, %v988
      %v990 = vand.u32 %v989, 4294901760
      %991 = vmatpush1.msra.mxu0 %v990
      %v992 = vand.u32 %v344, 4294901760
      %v993 = vsub.f32 %v344, %v992
      %v994 = vand.u32 %v993, 4294901760
      %995 = vmatprep.subr.mxu0 %v994
      %v996 = vand.u32 %v343, 4294901760
      %v997 = vsub.f32 %v343, %v996
      %v998 = vand.u32 %v997, 4294901760
      %999 = vmatpush1.msra.mxu0 %v998
      %v1000 = vand.u32 %v352, 4294901760
      %v1001 = vsub.f32 %v352, %v1000
      %v1002 = vand.u32 %v1001, 4294901760
      %1003 = vmatprep.subr.mxu0 %v1002
      %v1004 = vand.u32 %v351, 4294901760
      %v1005 = vsub.f32 %v351, %v1004
      %v1006 = vand.u32 %v1005, 4294901760
      %1007 = vmatpush1.msra.mxu0 %v1006
      %v1008 = vand.u32 %v360, 4294901760
      %v1009 = vsub.f32 %v360, %v1008
      %v1010 = vand.u32 %v1009, 4294901760
      %1011 = vmatprep.subr.mxu0 %v1010
      %v1012 = vand.u32 %v359, 4294901760
      %v1013 = vsub.f32 %v359, %v1012
      %v1014 = vand.u32 %v1013, 4294901760
      %1015 = vmatpush1.msra.mxu0 %v1014
      %v1016 = vand.u32 %v368, 4294901760
      %v1017 = vsub.f32 %v368, %v1016
      %v1018 = vand.u32 %v1017, 4294901760
      %1019 = vmatprep.subr.mxu0 %v1018
      %v1020 = vand.u32 %v367, 4294901760
      %v1021 = vsub.f32 %v367, %v1020
      %v1022 = vand.u32 %v1021, 4294901760
      %1023 = vmatpush1.msra.mxu0 %v1022
      %v1024 = vand.u32 %v376, 4294901760
      %v1025 = vsub.f32 %v376, %v1024
      %v1026 = vand.u32 %v1025, 4294901760
      %1027 = vmatprep.subr.mxu0 %v1026
      %v1028 = vand.u32 %v375, 4294901760
      %v1029 = vsub.f32 %v375, %v1028
      %v1030 = vand.u32 %v1029, 4294901760
      %1031 = vmatpush1.msra.mxu0 %v1030
      %v1032 = vand.u32 %v384, 4294901760
      %v1033 = vsub.f32 %v384, %v1032
      %v1034 = vand.u32 %v1033, 4294901760
      %1035 = vmatprep.subr.mxu0 %v1034
      %v1036 = vand.u32 %v383, 4294901760
      %v1037 = vsub.f32 %v383, %v1036
      %v1038 = vand.u32 %v1037, 4294901760
      %1039 = vmatpush1.msra.mxu0 %v1038
      %v1040 = vand.u32 %v392, 4294901760
      %v1041 = vsub.f32 %v392, %v1040
      %v1042 = vand.u32 %v1041, 4294901760
      %1043 = vmatprep.subr.mxu0 %v1042
      %v1044 = vand.u32 %v391, 4294901760
      %v1045 = vsub.f32 %v391, %v1044
      %v1046 = vand.u32 %v1045, 4294901760
      %1047 = vmatpush1.msra.mxu0 %v1046
      %v1048 = vand.u32 %v400, 4294901760
      %v1049 = vsub.f32 %v400, %v1048
      %v1050 = vand.u32 %v1049, 4294901760
      %1051 = vmatprep.subr.mxu0 %v1050
      %v1052 = vand.u32 %v399, 4294901760
      %v1053 = vsub.f32 %v399, %v1052
      %v1054 = vand.u32 %v1053, 4294901760
      %1055 = vmatpush1.msra.mxu0 %v1054
      %1056 = vmatprep.subr.mxu0 0.0
      %1057 = vmatpush1.msra.mxu0 0.0
      %1058 = vmatprep.subr.mxu0 0.0
      %1059 = vmatpush1.msra.mxu0 0.0
      %1060 = vmatprep.subr.mxu0 0.0
      %1061 = vmatpush1.msra.mxu0 0.0
      %1062 = vmatprep.subr.mxu0 0.0
      %1063 = vmatpush1.msra.mxu0 0.0
      %1064 = vmatprep.subr.mxu0 0.0
      %1065 = vmatpush1.msra.mxu0 0.0
      %1066 = vmatprep.subr.mxu0 0.0
      %1067 = vmatpush1.msra.mxu0 0.0
      %1068 = vmatprep.subr.mxu0 0.0
      %1069 = vmatpush1.msra.mxu0 0.0
      %1070 = vmatprep.subr.mxu0 0.0
      %1071 = vmatpush1.msra.mxu0 0.0
      %1072 = vmatprep.subr.mxu0 0.0
      %1073 = vmatpush1.msra.mxu0 0.0
      %1074 = vmatprep.subr.mxu0 0.0
      %1075 = vmatpush1.msra.mxu0 0.0
      %1076 = vmatprep.subr.mxu0 0.0
      %1077 = vmatpush1.msra.mxu0 0.0
      %1078 = vmatprep.subr.mxu0 0.0
      %1079 = vmatpush1.msra.mxu0 0.0
      %1080 = vmatprep.subr.mxu0 0.0
      %1081 = vmatpush1.msra.mxu0 0.0
      %1082 = vmatprep.subr.mxu0 0.0
      %1083 = vmatpush1.msra.mxu0 0.0
      %1084 = vmatprep.subr.mxu0 0.0
      %1085 = vmatpush1.msra.mxu0 0.0
      %1086 = vmatprep.subr.mxu0 0.0
      %1087 = vmatpush1.msra.mxu0 0.0
      %1088 = vmatprep.subr.mxu0 0.0
      %1089 = vmatpush1.msra.mxu0 0.0
      %1090 = vmatprep.subr.mxu0 0.0
      %1091 = vmatpush1.msra.mxu0 0.0
      %1092 = vmatprep.subr.mxu0 0.0
      %1093 = vmatpush1.msra.mxu0 0.0
      %1094 = vmatprep.subr.mxu0 0.0
      %1095 = vmatpush1.msra.mxu0 0.0
      %1096 = vmatprep.mubr.f32.mxu0 0.0
      %v1097 = vand.u32 %v409, 4294901760
      %1098 = vmatmul.mubr.f32.gmra.mrb[0].mxu0 %v1097
      %v1099 = vpop.f32.mrb[0].mxu0
      %v1100 = vadd.f32 %v947, %v1099
      %v1101 = vpop.f32.mrb[0].mxu0
      %v1102 = vadd.f32 %v949, %v1101
      %1103 = vmatprep.mubr.f32.mxu0 0.0
      %v1104 = vand.u32 %v412, 4294901760
      %1105 = vmatmul.mubr.f32.gmra.mrb[0].mxu0 %v1104
      %v1106 = vpop.f32.mrb[0].mxu0
      %v1107 = vadd.f32 %v956, %v1106
      %v1108 = vpop.f32.mrb[0].mxu0
      %v1109 = vadd.f32 %v958, %v1108
      %1110 = vdwg.mxu0
      %v1111 = vand.u32 %v312, 4294901760
      %1112 = vmatprep.subr.mxu0 %v1111
      %v1113 = vand.u32 %v311, 4294901760
      %1114 = vmatpush1.msra.mxu0 %v1113
      %v1115 = vand.u32 %v320, 4294901760
      %1116 = vmatprep.subr.mxu0 %v1115
      %v1117 = vand.u32 %v319, 4294901760
      %1118 = vmatpush1.msra.mxu0 %v1117
      %v1119 = vand.u32 %v328, 4294901760
      %1120 = vmatprep.subr.mxu0 %v1119
      %v1121 = vand.u32 %v327, 4294901760
      %1122 = vmatpush1.msra.mxu0 %v1121
      %v1123 = vand.u32 %v336, 4294901760
      %1124 = vmatprep.subr.mxu0 %v1123
      %v1125 = vand.u32 %v335, 4294901760
      %1126 = vmatpush1.msra.mxu0 %v1125
      %v1127 = vand.u32 %v344, 4294901760
      %1128 = vmatprep.subr.mxu0 %v1127
      %v1129 = vand.u32 %v343, 4294901760
      %1130 = vmatpush1.msra.mxu0 %v1129
      %v1131 = vand.u32 %v352, 4294901760
      %1132 = vmatprep.subr.mxu0 %v1131
      %v1133 = vand.u32 %v351, 4294901760
      %1134 = vmatpush1.msra.mxu0 %v1133
      %v1135 = vand.u32 %v360, 4294901760
      %1136 = vmatprep.subr.mxu0 %v1135
      %v1137 = vand.u32 %v359, 4294901760
      %1138 = vmatpush1.msra.mxu0 %v1137
      %v1139 = vand.u32 %v368, 4294901760
      %1140 = vmatprep.subr.mxu0 %v1139
      %v1141 = vand.u32 %v367, 4294901760
      %1142 = vmatpush1.msra.mxu0 %v1141
      %v1143 = vand.u32 %v376, 4294901760
      %1144 = vmatprep.subr.mxu0 %v1143
      %v1145 = vand.u32 %v375, 4294901760
      %1146 = vmatpush1.msra.mxu0 %v1145
      %v1147 = vand.u32 %v384, 4294901760
      %1148 = vmatprep.subr.mxu0 %v1147
      %v1149 = vand.u32 %v383, 4294901760
      %1150 = vmatpush1.msra.mxu0 %v1149
      %v1151 = vand.u32 %v392, 4294901760
      %1152 = vmatprep.subr.mxu0 %v1151
      %v1153 = vand.u32 %v391, 4294901760
      %1154 = vmatpush1.msra.mxu0 %v1153
      %v1155 = vand.u32 %v400, 4294901760
      %1156 = vmatprep.subr.mxu0 %v1155
      %v1157 = vand.u32 %v399, 4294901760
      %1158 = vmatpush1.msra.mxu0 %v1157
      %1159 = vmatprep.subr.mxu0 0.0
      %1160 = vmatpush1.msra.mxu0 0.0
      %1161 = vmatprep.subr.mxu0 0.0
      %1162 = vmatpush1.msra.mxu0 0.0
      %1163 = vmatprep.subr.mxu0 0.0
      %1164 = vmatpush1.msra.mxu0 0.0
      %1165 = vmatprep.subr.mxu0 0.0
      %1166 = vmatpush1.msra.mxu0 0.0
      %1167 = vmatprep.subr.mxu0 0.0
      %1168 = vmatpush1.msra.mxu0 0.0
      %1169 = vmatprep.subr.mxu0 0.0
      %1170 = vmatpush1.msra.mxu0 0.0
      %1171 = vmatprep.subr.mxu0 0.0
      %1172 = vmatpush1.msra.mxu0 0.0
      %1173 = vmatprep.subr.mxu0 0.0
      %1174 = vmatpush1.msra.mxu0 0.0
      %1175 = vmatprep.subr.mxu0 0.0
      %1176 = vmatpush1.msra.mxu0 0.0
      %1177 = vmatprep.subr.mxu0 0.0
      %1178 = vmatpush1.msra.mxu0 0.0
      %1179 = vmatprep.subr.mxu0 0.0
      %1180 = vmatpush1.msra.mxu0 0.0
      %1181 = vmatprep.subr.mxu0 0.0
      %1182 = vmatpush1.msra.mxu0 0.0
      %1183 = vmatprep.subr.mxu0 0.0
      %1184 = vmatpush1.msra.mxu0 0.0
      %1185 = vmatprep.subr.mxu0 0.0
      %1186 = vmatpush1.msra.mxu0 0.0
      %1187 = vmatprep.subr.mxu0 0.0
      %1188 = vmatpush1.msra.mxu0 0.0
      %1189 = vmatprep.subr.mxu0 0.0
      %1190 = vmatpush1.msra.mxu0 0.0
      %1191 = vmatprep.subr.mxu0 0.0
      %1192 = vmatpush1.msra.mxu0 0.0
      %1193 = vmatprep.subr.mxu0 0.0
      %1194 = vmatpush1.msra.mxu0 0.0
      %1195 = vmatprep.subr.mxu0 0.0
      %1196 = vmatpush1.msra.mxu0 0.0
      %1197 = vmatprep.subr.mxu0 0.0
      %1198 = vmatpush1.msra.mxu0 0.0
      %1199 = vmatprep.mubr.f32.mxu0 0.0
      %v1200 = vand.u32 %v409, 4294901760
      %1201 = vmatmul.mubr.f32.gmra.mrb[0].mxu0 %v1200
      %v1202 = vpop.f32.mrb[0].mxu0
      %v1203 = vadd.f32 %v1100, %v1202
      %v1204 = vpop.f32.mrb[0].mxu0
      %v1205 = vadd.f32 %v1102, %v1204
      %1206 = vmatprep.mubr.f32.mxu0 0.0
      %v1207 = vand.u32 %v412, 4294901760
      %1208 = vmatmul.mubr.f32.gmra.mrb[0].mxu0 %v1207
      %v1209 = vpop.f32.mrb[0].mxu0
      %v1210 = vadd.f32 %v1107, %v1209
      %v1211 = vpop.f32.mrb[0].mxu0
      %v1212 = vadd.f32 %v1109, %v1211
      %1213 = vdwg.mxu0
      %v1214 = vand.u32 %v314, 4294901760
      %1215 = vmatprep.subr.mxu0 %v1214
      %v1216 = vand.u32 %v313, 4294901760
      %1217 = vmatpush1.msra.mxu0 %v1216
      %v1218 = vand.u32 %v322, 4294901760
      %1219 = vmatprep.subr.mxu0 %v1218
      %v1220 = vand.u32 %v321, 4294901760
      %1221 = vmatpush1.msra.mxu0 %v1220
      %v1222 = vand.u32 %v330, 4294901760
      %1223 = vmatprep.subr.mxu0 %v1222
      %v1224 = vand.u32 %v329, 4294901760
      %1225 = vmatpush1.msra.mxu0 %v1224
      %v1226 = vand.u32 %v338, 4294901760
      %1227 = vmatprep.subr.mxu0 %v1226
      %v1228 = vand.u32 %v337, 4294901760
      %1229 = vmatpush1.msra.mxu0 %v1228
      %v1230 = vand.u32 %v346, 4294901760
      %1231 = vmatprep.subr.mxu0 %v1230
      %v1232 = vand.u32 %v345, 4294901760
      %1233 = vmatpush1.msra.mxu0 %v1232
      %v1234 = vand.u32 %v354, 4294901760
      %1235 = vmatprep.subr.mxu0 %v1234
      %v1236 = vand.u32 %v353, 4294901760
      %1237 = vmatpush1.msra.mxu0 %v1236
      %v1238 = vand.u32 %v362, 4294901760
      %1239 = vmatprep.subr.mxu0 %v1238
      %v1240 = vand.u32 %v361, 4294901760
      %1241 = vmatpush1.msra.mxu0 %v1240
      %v1242 = vand.u32 %v370, 4294901760
      %1243 = vmatprep.subr.mxu0 %v1242
      %v1244 = vand.u32 %v369, 4294901760
      %1245 = vmatpush1.msra.mxu0 %v1244
      %v1246 = vand.u32 %v378, 4294901760
      %1247 = vmatprep.subr.mxu0 %v1246
      %v1248 = vand.u32 %v377, 4294901760
      %1249 = vmatpush1.msra.mxu0 %v1248
      %v1250 = vand.u32 %v386, 4294901760
      %1251 = vmatprep.subr.mxu0 %v1250
      %v1252 = vand.u32 %v385, 4294901760
      %1253 = vmatpush1.msra.mxu0 %v1252
      %v1254 = vand.u32 %v394, 4294901760
      %1255 = vmatprep.subr.mxu0 %v1254
      %v1256 = vand.u32 %v393, 4294901760
      %1257 = vmatpush1.msra.mxu0 %v1256
      %v1258 = vand.u32 %v402, 4294901760
      %1259 = vmatprep.subr.mxu0 %v1258
      %v1260 = vand.u32 %v401, 4294901760
      %1261 = vmatpush1.msra.mxu0 %v1260
      %1262 = vmatprep.subr.mxu0 0.0
      %1263 = vmatpush1.msra.mxu0 0.0
      %1264 = vmatprep.subr.mxu0 0.0
      %1265 = vmatpush1.msra.mxu0 0.0
      %1266 = vmatprep.subr.mxu0 0.0
      %1267 = vmatpush1.msra.mxu0 0.0
      %1268 = vmatprep.subr.mxu0 0.0
      %1269 = vmatpush1.msra.mxu0 0.0
      %1270 = vmatprep.subr.mxu0 0.0
      %1271 = vmatpush1.msra.mxu0 0.0
      %1272 = vmatprep.subr.mxu0 0.0
      %1273 = vmatpush1.msra.mxu0 0.0
      %1274 = vmatprep.subr.mxu0 0.0
      %1275 = vmatpush1.msra.mxu0 0.0
      %1276 = vmatprep.subr.mxu0 0.0
      %1277 = vmatpush1.msra.mxu0 0.0
      %1278 = vmatprep.subr.mxu0 0.0
      %1279 = vmatpush1.msra.mxu0 0.0
      %1280 = vmatprep.subr.mxu0 0.0
      %1281 = vmatpush1.msra.mxu0 0.0
      %1282 = vmatprep.subr.mxu0 0.0
      %1283 = vmatpush1.msra.mxu0 0.0
      %1284 = vmatprep.subr.mxu0 0.0
      %1285 = vmatpush1.msra.mxu0 0.0
      %1286 = vmatprep.subr.mxu0 0.0
      %1287 = vmatpush1.msra.mxu0 0.0
      %1288 = vmatprep.subr.mxu0 0.0
      %1289 = vmatpush1.msra.mxu0 0.0
      %1290 = vmatprep.subr.mxu0 0.0
      %1291 = vmatpush1.msra.mxu0 0.0
      %1292 = vmatprep.subr.mxu0 0.0
      %1293 = vmatpush1.msra.mxu0 0.0
      %1294 = vmatprep.subr.mxu0 0.0
      %1295 = vmatpush1.msra.mxu0 0.0
      %1296 = vmatprep.subr.mxu0 0.0
      %1297 = vmatpush1.msra.mxu0 0.0
      %1298 = vmatprep.subr.mxu0 0.0
      %1299 = vmatpush1.msra.mxu0 0.0
      %1300 = vmatprep.subr.mxu0 0.0
      %1301 = vmatpush1.msra.mxu0 0.0
      %1302 = vmatprep.mubr.f32.mxu0 0.0
      %v1303 = vand.u32 %v409, 4294901760
      %v1304 = vsub.f32 %v409, %v1303
      %v1305 = vand.u32 %v1304, 4294901760
      %v1306 = vsub.f32 %v1304, %v1305
      %v1307 = vand.u32 %v1306, 4294901760
      %1308 = vmatmul.mubr.f32.gmra.mrb[0].mxu0 %v1307
      %v1309 = vpop.f32.mrb[0].mxu0
      %v1310 = vadd.f32 0.0, %v1309
      %v1311 = vpop.f32.mrb[0].mxu0
      %v1312 = vadd.f32 0.0, %v1311
      %1313 = vmatprep.mubr.f32.mxu0 0.0
      %v1314 = vand.u32 %v412, 4294901760
      %v1315 = vsub.f32 %v412, %v1314
      %v1316 = vand.u32 %v1315, 4294901760
      %v1317 = vsub.f32 %v1315, %v1316
      %v1318 = vand.u32 %v1317, 4294901760
      %1319 = vmatmul.mubr.f32.gmra.mrb[0].mxu0 %v1318
      %v1320 = vpop.f32.mrb[0].mxu0
      %v1321 = vadd.f32 0.0, %v1320
      %v1322 = vpop.f32.mrb[0].mxu0
      %v1323 = vadd.f32 0.0, %v1322
      %1324 = vdwg.mxu0
      %v1325 = vand.u32 %v314, 4294901760
      %v1326 = vsub.f32 %v314, %v1325
      %v1327 = vand.u32 %v1326, 4294901760
      %v1328 = vsub.f32 %v1326, %v1327
      %v1329 = vand.u32 %v1328, 4294901760
      %1330 = vmatprep.subr.mxu0 %v1329
      %v1331 = vand.u32 %v313, 4294901760
      %v1332 = vsub.f32 %v313, %v1331
      %v1333 = vand.u32 %v1332, 4294901760
      %v1334 = vsub.f32 %v1332, %v1333
      %v1335 = vand.u32 %v1334, 4294901760
      %1336 = vmatpush1.msra.mxu0 %v1335
      %v1337 = vand.u32 %v322, 4294901760
      %v1338 = vsub.f32 %v322, %v1337
      %v1339 = vand.u32 %v1338, 4294901760
      %v1340 = vsub.f32 %v1338, %v1339
      %v1341 = vand.u32 %v1340, 4294901760
      %1342 = vmatprep.subr.mxu0 %v1341
      %v1343 = vand.u32 %v321, 4294901760
      %v1344 = vsub.f32 %v321, %v1343
      %v1345 = vand.u32 %v1344, 4294901760
      %v1346 = vsub.f32 %v1344, %v1345
      %v1347 = vand.u32 %v1346, 4294901760
      %1348 = vmatpush1.msra.mxu0 %v1347
      %v1349 = vand.u32 %v330, 4294901760
      %v1350 = vsub.f32 %v330, %v1349
      %v1351 = vand.u32 %v1350, 4294901760
      %v1352 = vsub.f32 %v1350, %v1351
      %v1353 = vand.u32 %v1352, 4294901760
      %1354 = vmatprep.subr.mxu0 %v1353
      %v1355 = vand.u32 %v329, 4294901760
      %v1356 = vsub.f32 %v329, %v1355
      %v1357 = vand.u32 %v1356, 4294901760
      %v1358 = vsub.f32 %v1356, %v1357
      %v1359 = vand.u32 %v1358, 4294901760
      %1360 = vmatpush1.msra.mxu0 %v1359
      %v1361 = vand.u32 %v338, 4294901760
      %v1362 = vsub.f32 %v338, %v1361
      %v1363 = vand.u32 %v1362, 4294901760
      %v1364 = vsub.f32 %v1362, %v1363
      %v1365 = vand.u32 %v1364, 4294901760
      %1366 = vmatprep.subr.mxu0 %v1365
      %v1367 = vand.u32 %v337, 4294901760
      %v1368 = vsub.f32 %v337, %v1367
      %v1369 = vand.u32 %v1368, 4294901760
      %v1370 = vsub.f32 %v1368, %v1369
      %v1371 = vand.u32 %v1370, 4294901760
      %1372 = vmatpush1.msra.mxu0 %v1371
      %v1373 = vand.u32 %v346, 4294901760
      %v1374 = vsub.f32 %v346, %v1373
      %v1375 = vand.u32 %v1374, 4294901760
      %v1376 = vsub.f32 %v1374, %v1375
      %v1377 = vand.u32 %v1376, 4294901760
      %1378 = vmatprep.subr.mxu0 %v1377
      %v1379 = vand.u32 %v345, 4294901760
      %v1380 = vsub.f32 %v345, %v1379
      %v1381 = vand.u32 %v1380, 4294901760
      %v1382 = vsub.f32 %v1380, %v1381
      %v1383 = vand.u32 %v1382, 4294901760
      %1384 = vmatpush1.msra.mxu0 %v1383
      %v1385 = vand.u32 %v354, 4294901760
      %v1386 = vsub.f32 %v354, %v1385
      %v1387 = vand.u32 %v1386, 4294901760
      %v1388 = vsub.f32 %v1386, %v1387
      %v1389 = vand.u32 %v1388, 4294901760
      %1390 = vmatprep.subr.mxu0 %v1389
      %v1391 = vand.u32 %v353, 4294901760
      %v1392 = vsub.f32 %v353, %v1391
      %v1393 = vand.u32 %v1392, 4294901760
      %v1394 = vsub.f32 %v1392, %v1393
      %v1395 = vand.u32 %v1394, 4294901760
      %1396 = vmatpush1.msra.mxu0 %v1395
      %v1397 = vand.u32 %v362, 4294901760
      %v1398 = vsub.f32 %v362, %v1397
      %v1399 = vand.u32 %v1398, 4294901760
      %v1400 = vsub.f32 %v1398, %v1399
      %v1401 = vand.u32 %v1400, 4294901760
      %1402 = vmatprep.subr.mxu0 %v1401
      %v1403 = vand.u32 %v361, 4294901760
      %v1404 = vsub.f32 %v361, %v1403
      %v1405 = vand.u32 %v1404, 4294901760
      %v1406 = vsub.f32 %v1404, %v1405
      %v1407 = vand.u32 %v1406, 4294901760
      %1408 = vmatpush1.msra.mxu0 %v1407
      %v1409 = vand.u32 %v370, 4294901760
      %v1410 = vsub.f32 %v370, %v1409
      %v1411 = vand.u32 %v1410, 4294901760
      %v1412 = vsub.f32 %v1410, %v1411
      %v1413 = vand.u32 %v1412, 4294901760
      %1414 = vmatprep.subr.mxu0 %v1413
      %v1415 = vand.u32 %v369, 4294901760
      %v1416 = vsub.f32 %v369, %v1415
      %v1417 = vand.u32 %v1416, 4294901760
      %v1418 = vsub.f32 %v1416, %v1417
      %v1419 = vand.u32 %v1418, 4294901760
      %1420 = vmatpush1.msra.mxu0 %v1419
      %v1421 = vand.u32 %v378, 4294901760
      %v1422 = vsub.f32 %v378, %v1421
      %v1423 = vand.u32 %v1422, 4294901760
      %v1424 = vsub.f32 %v1422, %v1423
      %v1425 = vand.u32 %v1424, 4294901760
      %1426 = vmatprep.subr.mxu0 %v1425
      %v1427 = vand.u32 %v377, 4294901760
      %v1428 = vsub.f32 %v377, %v1427
      %v1429 = vand.u32 %v1428, 4294901760
      %v1430 = vsub.f32 %v1428, %v1429
      %v1431 = vand.u32 %v1430, 4294901760
      %1432 = vmatpush1.msra.mxu0 %v1431
      %v1433 = vand.u32 %v386, 4294901760
      %v1434 = vsub.f32 %v386, %v1433
      %v1435 = vand.u32 %v1434, 4294901760
      %v1436 = vsub.f32 %v1434, %v1435
      %v1437 = vand.u32 %v1436, 4294901760
      %1438 = vmatprep.subr.mxu0 %v1437
      %v1439 = vand.u32 %v385, 4294901760
      %v1440 = vsub.f32 %v385, %v1439
      %v1441 = vand.u32 %v1440, 4294901760
      %v1442 = vsub.f32 %v1440, %v1441
      %v1443 = vand.u32 %v1442, 4294901760
      %1444 = vmatpush1.msra.mxu0 %v1443
      %v1445 = vand.u32 %v394, 4294901760
      %v1446 = vsub.f32 %v394, %v1445
      %v1447 = vand.u32 %v1446, 4294901760
      %v1448 = vsub.f32 %v1446, %v1447
      %v1449 = vand.u32 %v1448, 4294901760
      %1450 = vmatprep.subr.mxu0 %v1449
      %v1451 = vand.u32 %v393, 4294901760
      %v1452 = vsub.f32 %v393, %v1451
      %v1453 = vand.u32 %v1452, 4294901760
      %v1454 = vsub.f32 %v1452, %v1453
      %v1455 = vand.u32 %v1454, 4294901760
      %1456 = vmatpush1.msra.mxu0 %v1455
      %v1457 = vand.u32 %v402, 4294901760
      %v1458 = vsub.f32 %v402, %v1457
      %v1459 = vand.u32 %v1458, 4294901760
      %v1460 = vsub.f32 %v1458, %v1459
      %v1461 = vand.u32 %v1460, 4294901760
      %1462 = vmatprep.subr.mxu0 %v1461
      %v1463 = vand.u32 %v401, 4294901760
      %v1464 = vsub.f32 %v401, %v1463
      %v1465 = vand.u32 %v1464, 4294901760
      %v1466 = vsub.f32 %v1464, %v1465
      %v1467 = vand.u32 %v1466, 4294901760
      %1468 = vmatpush1.msra.mxu0 %v1467
      %1469 = vmatprep.subr.mxu0 0.0
      %1470 = vmatpush1.msra.mxu0 0.0
      %1471 = vmatprep.subr.mxu0 0.0
      %1472 = vmatpush1.msra.mxu0 0.0
      %1473 = vmatprep.subr.mxu0 0.0
      %1474 = vmatpush1.msra.mxu0 0.0
      %1475 = vmatprep.subr.mxu0 0.0
      %1476 = vmatpush1.msra.mxu0 0.0
      %1477 = vmatprep.subr.mxu0 0.0
      %1478 = vmatpush1.msra.mxu0 0.0
      %1479 = vmatprep.subr.mxu0 0.0
      %1480 = vmatpush1.msra.mxu0 0.0
      %1481 = vmatprep.subr.mxu0 0.0
      %1482 = vmatpush1.msra.mxu0 0.0
      %1483 = vmatprep.subr.mxu0 0.0
      %1484 = vmatpush1.msra.mxu0 0.0
      %1485 = vmatprep.subr.mxu0 0.0
      %1486 = vmatpush1.msra.mxu0 0.0
      %1487 = vmatprep.subr.mxu0 0.0
      %1488 = vmatpush1.msra.mxu0 0.0
      %1489 = vmatprep.subr.mxu0 0.0
      %1490 = vmatpush1.msra.mxu0 0.0
      %1491 = vmatprep.subr.mxu0 0.0
      %1492 = vmatpush1.msra.mxu0 0.0
      %1493 = vmatprep.subr.mxu0 0.0
      %1494 = vmatpush1.msra.mxu0 0.0
      %1495 = vmatprep.subr.mxu0 0.0
      %1496 = vmatpush1.msra.mxu0 0.0
      %1497 = vmatprep.subr.mxu0 0.0
      %1498 = vmatpush1.msra.mxu0 0.0
      %1499 = vmatprep.subr.mxu0 0.0
      %1500 = vmatpush1.msra.mxu0 0.0
      %1501 = vmatprep.subr.mxu0 0.0
      %1502 = vmatpush1.msra.mxu0 0.0
      %1503 = vmatprep.subr.mxu0 0.0
      %1504 = vmatpush1.msra.mxu0 0.0
      %1505 = vmatprep.subr.mxu0 0.0
      %1506 = vmatpush1.msra.mxu0 0.0
      %1507 = vmatprep.subr.mxu0 0.0
      %1508 = vmatpush1.msra.mxu0 0.0
      %1509 = vmatprep.mubr.f32.mxu0 0.0
      %v1510 = vand.u32 %v409, 4294901760
      %1511 = vmatmul.mubr.f32.gmra.mrb[0].mxu0 %v1510
      %v1512 = vpop.f32.mrb[0].mxu0
      %v1513 = vadd.f32 %v1310, %v1512
      %v1514 = vpop.f32.mrb[0].mxu0
      %v1515 = vadd.f32 %v1312, %v1514
      %1516 = vmatprep.mubr.f32.mxu0 0.0
      %v1517 = vand.u32 %v412, 4294901760
      %1518 = vmatmul.mubr.f32.gmra.mrb[0].mxu0 %v1517
      %v1519 = vpop.f32.mrb[0].mxu0
      %v1520 = vadd.f32 %v1321, %v1519
      %v1521 = vpop.f32.mrb[0].mxu0
      %v1522 = vadd.f32 %v1323, %v1521
      %1523 = vdwg.mxu0
      %v1524 = vand.u32 %v314, 4294901760
      %v1525 = vsub.f32 %v314, %v1524
      %1526 = vmatprep.subr.mxu0 %v1525
      %v1527 = vand.u32 %v313, 4294901760
      %v1528 = vsub.f32 %v313, %v1527
      %1529 = vmatpush1.msra.mxu0 %v1528
      %v1530 = vand.u32 %v322, 4294901760
      %v1531 = vsub.f32 %v322, %v1530
      %1532 = vmatprep.subr.mxu0 %v1531
      %v1533 = vand.u32 %v321, 4294901760
      %v1534 = vsub.f32 %v321, %v1533
      %1535 = vmatpush1.msra.mxu0 %v1534
      %v1536 = vand.u32 %v330, 4294901760
      %v1537 = vsub.f32 %v330, %v1536
      %1538 = vmatprep.subr.mxu0 %v1537
      %v1539 = vand.u32 %v329, 4294901760
      %v1540 = vsub.f32 %v329, %v1539
      %1541 = vmatpush1.msra.mxu0 %v1540
      %v1542 = vand.u32 %v338, 4294901760
      %v1543 = vsub.f32 %v338, %v1542
      %1544 = vmatprep.subr.mxu0 %v1543
      %v1545 = vand.u32 %v337, 4294901760
      %v1546 = vsub.f32 %v337, %v1545
      %1547 = vmatpush1.msra.mxu0 %v1546
      %v1548 = vand.u32 %v346, 4294901760
      %v1549 = vsub.f32 %v346, %v1548
      %1550 = vmatprep.subr.mxu0 %v1549
      %v1551 = vand.u32 %v345, 4294901760
      %v1552 = vsub.f32 %v345, %v1551
      %1553 = vmatpush1.msra.mxu0 %v1552
      %v1554 = vand.u32 %v354, 4294901760
      %v1555 = vsub.f32 %v354, %v1554
      %1556 = vmatprep.subr.mxu0 %v1555
      %v1557 = vand.u32 %v353, 4294901760
      %v1558 = vsub.f32 %v353, %v1557
      %1559 = vmatpush1.msra.mxu0 %v1558
      %v1560 = vand.u32 %v362, 4294901760
      %v1561 = vsub.f32 %v362, %v1560
      %1562 = vmatprep.subr.mxu0 %v1561
      %v1563 = vand.u32 %v361, 4294901760
      %v1564 = vsub.f32 %v361, %v1563
      %1565 = vmatpush1.msra.mxu0 %v1564
      %v1566 = vand.u32 %v370, 4294901760
      %v1567 = vsub.f32 %v370, %v1566
      %1568 = vmatprep.subr.mxu0 %v1567
      %v1569 = vand.u32 %v369, 4294901760
      %v1570 = vsub.f32 %v369, %v1569
      %1571 = vmatpush1.msra.mxu0 %v1570
      %v1572 = vand.u32 %v378, 4294901760
      %v1573 = vsub.f32 %v378, %v1572
      %1574 = vmatprep.subr.mxu0 %v1573
      %v1575 = vand.u32 %v377, 4294901760
      %v1576 = vsub.f32 %v377, %v1575
      %1577 = vmatpush1.msra.mxu0 %v1576
      %v1578 = vand.u32 %v386, 4294901760
      %v1579 = vsub.f32 %v386, %v1578
      %1580 = vmatprep.subr.mxu0 %v1579
      %v1581 = vand.u32 %v385, 4294901760
      %v1582 = vsub.f32 %v385, %v1581
      %1583 = vmatpush1.msra.mxu0 %v1582
      %v1584 = vand.u32 %v394, 4294901760
      %v1585 = vsub.f32 %v394, %v1584
      %1586 = vmatprep.subr.mxu0 %v1585
      %v1587 = vand.u32 %v393, 4294901760
      %v1588 = vsub.f32 %v393, %v1587
      %1589 = vmatpush1.msra.mxu0 %v1588
      %v1590 = vand.u32 %v402, 4294901760
      %v1591 = vsub.f32 %v402, %v1590
      %1592 = vmatprep.subr.mxu0 %v1591
      %v1593 = vand.u32 %v401, 4294901760
      %v1594 = vsub.f32 %v401, %v1593
      %1595 = vmatpush1.msra.mxu0 %v1594
      %1596 = vmatprep.subr.mxu0 0.0
      %1597 = vmatpush1.msra.mxu0 0.0
      %1598 = vmatprep.subr.mxu0 0.0
      %1599 = vmatpush1.msra.mxu0 0.0
      %1600 = vmatprep.subr.mxu0 0.0
      %1601 = vmatpush1.msra.mxu0 0.0
      %1602 = vmatprep.subr.mxu0 0.0
      %1603 = vmatpush1.msra.mxu0 0.0
      %1604 = vmatprep.subr.mxu0 0.0
      %1605 = vmatpush1.msra.mxu0 0.0
      %1606 = vmatprep.subr.mxu0 0.0
      %1607 = vmatpush1.msra.mxu0 0.0
      %1608 = vmatprep.subr.mxu0 0.0
      %1609 = vmatpush1.msra.mxu0 0.0
      %1610 = vmatprep.subr.mxu0 0.0
      %1611 = vmatpush1.msra.mxu0 0.0
      %1612 = vmatprep.subr.mxu0 0.0
      %1613 = vmatpush1.msra.mxu0 0.0
      %1614 = vmatprep.subr.mxu0 0.0
      %1615 = vmatpush1.msra.mxu0 0.0
      %1616 = vmatprep.subr.mxu0 0.0
      %1617 = vmatpush1.msra.mxu0 0.0
      %1618 = vmatprep.subr.mxu0 0.0
      %1619 = vmatpush1.msra.mxu0 0.0
      %1620 = vmatprep.subr.mxu0 0.0
      %1621 = vmatpush1.msra.mxu0 0.0
      %1622 = vmatprep.subr.mxu0 0.0
      %1623 = vmatpush1.msra.mxu0 0.0
      %1624 = vmatprep.subr.mxu0 0.0
      %1625 = vmatpush1.msra.mxu0 0.0
      %1626 = vmatprep.subr.mxu0 0.0
      %1627 = vmatpush1.msra.mxu0 0.0
      %1628 = vmatprep.subr.mxu0 0.0
      %1629 = vmatpush1.msra.mxu0 0.0
      %1630 = vmatprep.subr.mxu0 0.0
      %1631 = vmatpush1.msra.mxu0 0.0
      %1632 = vmatprep.subr.mxu0 0.0
      %1633 = vmatpush1.msra.mxu0 0.0
      %1634 = vmatprep.subr.mxu0 0.0
      %1635 = vmatpush1.msra.mxu0 0.0
      %1636 = vmatprep.mubr.f32.mxu0 0.0
      %v1637 = vand.u32 %v409, 4294901760
      %v1638 = vsub.f32 %v409, %v1637
      %1639 = vmatmul.mubr.f32.gmra.mrb[0].mxu0 %v1638
      %v1640 = vpop.f32.mrb[0].mxu0
      %v1641 = vadd.f32 %v1513, %v1640
      %v1642 = vpop.f32.mrb[0].mxu0
      %v1643 = vadd.f32 %v1515, %v1642
      %1644 = vmatprep.mubr.f32.mxu0 0.0
      %v1645 = vand.u32 %v412, 4294901760
      %v1646 = vsub.f32 %v412, %v1645
      %1647 = vmatmul.mubr.f32.gmra.mrb[0].mxu0 %v1646
      %v1648 = vpop.f32.mrb[0].mxu0
      %v1649 = vadd.f32 %v1520, %v1648
      %v1650 = vpop.f32.mrb[0].mxu0
      %v1651 = vadd.f32 %v1522, %v1650
      %1652 = vdwg.mxu0
      %v1653 = vand.u32 %v314, 4294901760
      %1654 = vmatprep.subr.mxu0 %v1653
      %v1655 = vand.u32 %v313, 4294901760
      %1656 = vmatpush1.msra.mxu0 %v1655
      %v1657 = vand.u32 %v322, 4294901760
      %1658 = vmatprep.subr.mxu0 %v1657
      %v1659 = vand.u32 %v321, 4294901760
      %1660 = vmatpush1.msra.mxu0 %v1659
      %v1661 = vand.u32 %v330, 4294901760
      %1662 = vmatprep.subr.mxu0 %v1661
      %v1663 = vand.u32 %v329, 4294901760
      %1664 = vmatpush1.msra.mxu0 %v1663
      %v1665 = vand.u32 %v338, 4294901760
      %1666 = vmatprep.subr.mxu0 %v1665
      %v1667 = vand.u32 %v337, 4294901760
      %1668 = vmatpush1.msra.mxu0 %v1667
      %v1669 = vand.u32 %v346, 4294901760
      %1670 = vmatprep.subr.mxu0 %v1669
      %v1671 = vand.u32 %v345, 4294901760
      %1672 = vmatpush1.msra.mxu0 %v1671
      %v1673 = vand.u32 %v354, 4294901760
      %1674 = vmatprep.subr.mxu0 %v1673
      %v1675 = vand.u32 %v353, 4294901760
      %1676 = vmatpush1.msra.mxu0 %v1675
      %v1677 = vand.u32 %v362, 4294901760
      %1678 = vmatprep.subr.mxu0 %v1677
      %v1679 = vand.u32 %v361, 4294901760
      %1680 = vmatpush1.msra.mxu0 %v1679
      %v1681 = vand.u32 %v370, 4294901760
      %1682 = vmatprep.subr.mxu0 %v1681
      %v1683 = vand.u32 %v369, 4294901760
      %1684 = vmatpush1.msra.mxu0 %v1683
      %v1685 = vand.u32 %v378, 4294901760
      %1686 = vmatprep.subr.mxu0 %v1685
      %v1687 = vand.u32 %v377, 4294901760
      %1688 = vmatpush1.msra.mxu0 %v1687
      %v1689 = vand.u32 %v386, 4294901760
      %1690 = vmatprep.subr.mxu0 %v1689
      %v1691 = vand.u32 %v385, 4294901760
      %1692 = vmatpush1.msra.mxu0 %v1691
      %v1693 = vand.u32 %v394, 4294901760
      %1694 = vmatprep.subr.mxu0 %v1693
      %v1695 = vand.u32 %v393, 4294901760
      %1696 = vmatpush1.msra.mxu0 %v1695
      %v1697 = vand.u32 %v402, 4294901760
      %1698 = vmatprep.subr.mxu0 %v1697
      %v1699 = vand.u32 %v401, 4294901760
      %1700 = vmatpush1.msra.mxu0 %v1699
      %1701 = vmatprep.subr.mxu0 0.0
      %1702 = vmatpush1.msra.mxu0 0.0
      %1703 = vmatprep.subr.mxu0 0.0
      %1704 = vmatpush1.msra.mxu0 0.0
      %1705 = vmatprep.subr.mxu0 0.0
      %1706 = vmatpush1.msra.mxu0 0.0
      %1707 = vmatprep.subr.mxu0 0.0
      %1708 = vmatpush1.msra.mxu0 0.0
      %1709 = vmatprep.subr.mxu0 0.0
      %1710 = vmatpush1.msra.mxu0 0.0
      %1711 = vmatprep.subr.mxu0 0.0
      %1712 = vmatpush1.msra.mxu0 0.0
      %1713 = vmatprep.subr.mxu0 0.0
      %1714 = vmatpush1.msra.mxu0 0.0
      %1715 = vmatprep.subr.mxu0 0.0
      %1716 = vmatpush1.msra.mxu0 0.0
      %1717 = vmatprep.subr.mxu0 0.0
      %1718 = vmatpush1.msra.mxu0 0.0
      %1719 = vmatprep.subr.mxu0 0.0
      %1720 = vmatpush1.msra.mxu0 0.0
      %1721 = vmatprep.subr.mxu0 0.0
      %1722 = vmatpush1.msra.mxu0 0.0
      %1723 = vmatprep.subr.mxu0 0.0
      %1724 = vmatpush1.msra.mxu0 0.0
      %1725 = vmatprep.subr.mxu0 0.0
      %1726 = vmatpush1.msra.mxu0 0.0
      %1727 = vmatprep.subr.mxu0 0.0
      %1728 = vmatpush1.msra.mxu0 0.0
      %1729 = vmatprep.subr.mxu0 0.0
      %1730 = vmatpush1.msra.mxu0 0.0
      %1731 = vmatprep.subr.mxu0 0.0
      %1732 = vmatpush1.msra.mxu0 0.0
      %1733 = vmatprep.subr.mxu0 0.0
      %1734 = vmatpush1.msra.mxu0 0.0
      %1735 = vmatprep.subr.mxu0 0.0
      %1736 = vmatpush1.msra.mxu0 0.0
      %1737 = vmatprep.subr.mxu0 0.0
      %1738 = vmatpush1.msra.mxu0 0.0
      %1739 = vmatprep.subr.mxu0 0.0
      %1740 = vmatpush1.msra.mxu0 0.0
      %1741 = vmatprep.mubr.f32.mxu0 0.0
      %v1742 = vand.u32 %v409, 4294901760
      %v1743 = vsub.f32 %v409, %v1742
      %v1744 = vand.u32 %v1743, 4294901760
      %1745 = vmatmul.mubr.f32.gmra.mrb[0].mxu0 %v1744
      %v1746 = vpop.f32.mrb[0].mxu0
      %v1747 = vadd.f32 %v1641, %v1746
      %v1748 = vpop.f32.mrb[0].mxu0
      %v1749 = vadd.f32 %v1643, %v1748
      %1750 = vmatprep.mubr.f32.mxu0 0.0
      %v1751 = vand.u32 %v412, 4294901760
      %v1752 = vsub.f32 %v412, %v1751
      %v1753 = vand.u32 %v1752, 4294901760
      %1754 = vmatmul.mubr.f32.gmra.mrb[0].mxu0 %v1753
      %v1755 = vpop.f32.mrb[0].mxu0
      %v1756 = vadd.f32 %v1649, %v1755
      %v1757 = vpop.f32.mrb[0].mxu0
      %v1758 = vadd.f32 %v1651, %v1757
      %1759 = vdwg.mxu0
      %v1760 = vand.u32 %v314, 4294901760
      %v1761 = vsub.f32 %v314, %v1760
      %v1762 = vand.u32 %v1761, 4294901760
      %1763 = vmatprep.subr.mxu0 %v1762
      %v1764 = vand.u32 %v313, 4294901760
      %v1765 = vsub.f32 %v313, %v1764
      %v1766 = vand.u32 %v1765, 4294901760
      %1767 = vmatpush1.msra.mxu0 %v1766
      %v1768 = vand.u32 %v322, 4294901760
      %v1769 = vsub.f32 %v322, %v1768
      %v1770 = vand.u32 %v1769, 4294901760
      %1771 = vmatprep.subr.mxu0 %v1770
      %v1772 = vand.u32 %v321, 4294901760
      %v1773 = vsub.f32 %v321, %v1772
      %v1774 = vand.u32 %v1773, 4294901760
      %1775 = vmatpush1.msra.mxu0 %v1774
      %v1776 = vand.u32 %v330, 4294901760
      %v1777 = vsub.f32 %v330, %v1776
      %v1778 = vand.u32 %v1777, 4294901760
      %1779 = vmatprep.subr.mxu0 %v1778
      %v1780 = vand.u32 %v329, 4294901760
      %v1781 = vsub.f32 %v329, %v1780
      %v1782 = vand.u32 %v1781, 4294901760
      %1783 = vmatpush1.msra.mxu0 %v1782
      %v1784 = vand.u32 %v338, 4294901760
      %v1785 = vsub.f32 %v338, %v1784
      %v1786 = vand.u32 %v1785, 4294901760
      %1787 = vmatprep.subr.mxu0 %v1786
      %v1788 = vand.u32 %v337, 4294901760
      %v1789 = vsub.f32 %v337, %v1788
      %v1790 = vand.u32 %v1789, 4294901760
      %1791 = vmatpush1.msra.mxu0 %v1790
      %v1792 = vand.u32 %v346, 4294901760
      %v1793 = vsub.f32 %v346, %v1792
      %v1794 = vand.u32 %v1793, 4294901760
      %1795 = vmatprep.subr.mxu0 %v1794
      %v1796 = vand.u32 %v345, 4294901760
      %v1797 = vsub.f32 %v345, %v1796
      %v1798 = vand.u32 %v1797, 4294901760
      %1799 = vmatpush1.msra.mxu0 %v1798
      %v1800 = vand.u32 %v354, 4294901760
      %v1801 = vsub.f32 %v354, %v1800
      %v1802 = vand.u32 %v1801, 4294901760
      %1803 = vmatprep.subr.mxu0 %v1802
      %v1804 = vand.u32 %v353, 4294901760
      %v1805 = vsub.f32 %v353, %v1804
      %v1806 = vand.u32 %v1805, 4294901760
      %1807 = vmatpush1.msra.mxu0 %v1806
      %v1808 = vand.u32 %v362, 4294901760
      %v1809 = vsub.f32 %v362, %v1808
      %v1810 = vand.u32 %v1809, 4294901760
      %1811 = vmatprep.subr.mxu0 %v1810
      %v1812 = vand.u32 %v361, 4294901760
      %v1813 = vsub.f32 %v361, %v1812
      %v1814 = vand.u32 %v1813, 4294901760
      %1815 = vmatpush1.msra.mxu0 %v1814
      %v1816 = vand.u32 %v370, 4294901760
      %v1817 = vsub.f32 %v370, %v1816
      %v1818 = vand.u32 %v1817, 4294901760
      %1819 = vmatprep.subr.mxu0 %v1818
      %v1820 = vand.u32 %v369, 4294901760
      %v1821 = vsub.f32 %v369, %v1820
      %v1822 = vand.u32 %v1821, 4294901760
      %1823 = vmatpush1.msra.mxu0 %v1822
      %v1824 = vand.u32 %v378, 4294901760
      %v1825 = vsub.f32 %v378, %v1824
      %v1826 = vand.u32 %v1825, 4294901760
      %1827 = vmatprep.subr.mxu0 %v1826
      %v1828 = vand.u32 %v377, 4294901760
      %v1829 = vsub.f32 %v377, %v1828
      %v1830 = vand.u32 %v1829, 4294901760
      %1831 = vmatpush1.msra.mxu0 %v1830
      %v1832 = vand.u32 %v386, 4294901760
      %v1833 = vsub.f32 %v386, %v1832
      %v1834 = vand.u32 %v1833, 4294901760
      %1835 = vmatprep.subr.mxu0 %v1834
      %v1836 = vand.u32 %v385, 4294901760
      %v1837 = vsub.f32 %v385, %v1836
      %v1838 = vand.u32 %v1837, 4294901760
      %1839 = vmatpush1.msra.mxu0 %v1838
      %v1840 = vand.u32 %v394, 4294901760
      %v1841 = vsub.f32 %v394, %v1840
      %v1842 = vand.u32 %v1841, 4294901760
      %1843 = vmatprep.subr.mxu0 %v1842
      %v1844 = vand.u32 %v393, 4294901760
      %v1845 = vsub.f32 %v393, %v1844
      %v1846 = vand.u32 %v1845, 4294901760
      %1847 = vmatpush1.msra.mxu0 %v1846
      %v1848 = vand.u32 %v402, 4294901760
      %v1849 = vsub.f32 %v402, %v1848
      %v1850 = vand.u32 %v1849, 4294901760
      %1851 = vmatprep.subr.mxu0 %v1850
      %v1852 = vand.u32 %v401, 4294901760
      %v1853 = vsub.f32 %v401, %v1852
      %v1854 = vand.u32 %v1853, 4294901760
      %1855 = vmatpush1.msra.mxu0 %v1854
      %1856 = vmatprep.subr.mxu0 0.0
      %1857 = vmatpush1.msra.mxu0 0.0
      %1858 = vmatprep.subr.mxu0 0.0
      %1859 = vmatpush1.msra.mxu0 0.0
      %1860 = vmatprep.subr.mxu0 0.0
      %1861 = vmatpush1.msra.mxu0 0.0
      %1862 = vmatprep.subr.mxu0 0.0
      %1863 = vmatpush1.msra.mxu0 0.0
      %1864 = vmatprep.subr.mxu0 0.0
      %1865 = vmatpush1.msra.mxu0 0.0
      %1866 = vmatprep.subr.mxu0 0.0
      %1867 = vmatpush1.msra.mxu0 0.0
      %1868 = vmatprep.subr.mxu0 0.0
      %1869 = vmatpush1.msra.mxu0 0.0
      %1870 = vmatprep.subr.mxu0 0.0
      %1871 = vmatpush1.msra.mxu0 0.0
      %1872 = vmatprep.subr.mxu0 0.0
      %1873 = vmatpush1.msra.mxu0 0.0
      %1874 = vmatprep.subr.mxu0 0.0
      %1875 = vmatpush1.msra.mxu0 0.0
      %1876 = vmatprep.subr.mxu0 0.0
      %1877 = vmatpush1.msra.mxu0 0.0
      %1878 = vmatprep.subr.mxu0 0.0
      %1879 = vmatpush1.msra.mxu0 0.0
      %1880 = vmatprep.subr.mxu0 0.0
      %1881 = vmatpush1.msra.mxu0 0.0
      %1882 = vmatprep.subr.mxu0 0.0
      %1883 = vmatpush1.msra.mxu0 0.0
      %1884 = vmatprep.subr.mxu0 0.0
      %1885 = vmatpush1.msra.mxu0 0.0
      %1886 = vmatprep.subr.mxu0 0.0
      %1887 = vmatpush1.msra.mxu0 0.0
      %1888 = vmatprep.subr.mxu0 0.0
      %1889 = vmatpush1.msra.mxu0 0.0
      %1890 = vmatprep.subr.mxu0 0.0
      %1891 = vmatpush1.msra.mxu0 0.0
      %1892 = vmatprep.subr.mxu0 0.0
      %1893 = vmatpush1.msra.mxu0 0.0
      %1894 = vmatprep.subr.mxu0 0.0
      %1895 = vmatpush1.msra.mxu0 0.0
      %1896 = vmatprep.mubr.f32.mxu0 0.0
      %v1897 = vand.u32 %v409, 4294901760
      %1898 = vmatmul.mubr.f32.gmra.mrb[0].mxu0 %v1897
      %v1899 = vpop.f32.mrb[0].mxu0
      %v1900 = vadd.f32 %v1747, %v1899
      %v1901 = vpop.f32.mrb[0].mxu0
      %v1902 = vadd.f32 %v1749, %v1901
      %1903 = vmatprep.mubr.f32.mxu0 0.0
      %v1904 = vand.u32 %v412, 4294901760
      %1905 = vmatmul.mubr.f32.gmra.mrb[0].mxu0 %v1904
      %v1906 = vpop.f32.mrb[0].mxu0
      %v1907 = vadd.f32 %v1756, %v1906
      %v1908 = vpop.f32.mrb[0].mxu0
      %v1909 = vadd.f32 %v1758, %v1908
      %1910 = vdwg.mxu0
      %v1911 = vand.u32 %v314, 4294901760
      %1912 = vmatprep.subr.mxu0 %v1911
      %v1913 = vand.u32 %v313, 4294901760
      %1914 = vmatpush1.msra.mxu0 %v1913
      %v1915 = vand.u32 %v322, 4294901760
      %1916 = vmatprep.subr.mxu0 %v1915
      %v1917 = vand.u32 %v321, 4294901760
      %1918 = vmatpush1.msra.mxu0 %v1917
      %v1919 = vand.u32 %v330, 4294901760
      %1920 = vmatprep.subr.mxu0 %v1919
      %v1921 = vand.u32 %v329, 4294901760
      %1922 = vmatpush1.msra.mxu0 %v1921
      %v1923 = vand.u32 %v338, 4294901760
      %1924 = vmatprep.subr.mxu0 %v1923
      %v1925 = vand.u32 %v337, 4294901760
      %1926 = vmatpush1.msra.mxu0 %v1925
      %v1927 = vand.u32 %v346, 4294901760
      %1928 = vmatprep.subr.mxu0 %v1927
      %v1929 = vand.u32 %v345, 4294901760
      %1930 = vmatpush1.msra.mxu0 %v1929
      %v1931 = vand.u32 %v354, 4294901760
      %1932 = vmatprep.subr.mxu0 %v1931
      %v1933 = vand.u32 %v353, 4294901760
      %1934 = vmatpush1.msra.mxu0 %v1933
      %v1935 = vand.u32 %v362, 4294901760
      %1936 = vmatprep.subr.mxu0 %v1935
      %v1937 = vand.u32 %v361, 4294901760
      %1938 = vmatpush1.msra.mxu0 %v1937
      %v1939 = vand.u32 %v370, 4294901760
      %1940 = vmatprep.subr.mxu0 %v1939
      %v1941 = vand.u32 %v369, 4294901760
      %1942 = vmatpush1.msra.mxu0 %v1941
      %v1943 = vand.u32 %v378, 4294901760
      %1944 = vmatprep.subr.mxu0 %v1943
      %v1945 = vand.u32 %v377, 4294901760
      %1946 = vmatpush1.msra.mxu0 %v1945
      %v1947 = vand.u32 %v386, 4294901760
      %1948 = vmatprep.subr.mxu0 %v1947
      %v1949 = vand.u32 %v385, 4294901760
      %1950 = vmatpush1.msra.mxu0 %v1949
      %v1951 = vand.u32 %v394, 4294901760
      %1952 = vmatprep.subr.mxu0 %v1951
      %v1953 = vand.u32 %v393, 4294901760
      %1954 = vmatpush1.msra.mxu0 %v1953
      %v1955 = vand.u32 %v402, 4294901760
      %1956 = vmatprep.subr.mxu0 %v1955
      %v1957 = vand.u32 %v401, 4294901760
      %1958 = vmatpush1.msra.mxu0 %v1957
      %1959 = vmatprep.subr.mxu0 0.0
      %1960 = vmatpush1.msra.mxu0 0.0
      %1961 = vmatprep.subr.mxu0 0.0
      %1962 = vmatpush1.msra.mxu0 0.0
      %1963 = vmatprep.subr.mxu0 0.0
      %1964 = vmatpush1.msra.mxu0 0.0
      %1965 = vmatprep.subr.mxu0 0.0
      %1966 = vmatpush1.msra.mxu0 0.0
      %1967 = vmatprep.subr.mxu0 0.0
      %1968 = vmatpush1.msra.mxu0 0.0
      %1969 = vmatprep.subr.mxu0 0.0
      %1970 = vmatpush1.msra.mxu0 0.0
      %1971 = vmatprep.subr.mxu0 0.0
      %1972 = vmatpush1.msra.mxu0 0.0
      %1973 = vmatprep.subr.mxu0 0.0
      %1974 = vmatpush1.msra.mxu0 0.0
      %1975 = vmatprep.subr.mxu0 0.0
      %1976 = vmatpush1.msra.mxu0 0.0
      %1977 = vmatprep.subr.mxu0 0.0
      %1978 = vmatpush1.msra.mxu0 0.0
      %1979 = vmatprep.subr.mxu0 0.0
      %1980 = vmatpush1.msra.mxu0 0.0
      %1981 = vmatprep.subr.mxu0 0.0
      %1982 = vmatpush1.msra.mxu0 0.0
      %1983 = vmatprep.subr.mxu0 0.0
      %1984 = vmatpush1.msra.mxu0 0.0
      %1985 = vmatprep.subr.mxu0 0.0
      %1986 = vmatpush1.msra.mxu0 0.0
      %1987 = vmatprep.subr.mxu0 0.0
      %1988 = vmatpush1.msra.mxu0 0.0
      %1989 = vmatprep.subr.mxu0 0.0
      %1990 = vmatpush1.msra.mxu0 0.0
      %1991 = vmatprep.subr.mxu0 0.0
      %1992 = vmatpush1.msra.mxu0 0.0
      %1993 = vmatprep.subr.mxu0 0.0
      %1994 = vmatpush1.msra.mxu0 0.0
      %1995 = vmatprep.subr.mxu0 0.0
      %1996 = vmatpush1.msra.mxu0 0.0
      %1997 = vmatprep.subr.mxu0 0.0
      %1998 = vmatpush1.msra.mxu0 0.0
      %1999 = vmatprep.mubr.f32.mxu0 0.0
      %v2000 = vand.u32 %v409, 4294901760
      %2001 = vmatmul.mubr.f32.gmra.mrb[0].mxu0 %v2000
      %v2002 = vpop.f32.mrb[0].mxu0
      %v2003 = vadd.f32 %v1900, %v2002
      %v2004 = vpop.f32.mrb[0].mxu0
      %v2005 = vadd.f32 %v1902, %v2004
      %2006 = vmatprep.mubr.f32.mxu0 0.0
      %v2007 = vand.u32 %v412, 4294901760
      %2008 = vmatmul.mubr.f32.gmra.mrb[0].mxu0 %v2007
      %v2009 = vpop.f32.mrb[0].mxu0
      %v2010 = vadd.f32 %v1907, %v2009
      %v2011 = vpop.f32.mrb[0].mxu0
      %v2012 = vadd.f32 %v1909, %v2011
      %2013 = vdwg.mxu0
      %v2014 = vand.u32 %v316, 4294901760
      %2015 = vmatprep.subr.mxu0 %v2014
      %v2016 = vand.u32 %v315, 4294901760
      %2017 = vmatpush1.msra.mxu0 %v2016
      %v2018 = vand.u32 %v324, 4294901760
      %2019 = vmatprep.subr.mxu0 %v2018
      %v2020 = vand.u32 %v323, 4294901760
      %2021 = vmatpush1.msra.mxu0 %v2020
      %v2022 = vand.u32 %v332, 4294901760
      %2023 = vmatprep.subr.mxu0 %v2022
      %v2024 = vand.u32 %v331, 4294901760
      %2025 = vmatpush1.msra.mxu0 %v2024
      %v2026 = vand.u32 %v340, 4294901760
      %2027 = vmatprep.subr.mxu0 %v2026
      %v2028 = vand.u32 %v339, 4294901760
      %2029 = vmatpush1.msra.mxu0 %v2028
      %v2030 = vand.u32 %v348, 4294901760
      %2031 = vmatprep.subr.mxu0 %v2030
      %v2032 = vand.u32 %v347, 4294901760
      %2033 = vmatpush1.msra.mxu0 %v2032
      %v2034 = vand.u32 %v356, 4294901760
      %2035 = vmatprep.subr.mxu0 %v2034
      %v2036 = vand.u32 %v355, 4294901760
      %2037 = vmatpush1.msra.mxu0 %v2036
      %v2038 = vand.u32 %v364, 4294901760
      %2039 = vmatprep.subr.mxu0 %v2038
      %v2040 = vand.u32 %v363, 4294901760
      %2041 = vmatpush1.msra.mxu0 %v2040
      %v2042 = vand.u32 %v372, 4294901760
      %2043 = vmatprep.subr.mxu0 %v2042
      %v2044 = vand.u32 %v371, 4294901760
      %2045 = vmatpush1.msra.mxu0 %v2044
      %v2046 = vand.u32 %v380, 4294901760
      %2047 = vmatprep.subr.mxu0 %v2046
      %v2048 = vand.u32 %v379, 4294901760
      %2049 = vmatpush1.msra.mxu0 %v2048
      %v2050 = vand.u32 %v388, 4294901760
      %2051 = vmatprep.subr.mxu0 %v2050
      %v2052 = vand.u32 %v387, 4294901760
      %2053 = vmatpush1.msra.mxu0 %v2052
      %v2054 = vand.u32 %v396, 4294901760
      %2055 = vmatprep.subr.mxu0 %v2054
      %v2056 = vand.u32 %v395, 4294901760
      %2057 = vmatpush1.msra.mxu0 %v2056
      %v2058 = vand.u32 %v404, 4294901760
      %2059 = vmatprep.subr.mxu0 %v2058
      %v2060 = vand.u32 %v403, 4294901760
      %2061 = vmatpush1.msra.mxu0 %v2060
      %2062 = vmatprep.subr.mxu0 0.0
      %2063 = vmatpush1.msra.mxu0 0.0
      %2064 = vmatprep.subr.mxu0 0.0
      %2065 = vmatpush1.msra.mxu0 0.0
      %2066 = vmatprep.subr.mxu0 0.0
      %2067 = vmatpush1.msra.mxu0 0.0
      %2068 = vmatprep.subr.mxu0 0.0
      %2069 = vmatpush1.msra.mxu0 0.0
      %2070 = vmatprep.subr.mxu0 0.0
      %2071 = vmatpush1.msra.mxu0 0.0
      %2072 = vmatprep.subr.mxu0 0.0
      %2073 = vmatpush1.msra.mxu0 0.0
      %2074 = vmatprep.subr.mxu0 0.0
      %2075 = vmatpush1.msra.mxu0 0.0
      %2076 = vmatprep.subr.mxu0 0.0
      %2077 = vmatpush1.msra.mxu0 0.0
      %2078 = vmatprep.subr.mxu0 0.0
      %2079 = vmatpush1.msra.mxu0 0.0
      %2080 = vmatprep.subr.mxu0 0.0
      %2081 = vmatpush1.msra.mxu0 0.0
      %2082 = vmatprep.subr.mxu0 0.0
      %2083 = vmatpush1.msra.mxu0 0.0
      %2084 = vmatprep.subr.mxu0 0.0
      %2085 = vmatpush1.msra.mxu0 0.0
      %2086 = vmatprep.subr.mxu0 0.0
      %2087 = vmatpush1.msra.mxu0 0.0
      %2088 = vmatprep.subr.mxu0 0.0
      %2089 = vmatpush1.msra.mxu0 0.0
      %2090 = vmatprep.subr.mxu0 0.0
      %2091 = vmatpush1.msra.mxu0 0.0
      %2092 = vmatprep.subr.mxu0 0.0
      %2093 = vmatpush1.msra.mxu0 0.0
      %2094 = vmatprep.subr.mxu0 0.0
      %2095 = vmatpush1.msra.mxu0 0.0
      %2096 = vmatprep.subr.mxu0 0.0
      %2097 = vmatpush1.msra.mxu0 0.0
      %2098 = vmatprep.subr.mxu0 0.0
      %2099 = vmatpush1.msra.mxu0 0.0
      %2100 = vmatprep.subr.mxu0 0.0
      %2101 = vmatpush1.msra.mxu0 0.0
      %2102 = vmatprep.mubr.f32.mxu0 0.0
      %v2103 = vand.u32 %v409, 4294901760
      %v2104 = vsub.f32 %v409, %v2103
      %v2105 = vand.u32 %v2104, 4294901760
      %v2106 = vsub.f32 %v2104, %v2105
      %v2107 = vand.u32 %v2106, 4294901760
      %2108 = vmatmul.mubr.f32.gmra.mrb[0].mxu0 %v2107
      %v2109 = vpop.f32.mrb[0].mxu0
      %v2110 = vadd.f32 0.0, %v2109
      %v2111 = vpop.f32.mrb[0].mxu0
      %v2112 = vadd.f32 0.0, %v2111
      %2113 = vmatprep.mubr.f32.mxu0 0.0
      %v2114 = vand.u32 %v412, 4294901760
      %v2115 = vsub.f32 %v412, %v2114
      %v2116 = vand.u32 %v2115, 4294901760
      %v2117 = vsub.f32 %v2115, %v2116
      %v2118 = vand.u32 %v2117, 4294901760
      %2119 = vmatmul.mubr.f32.gmra.mrb[0].mxu0 %v2118
      %v2120 = vpop.f32.mrb[0].mxu0
      %v2121 = vadd.f32 0.0, %v2120
      %v2122 = vpop.f32.mrb[0].mxu0
      %v2123 = vadd.f32 0.0, %v2122
      %2124 = vdwg.mxu0
      %v2125 = vand.u32 %v316, 4294901760
      %v2126 = vsub.f32 %v316, %v2125
      %v2127 = vand.u32 %v2126, 4294901760
      %v2128 = vsub.f32 %v2126, %v2127
      %v2129 = vand.u32 %v2128, 4294901760
      %2130 = vmatprep.subr.mxu0 %v2129
      %v2131 = vand.u32 %v315, 4294901760
      %v2132 = vsub.f32 %v315, %v2131
      %v2133 = vand.u32 %v2132, 4294901760
      %v2134 = vsub.f32 %v2132, %v2133
      %v2135 = vand.u32 %v2134, 4294901760
      %2136 = vmatpush1.msra.mxu0 %v2135
      %v2137 = vand.u32 %v324, 4294901760
      %v2138 = vsub.f32 %v324, %v2137
      %v2139 = vand.u32 %v2138, 4294901760
      %v2140 = vsub.f32 %v2138, %v2139
      %v2141 = vand.u32 %v2140, 4294901760
      %2142 = vmatprep.subr.mxu0 %v2141
      %v2143 = vand.u32 %v323, 4294901760
      %v2144 = vsub.f32 %v323, %v2143
      %v2145 = vand.u32 %v2144, 4294901760
      %v2146 = vsub.f32 %v2144, %v2145
      %v2147 = vand.u32 %v2146, 4294901760
      %2148 = vmatpush1.msra.mxu0 %v2147
      %v2149 = vand.u32 %v332, 4294901760
      %v2150 = vsub.f32 %v332, %v2149
      %v2151 = vand.u32 %v2150, 4294901760
      %v2152 = vsub.f32 %v2150, %v2151
      %v2153 = vand.u32 %v2152, 4294901760
      %2154 = vmatprep.subr.mxu0 %v2153
      %v2155 = vand.u32 %v331, 4294901760
      %v2156 = vsub.f32 %v331, %v2155
      %v2157 = vand.u32 %v2156, 4294901760
      %v2158 = vsub.f32 %v2156, %v2157
      %v2159 = vand.u32 %v2158, 4294901760
      %2160 = vmatpush1.msra.mxu0 %v2159
      %v2161 = vand.u32 %v340, 4294901760
      %v2162 = vsub.f32 %v340, %v2161
      %v2163 = vand.u32 %v2162, 4294901760
      %v2164 = vsub.f32 %v2162, %v2163
      %v2165 = vand.u32 %v2164, 4294901760
      %2166 = vmatprep.subr.mxu0 %v2165
      %v2167 = vand.u32 %v339, 4294901760
      %v2168 = vsub.f32 %v339, %v2167
      %v2169 = vand.u32 %v2168, 4294901760
      %v2170 = vsub.f32 %v2168, %v2169
      %v2171 = vand.u32 %v2170, 4294901760
      %2172 = vmatpush1.msra.mxu0 %v2171
      %v2173 = vand.u32 %v348, 4294901760
      %v2174 = vsub.f32 %v348, %v2173
      %v2175 = vand.u32 %v2174, 4294901760
      %v2176 = vsub.f32 %v2174, %v2175
      %v2177 = vand.u32 %v2176, 4294901760
      %2178 = vmatprep.subr.mxu0 %v2177
      %v2179 = vand.u32 %v347, 4294901760
      %v2180 = vsub.f32 %v347, %v2179
      %v2181 = vand.u32 %v2180, 4294901760
      %v2182 = vsub.f32 %v2180, %v2181
      %v2183 = vand.u32 %v2182, 4294901760
      %2184 = vmatpush1.msra.mxu0 %v2183
      %v2185 = vand.u32 %v356, 4294901760
      %v2186 = vsub.f32 %v356, %v2185
      %v2187 = vand.u32 %v2186, 4294901760
      %v2188 = vsub.f32 %v2186, %v2187
      %v2189 = vand.u32 %v2188, 4294901760
      %2190 = vmatprep.subr.mxu0 %v2189
      %v2191 = vand.u32 %v355, 4294901760
      %v2192 = vsub.f32 %v355, %v2191
      %v2193 = vand.u32 %v2192, 4294901760
      %v2194 = vsub.f32 %v2192, %v2193
      %v2195 = vand.u32 %v2194, 4294901760
      %2196 = vmatpush1.msra.mxu0 %v2195
      %v2197 = vand.u32 %v364, 4294901760
      %v2198 = vsub.f32 %v364, %v2197
      %v2199 = vand.u32 %v2198, 4294901760
      %v2200 = vsub.f32 %v2198, %v2199
      %v2201 = vand.u32 %v2200, 4294901760
      %2202 = vmatprep.subr.mxu0 %v2201
      %v2203 = vand.u32 %v363, 4294901760
      %v2204 = vsub.f32 %v363, %v2203
      %v2205 = vand.u32 %v2204, 4294901760
      %v2206 = vsub.f32 %v2204, %v2205
      %v2207 = vand.u32 %v2206, 4294901760
      %2208 = vmatpush1.msra.mxu0 %v2207
      %v2209 = vand.u32 %v372, 4294901760
      %v2210 = vsub.f32 %v372, %v2209
      %v2211 = vand.u32 %v2210, 4294901760
      %v2212 = vsub.f32 %v2210, %v2211
      %v2213 = vand.u32 %v2212, 4294901760
      %2214 = vmatprep.subr.mxu0 %v2213
      %v2215 = vand.u32 %v371, 4294901760
      %v2216 = vsub.f32 %v371, %v2215
      %v2217 = vand.u32 %v2216, 4294901760
      %v2218 = vsub.f32 %v2216, %v2217
      %v2219 = vand.u32 %v2218, 4294901760
      %2220 = vmatpush1.msra.mxu0 %v2219
      %v2221 = vand.u32 %v380, 4294901760
      %v2222 = vsub.f32 %v380, %v2221
      %v2223 = vand.u32 %v2222, 4294901760
      %v2224 = vsub.f32 %v2222, %v2223
      %v2225 = vand.u32 %v2224, 4294901760
      %2226 = vmatprep.subr.mxu0 %v2225
      %v2227 = vand.u32 %v379, 4294901760
      %v2228 = vsub.f32 %v379, %v2227
      %v2229 = vand.u32 %v2228, 4294901760
      %v2230 = vsub.f32 %v2228, %v2229
      %v2231 = vand.u32 %v2230, 4294901760
      %2232 = vmatpush1.msra.mxu0 %v2231
      %v2233 = vand.u32 %v388, 4294901760
      %v2234 = vsub.f32 %v388, %v2233
      %v2235 = vand.u32 %v2234, 4294901760
      %v2236 = vsub.f32 %v2234, %v2235
      %v2237 = vand.u32 %v2236, 4294901760
      %2238 = vmatprep.subr.mxu0 %v2237
      %v2239 = vand.u32 %v387, 4294901760
      %v2240 = vsub.f32 %v387, %v2239
      %v2241 = vand.u32 %v2240, 4294901760
      %v2242 = vsub.f32 %v2240, %v2241
      %v2243 = vand.u32 %v2242, 4294901760
      %2244 = vmatpush1.msra.mxu0 %v2243
      %v2245 = vand.u32 %v396, 4294901760
      %v2246 = vsub.f32 %v396, %v2245
      %v2247 = vand.u32 %v2246, 4294901760
      %v2248 = vsub.f32 %v2246, %v2247
      %v2249 = vand.u32 %v2248, 4294901760
      %2250 = vmatprep.subr.mxu0 %v2249
      %v2251 = vand.u32 %v395, 4294901760
      %v2252 = vsub.f32 %v395, %v2251
      %v2253 = vand.u32 %v2252, 4294901760
      %v2254 = vsub.f32 %v2252, %v2253
      %v2255 = vand.u32 %v2254, 4294901760
      %2256 = vmatpush1.msra.mxu0 %v2255
      %v2257 = vand.u32 %v404, 4294901760
      %v2258 = vsub.f32 %v404, %v2257
      %v2259 = vand.u32 %v2258, 4294901760
      %v2260 = vsub.f32 %v2258, %v2259
      %v2261 = vand.u32 %v2260, 4294901760
      %2262 = vmatprep.subr.mxu0 %v2261
      %v2263 = vand.u32 %v403, 4294901760
      %v2264 = vsub.f32 %v403, %v2263
      %v2265 = vand.u32 %v2264, 4294901760
      %v2266 = vsub.f32 %v2264, %v2265
      %v2267 = vand.u32 %v2266, 4294901760
      %2268 = vmatpush1.msra.mxu0 %v2267
      %2269 = vmatprep.subr.mxu0 0.0
      %2270 = vmatpush1.msra.mxu0 0.0
      %2271 = vmatprep.subr.mxu0 0.0
      %2272 = vmatpush1.msra.mxu0 0.0
      %2273 = vmatprep.subr.mxu0 0.0
      %2274 = vmatpush1.msra.mxu0 0.0
      %2275 = vmatprep.subr.mxu0 0.0
      %2276 = vmatpush1.msra.mxu0 0.0
      %2277 = vmatprep.subr.mxu0 0.0
      %2278 = vmatpush1.msra.mxu0 0.0
      %2279 = vmatprep.subr.mxu0 0.0
      %2280 = vmatpush1.msra.mxu0 0.0
      %2281 = vmatprep.subr.mxu0 0.0
      %2282 = vmatpush1.msra.mxu0 0.0
      %2283 = vmatprep.subr.mxu0 0.0
      %2284 = vmatpush1.msra.mxu0 0.0
      %2285 = vmatprep.subr.mxu0 0.0
      %2286 = vmatpush1.msra.mxu0 0.0
      %2287 = vmatprep.subr.mxu0 0.0
      %2288 = vmatpush1.msra.mxu0 0.0
      %2289 = vmatprep.subr.mxu0 0.0
      %2290 = vmatpush1.msra.mxu0 0.0
      %2291 = vmatprep.subr.mxu0 0.0
      %2292 = vmatpush1.msra.mxu0 0.0
      %2293 = vmatprep.subr.mxu0 0.0
      %2294 = vmatpush1.msra.mxu0 0.0
      %2295 = vmatprep.subr.mxu0 0.0
      %2296 = vmatpush1.msra.mxu0 0.0
      %2297 = vmatprep.subr.mxu0 0.0
      %2298 = vmatpush1.msra.mxu0 0.0
      %2299 = vmatprep.subr.mxu0 0.0
      %2300 = vmatpush1.msra.mxu0 0.0
      %2301 = vmatprep.subr.mxu0 0.0
      %2302 = vmatpush1.msra.mxu0 0.0
      %2303 = vmatprep.subr.mxu0 0.0
      %2304 = vmatpush1.msra.mxu0 0.0
      %2305 = vmatprep.subr.mxu0 0.0
      %2306 = vmatpush1.msra.mxu0 0.0
      %2307 = vmatprep.subr.mxu0 0.0
      %2308 = vmatpush1.msra.mxu0 0.0
      %2309 = vmatprep.mubr.f32.mxu0 0.0
      %v2310 = vand.u32 %v409, 4294901760
      %2311 = vmatmul.mubr.f32.gmra.mrb[0].mxu0 %v2310
      %v2312 = vpop.f32.mrb[0].mxu0
      %v2313 = vadd.f32 %v2110, %v2312
      %v2314 = vpop.f32.mrb[0].mxu0
      %v2315 = vadd.f32 %v2112, %v2314
      %2316 = vmatprep.mubr.f32.mxu0 0.0
      %v2317 = vand.u32 %v412, 4294901760
      %2318 = vmatmul.mubr.f32.gmra.mrb[0].mxu0 %v2317
      %v2319 = vpop.f32.mrb[0].mxu0
      %v2320 = vadd.f32 %v2121, %v2319
      %v2321 = vpop.f32.mrb[0].mxu0
      %v2322 = vadd.f32 %v2123, %v2321
      %2323 = vdwg.mxu0
      %v2324 = vand.u32 %v316, 4294901760
      %v2325 = vsub.f32 %v316, %v2324
      %2326 = vmatprep.subr.mxu0 %v2325
      %v2327 = vand.u32 %v315, 4294901760
      %v2328 = vsub.f32 %v315, %v2327
      %2329 = vmatpush1.msra.mxu0 %v2328
      %v2330 = vand.u32 %v324, 4294901760
      %v2331 = vsub.f32 %v324, %v2330
      %2332 = vmatprep.subr.mxu0 %v2331
      %v2333 = vand.u32 %v323, 4294901760
      %v2334 = vsub.f32 %v323, %v2333
      %2335 = vmatpush1.msra.mxu0 %v2334
      %v2336 = vand.u32 %v332, 4294901760
      %v2337 = vsub.f32 %v332, %v2336
      %2338 = vmatprep.subr.mxu0 %v2337
      %v2339 = vand.u32 %v331, 4294901760
      %v2340 = vsub.f32 %v331, %v2339
      %2341 = vmatpush1.msra.mxu0 %v2340
      %v2342 = vand.u32 %v340, 4294901760
      %v2343 = vsub.f32 %v340, %v2342
      %2344 = vmatprep.subr.mxu0 %v2343
      %v2345 = vand.u32 %v339, 4294901760
      %v2346 = vsub.f32 %v339, %v2345
      %2347 = vmatpush1.msra.mxu0 %v2346
      %v2348 = vand.u32 %v348, 4294901760
      %v2349 = vsub.f32 %v348, %v2348
      %2350 = vmatprep.subr.mxu0 %v2349
      %v2351 = vand.u32 %v347, 4294901760
      %v2352 = vsub.f32 %v347, %v2351
      %2353 = vmatpush1.msra.mxu0 %v2352
      %v2354 = vand.u32 %v356, 4294901760
      %v2355 = vsub.f32 %v356, %v2354
      %2356 = vmatprep.subr.mxu0 %v2355
      %v2357 = vand.u32 %v355, 4294901760
      %v2358 = vsub.f32 %v355, %v2357
      %2359 = vmatpush1.msra.mxu0 %v2358
      %v2360 = vand.u32 %v364, 4294901760
      %v2361 = vsub.f32 %v364, %v2360
      %2362 = vmatprep.subr.mxu0 %v2361
      %v2363 = vand.u32 %v363, 4294901760
      %v2364 = vsub.f32 %v363, %v2363
      %2365 = vmatpush1.msra.mxu0 %v2364
      %v2366 = vand.u32 %v372, 4294901760
      %v2367 = vsub.f32 %v372, %v2366
      %2368 = vmatprep.subr.mxu0 %v2367
      %v2369 = vand.u32 %v371, 4294901760
      %v2370 = vsub.f32 %v371, %v2369
      %2371 = vmatpush1.msra.mxu0 %v2370
      %v2372 = vand.u32 %v380, 4294901760
      %v2373 = vsub.f32 %v380, %v2372
      %2374 = vmatprep.subr.mxu0 %v2373
      %v2375 = vand.u32 %v379, 4294901760
      %v2376 = vsub.f32 %v379, %v2375
      %2377 = vmatpush1.msra.mxu0 %v2376
      %v2378 = vand.u32 %v388, 4294901760
      %v2379 = vsub.f32 %v388, %v2378
      %2380 = vmatprep.subr.mxu0 %v2379
      %v2381 = vand.u32 %v387, 4294901760
      %v2382 = vsub.f32 %v387, %v2381
      %2383 = vmatpush1.msra.mxu0 %v2382
      %v2384 = vand.u32 %v396, 4294901760
      %v2385 = vsub.f32 %v396, %v2384
      %2386 = vmatprep.subr.mxu0 %v2385
      %v2387 = vand.u32 %v395, 4294901760
      %v2388 = vsub.f32 %v395, %v2387
      %2389 = vmatpush1.msra.mxu0 %v2388
      %v2390 = vand.u32 %v404, 4294901760
      %v2391 = vsub.f32 %v404, %v2390
      %2392 = vmatprep.subr.mxu0 %v2391
      %v2393 = vand.u32 %v403, 4294901760
      %v2394 = vsub.f32 %v403, %v2393
      %2395 = vmatpush1.msra.mxu0 %v2394
      %2396 = vmatprep.subr.mxu0 0.0
      %2397 = vmatpush1.msra.mxu0 0.0
      %2398 = vmatprep.subr.mxu0 0.0
      %2399 = vmatpush1.msra.mxu0 0.0
      %2400 = vmatprep.subr.mxu0 0.0
      %2401 = vmatpush1.msra.mxu0 0.0
      %2402 = vmatprep.subr.mxu0 0.0
      %2403 = vmatpush1.msra.mxu0 0.0
      %2404 = vmatprep.subr.mxu0 0.0
      %2405 = vmatpush1.msra.mxu0 0.0
      %2406 = vmatprep.subr.mxu0 0.0
      %2407 = vmatpush1.msra.mxu0 0.0
      %2408 = vmatprep.subr.mxu0 0.0
      %2409 = vmatpush1.msra.mxu0 0.0
      %2410 = vmatprep.subr.mxu0 0.0
      %2411 = vmatpush1.msra.mxu0 0.0
      %2412 = vmatprep.subr.mxu0 0.0
      %2413 = vmatpush1.msra.mxu0 0.0
      %2414 = vmatprep.subr.mxu0 0.0
      %2415 = vmatpush1.msra.mxu0 0.0
      %2416 = vmatprep.subr.mxu0 0.0
      %2417 = vmatpush1.msra.mxu0 0.0
      %2418 = vmatprep.subr.mxu0 0.0
      %2419 = vmatpush1.msra.mxu0 0.0
      %2420 = vmatprep.subr.mxu0 0.0
      %2421 = vmatpush1.msra.mxu0 0.0
      %2422 = vmatprep.subr.mxu0 0.0
      %2423 = vmatpush1.msra.mxu0 0.0
      %2424 = vmatprep.subr.mxu0 0.0
      %2425 = vmatpush1.msra.mxu0 0.0
      %2426 = vmatprep.subr.mxu0 0.0
      %2427 = vmatpush1.msra.mxu0 0.0
      %2428 = vmatprep.subr.mxu0 0.0
      %2429 = vmatpush1.msra.mxu0 0.0
      %2430 = vmatprep.subr.mxu0 0.0
      %2431 = vmatpush1.msra.mxu0 0.0
      %2432 = vmatprep.subr.mxu0 0.0
      %2433 = vmatpush1.msra.mxu0 0.0
      %2434 = vmatprep.subr.mxu0 0.0
      %2435 = vmatpush1.msra.mxu0 0.0
      %2436 = vmatprep.mubr.f32.mxu0 0.0
      %v2437 = vand.u32 %v409, 4294901760
      %v2438 = vsub.f32 %v409, %v2437
      %2439 = vmatmul.mubr.f32.gmra.mrb[0].mxu0 %v2438
      %v2440 = vpop.f32.mrb[0].mxu0
      %v2441 = vadd.f32 %v2313, %v2440
      %v2442 = vpop.f32.mrb[0].mxu0
      %v2443 = vadd.f32 %v2315, %v2442
      %2444 = vmatprep.mubr.f32.mxu0 0.0
      %v2445 = vand.u32 %v412, 4294901760
      %v2446 = vsub.f32 %v412, %v2445
      %2447 = vmatmul.mubr.f32.gmra.mrb[0].mxu0 %v2446
      %v2448 = vpop.f32.mrb[0].mxu0
      %v2449 = vadd.f32 %v2320, %v2448
      %v2450 = vpop.f32.mrb[0].mxu0
      %v2451 = vadd.f32 %v2322, %v2450
      %2452 = vdwg.mxu0
      %v2453 = vand.u32 %v316, 4294901760
      %2454 = vmatprep.subr.mxu0 %v2453
      %v2455 = vand.u32 %v315, 4294901760
      %2456 = vmatpush1.msra.mxu0 %v2455
      %v2457 = vand.u32 %v324, 4294901760
      %2458 = vmatprep.subr.mxu0 %v2457
      %v2459 = vand.u32 %v323, 4294901760
      %2460 = vmatpush1.msra.mxu0 %v2459
      %v2461 = vand.u32 %v332, 4294901760
      %2462 = vmatprep.subr.mxu0 %v2461
      %v2463 = vand.u32 %v331, 4294901760
      %2464 = vmatpush1.msra.mxu0 %v2463
      %v2465 = vand.u32 %v340, 4294901760
      %2466 = vmatprep.subr.mxu0 %v2465
      %v2467 = vand.u32 %v339, 4294901760
      %2468 = vmatpush1.msra.mxu0 %v2467
      %v2469 = vand.u32 %v348, 4294901760
      %2470 = vmatprep.subr.mxu0 %v2469
      %v2471 = vand.u32 %v347, 4294901760
      %2472 = vmatpush1.msra.mxu0 %v2471
      %v2473 = vand.u32 %v356, 4294901760
      %2474 = vmatprep.subr.mxu0 %v2473
      %v2475 = vand.u32 %v355, 4294901760
      %2476 = vmatpush1.msra.mxu0 %v2475
      %v2477 = vand.u32 %v364, 4294901760
      %2478 = vmatprep.subr.mxu0 %v2477
      %v2479 = vand.u32 %v363, 4294901760
      %2480 = vmatpush1.msra.mxu0 %v2479
      %v2481 = vand.u32 %v372, 4294901760
      %2482 = vmatprep.subr.mxu0 %v2481
      %v2483 = vand.u32 %v371, 4294901760
      %2484 = vmatpush1.msra.mxu0 %v2483
      %v2485 = vand.u32 %v380, 4294901760
      %2486 = vmatprep.subr.mxu0 %v2485
      %v2487 = vand.u32 %v379, 4294901760
      %2488 = vmatpush1.msra.mxu0 %v2487
      %v2489 = vand.u32 %v388, 4294901760
      %2490 = vmatprep.subr.mxu0 %v2489
      %v2491 = vand.u32 %v387, 4294901760
      %2492 = vmatpush1.msra.mxu0 %v2491
      %v2493 = vand.u32 %v396, 4294901760
      %2494 = vmatprep.subr.mxu0 %v2493
      %v2495 = vand.u32 %v395, 4294901760
      %2496 = vmatpush1.msra.mxu0 %v2495
      %v2497 = vand.u32 %v404, 4294901760
      %2498 = vmatprep.subr.mxu0 %v2497
      %v2499 = vand.u32 %v403, 4294901760
      %2500 = vmatpush1.msra.mxu0 %v2499
      %2501 = vmatprep.subr.mxu0 0.0
      %2502 = vmatpush1.msra.mxu0 0.0
      %2503 = vmatprep.subr.mxu0 0.0
      %2504 = vmatpush1.msra.mxu0 0.0
      %2505 = vmatprep.subr.mxu0 0.0
      %2506 = vmatpush1.msra.mxu0 0.0
      %2507 = vmatprep.subr.mxu0 0.0
      %2508 = vmatpush1.msra.mxu0 0.0
      %2509 = vmatprep.subr.mxu0 0.0
      %2510 = vmatpush1.msra.mxu0 0.0
      %2511 = vmatprep.subr.mxu0 0.0
      %2512 = vmatpush1.msra.mxu0 0.0
      %2513 = vmatprep.subr.mxu0 0.0
      %2514 = vmatpush1.msra.mxu0 0.0
      %2515 = vmatprep.subr.mxu0 0.0
      %2516 = vmatpush1.msra.mxu0 0.0
      %2517 = vmatprep.subr.mxu0 0.0
      %2518 = vmatpush1.msra.mxu0 0.0
      %2519 = vmatprep.subr.mxu0 0.0
      %2520 = vmatpush1.msra.mxu0 0.0
      %2521 = vmatprep.subr.mxu0 0.0
      %2522 = vmatpush1.msra.mxu0 0.0
      %2523 = vmatprep.subr.mxu0 0.0
      %2524 = vmatpush1.msra.mxu0 0.0
      %2525 = vmatprep.subr.mxu0 0.0
      %2526 = vmatpush1.msra.mxu0 0.0
      %2527 = vmatprep.subr.mxu0 0.0
      %2528 = vmatpush1.msra.mxu0 0.0
      %2529 = vmatprep.subr.mxu0 0.0
      %2530 = vmatpush1.msra.mxu0 0.0
      %2531 = vmatprep.subr.mxu0 0.0
      %2532 = vmatpush1.msra.mxu0 0.0
      %2533 = vmatprep.subr.mxu0 0.0
      %2534 = vmatpush1.msra.mxu0 0.0
      %2535 = vmatprep.subr.mxu0 0.0
      %2536 = vmatpush1.msra.mxu0 0.0
      %2537 = vmatprep.subr.mxu0 0.0
      %2538 = vmatpush1.msra.mxu0 0.0
      %2539 = vmatprep.subr.mxu0 0.0
      %2540 = vmatpush1.msra.mxu0 0.0
      %2541 = vmatprep.mubr.f32.mxu0 0.0
      %v2542 = vand.u32 %v409, 4294901760
      %v2543 = vsub.f32 %v409, %v2542
      %v2544 = vand.u32 %v2543, 4294901760
      %2545 = vmatmul.mubr.f32.gmra.mrb[0].mxu0 %v2544
      %v2546 = vpop.f32.mrb[0].mxu0
      %v2547 = vadd.f32 %v2441, %v2546
      %v2548 = vpop.f32.mrb[0].mxu0
      %v2549 = vadd.f32 %v2443, %v2548
      %2550 = vmatprep.mubr.f32.mxu0 0.0
      %v2551 = vand.u32 %v412, 4294901760
      %v2552 = vsub.f32 %v412, %v2551
      %v2553 = vand.u32 %v2552, 4294901760
      %2554 = vmatmul.mubr.f32.gmra.mrb[0].mxu0 %v2553
      %v2555 = vpop.f32.mrb[0].mxu0
      %v2556 = vadd.f32 %v2449, %v2555
      %v2557 = vpop.f32.mrb[0].mxu0
      %v2558 = vadd.f32 %v2451, %v2557
      %2559 = vdwg.mxu0
      %v2560 = vand.u32 %v316, 4294901760
      %v2561 = vsub.f32 %v316, %v2560
      %v2562 = vand.u32 %v2561, 4294901760
      %2563 = vmatprep.subr.mxu0 %v2562
      %v2564 = vand.u32 %v315, 4294901760
      %v2565 = vsub.f32 %v315, %v2564
      %v2566 = vand.u32 %v2565, 4294901760
      %2567 = vmatpush1.msra.mxu0 %v2566
      %v2568 = vand.u32 %v324, 4294901760
      %v2569 = vsub.f32 %v324, %v2568
      %v2570 = vand.u32 %v2569, 4294901760
      %2571 = vmatprep.subr.mxu0 %v2570
      %v2572 = vand.u32 %v323, 4294901760
      %v2573 = vsub.f32 %v323, %v2572
      %v2574 = vand.u32 %v2573, 4294901760
      %2575 = vmatpush1.msra.mxu0 %v2574
      %v2576 = vand.u32 %v332, 4294901760
      %v2577 = vsub.f32 %v332, %v2576
      %v2578 = vand.u32 %v2577, 4294901760
      %2579 = vmatprep.subr.mxu0 %v2578
      %v2580 = vand.u32 %v331, 4294901760
      %v2581 = vsub.f32 %v331, %v2580
      %v2582 = vand.u32 %v2581, 4294901760
      %2583 = vmatpush1.msra.mxu0 %v2582
      %v2584 = vand.u32 %v340, 4294901760
      %v2585 = vsub.f32 %v340, %v2584
      %v2586 = vand.u32 %v2585, 4294901760
      %2587 = vmatprep.subr.mxu0 %v2586
      %v2588 = vand.u32 %v339, 4294901760
      %v2589 = vsub.f32 %v339, %v2588
      %v2590 = vand.u32 %v2589, 4294901760
      %2591 = vmatpush1.msra.mxu0 %v2590
      %v2592 = vand.u32 %v348, 4294901760
      %v2593 = vsub.f32 %v348, %v2592
      %v2594 = vand.u32 %v2593, 4294901760
      %2595 = vmatprep.subr.mxu0 %v2594
      %v2596 = vand.u32 %v347, 4294901760
      %v2597 = vsub.f32 %v347, %v2596
      %v2598 = vand.u32 %v2597, 4294901760
      %2599 = vmatpush1.msra.mxu0 %v2598
      %v2600 = vand.u32 %v356, 4294901760
      %v2601 = vsub.f32 %v356, %v2600
      %v2602 = vand.u32 %v2601, 4294901760
      %2603 = vmatprep.subr.mxu0 %v2602
      %v2604 = vand.u32 %v355, 4294901760
      %v2605 = vsub.f32 %v355, %v2604
      %v2606 = vand.u32 %v2605, 4294901760
      %2607 = vmatpush1.msra.mxu0 %v2606
      %v2608 = vand.u32 %v364, 4294901760
      %v2609 = vsub.f32 %v364, %v2608
      %v2610 = vand.u32 %v2609, 4294901760
      %2611 = vmatprep.subr.mxu0 %v2610
      %v2612 = vand.u32 %v363, 4294901760
      %v2613 = vsub.f32 %v363, %v2612
      %v2614 = vand.u32 %v2613, 4294901760
      %2615 = vmatpush1.msra.mxu0 %v2614
      %v2616 = vand.u32 %v372, 4294901760
      %v2617 = vsub.f32 %v372, %v2616
      %v2618 = vand.u32 %v2617, 4294901760
      %2619 = vmatprep.subr.mxu0 %v2618
      %v2620 = vand.u32 %v371, 4294901760
      %v2621 = vsub.f32 %v371, %v2620
      %v2622 = vand.u32 %v2621, 4294901760
      %2623 = vmatpush1.msra.mxu0 %v2622
      %v2624 = vand.u32 %v380, 4294901760
      %v2625 = vsub.f32 %v380, %v2624
      %v2626 = vand.u32 %v2625, 4294901760
      %2627 = vmatprep.subr.mxu0 %v2626
      %v2628 = vand.u32 %v379, 4294901760
      %v2629 = vsub.f32 %v379, %v2628
      %v2630 = vand.u32 %v2629, 4294901760
      %2631 = vmatpush1.msra.mxu0 %v2630
      %v2632 = vand.u32 %v388, 4294901760
      %v2633 = vsub.f32 %v388, %v2632
      %v2634 = vand.u32 %v2633, 4294901760
      %2635 = vmatprep.subr.mxu0 %v2634
      %v2636 = vand.u32 %v387, 4294901760
      %v2637 = vsub.f32 %v387, %v2636
      %v2638 = vand.u32 %v2637, 4294901760
      %2639 = vmatpush1.msra.mxu0 %v2638
      %v2640 = vand.u32 %v396, 4294901760
      %v2641 = vsub.f32 %v396, %v2640
      %v2642 = vand.u32 %v2641, 4294901760
      %2643 = vmatprep.subr.mxu0 %v2642
      %v2644 = vand.u32 %v395, 4294901760
      %v2645 = vsub.f32 %v395, %v2644
      %v2646 = vand.u32 %v2645, 4294901760
      %2647 = vmatpush1.msra.mxu0 %v2646
      %v2648 = vand.u32 %v404, 4294901760
      %v2649 = vsub.f32 %v404, %v2648
      %v2650 = vand.u32 %v2649, 4294901760
      %2651 = vmatprep.subr.mxu0 %v2650
      %v2652 = vand.u32 %v403, 4294901760
      %v2653 = vsub.f32 %v403, %v2652
      %v2654 = vand.u32 %v2653, 4294901760
      %2655 = vmatpush1.msra.mxu0 %v2654
      %2656 = vmatprep.subr.mxu0 0.0
      %2657 = vmatpush1.msra.mxu0 0.0
      %2658 = vmatprep.subr.mxu0 0.0
      %2659 = vmatpush1.msra.mxu0 0.0
      %2660 = vmatprep.subr.mxu0 0.0
      %2661 = vmatpush1.msra.mxu0 0.0
      %2662 = vmatprep.subr.mxu0 0.0
      %2663 = vmatpush1.msra.mxu0 0.0
      %2664 = vmatprep.subr.mxu0 0.0
      %2665 = vmatpush1.msra.mxu0 0.0
      %2666 = vmatprep.subr.mxu0 0.0
      %2667 = vmatpush1.msra.mxu0 0.0
      %2668 = vmatprep.subr.mxu0 0.0
      %2669 = vmatpush1.msra.mxu0 0.0
      %2670 = vmatprep.subr.mxu0 0.0
      %2671 = vmatpush1.msra.mxu0 0.0
      %2672 = vmatprep.subr.mxu0 0.0
      %2673 = vmatpush1.msra.mxu0 0.0
      %2674 = vmatprep.subr.mxu0 0.0
      %2675 = vmatpush1.msra.mxu0 0.0
      %2676 = vmatprep.subr.mxu0 0.0
      %2677 = vmatpush1.msra.mxu0 0.0
      %2678 = vmatprep.subr.mxu0 0.0
      %2679 = vmatpush1.msra.mxu0 0.0
      %2680 = vmatprep.subr.mxu0 0.0
      %2681 = vmatpush1.msra.mxu0 0.0
      %2682 = vmatprep.subr.mxu0 0.0
      %2683 = vmatpush1.msra.mxu0 0.0
      %2684 = vmatprep.subr.mxu0 0.0
      %2685 = vmatpush1.msra.mxu0 0.0
      %2686 = vmatprep.subr.mxu0 0.0
      %2687 = vmatpush1.msra.mxu0 0.0
      %2688 = vmatprep.subr.mxu0 0.0
      %2689 = vmatpush1.msra.mxu0 0.0
      %2690 = vmatprep.subr.mxu0 0.0
      %2691 = vmatpush1.msra.mxu0 0.0
      %2692 = vmatprep.subr.mxu0 0.0
      %2693 = vmatpush1.msra.mxu0 0.0
      %2694 = vmatprep.subr.mxu0 0.0
      %2695 = vmatpush1.msra.mxu0 0.0
      %2696 = vmatprep.mubr.f32.mxu0 0.0
      %v2697 = vand.u32 %v409, 4294901760
      %2698 = vmatmul.mubr.f32.gmra.mrb[0].mxu0 %v2697
      %v2699 = vpop.f32.mrb[0].mxu0
      %v2700 = vadd.f32 %v2547, %v2699
      %v2701 = vpop.f32.mrb[0].mxu0
      %v2702 = vadd.f32 %v2549, %v2701
      %2703 = vmatprep.mubr.f32.mxu0 0.0
      %v2704 = vand.u32 %v412, 4294901760
      %2705 = vmatmul.mubr.f32.gmra.mrb[0].mxu0 %v2704
      %v2706 = vpop.f32.mrb[0].mxu0
      %v2707 = vadd.f32 %v2556, %v2706
      %v2708 = vpop.f32.mrb[0].mxu0
      %v2709 = vadd.f32 %v2558, %v2708
      %2710 = vdwg.mxu0
      %v2711 = vand.u32 %v316, 4294901760
      %2712 = vmatprep.subr.mxu0 %v2711
      %v2713 = vand.u32 %v315, 4294901760
      %2714 = vmatpush1.msra.mxu0 %v2713
      %v2715 = vand.u32 %v324, 4294901760
      %2716 = vmatprep.subr.mxu0 %v2715
      %v2717 = vand.u32 %v323, 4294901760
      %2718 = vmatpush1.msra.mxu0 %v2717
      %v2719 = vand.u32 %v332, 4294901760
      %2720 = vmatprep.subr.mxu0 %v2719
      %v2721 = vand.u32 %v331, 4294901760
      %2722 = vmatpush1.msra.mxu0 %v2721
      %v2723 = vand.u32 %v340, 4294901760
      %2724 = vmatprep.subr.mxu0 %v2723
      %v2725 = vand.u32 %v339, 4294901760
      %2726 = vmatpush1.msra.mxu0 %v2725
      %v2727 = vand.u32 %v348, 4294901760
      %2728 = vmatprep.subr.mxu0 %v2727
      %v2729 = vand.u32 %v347, 4294901760
      %2730 = vmatpush1.msra.mxu0 %v2729
      %v2731 = vand.u32 %v356, 4294901760
      %2732 = vmatprep.subr.mxu0 %v2731
      %v2733 = vand.u32 %v355, 4294901760
      %2734 = vmatpush1.msra.mxu0 %v2733
      %v2735 = vand.u32 %v364, 4294901760
      %2736 = vmatprep.subr.mxu0 %v2735
      %v2737 = vand.u32 %v363, 4294901760
      %2738 = vmatpush1.msra.mxu0 %v2737
      %v2739 = vand.u32 %v372, 4294901760
      %2740 = vmatprep.subr.mxu0 %v2739
      %v2741 = vand.u32 %v371, 4294901760
      %2742 = vmatpush1.msra.mxu0 %v2741
      %v2743 = vand.u32 %v380, 4294901760
      %2744 = vmatprep.subr.mxu0 %v2743
      %v2745 = vand.u32 %v379, 4294901760
      %2746 = vmatpush1.msra.mxu0 %v2745
      %v2747 = vand.u32 %v388, 4294901760
      %2748 = vmatprep.subr.mxu0 %v2747
      %v2749 = vand.u32 %v387, 4294901760
      %2750 = vmatpush1.msra.mxu0 %v2749
      %v2751 = vand.u32 %v396, 4294901760
      %2752 = vmatprep.subr.mxu0 %v2751
      %v2753 = vand.u32 %v395, 4294901760
      %2754 = vmatpush1.msra.mxu0 %v2753
      %v2755 = vand.u32 %v404, 4294901760
      %2756 = vmatprep.subr.mxu0 %v2755
      %v2757 = vand.u32 %v403, 4294901760
      %2758 = vmatpush1.msra.mxu0 %v2757
      %2759 = vmatprep.subr.mxu0 0.0
      %2760 = vmatpush1.msra.mxu0 0.0
      %2761 = vmatprep.subr.mxu0 0.0
      %2762 = vmatpush1.msra.mxu0 0.0
      %2763 = vmatprep.subr.mxu0 0.0
      %2764 = vmatpush1.msra.mxu0 0.0
      %2765 = vmatprep.subr.mxu0 0.0
      %2766 = vmatpush1.msra.mxu0 0.0
      %2767 = vmatprep.subr.mxu0 0.0
      %2768 = vmatpush1.msra.mxu0 0.0
      %2769 = vmatprep.subr.mxu0 0.0
      %2770 = vmatpush1.msra.mxu0 0.0
      %2771 = vmatprep.subr.mxu0 0.0
      %2772 = vmatpush1.msra.mxu0 0.0
      %2773 = vmatprep.subr.mxu0 0.0
      %2774 = vmatpush1.msra.mxu0 0.0
      %2775 = vmatprep.subr.mxu0 0.0
      %2776 = vmatpush1.msra.mxu0 0.0
      %2777 = vmatprep.subr.mxu0 0.0
      %2778 = vmatpush1.msra.mxu0 0.0
      %2779 = vmatprep.subr.mxu0 0.0
      %2780 = vmatpush1.msra.mxu0 0.0
      %2781 = vmatprep.subr.mxu0 0.0
      %2782 = vmatpush1.msra.mxu0 0.0
      %2783 = vmatprep.subr.mxu0 0.0
      %2784 = vmatpush1.msra.mxu0 0.0
      %2785 = vmatprep.subr.mxu0 0.0
      %2786 = vmatpush1.msra.mxu0 0.0
      %2787 = vmatprep.subr.mxu0 0.0
      %2788 = vmatpush1.msra.mxu0 0.0
      %2789 = vmatprep.subr.mxu0 0.0
      %2790 = vmatpush1.msra.mxu0 0.0
      %2791 = vmatprep.subr.mxu0 0.0
      %2792 = vmatpush1.msra.mxu0 0.0
      %2793 = vmatprep.subr.mxu0 0.0
      %2794 = vmatpush1.msra.mxu0 0.0
      %2795 = vmatprep.subr.mxu0 0.0
      %2796 = vmatpush1.msra.mxu0 0.0
      %2797 = vmatprep.subr.mxu0 0.0
      %2798 = vmatpush1.msra.mxu0 0.0
      %2799 = vmatprep.mubr.f32.mxu0 0.0
      %v2800 = vand.u32 %v409, 4294901760
      %2801 = vmatmul.mubr.f32.gmra.mrb[0].mxu0 %v2800
      %v2802 = vpop.f32.mrb[0].mxu0
      %v2803 = vadd.f32 %v2700, %v2802
      %v2804 = vpop.f32.mrb[0].mxu0
      %v2805 = vadd.f32 %v2702, %v2804
      %2806 = vmatprep.mubr.f32.mxu0 0.0
      %v2807 = vand.u32 %v412, 4294901760
      %2808 = vmatmul.mubr.f32.gmra.mrb[0].mxu0 %v2807
      %v2809 = vpop.f32.mrb[0].mxu0
      %v2810 = vadd.f32 %v2707, %v2809
      %v2811 = vpop.f32.mrb[0].mxu0
      %v2812 = vadd.f32 %v2709, %v2811
      %2813 = vdwg.mxu0
      %v2814 = vand.u32 %v318, 4294901760
      %2815 = vmatprep.subr.mxu0 %v2814
      %v2816 = vand.u32 %v317, 4294901760
      %2817 = vmatpush1.msra.mxu0 %v2816
      %v2818 = vand.u32 %v326, 4294901760
      %2819 = vmatprep.subr.mxu0 %v2818
      %v2820 = vand.u32 %v325, 4294901760
      %2821 = vmatpush1.msra.mxu0 %v2820
      %v2822 = vand.u32 %v334, 4294901760
      %2823 = vmatprep.subr.mxu0 %v2822
      %v2824 = vand.u32 %v333, 4294901760
      %2825 = vmatpush1.msra.mxu0 %v2824
      %v2826 = vand.u32 %v342, 4294901760
      %2827 = vmatprep.subr.mxu0 %v2826
      %v2828 = vand.u32 %v341, 4294901760
      %2829 = vmatpush1.msra.mxu0 %v2828
      %v2830 = vand.u32 %v350, 4294901760
      %2831 = vmatprep.subr.mxu0 %v2830
      %v2832 = vand.u32 %v349, 4294901760
      %2833 = vmatpush1.msra.mxu0 %v2832
      %v2834 = vand.u32 %v358, 4294901760
      %2835 = vmatprep.subr.mxu0 %v2834
      %v2836 = vand.u32 %v357, 4294901760
      %2837 = vmatpush1.msra.mxu0 %v2836
      %v2838 = vand.u32 %v366, 4294901760
      %2839 = vmatprep.subr.mxu0 %v2838
      %v2840 = vand.u32 %v365, 4294901760
      %2841 = vmatpush1.msra.mxu0 %v2840
      %v2842 = vand.u32 %v374, 4294901760
      %2843 = vmatprep.subr.mxu0 %v2842
      %v2844 = vand.u32 %v373, 4294901760
      %2845 = vmatpush1.msra.mxu0 %v2844
      %v2846 = vand.u32 %v382, 4294901760
      %2847 = vmatprep.subr.mxu0 %v2846
      %v2848 = vand.u32 %v381, 4294901760
      %2849 = vmatpush1.msra.mxu0 %v2848
      %v2850 = vand.u32 %v390, 4294901760
      %2851 = vmatprep.subr.mxu0 %v2850
      %v2852 = vand.u32 %v389, 4294901760
      %2853 = vmatpush1.msra.mxu0 %v2852
      %v2854 = vand.u32 %v398, 4294901760
      %2855 = vmatprep.subr.mxu0 %v2854
      %v2856 = vand.u32 %v397, 4294901760
      %2857 = vmatpush1.msra.mxu0 %v2856
      %v2858 = vand.u32 %v406, 4294901760
      %2859 = vmatprep.subr.mxu0 %v2858
      %v2860 = vand.u32 %v405, 4294901760
      %2861 = vmatpush1.msra.mxu0 %v2860
      %2862 = vmatprep.subr.mxu0 0.0
      %2863 = vmatpush1.msra.mxu0 0.0
      %2864 = vmatprep.subr.mxu0 0.0
      %2865 = vmatpush1.msra.mxu0 0.0
      %2866 = vmatprep.subr.mxu0 0.0
      %2867 = vmatpush1.msra.mxu0 0.0
      %2868 = vmatprep.subr.mxu0 0.0
      %2869 = vmatpush1.msra.mxu0 0.0
      %2870 = vmatprep.subr.mxu0 0.0
      %2871 = vmatpush1.msra.mxu0 0.0
      %2872 = vmatprep.subr.mxu0 0.0
      %2873 = vmatpush1.msra.mxu0 0.0
      %2874 = vmatprep.subr.mxu0 0.0
      %2875 = vmatpush1.msra.mxu0 0.0
      %2876 = vmatprep.subr.mxu0 0.0
      %2877 = vmatpush1.msra.mxu0 0.0
      %2878 = vmatprep.subr.mxu0 0.0
      %2879 = vmatpush1.msra.mxu0 0.0
      %2880 = vmatprep.subr.mxu0 0.0
      %2881 = vmatpush1.msra.mxu0 0.0
      %2882 = vmatprep.subr.mxu0 0.0
      %2883 = vmatpush1.msra.mxu0 0.0
      %2884 = vmatprep.subr.mxu0 0.0
      %2885 = vmatpush1.msra.mxu0 0.0
      %2886 = vmatprep.subr.mxu0 0.0
      %2887 = vmatpush1.msra.mxu0 0.0
      %2888 = vmatprep.subr.mxu0 0.0
      %2889 = vmatpush1.msra.mxu0 0.0
      %2890 = vmatprep.subr.mxu0 0.0
      %2891 = vmatpush1.msra.mxu0 0.0
      %2892 = vmatprep.subr.mxu0 0.0
      %2893 = vmatpush1.msra.mxu0 0.0
      %2894 = vmatprep.subr.mxu0 0.0
      %2895 = vmatpush1.msra.mxu0 0.0
      %2896 = vmatprep.subr.mxu0 0.0
      %2897 = vmatpush1.msra.mxu0 0.0
      %2898 = vmatprep.subr.mxu0 0.0
      %2899 = vmatpush1.msra.mxu0 0.0
      %2900 = vmatprep.subr.mxu0 0.0
      %2901 = vmatpush1.msra.mxu0 0.0
      %2902 = vmatprep.mubr.f32.mxu0 0.0
      %v2903 = vand.u32 %v409, 4294901760
      %v2904 = vsub.f32 %v409, %v2903
      %v2905 = vand.u32 %v2904, 4294901760
      %v2906 = vsub.f32 %v2904, %v2905
      %v2907 = vand.u32 %v2906, 4294901760
      %2908 = vmatmul.mubr.f32.gmra.mrb[0].mxu0 %v2907
      %v2909 = vpop.f32.mrb[0].mxu0
      %v2910 = vadd.f32 0.0, %v2909
      %v2911 = vpop.f32.mrb[0].mxu0
      %v2912 = vadd.f32 0.0, %v2911
      %2913 = vmatprep.mubr.f32.mxu0 0.0
      %v2914 = vand.u32 %v412, 4294901760
      %v2915 = vsub.f32 %v412, %v2914
      %v2916 = vand.u32 %v2915, 4294901760
      %v2917 = vsub.f32 %v2915, %v2916
      %v2918 = vand.u32 %v2917, 4294901760
      %2919 = vmatmul.mubr.f32.gmra.mrb[0].mxu0 %v2918
      %v2920 = vpop.f32.mrb[0].mxu0
      %v2921 = vadd.f32 0.0, %v2920
      %v2922 = vpop.f32.mrb[0].mxu0
      %v2923 = vadd.f32 0.0, %v2922
      %2924 = vdwg.mxu0
      %v2925 = vand.u32 %v318, 4294901760
      %v2926 = vsub.f32 %v318, %v2925
      %v2927 = vand.u32 %v2926, 4294901760
      %v2928 = vsub.f32 %v2926, %v2927
      %v2929 = vand.u32 %v2928, 4294901760
      %2930 = vmatprep.subr.mxu0 %v2929
      %v2931 = vand.u32 %v317, 4294901760
      %v2932 = vsub.f32 %v317, %v2931
      %v2933 = vand.u32 %v2932, 4294901760
      %v2934 = vsub.f32 %v2932, %v2933
      %v2935 = vand.u32 %v2934, 4294901760
      %2936 = vmatpush1.msra.mxu0 %v2935
      %v2937 = vand.u32 %v326, 4294901760
      %v2938 = vsub.f32 %v326, %v2937
      %v2939 = vand.u32 %v2938, 4294901760
      %v2940 = vsub.f32 %v2938, %v2939
      %v2941 = vand.u32 %v2940, 4294901760
      %2942 = vmatprep.subr.mxu0 %v2941
      %v2943 = vand.u32 %v325, 4294901760
      %v2944 = vsub.f32 %v325, %v2943
      %v2945 = vand.u32 %v2944, 4294901760
      %v2946 = vsub.f32 %v2944, %v2945
      %v2947 = vand.u32 %v2946, 4294901760
      %2948 = vmatpush1.msra.mxu0 %v2947
      %v2949 = vand.u32 %v334, 4294901760
      %v2950 = vsub.f32 %v334, %v2949
      %v2951 = vand.u32 %v2950, 4294901760
      %v2952 = vsub.f32 %v2950, %v2951
      %v2953 = vand.u32 %v2952, 4294901760
      %2954 = vmatprep.subr.mxu0 %v2953
      %v2955 = vand.u32 %v333, 4294901760
      %v2956 = vsub.f32 %v333, %v2955
      %v2957 = vand.u32 %v2956, 4294901760
      %v2958 = vsub.f32 %v2956, %v2957
      %v2959 = vand.u32 %v2958, 4294901760
      %2960 = vmatpush1.msra.mxu0 %v2959
      %v2961 = vand.u32 %v342, 4294901760
      %v2962 = vsub.f32 %v342, %v2961
      %v2963 = vand.u32 %v2962, 4294901760
      %v2964 = vsub.f32 %v2962, %v2963
      %v2965 = vand.u32 %v2964, 4294901760
      %2966 = vmatprep.subr.mxu0 %v2965
      %v2967 = vand.u32 %v341, 4294901760
      %v2968 = vsub.f32 %v341, %v2967
      %v2969 = vand.u32 %v2968, 4294901760
      %v2970 = vsub.f32 %v2968, %v2969
      %v2971 = vand.u32 %v2970, 4294901760
      %2972 = vmatpush1.msra.mxu0 %v2971
      %v2973 = vand.u32 %v350, 4294901760
      %v2974 = vsub.f32 %v350, %v2973
      %v2975 = vand.u32 %v2974, 4294901760
      %v2976 = vsub.f32 %v2974, %v2975
      %v2977 = vand.u32 %v2976, 4294901760
      %2978 = vmatprep.subr.mxu0 %v2977
      %v2979 = vand.u32 %v349, 4294901760
      %v2980 = vsub.f32 %v349, %v2979
      %v2981 = vand.u32 %v2980, 4294901760
      %v2982 = vsub.f32 %v2980, %v2981
      %v2983 = vand.u32 %v2982, 4294901760
      %2984 = vmatpush1.msra.mxu0 %v2983
      %v2985 = vand.u32 %v358, 4294901760
      %v2986 = vsub.f32 %v358, %v2985
      %v2987 = vand.u32 %v2986, 4294901760
      %v2988 = vsub.f32 %v2986, %v2987
      %v2989 = vand.u32 %v2988, 4294901760
      %2990 = vmatprep.subr.mxu0 %v2989
      %v2991 = vand.u32 %v357, 4294901760
      %v2992 = vsub.f32 %v357, %v2991
      %v2993 = vand.u32 %v2992, 4294901760
      %v2994 = vsub.f32 %v2992, %v2993
      %v2995 = vand.u32 %v2994, 4294901760
      %2996 = vmatpush1.msra.mxu0 %v2995
      %v2997 = vand.u32 %v366, 4294901760
      %v2998 = vsub.f32 %v366, %v2997
      %v2999 = vand.u32 %v2998, 4294901760
      %v3000 = vsub.f32 %v2998, %v2999
      %v3001 = vand.u32 %v3000, 4294901760
      %3002 = vmatprep.subr.mxu0 %v3001
      %v3003 = vand.u32 %v365, 4294901760
      %v3004 = vsub.f32 %v365, %v3003
      %v3005 = vand.u32 %v3004, 4294901760
      %v3006 = vsub.f32 %v3004, %v3005
      %v3007 = vand.u32 %v3006, 4294901760
      %3008 = vmatpush1.msra.mxu0 %v3007
      %v3009 = vand.u32 %v374, 4294901760
      %v3010 = vsub.f32 %v374, %v3009
      %v3011 = vand.u32 %v3010, 4294901760
      %v3012 = vsub.f32 %v3010, %v3011
      %v3013 = vand.u32 %v3012, 4294901760
      %3014 = vmatprep.subr.mxu0 %v3013
      %v3015 = vand.u32 %v373, 4294901760
      %v3016 = vsub.f32 %v373, %v3015
      %v3017 = vand.u32 %v3016, 4294901760
      %v3018 = vsub.f32 %v3016, %v3017
      %v3019 = vand.u32 %v3018, 4294901760
      %3020 = vmatpush1.msra.mxu0 %v3019
      %v3021 = vand.u32 %v382, 4294901760
      %v3022 = vsub.f32 %v382, %v3021
      %v3023 = vand.u32 %v3022, 4294901760
      %v3024 = vsub.f32 %v3022, %v3023
      %v3025 = vand.u32 %v3024, 4294901760
      %3026 = vmatprep.subr.mxu0 %v3025
      %v3027 = vand.u32 %v381, 4294901760
      %v3028 = vsub.f32 %v381, %v3027
      %v3029 = vand.u32 %v3028, 4294901760
      %v3030 = vsub.f32 %v3028, %v3029
      %v3031 = vand.u32 %v3030, 4294901760
      %3032 = vmatpush1.msra.mxu0 %v3031
      %v3033 = vand.u32 %v390, 4294901760
      %v3034 = vsub.f32 %v390, %v3033
      %v3035 = vand.u32 %v3034, 4294901760
      %v3036 = vsub.f32 %v3034, %v3035
      %v3037 = vand.u32 %v3036, 4294901760
      %3038 = vmatprep.subr.mxu0 %v3037
      %v3039 = vand.u32 %v389, 4294901760
      %v3040 = vsub.f32 %v389, %v3039
      %v3041 = vand.u32 %v3040, 4294901760
      %v3042 = vsub.f32 %v3040, %v3041
      %v3043 = vand.u32 %v3042, 4294901760
      %3044 = vmatpush1.msra.mxu0 %v3043
      %v3045 = vand.u32 %v398, 4294901760
      %v3046 = vsub.f32 %v398, %v3045
      %v3047 = vand.u32 %v3046, 4294901760
      %v3048 = vsub.f32 %v3046, %v3047
      %v3049 = vand.u32 %v3048, 4294901760
      %3050 = vmatprep.subr.mxu0 %v3049
      %v3051 = vand.u32 %v397, 4294901760
      %v3052 = vsub.f32 %v397, %v3051
      %v3053 = vand.u32 %v3052, 4294901760
      %v3054 = vsub.f32 %v3052, %v3053
      %v3055 = vand.u32 %v3054, 4294901760
      %3056 = vmatpush1.msra.mxu0 %v3055
      %v3057 = vand.u32 %v406, 4294901760
      %v3058 = vsub.f32 %v406, %v3057
      %v3059 = vand.u32 %v3058, 4294901760
      %v3060 = vsub.f32 %v3058, %v3059
      %v3061 = vand.u32 %v3060, 4294901760
      %3062 = vmatprep.subr.mxu0 %v3061
      %v3063 = vand.u32 %v405, 4294901760
      %v3064 = vsub.f32 %v405, %v3063
      %v3065 = vand.u32 %v3064, 4294901760
      %v3066 = vsub.f32 %v3064, %v3065
      %v3067 = vand.u32 %v3066, 4294901760
      %3068 = vmatpush1.msra.mxu0 %v3067
      %3069 = vmatprep.subr.mxu0 0.0
      %3070 = vmatpush1.msra.mxu0 0.0
      %3071 = vmatprep.subr.mxu0 0.0
      %3072 = vmatpush1.msra.mxu0 0.0
      %3073 = vmatprep.subr.mxu0 0.0
      %3074 = vmatpush1.msra.mxu0 0.0
      %3075 = vmatprep.subr.mxu0 0.0
      %3076 = vmatpush1.msra.mxu0 0.0
      %3077 = vmatprep.subr.mxu0 0.0
      %3078 = vmatpush1.msra.mxu0 0.0
      %3079 = vmatprep.subr.mxu0 0.0
      %3080 = vmatpush1.msra.mxu0 0.0
      %3081 = vmatprep.subr.mxu0 0.0
      %3082 = vmatpush1.msra.mxu0 0.0
      %3083 = vmatprep.subr.mxu0 0.0
      %3084 = vmatpush1.msra.mxu0 0.0
      %3085 = vmatprep.subr.mxu0 0.0
      %3086 = vmatpush1.msra.mxu0 0.0
      %3087 = vmatprep.subr.mxu0 0.0
      %3088 = vmatpush1.msra.mxu0 0.0
      %3089 = vmatprep.subr.mxu0 0.0
      %3090 = vmatpush1.msra.mxu0 0.0
      %3091 = vmatprep.subr.mxu0 0.0
      %3092 = vmatpush1.msra.mxu0 0.0
      %3093 = vmatprep.subr.mxu0 0.0
      %3094 = vmatpush1.msra.mxu0 0.0
      %3095 = vmatprep.subr.mxu0 0.0
      %3096 = vmatpush1.msra.mxu0 0.0
      %3097 = vmatprep.subr.mxu0 0.0
      %3098 = vmatpush1.msra.mxu0 0.0
      %3099 = vmatprep.subr.mxu0 0.0
      %3100 = vmatpush1.msra.mxu0 0.0
      %3101 = vmatprep.subr.mxu0 0.0
      %3102 = vmatpush1.msra.mxu0 0.0
      %3103 = vmatprep.subr.mxu0 0.0
      %3104 = vmatpush1.msra.mxu0 0.0
      %3105 = vmatprep.subr.mxu0 0.0
      %3106 = vmatpush1.msra.mxu0 0.0
      %3107 = vmatprep.subr.mxu0 0.0
      %3108 = vmatpush1.msra.mxu0 0.0
      %3109 = vmatprep.mubr.f32.mxu0 0.0
      %v3110 = vand.u32 %v409, 4294901760
      %3111 = vmatmul.mubr.f32.gmra.mrb[0].mxu0 %v3110
      %v3112 = vpop.f32.mrb[0].mxu0
      %v3113 = vadd.f32 %v2910, %v3112
      %v3114 = vpop.f32.mrb[0].mxu0
      %v3115 = vadd.f32 %v2912, %v3114
      %3116 = vmatprep.mubr.f32.mxu0 0.0
      %v3117 = vand.u32 %v412, 4294901760
      %3118 = vmatmul.mubr.f32.gmra.mrb[0].mxu0 %v3117
      %v3119 = vpop.f32.mrb[0].mxu0
      %v3120 = vadd.f32 %v2921, %v3119
      %v3121 = vpop.f32.mrb[0].mxu0
      %v3122 = vadd.f32 %v2923, %v3121
      %3123 = vdwg.mxu0
      %v3124 = vand.u32 %v318, 4294901760
      %v3125 = vsub.f32 %v318, %v3124
      %3126 = vmatprep.subr.mxu0 %v3125
      %v3127 = vand.u32 %v317, 4294901760
      %v3128 = vsub.f32 %v317, %v3127
      %3129 = vmatpush1.msra.mxu0 %v3128
      %v3130 = vand.u32 %v326, 4294901760
      %v3131 = vsub.f32 %v326, %v3130
      %3132 = vmatprep.subr.mxu0 %v3131
      %v3133 = vand.u32 %v325, 4294901760
      %v3134 = vsub.f32 %v325, %v3133
      %3135 = vmatpush1.msra.mxu0 %v3134
      %v3136 = vand.u32 %v334, 4294901760
      %v3137 = vsub.f32 %v334, %v3136
      %3138 = vmatprep.subr.mxu0 %v3137
      %v3139 = vand.u32 %v333, 4294901760
      %v3140 = vsub.f32 %v333, %v3139
      %3141 = vmatpush1.msra.mxu0 %v3140
      %v3142 = vand.u32 %v342, 4294901760
      %v3143 = vsub.f32 %v342, %v3142
      %3144 = vmatprep.subr.mxu0 %v3143
      %v3145 = vand.u32 %v341, 4294901760
      %v3146 = vsub.f32 %v341, %v3145
      %3147 = vmatpush1.msra.mxu0 %v3146
      %v3148 = vand.u32 %v350, 4294901760
      %v3149 = vsub.f32 %v350, %v3148
      %3150 = vmatprep.subr.mxu0 %v3149
      %v3151 = vand.u32 %v349, 4294901760
      %v3152 = vsub.f32 %v349, %v3151
      %3153 = vmatpush1.msra.mxu0 %v3152
      %v3154 = vand.u32 %v358, 4294901760
      %v3155 = vsub.f32 %v358, %v3154
      %3156 = vmatprep.subr.mxu0 %v3155
      %v3157 = vand.u32 %v357, 4294901760
      %v3158 = vsub.f32 %v357, %v3157
      %3159 = vmatpush1.msra.mxu0 %v3158
      %v3160 = vand.u32 %v366, 4294901760
      %v3161 = vsub.f32 %v366, %v3160
      %3162 = vmatprep.subr.mxu0 %v3161
      %v3163 = vand.u32 %v365, 4294901760
      %v3164 = vsub.f32 %v365, %v3163
      %3165 = vmatpush1.msra.mxu0 %v3164
      %v3166 = vand.u32 %v374, 4294901760
      %v3167 = vsub.f32 %v374, %v3166
      %3168 = vmatprep.subr.mxu0 %v3167
      %v3169 = vand.u32 %v373, 4294901760
      %v3170 = vsub.f32 %v373, %v3169
      %3171 = vmatpush1.msra.mxu0 %v3170
      %v3172 = vand.u32 %v382, 4294901760
      %v3173 = vsub.f32 %v382, %v3172
      %3174 = vmatprep.subr.mxu0 %v3173
      %v3175 = vand.u32 %v381, 4294901760
      %v3176 = vsub.f32 %v381, %v3175
      %3177 = vmatpush1.msra.mxu0 %v3176
      %v3178 = vand.u32 %v390, 4294901760
      %v3179 = vsub.f32 %v390, %v3178
      %3180 = vmatprep.subr.mxu0 %v3179
      %v3181 = vand.u32 %v389, 4294901760
      %v3182 = vsub.f32 %v389, %v3181
      %3183 = vmatpush1.msra.mxu0 %v3182
      %v3184 = vand.u32 %v398, 4294901760
      %v3185 = vsub.f32 %v398, %v3184
      %3186 = vmatprep.subr.mxu0 %v3185
      %v3187 = vand.u32 %v397, 4294901760
      %v3188 = vsub.f32 %v397, %v3187
      %3189 = vmatpush1.msra.mxu0 %v3188
      %v3190 = vand.u32 %v406, 4294901760
      %v3191 = vsub.f32 %v406, %v3190
      %3192 = vmatprep.subr.mxu0 %v3191
      %v3193 = vand.u32 %v405, 4294901760
      %v3194 = vsub.f32 %v405, %v3193
      %3195 = vmatpush1.msra.mxu0 %v3194
      %3196 = vmatprep.subr.mxu0 0.0
      %3197 = vmatpush1.msra.mxu0 0.0
      %3198 = vmatprep.subr.mxu0 0.0
      %3199 = vmatpush1.msra.mxu0 0.0
      %3200 = vmatprep.subr.mxu0 0.0
      %3201 = vmatpush1.msra.mxu0 0.0
      %3202 = vmatprep.subr.mxu0 0.0
      %3203 = vmatpush1.msra.mxu0 0.0
      %3204 = vmatprep.subr.mxu0 0.0
      %3205 = vmatpush1.msra.mxu0 0.0
      %3206 = vmatprep.subr.mxu0 0.0
      %3207 = vmatpush1.msra.mxu0 0.0
      %3208 = vmatprep.subr.mxu0 0.0
      %3209 = vmatpush1.msra.mxu0 0.0
      %3210 = vmatprep.subr.mxu0 0.0
      %3211 = vmatpush1.msra.mxu0 0.0
      %3212 = vmatprep.subr.mxu0 0.0
      %3213 = vmatpush1.msra.mxu0 0.0
      %3214 = vmatprep.subr.mxu0 0.0
      %3215 = vmatpush1.msra.mxu0 0.0
      %3216 = vmatprep.subr.mxu0 0.0
      %3217 = vmatpush1.msra.mxu0 0.0
      %3218 = vmatprep.subr.mxu0 0.0
      %3219 = vmatpush1.msra.mxu0 0.0
      %3220 = vmatprep.subr.mxu0 0.0
      %3221 = vmatpush1.msra.mxu0 0.0
      %3222 = vmatprep.subr.mxu0 0.0
      %3223 = vmatpush1.msra.mxu0 0.0
      %3224 = vmatprep.subr.mxu0 0.0
      %3225 = vmatpush1.msra.mxu0 0.0
      %3226 = vmatprep.subr.mxu0 0.0
      %3227 = vmatpush1.msra.mxu0 0.0
      %3228 = vmatprep.subr.mxu0 0.0
      %3229 = vmatpush1.msra.mxu0 0.0
      %3230 = vmatprep.subr.mxu0 0.0
      %3231 = vmatpush1.msra.mxu0 0.0
      %3232 = vmatprep.subr.mxu0 0.0
      %3233 = vmatpush1.msra.mxu0 0.0
      %3234 = vmatprep.subr.mxu0 0.0
      %3235 = vmatpush1.msra.mxu0 0.0
      %3236 = vmatprep.mubr.f32.mxu0 0.0
      %v3237 = vand.u32 %v409, 4294901760
      %v3238 = vsub.f32 %v409, %v3237
      %3239 = vmatmul.mubr.f32.gmra.mrb[0].mxu0 %v3238
      %v3240 = vpop.f32.mrb[0].mxu0
      %v3241 = vadd.f32 %v3113, %v3240
      %v3242 = vpop.f32.mrb[0].mxu0
      %v3243 = vadd.f32 %v3115, %v3242
      %3244 = vmatprep.mubr.f32.mxu0 0.0
      %v3245 = vand.u32 %v412, 4294901760
      %v3246 = vsub.f32 %v412, %v3245
      %3247 = vmatmul.mubr.f32.gmra.mrb[0].mxu0 %v3246
      %v3248 = vpop.f32.mrb[0].mxu0
      %v3249 = vadd.f32 %v3120, %v3248
      %v3250 = vpop.f32.mrb[0].mxu0
      %v3251 = vadd.f32 %v3122, %v3250
      %3252 = vdwg.mxu0
      %v3253 = vand.u32 %v318, 4294901760
      %3254 = vmatprep.subr.mxu0 %v3253
      %v3255 = vand.u32 %v317, 4294901760
      %3256 = vmatpush1.msra.mxu0 %v3255
      %v3257 = vand.u32 %v326, 4294901760
      %3258 = vmatprep.subr.mxu0 %v3257
      %v3259 = vand.u32 %v325, 4294901760
      %3260 = vmatpush1.msra.mxu0 %v3259
      %v3261 = vand.u32 %v334, 4294901760
      %3262 = vmatprep.subr.mxu0 %v3261
      %v3263 = vand.u32 %v333, 4294901760
      %3264 = vmatpush1.msra.mxu0 %v3263
      %v3265 = vand.u32 %v342, 4294901760
      %3266 = vmatprep.subr.mxu0 %v3265
      %v3267 = vand.u32 %v341, 4294901760
      %3268 = vmatpush1.msra.mxu0 %v3267
      %v3269 = vand.u32 %v350, 4294901760
      %3270 = vmatprep.subr.mxu0 %v3269
      %v3271 = vand.u32 %v349, 4294901760
      %3272 = vmatpush1.msra.mxu0 %v3271
      %v3273 = vand.u32 %v358, 4294901760
      %3274 = vmatprep.subr.mxu0 %v3273
      %v3275 = vand.u32 %v357, 4294901760
      %3276 = vmatpush1.msra.mxu0 %v3275
      %v3277 = vand.u32 %v366, 4294901760
      %3278 = vmatprep.subr.mxu0 %v3277
      %v3279 = vand.u32 %v365, 4294901760
      %3280 = vmatpush1.msra.mxu0 %v3279
      %v3281 = vand.u32 %v374, 4294901760
      %3282 = vmatprep.subr.mxu0 %v3281
      %v3283 = vand.u32 %v373, 4294901760
      %3284 = vmatpush1.msra.mxu0 %v3283
      %v3285 = vand.u32 %v382, 4294901760
      %3286 = vmatprep.subr.mxu0 %v3285
      %v3287 = vand.u32 %v381, 4294901760
      %3288 = vmatpush1.msra.mxu0 %v3287
      %v3289 = vand.u32 %v390, 4294901760
      %3290 = vmatprep.subr.mxu0 %v3289
      %v3291 = vand.u32 %v389, 4294901760
      %3292 = vmatpush1.msra.mxu0 %v3291
      %v3293 = vand.u32 %v398, 4294901760
      %3294 = vmatprep.subr.mxu0 %v3293
      %v3295 = vand.u32 %v397, 4294901760
      %3296 = vmatpush1.msra.mxu0 %v3295
      %v3297 = vand.u32 %v406, 4294901760
      %3298 = vmatprep.subr.mxu0 %v3297
      %v3299 = vand.u32 %v405, 4294901760
      %3300 = vmatpush1.msra.mxu0 %v3299
      %3301 = vmatprep.subr.mxu0 0.0
      %3302 = vmatpush1.msra.mxu0 0.0
      %3303 = vmatprep.subr.mxu0 0.0
      %3304 = vmatpush1.msra.mxu0 0.0
      %3305 = vmatprep.subr.mxu0 0.0
      %3306 = vmatpush1.msra.mxu0 0.0
      %3307 = vmatprep.subr.mxu0 0.0
      %3308 = vmatpush1.msra.mxu0 0.0
      %3309 = vmatprep.subr.mxu0 0.0
      %3310 = vmatpush1.msra.mxu0 0.0
      %3311 = vmatprep.subr.mxu0 0.0
      %3312 = vmatpush1.msra.mxu0 0.0
      %3313 = vmatprep.subr.mxu0 0.0
      %3314 = vmatpush1.msra.mxu0 0.0
      %3315 = vmatprep.subr.mxu0 0.0
      %3316 = vmatpush1.msra.mxu0 0.0
      %3317 = vmatprep.subr.mxu0 0.0
      %3318 = vmatpush1.msra.mxu0 0.0
      %3319 = vmatprep.subr.mxu0 0.0
      %3320 = vmatpush1.msra.mxu0 0.0
      %3321 = vmatprep.subr.mxu0 0.0
      %3322 = vmatpush1.msra.mxu0 0.0
      %3323 = vmatprep.subr.mxu0 0.0
      %3324 = vmatpush1.msra.mxu0 0.0
      %3325 = vmatprep.subr.mxu0 0.0
      %3326 = vmatpush1.msra.mxu0 0.0
      %3327 = vmatprep.subr.mxu0 0.0
      %3328 = vmatpush1.msra.mxu0 0.0
      %3329 = vmatprep.subr.mxu0 0.0
      %3330 = vmatpush1.msra.mxu0 0.0
      %3331 = vmatprep.subr.mxu0 0.0
      %3332 = vmatpush1.msra.mxu0 0.0
      %3333 = vmatprep.subr.mxu0 0.0
      %3334 = vmatpush1.msra.mxu0 0.0
      %3335 = vmatprep.subr.mxu0 0.0
      %3336 = vmatpush1.msra.mxu0 0.0
      %3337 = vmatprep.subr.mxu0 0.0
      %3338 = vmatpush1.msra.mxu0 0.0
      %3339 = vmatprep.subr.mxu0 0.0
      %3340 = vmatpush1.msra.mxu0 0.0
      %3341 = vmatprep.mubr.f32.mxu0 0.0
      %v3342 = vand.u32 %v409, 4294901760
      %v3343 = vsub.f32 %v409, %v3342
      %v3344 = vand.u32 %v3343, 4294901760
      %3345 = vmatmul.mubr.f32.gmra.mrb[0].mxu0 %v3344
      %v3346 = vpop.f32.mrb[0].mxu0
      %v3347 = vadd.f32 %v3241, %v3346
      %v3348 = vpop.f32.mrb[0].mxu0
      %v3349 = vadd.f32 %v3243, %v3348
      %3350 = vmatprep.mubr.f32.mxu0 0.0
      %v3351 = vand.u32 %v412, 4294901760
      %v3352 = vsub.f32 %v412, %v3351
      %v3353 = vand.u32 %v3352, 4294901760
      %3354 = vmatmul.mubr.f32.gmra.mrb[0].mxu0 %v3353
      %v3355 = vpop.f32.mrb[0].mxu0
      %v3356 = vadd.f32 %v3249, %v3355
      %v3357 = vpop.f32.mrb[0].mxu0
      %v3358 = vadd.f32 %v3251, %v3357
      %3359 = vdwg.mxu0
      %v3360 = vand.u32 %v318, 4294901760
      %v3361 = vsub.f32 %v318, %v3360
      %v3362 = vand.u32 %v3361, 4294901760
      %3363 = vmatprep.subr.mxu0 %v3362
      %v3364 = vand.u32 %v317, 4294901760
      %v3365 = vsub.f32 %v317, %v3364
      %v3366 = vand.u32 %v3365, 4294901760
      %3367 = vmatpush1.msra.mxu0 %v3366
      %v3368 = vand.u32 %v326, 4294901760
      %v3369 = vsub.f32 %v326, %v3368
      %v3370 = vand.u32 %v3369, 4294901760
      %3371 = vmatprep.subr.mxu0 %v3370
      %v3372 = vand.u32 %v325, 4294901760
      %v3373 = vsub.f32 %v325, %v3372
      %v3374 = vand.u32 %v3373, 4294901760
      %3375 = vmatpush1.msra.mxu0 %v3374
      %v3376 = vand.u32 %v334, 4294901760
      %v3377 = vsub.f32 %v334, %v3376
      %v3378 = vand.u32 %v3377, 4294901760
      %3379 = vmatprep.subr.mxu0 %v3378
      %v3380 = vand.u32 %v333, 4294901760
      %v3381 = vsub.f32 %v333, %v3380
      %v3382 = vand.u32 %v3381, 4294901760
      %3383 = vmatpush1.msra.mxu0 %v3382
      %v3384 = vand.u32 %v342, 4294901760
      %v3385 = vsub.f32 %v342, %v3384
      %v3386 = vand.u32 %v3385, 4294901760
      %3387 = vmatprep.subr.mxu0 %v3386
      %v3388 = vand.u32 %v341, 4294901760
      %v3389 = vsub.f32 %v341, %v3388
      %v3390 = vand.u32 %v3389, 4294901760
      %3391 = vmatpush1.msra.mxu0 %v3390
      %v3392 = vand.u32 %v350, 4294901760
      %v3393 = vsub.f32 %v350, %v3392
      %v3394 = vand.u32 %v3393, 4294901760
      %3395 = vmatprep.subr.mxu0 %v3394
      %v3396 = vand.u32 %v349, 4294901760
      %v3397 = vsub.f32 %v349, %v3396
      %v3398 = vand.u32 %v3397, 4294901760
      %3399 = vmatpush1.msra.mxu0 %v3398
      %v3400 = vand.u32 %v358, 4294901760
      %v3401 = vsub.f32 %v358, %v3400
      %v3402 = vand.u32 %v3401, 4294901760
      %3403 = vmatprep.subr.mxu0 %v3402
      %v3404 = vand.u32 %v357, 4294901760
      %v3405 = vsub.f32 %v357, %v3404
      %v3406 = vand.u32 %v3405, 4294901760
      %3407 = vmatpush1.msra.mxu0 %v3406
      %v3408 = vand.u32 %v366, 4294901760
      %v3409 = vsub.f32 %v366, %v3408
      %v3410 = vand.u32 %v3409, 4294901760
      %3411 = vmatprep.subr.mxu0 %v3410
      %v3412 = vand.u32 %v365, 4294901760
      %v3413 = vsub.f32 %v365, %v3412
      %v3414 = vand.u32 %v3413, 4294901760
      %3415 = vmatpush1.msra.mxu0 %v3414
      %v3416 = vand.u32 %v374, 4294901760
      %v3417 = vsub.f32 %v374, %v3416
      %v3418 = vand.u32 %v3417, 4294901760
      %3419 = vmatprep.subr.mxu0 %v3418
      %v3420 = vand.u32 %v373, 4294901760
      %v3421 = vsub.f32 %v373, %v3420
      %v3422 = vand.u32 %v3421, 4294901760
      %3423 = vmatpush1.msra.mxu0 %v3422
      %v3424 = vand.u32 %v382, 4294901760
      %v3425 = vsub.f32 %v382, %v3424
      %v3426 = vand.u32 %v3425, 4294901760
      %3427 = vmatprep.subr.mxu0 %v3426
      %v3428 = vand.u32 %v381, 4294901760
      %v3429 = vsub.f32 %v381, %v3428
      %v3430 = vand.u32 %v3429, 4294901760
      %3431 = vmatpush1.msra.mxu0 %v3430
      %v3432 = vand.u32 %v390, 4294901760
      %v3433 = vsub.f32 %v390, %v3432
      %v3434 = vand.u32 %v3433, 4294901760
      %3435 = vmatprep.subr.mxu0 %v3434
      %v3436 = vand.u32 %v389, 4294901760
      %v3437 = vsub.f32 %v389, %v3436
      %v3438 = vand.u32 %v3437, 4294901760
      %3439 = vmatpush1.msra.mxu0 %v3438
      %v3440 = vand.u32 %v398, 4294901760
      %v3441 = vsub.f32 %v398, %v3440
      %v3442 = vand.u32 %v3441, 4294901760
      %3443 = vmatprep.subr.mxu0 %v3442
      %v3444 = vand.u32 %v397, 4294901760
      %v3445 = vsub.f32 %v397, %v3444
      %v3446 = vand.u32 %v3445, 4294901760
      %3447 = vmatpush1.msra.mxu0 %v3446
      %v3448 = vand.u32 %v406, 4294901760
      %v3449 = vsub.f32 %v406, %v3448
      %v3450 = vand.u32 %v3449, 4294901760
      %3451 = vmatprep.subr.mxu0 %v3450
      %v3452 = vand.u32 %v405, 4294901760
      %v3453 = vsub.f32 %v405, %v3452
      %v3454 = vand.u32 %v3453, 4294901760
      %3455 = vmatpush1.msra.mxu0 %v3454
      %3456 = vmatprep.subr.mxu0 0.0
      %3457 = vmatpush1.msra.mxu0 0.0
      %3458 = vmatprep.subr.mxu0 0.0
      %3459 = vmatpush1.msra.mxu0 0.0
      %3460 = vmatprep.subr.mxu0 0.0
      %3461 = vmatpush1.msra.mxu0 0.0
      %3462 = vmatprep.subr.mxu0 0.0
      %3463 = vmatpush1.msra.mxu0 0.0
      %3464 = vmatprep.subr.mxu0 0.0
      %3465 = vmatpush1.msra.mxu0 0.0
      %3466 = vmatprep.subr.mxu0 0.0
      %3467 = vmatpush1.msra.mxu0 0.0
      %3468 = vmatprep.subr.mxu0 0.0
      %3469 = vmatpush1.msra.mxu0 0.0
      %3470 = vmatprep.subr.mxu0 0.0
      %3471 = vmatpush1.msra.mxu0 0.0
      %3472 = vmatprep.subr.mxu0 0.0
      %3473 = vmatpush1.msra.mxu0 0.0
      %3474 = vmatprep.subr.mxu0 0.0
      %3475 = vmatpush1.msra.mxu0 0.0
      %3476 = vmatprep.subr.mxu0 0.0
      %3477 = vmatpush1.msra.mxu0 0.0
      %3478 = vmatprep.subr.mxu0 0.0
      %3479 = vmatpush1.msra.mxu0 0.0
      %3480 = vmatprep.subr.mxu0 0.0
      %3481 = vmatpush1.msra.mxu0 0.0
      %3482 = vmatprep.subr.mxu0 0.0
      %3483 = vmatpush1.msra.mxu0 0.0
      %3484 = vmatprep.subr.mxu0 0.0
      %3485 = vmatpush1.msra.mxu0 0.0
      %3486 = vmatprep.subr.mxu0 0.0
      %3487 = vmatpush1.msra.mxu0 0.0
      %3488 = vmatprep.subr.mxu0 0.0
      %3489 = vmatpush1.msra.mxu0 0.0
      %3490 = vmatprep.subr.mxu0 0.0
      %3491 = vmatpush1.msra.mxu0 0.0
      %3492 = vmatprep.subr.mxu0 0.0
      %3493 = vmatpush1.msra.mxu0 0.0
      %3494 = vmatprep.subr.mxu0 0.0
      %3495 = vmatpush1.msra.mxu0 0.0
      %3496 = vmatprep.mubr.f32.mxu0 0.0
      %v3497 = vand.u32 %v409, 4294901760
      %3498 = vmatmul.mubr.f32.gmra.mrb[0].mxu0 %v3497
      %v3499 = vpop.f32.mrb[0].mxu0
      %v3500 = vadd.f32 %v3347, %v3499
      %v3501 = vpop.f32.mrb[0].mxu0
      %v3502 = vadd.f32 %v3349, %v3501
      %3503 = vmatprep.mubr.f32.mxu0 0.0
      %v3504 = vand.u32 %v412, 4294901760
      %3505 = vmatmul.mubr.f32.gmra.mrb[0].mxu0 %v3504
      %v3506 = vpop.f32.mrb[0].mxu0
      %v3507 = vadd.f32 %v3356, %v3506
      %v3508 = vpop.f32.mrb[0].mxu0
      %v3509 = vadd.f32 %v3358, %v3508
      %3510 = vdwg.mxu0
      %v3511 = vand.u32 %v318, 4294901760
      %3512 = vmatprep.subr.mxu0 %v3511
      %v3513 = vand.u32 %v317, 4294901760
      %3514 = vmatpush1.msra.mxu0 %v3513
      %v3515 = vand.u32 %v326, 4294901760
      %3516 = vmatprep.subr.mxu0 %v3515
      %v3517 = vand.u32 %v325, 4294901760
      %3518 = vmatpush1.msra.mxu0 %v3517
      %v3519 = vand.u32 %v334, 4294901760
      %3520 = vmatprep.subr.mxu0 %v3519
      %v3521 = vand.u32 %v333, 4294901760
      %3522 = vmatpush1.msra.mxu0 %v3521
      %v3523 = vand.u32 %v342, 4294901760
      %3524 = vmatprep.subr.mxu0 %v3523
      %v3525 = vand.u32 %v341, 4294901760
      %3526 = vmatpush1.msra.mxu0 %v3525
      %v3527 = vand.u32 %v350, 4294901760
      %3528 = vmatprep.subr.mxu0 %v3527
      %v3529 = vand.u32 %v349, 4294901760
      %3530 = vmatpush1.msra.mxu0 %v3529
      %v3531 = vand.u32 %v358, 4294901760
      %3532 = vmatprep.subr.mxu0 %v3531
      %v3533 = vand.u32 %v357, 4294901760
      %3534 = vmatpush1.msra.mxu0 %v3533
      %v3535 = vand.u32 %v366, 4294901760
      %3536 = vmatprep.subr.mxu0 %v3535
      %v3537 = vand.u32 %v365, 4294901760
      %3538 = vmatpush1.msra.mxu0 %v3537
      %v3539 = vand.u32 %v374, 4294901760
      %3540 = vmatprep.subr.mxu0 %v3539
      %v3541 = vand.u32 %v373, 4294901760
      %3542 = vmatpush1.msra.mxu0 %v3541
      %v3543 = vand.u32 %v382, 4294901760
      %3544 = vmatprep.subr.mxu0 %v3543
      %v3545 = vand.u32 %v381, 4294901760
      %3546 = vmatpush1.msra.mxu0 %v3545
      %v3547 = vand.u32 %v390, 4294901760
      %3548 = vmatprep.subr.mxu0 %v3547
      %v3549 = vand.u32 %v389, 4294901760
      %3550 = vmatpush1.msra.mxu0 %v3549
      %v3551 = vand.u32 %v398, 4294901760
      %3552 = vmatprep.subr.mxu0 %v3551
      %v3553 = vand.u32 %v397, 4294901760
      %3554 = vmatpush1.msra.mxu0 %v3553
      %v3555 = vand.u32 %v406, 4294901760
      %3556 = vmatprep.subr.mxu0 %v3555
      %v3557 = vand.u32 %v405, 4294901760
      %3558 = vmatpush1.msra.mxu0 %v3557
      %3559 = vmatprep.subr.mxu0 0.0
      %3560 = vmatpush1.msra.mxu0 0.0
      %3561 = vmatprep.subr.mxu0 0.0
      %3562 = vmatpush1.msra.mxu0 0.0
      %3563 = vmatprep.subr.mxu0 0.0
      %3564 = vmatpush1.msra.mxu0 0.0
      %3565 = vmatprep.subr.mxu0 0.0
      %3566 = vmatpush1.msra.mxu0 0.0
      %3567 = vmatprep.subr.mxu0 0.0
      %3568 = vmatpush1.msra.mxu0 0.0
      %3569 = vmatprep.subr.mxu0 0.0
      %3570 = vmatpush1.msra.mxu0 0.0
      %3571 = vmatprep.subr.mxu0 0.0
      %3572 = vmatpush1.msra.mxu0 0.0
      %3573 = vmatprep.subr.mxu0 0.0
      %3574 = vmatpush1.msra.mxu0 0.0
      %3575 = vmatprep.subr.mxu0 0.0
      %3576 = vmatpush1.msra.mxu0 0.0
      %3577 = vmatprep.subr.mxu0 0.0
      %3578 = vmatpush1.msra.mxu0 0.0
      %3579 = vmatprep.subr.mxu0 0.0
      %3580 = vmatpush1.msra.mxu0 0.0
      %3581 = vmatprep.subr.mxu0 0.0
      %3582 = vmatpush1.msra.mxu0 0.0
      %3583 = vmatprep.subr.mxu0 0.0
      %3584 = vmatpush1.msra.mxu0 0.0
      %3585 = vmatprep.subr.mxu0 0.0
      %3586 = vmatpush1.msra.mxu0 0.0
      %3587 = vmatprep.subr.mxu0 0.0
      %3588 = vmatpush1.msra.mxu0 0.0
      %3589 = vmatprep.subr.mxu0 0.0
      %3590 = vmatpush1.msra.mxu0 0.0
      %3591 = vmatprep.subr.mxu0 0.0
      %3592 = vmatpush1.msra.mxu0 0.0
      %3593 = vmatprep.subr.mxu0 0.0
      %3594 = vmatpush1.msra.mxu0 0.0
      %3595 = vmatprep.subr.mxu0 0.0
      %3596 = vmatpush1.msra.mxu0 0.0
      %3597 = vmatprep.subr.mxu0 0.0
      %3598 = vmatpush1.msra.mxu0 0.0
      %3599 = vmatprep.mubr.f32.mxu0 0.0
      %v3600 = vand.u32 %v409, 4294901760
      %3601 = vmatmul.mubr.f32.gmra.mrb[0].mxu0 %v3600
      %v3602 = vpop.f32.mrb[0].mxu0
      %v3603 = vadd.f32 %v3500, %v3602
      %v3604 = vpop.f32.mrb[0].mxu0
      %v3605 = vadd.f32 %v3502, %v3604
      %3606 = vmatprep.mubr.f32.mxu0 0.0
      %v3607 = vand.u32 %v412, 4294901760
      %3608 = vmatmul.mubr.f32.gmra.mrb[0].mxu0 %v3607
      %v3609 = vpop.f32.mrb[0].mxu0
      %v3610 = vadd.f32 %v3507, %v3609
      %v3611 = vpop.f32.mrb[0].mxu0
      %v3612 = vadd.f32 %v3509, %v3611
      %3613 = vdwg.mxu0
      %vm3614 = vcmask 130048
      %v3616 = vsel %vm3614, %v307, 0
      %v3619 = vsel %vm3614, %v308, 0
      %v3621 = vand.u32 %v292, 4294901760
      %3622 = vmatprep.subr.mxu0 %v3621
      %v3623 = vand.u32 %v291, 4294901760
      %3624 = vmatpush1.msra.mxu0 %v3623
      %v3625 = vand.u32 %v300, 4294901760
      %3626 = vmatprep.subr.mxu0 %v3625
      %v3627 = vand.u32 %v299, 4294901760
      %3628 = vmatpush1.msra.mxu0 %v3627
      %3629 = vmatprep.subr.mxu0 0.0
      %3630 = vmatpush1.msra.mxu0 0.0
      %3631 = vmatprep.subr.mxu0 0.0
      %3632 = vmatpush1.msra.mxu0 0.0
      %3633 = vmatprep.subr.mxu0 0.0
      %3634 = vmatpush1.msra.mxu0 0.0
      %3635 = vmatprep.subr.mxu0 0.0
      %3636 = vmatpush1.msra.mxu0 0.0
      %3637 = vmatprep.subr.mxu0 0.0
      %3638 = vmatpush1.msra.mxu0 0.0
      %3639 = vmatprep.subr.mxu0 0.0
      %3640 = vmatpush1.msra.mxu0 0.0
      %3641 = vmatprep.subr.mxu0 0.0
      %3642 = vmatpush1.msra.mxu0 0.0
      %3643 = vmatprep.subr.mxu0 0.0
      %3644 = vmatpush1.msra.mxu0 0.0
      %3645 = vmatprep.subr.mxu0 0.0
      %3646 = vmatpush1.msra.mxu0 0.0
      %3647 = vmatprep.subr.mxu0 0.0
      %3648 = vmatpush1.msra.mxu0 0.0
      %3649 = vmatprep.subr.mxu0 0.0
      %3650 = vmatpush1.msra.mxu0 0.0
      %3651 = vmatprep.subr.mxu0 0.0
      %3652 = vmatpush1.msra.mxu0 0.0
      %3653 = vmatprep.subr.mxu0 0.0
      %3654 = vmatpush1.msra.mxu0 0.0
      %3655 = vmatprep.subr.mxu0 0.0
      %3656 = vmatpush1.msra.mxu0 0.0
      %3657 = vmatprep.subr.mxu0 0.0
      %3658 = vmatpush1.msra.mxu0 0.0
      %3659 = vmatprep.subr.mxu0 0.0
      %3660 = vmatpush1.msra.mxu0 0.0
      %3661 = vmatprep.subr.mxu0 0.0
      %3662 = vmatpush1.msra.mxu0 0.0
      %3663 = vmatprep.subr.mxu0 0.0
      %3664 = vmatpush1.msra.mxu0 0.0
      %3665 = vmatprep.subr.mxu0 0.0
      %3666 = vmatpush1.msra.mxu0 0.0
      %3667 = vmatprep.subr.mxu0 0.0
      %3668 = vmatpush1.msra.mxu0 0.0
      %3669 = vmatprep.subr.mxu0 0.0
      %3670 = vmatpush1.msra.mxu0 0.0
      %3671 = vmatprep.subr.mxu0 0.0
      %3672 = vmatpush1.msra.mxu0 0.0
      %3673 = vmatprep.subr.mxu0 0.0
      %3674 = vmatpush1.msra.mxu0 0.0
      %3675 = vmatprep.subr.mxu0 0.0
      %3676 = vmatpush1.msra.mxu0 0.0
      %3677 = vmatprep.subr.mxu0 0.0
      %3678 = vmatpush1.msra.mxu0 0.0
      %3679 = vmatprep.subr.mxu0 0.0
      %3680 = vmatpush1.msra.mxu0 0.0
      %3681 = vmatprep.subr.mxu0 0.0
      %3682 = vmatpush1.msra.mxu0 0.0
      %3683 = vmatprep.subr.mxu0 0.0
      %3684 = vmatpush1.msra.mxu0 0.0
      %3685 = vmatprep.subr.mxu0 0.0
      %3686 = vmatpush1.msra.mxu0 0.0
      %3687 = vmatprep.subr.mxu0 0.0
      %3688 = vmatpush1.msra.mxu0 0.0
      %3689 = vmatprep.mubr.f32.mxu0 0.0
      %v3690 = vand.u32 %v3616, 4294901760
      %v3691 = vsub.f32 %v3616, %v3690
      %v3692 = vand.u32 %v3691, 4294901760
      %v3693 = vsub.f32 %v3691, %v3692
      %v3694 = vand.u32 %v3693, 4294901760
      %3695 = vmatmul.mubr.f32.gmra.mrb[0].mxu0 %v3694
      %v3696 = vpop.f32.mrb[0].mxu0
      %v3697 = vadd.f32 %v1203, %v3696
      %v3698 = vpop.f32.mrb[0].mxu0
      %v3699 = vadd.f32 %v1205, %v3698
      %3700 = vmatprep.mubr.f32.mxu0 0.0
      %v3701 = vand.u32 %v3619, 4294901760
      %v3702 = vsub.f32 %v3619, %v3701
      %v3703 = vand.u32 %v3702, 4294901760
      %v3704 = vsub.f32 %v3702, %v3703
      %v3705 = vand.u32 %v3704, 4294901760
      %3706 = vmatmul.mubr.f32.gmra.mrb[0].mxu0 %v3705
      %v3707 = vpop.f32.mrb[0].mxu0
      %v3708 = vadd.f32 %v1210, %v3707
      %v3709 = vpop.f32.mrb[0].mxu0
      %v3710 = vadd.f32 %v1212, %v3709
      %3711 = vdwg.mxu0
      %v3712 = vand.u32 %v292, 4294901760
      %v3713 = vsub.f32 %v292, %v3712
      %v3714 = vand.u32 %v3713, 4294901760
      %v3715 = vsub.f32 %v3713, %v3714
      %v3716 = vand.u32 %v3715, 4294901760
      %3717 = vmatprep.subr.mxu0 %v3716
      %v3718 = vand.u32 %v291, 4294901760
      %v3719 = vsub.f32 %v291, %v3718
      %v3720 = vand.u32 %v3719, 4294901760
      %v3721 = vsub.f32 %v3719, %v3720
      %v3722 = vand.u32 %v3721, 4294901760
      %3723 = vmatpush1.msra.mxu0 %v3722
      %v3724 = vand.u32 %v300, 4294901760
      %v3725 = vsub.f32 %v300, %v3724
      %v3726 = vand.u32 %v3725, 4294901760
      %v3727 = vsub.f32 %v3725, %v3726
      %v3728 = vand.u32 %v3727, 4294901760
      %3729 = vmatprep.subr.mxu0 %v3728
      %v3730 = vand.u32 %v299, 4294901760
      %v3731 = vsub.f32 %v299, %v3730
      %v3732 = vand.u32 %v3731, 4294901760
      %v3733 = vsub.f32 %v3731, %v3732
      %v3734 = vand.u32 %v3733, 4294901760
      %3735 = vmatpush1.msra.mxu0 %v3734
      %3736 = vmatprep.subr.mxu0 0.0
      %3737 = vmatpush1.msra.mxu0 0.0
      %3738 = vmatprep.subr.mxu0 0.0
      %3739 = vmatpush1.msra.mxu0 0.0
      %3740 = vmatprep.subr.mxu0 0.0
      %3741 = vmatpush1.msra.mxu0 0.0
      %3742 = vmatprep.subr.mxu0 0.0
      %3743 = vmatpush1.msra.mxu0 0.0
      %3744 = vmatprep.subr.mxu0 0.0
      %3745 = vmatpush1.msra.mxu0 0.0
      %3746 = vmatprep.subr.mxu0 0.0
      %3747 = vmatpush1.msra.mxu0 0.0
      %3748 = vmatprep.subr.mxu0 0.0
      %3749 = vmatpush1.msra.mxu0 0.0
      %3750 = vmatprep.subr.mxu0 0.0
      %3751 = vmatpush1.msra.mxu0 0.0
      %3752 = vmatprep.subr.mxu0 0.0
      %3753 = vmatpush1.msra.mxu0 0.0
      %3754 = vmatprep.subr.mxu0 0.0
      %3755 = vmatpush1.msra.mxu0 0.0
      %3756 = vmatprep.subr.mxu0 0.0
      %3757 = vmatpush1.msra.mxu0 0.0
      %3758 = vmatprep.subr.mxu0 0.0
      %3759 = vmatpush1.msra.mxu0 0.0
      %3760 = vmatprep.subr.mxu0 0.0
      %3761 = vmatpush1.msra.mxu0 0.0
      %3762 = vmatprep.subr.mxu0 0.0
      %3763 = vmatpush1.msra.mxu0 0.0
      %3764 = vmatprep.subr.mxu0 0.0
      %3765 = vmatpush1.msra.mxu0 0.0
      %3766 = vmatprep.subr.mxu0 0.0
      %3767 = vmatpush1.msra.mxu0 0.0
      %3768 = vmatprep.subr.mxu0 0.0
      %3769 = vmatpush1.msra.mxu0 0.0
      %3770 = vmatprep.subr.mxu0 0.0
      %3771 = vmatpush1.msra.mxu0 0.0
      %3772 = vmatprep.subr.mxu0 0.0
      %3773 = vmatpush1.msra.mxu0 0.0
      %3774 = vmatprep.subr.mxu0 0.0
      %3775 = vmatpush1.msra.mxu0 0.0
      %3776 = vmatprep.subr.mxu0 0.0
      %3777 = vmatpush1.msra.mxu0 0.0
      %3778 = vmatprep.subr.mxu0 0.0
      %3779 = vmatpush1.msra.mxu0 0.0
      %3780 = vmatprep.subr.mxu0 0.0
      %3781 = vmatpush1.msra.mxu0 0.0
      %3782 = vmatprep.subr.mxu0 0.0
      %3783 = vmatpush1.msra.mxu0 0.0
      %3784 = vmatprep.subr.mxu0 0.0
      %3785 = vmatpush1.msra.mxu0 0.0
      %3786 = vmatprep.subr.mxu0 0.0
      %3787 = vmatpush1.msra.mxu0 0.0
      %3788 = vmatprep.subr.mxu0 0.0
      %3789 = vmatpush1.msra.mxu0 0.0
      %3790 = vmatprep.subr.mxu0 0.0
      %3791 = vmatpush1.msra.mxu0 0.0
      %3792 = vmatprep.subr.mxu0 0.0
      %3793 = vmatpush1.msra.mxu0 0.0
      %3794 = vmatprep.subr.mxu0 0.0
      %3795 = vmatpush1.msra.mxu0 0.0
      %3796 = vmatprep.mubr.f32.mxu0 0.0
      %v3797 = vand.u32 %v3616, 4294901760
      %3798 = vmatmul.mubr.f32.gmra.mrb[0].mxu0 %v3797
      %v3799 = vpop.f32.mrb[0].mxu0
      %v3800 = vadd.f32 %v3697, %v3799
      %v3801 = vpop.f32.mrb[0].mxu0
      %v3802 = vadd.f32 %v3699, %v3801
      %3803 = vmatprep.mubr.f32.mxu0 0.0
      %v3804 = vand.u32 %v3619, 4294901760
      %3805 = vmatmul.mubr.f32.gmra.mrb[0].mxu0 %v3804
      %v3806 = vpop.f32.mrb[0].mxu0
      %v3807 = vadd.f32 %v3708, %v3806
      %v3808 = vpop.f32.mrb[0].mxu0
      %v3809 = vadd.f32 %v3710, %v3808
      %3810 = vdwg.mxu0
      %v3811 = vand.u32 %v292, 4294901760
      %v3812 = vsub.f32 %v292, %v3811
      %3813 = vmatprep.subr.mxu0 %v3812
      %v3814 = vand.u32 %v291, 4294901760
      %v3815 = vsub.f32 %v291, %v3814
      %3816 = vmatpush1.msra.mxu0 %v3815
      %v3817 = vand.u32 %v300, 4294901760
      %v3818 = vsub.f32 %v300, %v3817
      %3819 = vmatprep.subr.mxu0 %v3818
      %v3820 = vand.u32 %v299, 4294901760
      %v3821 = vsub.f32 %v299, %v3820
      %3822 = vmatpush1.msra.mxu0 %v3821
      %3823 = vmatprep.subr.mxu0 0.0
      %3824 = vmatpush1.msra.mxu0 0.0
      %3825 = vmatprep.subr.mxu0 0.0
      %3826 = vmatpush1.msra.mxu0 0.0
      %3827 = vmatprep.subr.mxu0 0.0
      %3828 = vmatpush1.msra.mxu0 0.0
      %3829 = vmatprep.subr.mxu0 0.0
      %3830 = vmatpush1.msra.mxu0 0.0
      %3831 = vmatprep.subr.mxu0 0.0
      %3832 = vmatpush1.msra.mxu0 0.0
      %3833 = vmatprep.subr.mxu0 0.0
      %3834 = vmatpush1.msra.mxu0 0.0
      %3835 = vmatprep.subr.mxu0 0.0
      %3836 = vmatpush1.msra.mxu0 0.0
      %3837 = vmatprep.subr.mxu0 0.0
      %3838 = vmatpush1.msra.mxu0 0.0
      %3839 = vmatprep.subr.mxu0 0.0
      %3840 = vmatpush1.msra.mxu0 0.0
      %3841 = vmatprep.subr.mxu0 0.0
      %3842 = vmatpush1.msra.mxu0 0.0
      %3843 = vmatprep.subr.mxu0 0.0
      %3844 = vmatpush1.msra.mxu0 0.0
      %3845 = vmatprep.subr.mxu0 0.0
      %3846 = vmatpush1.msra.mxu0 0.0
      %3847 = vmatprep.subr.mxu0 0.0
      %3848 = vmatpush1.msra.mxu0 0.0
      %3849 = vmatprep.subr.mxu0 0.0
      %3850 = vmatpush1.msra.mxu0 0.0
      %3851 = vmatprep.subr.mxu0 0.0
      %3852 = vmatpush1.msra.mxu0 0.0
      %3853 = vmatprep.subr.mxu0 0.0
      %3854 = vmatpush1.msra.mxu0 0.0
      %3855 = vmatprep.subr.mxu0 0.0
      %3856 = vmatpush1.msra.mxu0 0.0
      %3857 = vmatprep.subr.mxu0 0.0
      %3858 = vmatpush1.msra.mxu0 0.0
      %3859 = vmatprep.subr.mxu0 0.0
      %3860 = vmatpush1.msra.mxu0 0.0
      %3861 = vmatprep.subr.mxu0 0.0
      %3862 = vmatpush1.msra.mxu0 0.0
      %3863 = vmatprep.subr.mxu0 0.0
      %3864 = vmatpush1.msra.mxu0 0.0
      %3865 = vmatprep.subr.mxu0 0.0
      %3866 = vmatpush1.msra.mxu0 0.0
      %3867 = vmatprep.subr.mxu0 0.0
      %3868 = vmatpush1.msra.mxu0 0.0
      %3869 = vmatprep.subr.mxu0 0.0
      %3870 = vmatpush1.msra.mxu0 0.0
      %3871 = vmatprep.subr.mxu0 0.0
      %3872 = vmatpush1.msra.mxu0 0.0
      %3873 = vmatprep.subr.mxu0 0.0
      %3874 = vmatpush1.msra.mxu0 0.0
      %3875 = vmatprep.subr.mxu0 0.0
      %3876 = vmatpush1.msra.mxu0 0.0
      %3877 = vmatprep.subr.mxu0 0.0
      %3878 = vmatpush1.msra.mxu0 0.0
      %3879 = vmatprep.subr.mxu0 0.0
      %3880 = vmatpush1.msra.mxu0 0.0
      %3881 = vmatprep.subr.mxu0 0.0
      %3882 = vmatpush1.msra.mxu0 0.0
      %3883 = vmatprep.mubr.f32.mxu0 0.0
      %v3884 = vand.u32 %v3616, 4294901760
      %v3885 = vsub.f32 %v3616, %v3884
      %3886 = vmatmul.mubr.f32.gmra.mrb[0].mxu0 %v3885
      %v3887 = vpop.f32.mrb[0].mxu0
      %v3888 = vadd.f32 %v3800, %v3887
      %v3889 = vpop.f32.mrb[0].mxu0
      %v3890 = vadd.f32 %v3802, %v3889
      %3891 = vmatprep.mubr.f32.mxu0 0.0
      %v3892 = vand.u32 %v3619, 4294901760
      %v3893 = vsub.f32 %v3619, %v3892
      %3894 = vmatmul.mubr.f32.gmra.mrb[0].mxu0 %v3893
      %v3895 = vpop.f32.mrb[0].mxu0
      %v3896 = vadd.f32 %v3807, %v3895
      %v3897 = vpop.f32.mrb[0].mxu0
      %v3898 = vadd.f32 %v3809, %v3897
      %3899 = vdwg.mxu0
      %v3900 = vand.u32 %v292, 4294901760
      %3901 = vmatprep.subr.mxu0 %v3900
      %v3902 = vand.u32 %v291, 4294901760
      %3903 = vmatpush1.msra.mxu0 %v3902
      %v3904 = vand.u32 %v300, 4294901760
      %3905 = vmatprep.subr.mxu0 %v3904
      %v3906 = vand.u32 %v299, 4294901760
      %3907 = vmatpush1.msra.mxu0 %v3906
      %3908 = vmatprep.subr.mxu0 0.0
      %3909 = vmatpush1.msra.mxu0 0.0
      %3910 = vmatprep.subr.mxu0 0.0
      %3911 = vmatpush1.msra.mxu0 0.0
      %3912 = vmatprep.subr.mxu0 0.0
      %3913 = vmatpush1.msra.mxu0 0.0
      %3914 = vmatprep.subr.mxu0 0.0
      %3915 = vmatpush1.msra.mxu0 0.0
      %3916 = vmatprep.subr.mxu0 0.0
      %3917 = vmatpush1.msra.mxu0 0.0
      %3918 = vmatprep.subr.mxu0 0.0
      %3919 = vmatpush1.msra.mxu0 0.0
      %3920 = vmatprep.subr.mxu0 0.0
      %3921 = vmatpush1.msra.mxu0 0.0
      %3922 = vmatprep.subr.mxu0 0.0
      %3923 = vmatpush1.msra.mxu0 0.0
      %3924 = vmatprep.subr.mxu0 0.0
      %3925 = vmatpush1.msra.mxu0 0.0
      %3926 = vmatprep.subr.mxu0 0.0
      %3927 = vmatpush1.msra.mxu0 0.0
      %3928 = vmatprep.subr.mxu0 0.0
      %3929 = vmatpush1.msra.mxu0 0.0
      %3930 = vmatprep.subr.mxu0 0.0
      %3931 = vmatpush1.msra.mxu0 0.0
      %3932 = vmatprep.subr.mxu0 0.0
      %3933 = vmatpush1.msra.mxu0 0.0
      %3934 = vmatprep.subr.mxu0 0.0
      %3935 = vmatpush1.msra.mxu0 0.0
      %3936 = vmatprep.subr.mxu0 0.0
      %3937 = vmatpush1.msra.mxu0 0.0
      %3938 = vmatprep.subr.mxu0 0.0
      %3939 = vmatpush1.msra.mxu0 0.0
      %3940 = vmatprep.subr.mxu0 0.0
      %3941 = vmatpush1.msra.mxu0 0.0
      %3942 = vmatprep.subr.mxu0 0.0
      %3943 = vmatpush1.msra.mxu0 0.0
      %3944 = vmatprep.subr.mxu0 0.0
      %3945 = vmatpush1.msra.mxu0 0.0
      %3946 = vmatprep.subr.mxu0 0.0
      %3947 = vmatpush1.msra.mxu0 0.0
      %3948 = vmatprep.subr.mxu0 0.0
      %3949 = vmatpush1.msra.mxu0 0.0
      %3950 = vmatprep.subr.mxu0 0.0
      %3951 = vmatpush1.msra.mxu0 0.0
      %3952 = vmatprep.subr.mxu0 0.0
      %3953 = vmatpush1.msra.mxu0 0.0
      %3954 = vmatprep.subr.mxu0 0.0
      %3955 = vmatpush1.msra.mxu0 0.0
      %3956 = vmatprep.subr.mxu0 0.0
      %3957 = vmatpush1.msra.mxu0 0.0
      %3958 = vmatprep.subr.mxu0 0.0
      %3959 = vmatpush1.msra.mxu0 0.0
      %3960 = vmatprep.subr.mxu0 0.0
      %3961 = vmatpush1.msra.mxu0 0.0
      %3962 = vmatprep.subr.mxu0 0.0
      %3963 = vmatpush1.msra.mxu0 0.0
      %3964 = vmatprep.subr.mxu0 0.0
      %3965 = vmatpush1.msra.mxu0 0.0
      %3966 = vmatprep.subr.mxu0 0.0
      %3967 = vmatpush1.msra.mxu0 0.0
      %3968 = vmatprep.mubr.f32.mxu0 0.0
      %v3969 = vand.u32 %v3616, 4294901760
      %v3970 = vsub.f32 %v3616, %v3969
      %v3971 = vand.u32 %v3970, 4294901760
      %3972 = vmatmul.mubr.f32.gmra.mrb[0].mxu0 %v3971
      %v3973 = vpop.f32.mrb[0].mxu0
      %v3974 = vadd.f32 %v3888, %v3973
      %v3975 = vpop.f32.mrb[0].mxu0
      %v3976 = vadd.f32 %v3890, %v3975
      %3977 = vmatprep.mubr.f32.mxu0 0.0
      %v3978 = vand.u32 %v3619, 4294901760
      %v3979 = vsub.f32 %v3619, %v3978
      %v3980 = vand.u32 %v3979, 4294901760
      %3981 = vmatmul.mubr.f32.gmra.mrb[0].mxu0 %v3980
      %v3982 = vpop.f32.mrb[0].mxu0
      %v3983 = vadd.f32 %v3896, %v3982
      %v3984 = vpop.f32.mrb[0].mxu0
      %v3985 = vadd.f32 %v3898, %v3984
      %3986 = vdwg.mxu0
      %v3987 = vand.u32 %v292, 4294901760
      %v3988 = vsub.f32 %v292, %v3987
      %v3989 = vand.u32 %v3988, 4294901760
      %3990 = vmatprep.subr.mxu0 %v3989
      %v3991 = vand.u32 %v291, 4294901760
      %v3992 = vsub.f32 %v291, %v3991
      %v3993 = vand.u32 %v3992, 4294901760
      %3994 = vmatpush1.msra.mxu0 %v3993
      %v3995 = vand.u32 %v300, 4294901760
      %v3996 = vsub.f32 %v300, %v3995
      %v3997 = vand.u32 %v3996, 4294901760
      %3998 = vmatprep.subr.mxu0 %v3997
      %v3999 = vand.u32 %v299, 4294901760
      %v4000 = vsub.f32 %v299, %v3999
      %v4001 = vand.u32 %v4000, 4294901760
      %4002 = vmatpush1.msra.mxu0 %v4001
      %4003 = vmatprep.subr.mxu0 0.0
      %4004 = vmatpush1.msra.mxu0 0.0
      %4005 = vmatprep.subr.mxu0 0.0
      %4006 = vmatpush1.msra.mxu0 0.0
      %4007 = vmatprep.subr.mxu0 0.0
      %4008 = vmatpush1.msra.mxu0 0.0
      %4009 = vmatprep.subr.mxu0 0.0
      %4010 = vmatpush1.msra.mxu0 0.0
      %4011 = vmatprep.subr.mxu0 0.0
      %4012 = vmatpush1.msra.mxu0 0.0
      %4013 = vmatprep.subr.mxu0 0.0
      %4014 = vmatpush1.msra.mxu0 0.0
      %4015 = vmatprep.subr.mxu0 0.0
      %4016 = vmatpush1.msra.mxu0 0.0
      %4017 = vmatprep.subr.mxu0 0.0
      %4018 = vmatpush1.msra.mxu0 0.0
      %4019 = vmatprep.subr.mxu0 0.0
      %4020 = vmatpush1.msra.mxu0 0.0
      %4021 = vmatprep.subr.mxu0 0.0
      %4022 = vmatpush1.msra.mxu0 0.0
      %4023 = vmatprep.subr.mxu0 0.0
      %4024 = vmatpush1.msra.mxu0 0.0
      %4025 = vmatprep.subr.mxu0 0.0
      %4026 = vmatpush1.msra.mxu0 0.0
      %4027 = vmatprep.subr.mxu0 0.0
      %4028 = vmatpush1.msra.mxu0 0.0
      %4029 = vmatprep.subr.mxu0 0.0
      %4030 = vmatpush1.msra.mxu0 0.0
      %4031 = vmatprep.subr.mxu0 0.0
      %4032 = vmatpush1.msra.mxu0 0.0
      %4033 = vmatprep.subr.mxu0 0.0
      %4034 = vmatpush1.msra.mxu0 0.0
      %4035 = vmatprep.subr.mxu0 0.0
      %4036 = vmatpush1.msra.mxu0 0.0
      %4037 = vmatprep.subr.mxu0 0.0
      %4038 = vmatpush1.msra.mxu0 0.0
      %4039 = vmatprep.subr.mxu0 0.0
      %4040 = vmatpush1.msra.mxu0 0.0
      %4041 = vmatprep.subr.mxu0 0.0
      %4042 = vmatpush1.msra.mxu0 0.0
      %4043 = vmatprep.subr.mxu0 0.0
      %4044 = vmatpush1.msra.mxu0 0.0
      %4045 = vmatprep.subr.mxu0 0.0
      %4046 = vmatpush1.msra.mxu0 0.0
      %4047 = vmatprep.subr.mxu0 0.0
      %4048 = vmatpush1.msra.mxu0 0.0
      %4049 = vmatprep.subr.mxu0 0.0
      %4050 = vmatpush1.msra.mxu0 0.0
      %4051 = vmatprep.subr.mxu0 0.0
      %4052 = vmatpush1.msra.mxu0 0.0
      %4053 = vmatprep.subr.mxu0 0.0
      %4054 = vmatpush1.msra.mxu0 0.0
      %4055 = vmatprep.subr.mxu0 0.0
      %4056 = vmatpush1.msra.mxu0 0.0
      %4057 = vmatprep.subr.mxu0 0.0
      %4058 = vmatpush1.msra.mxu0 0.0
      %4059 = vmatprep.subr.mxu0 0.0
      %4060 = vmatpush1.msra.mxu0 0.0
      %4061 = vmatprep.subr.mxu0 0.0
      %4062 = vmatpush1.msra.mxu0 0.0
      %4063 = vmatprep.mubr.f32.mxu0 0.0
      %v4064 = vand.u32 %v3616, 4294901760
      %4065 = vmatmul.mubr.f32.gmra.mrb[0].mxu0 %v4064
      %v4066 = vpop.f32.mrb[0].mxu0
      %v4067 = vadd.f32 %v3974, %v4066
      %v4068 = vpop.f32.mrb[0].mxu0
      %v4069 = vadd.f32 %v3976, %v4068
      %4070 = vmatprep.mubr.f32.mxu0 0.0
      %v4071 = vand.u32 %v3619, 4294901760
      %4072 = vmatmul.mubr.f32.gmra.mrb[0].mxu0 %v4071
      %v4073 = vpop.f32.mrb[0].mxu0
      %v4074 = vadd.f32 %v3983, %v4073
      %v4075 = vpop.f32.mrb[0].mxu0
      %v4076 = vadd.f32 %v3985, %v4075
      %4077 = vdwg.mxu0
      %v4078 = vand.u32 %v292, 4294901760
      %4079 = vmatprep.subr.mxu0 %v4078
      %v4080 = vand.u32 %v291, 4294901760
      %4081 = vmatpush1.msra.mxu0 %v4080
      %v4082 = vand.u32 %v300, 4294901760
      %4083 = vmatprep.subr.mxu0 %v4082
      %v4084 = vand.u32 %v299, 4294901760
      %4085 = vmatpush1.msra.mxu0 %v4084
      %4086 = vmatprep.subr.mxu0 0.0
      %4087 = vmatpush1.msra.mxu0 0.0
      %4088 = vmatprep.subr.mxu0 0.0
      %4089 = vmatpush1.msra.mxu0 0.0
      %4090 = vmatprep.subr.mxu0 0.0
      %4091 = vmatpush1.msra.mxu0 0.0
      %4092 = vmatprep.subr.mxu0 0.0
      %4093 = vmatpush1.msra.mxu0 0.0
      %4094 = vmatprep.subr.mxu0 0.0
      %4095 = vmatpush1.msra.mxu0 0.0
      %4096 = vmatprep.subr.mxu0 0.0
      %4097 = vmatpush1.msra.mxu0 0.0
      %4098 = vmatprep.subr.mxu0 0.0
      %4099 = vmatpush1.msra.mxu0 0.0
      %4100 = vmatprep.subr.mxu0 0.0
      %4101 = vmatpush1.msra.mxu0 0.0
      %4102 = vmatprep.subr.mxu0 0.0
      %4103 = vmatpush1.msra.mxu0 0.0
      %4104 = vmatprep.subr.mxu0 0.0
      %4105 = vmatpush1.msra.mxu0 0.0
      %4106 = vmatprep.subr.mxu0 0.0
      %4107 = vmatpush1.msra.mxu0 0.0
      %4108 = vmatprep.subr.mxu0 0.0
      %4109 = vmatpush1.msra.mxu0 0.0
      %4110 = vmatprep.subr.mxu0 0.0
      %4111 = vmatpush1.msra.mxu0 0.0
      %4112 = vmatprep.subr.mxu0 0.0
      %4113 = vmatpush1.msra.mxu0 0.0
      %4114 = vmatprep.subr.mxu0 0.0
      %4115 = vmatpush1.msra.mxu0 0.0
      %4116 = vmatprep.subr.mxu0 0.0
      %4117 = vmatpush1.msra.mxu0 0.0
      %4118 = vmatprep.subr.mxu0 0.0
      %4119 = vmatpush1.msra.mxu0 0.0
      %4120 = vmatprep.subr.mxu0 0.0
      %4121 = vmatpush1.msra.mxu0 0.0
      %4122 = vmatprep.subr.mxu0 0.0
      %4123 = vmatpush1.msra.mxu0 0.0
      %4124 = vmatprep.subr.mxu0 0.0
      %4125 = vmatpush1.msra.mxu0 0.0
      %4126 = vmatprep.subr.mxu0 0.0
      %4127 = vmatpush1.msra.mxu0 0.0
      %4128 = vmatprep.subr.mxu0 0.0
      %4129 = vmatpush1.msra.mxu0 0.0
      %4130 = vmatprep.subr.mxu0 0.0
      %4131 = vmatpush1.msra.mxu0 0.0
      %4132 = vmatprep.subr.mxu0 0.0
      %4133 = vmatpush1.msra.mxu0 0.0
      %4134 = vmatprep.subr.mxu0 0.0
      %4135 = vmatpush1.msra.mxu0 0.0
      %4136 = vmatprep.subr.mxu0 0.0
      %4137 = vmatpush1.msra.mxu0 0.0
      %4138 = vmatprep.subr.mxu0 0.0
      %4139 = vmatpush1.msra.mxu0 0.0
      %4140 = vmatprep.subr.mxu0 0.0
      %4141 = vmatpush1.msra.mxu0 0.0
      %4142 = vmatprep.subr.mxu0 0.0
      %4143 = vmatpush1.msra.mxu0 0.0
      %4144 = vmatprep.subr.mxu0 0.0
      %4145 = vmatpush1.msra.mxu0 0.0
      %4146 = vmatprep.mubr.f32.mxu0 0.0
      %v4147 = vand.u32 %v3616, 4294901760
      %4148 = vmatmul.mubr.f32.gmra.mrb[0].mxu0 %v4147
      %v4149 = vpop.f32.mrb[0].mxu0
      %v4150 = vadd.f32 %v4067, %v4149
      %v4151 = vpop.f32.mrb[0].mxu0
      %v4152 = vadd.f32 %v4069, %v4151
      %4153 = vmatprep.mubr.f32.mxu0 0.0
      %v4154 = vand.u32 %v3619, 4294901760
      %4155 = vmatmul.mubr.f32.gmra.mrb[0].mxu0 %v4154
      %v4156 = vpop.f32.mrb[0].mxu0
      %v4157 = vadd.f32 %v4074, %v4156
      %v4158 = vpop.f32.mrb[0].mxu0
      %v4159 = vadd.f32 %v4076, %v4158
      %4160 = vdwg.mxu0
      %v4161 = vand.u32 %v294, 4294901760
      %4162 = vmatprep.subr.mxu0 %v4161
      %v4163 = vand.u32 %v293, 4294901760
      %4164 = vmatpush1.msra.mxu0 %v4163
      %v4165 = vand.u32 %v302, 4294901760
      %4166 = vmatprep.subr.mxu0 %v4165
      %v4167 = vand.u32 %v301, 4294901760
      %4168 = vmatpush1.msra.mxu0 %v4167
      %4169 = vmatprep.subr.mxu0 0.0
      %4170 = vmatpush1.msra.mxu0 0.0
      %4171 = vmatprep.subr.mxu0 0.0
      %4172 = vmatpush1.msra.mxu0 0.0
      %4173 = vmatprep.subr.mxu0 0.0
      %4174 = vmatpush1.msra.mxu0 0.0
      %4175 = vmatprep.subr.mxu0 0.0
      %4176 = vmatpush1.msra.mxu0 0.0
      %4177 = vmatprep.subr.mxu0 0.0
      %4178 = vmatpush1.msra.mxu0 0.0
      %4179 = vmatprep.subr.mxu0 0.0
      %4180 = vmatpush1.msra.mxu0 0.0
      %4181 = vmatprep.subr.mxu0 0.0
      %4182 = vmatpush1.msra.mxu0 0.0
      %4183 = vmatprep.subr.mxu0 0.0
      %4184 = vmatpush1.msra.mxu0 0.0
      %4185 = vmatprep.subr.mxu0 0.0
      %4186 = vmatpush1.msra.mxu0 0.0
      %4187 = vmatprep.subr.mxu0 0.0
      %4188 = vmatpush1.msra.mxu0 0.0
      %4189 = vmatprep.subr.mxu0 0.0
      %4190 = vmatpush1.msra.mxu0 0.0
      %4191 = vmatprep.subr.mxu0 0.0
      %4192 = vmatpush1.msra.mxu0 0.0
      %4193 = vmatprep.subr.mxu0 0.0
      %4194 = vmatpush1.msra.mxu0 0.0
      %4195 = vmatprep.subr.mxu0 0.0
      %4196 = vmatpush1.msra.mxu0 0.0
      %4197 = vmatprep.subr.mxu0 0.0
      %4198 = vmatpush1.msra.mxu0 0.0
      %4199 = vmatprep.subr.mxu0 0.0
      %4200 = vmatpush1.msra.mxu0 0.0
      %4201 = vmatprep.subr.mxu0 0.0
      %4202 = vmatpush1.msra.mxu0 0.0
      %4203 = vmatprep.subr.mxu0 0.0
      %4204 = vmatpush1.msra.mxu0 0.0
      %4205 = vmatprep.subr.mxu0 0.0
      %4206 = vmatpush1.msra.mxu0 0.0
      %4207 = vmatprep.subr.mxu0 0.0
      %4208 = vmatpush1.msra.mxu0 0.0
      %4209 = vmatprep.subr.mxu0 0.0
      %4210 = vmatpush1.msra.mxu0 0.0
      %4211 = vmatprep.subr.mxu0 0.0
      %4212 = vmatpush1.msra.mxu0 0.0
      %4213 = vmatprep.subr.mxu0 0.0
      %4214 = vmatpush1.msra.mxu0 0.0
      %4215 = vmatprep.subr.mxu0 0.0
      %4216 = vmatpush1.msra.mxu0 0.0
      %4217 = vmatprep.subr.mxu0 0.0
      %4218 = vmatpush1.msra.mxu0 0.0
      %4219 = vmatprep.subr.mxu0 0.0
      %4220 = vmatpush1.msra.mxu0 0.0
      %4221 = vmatprep.subr.mxu0 0.0
      %4222 = vmatpush1.msra.mxu0 0.0
      %4223 = vmatprep.subr.mxu0 0.0
      %4224 = vmatpush1.msra.mxu0 0.0
      %4225 = vmatprep.subr.mxu0 0.0
      %4226 = vmatpush1.msra.mxu0 0.0
      %4227 = vmatprep.subr.mxu0 0.0
      %4228 = vmatpush1.msra.mxu0 0.0
      %4229 = vmatprep.mubr.f32.mxu0 0.0
      %v4230 = vand.u32 %v3616, 4294901760
      %v4231 = vsub.f32 %v3616, %v4230
      %v4232 = vand.u32 %v4231, 4294901760
      %v4233 = vsub.f32 %v4231, %v4232
      %v4234 = vand.u32 %v4233, 4294901760
      %4235 = vmatmul.mubr.f32.gmra.mrb[0].mxu0 %v4234
      %v4236 = vpop.f32.mrb[0].mxu0
      %v4237 = vadd.f32 %v2003, %v4236
      %v4238 = vpop.f32.mrb[0].mxu0
      %v4239 = vadd.f32 %v2005, %v4238
      %4240 = vmatprep.mubr.f32.mxu0 0.0
      %v4241 = vand.u32 %v3619, 4294901760
      %v4242 = vsub.f32 %v3619, %v4241
      %v4243 = vand.u32 %v4242, 4294901760
      %v4244 = vsub.f32 %v4242, %v4243
      %v4245 = vand.u32 %v4244, 4294901760
      %4246 = vmatmul.mubr.f32.gmra.mrb[0].mxu0 %v4245
      %v4247 = vpop.f32.mrb[0].mxu0
      %v4248 = vadd.f32 %v2010, %v4247
      %v4249 = vpop.f32.mrb[0].mxu0
      %v4250 = vadd.f32 %v2012, %v4249
      %4251 = vdwg.mxu0
      %v4252 = vand.u32 %v294, 4294901760
      %v4253 = vsub.f32 %v294, %v4252
      %v4254 = vand.u32 %v4253, 4294901760
      %v4255 = vsub.f32 %v4253, %v4254
      %v4256 = vand.u32 %v4255, 4294901760
      %4257 = vmatprep.subr.mxu0 %v4256
      %v4258 = vand.u32 %v293, 4294901760
      %v4259 = vsub.f32 %v293, %v4258
      %v4260 = vand.u32 %v4259, 4294901760
      %v4261 = vsub.f32 %v4259, %v4260
      %v4262 = vand.u32 %v4261, 4294901760
      %4263 = vmatpush1.msra.mxu0 %v4262
      %v4264 = vand.u32 %v302, 4294901760
      %v4265 = vsub.f32 %v302, %v4264
      %v4266 = vand.u32 %v4265, 4294901760
      %v4267 = vsub.f32 %v4265, %v4266
      %v4268 = vand.u32 %v4267, 4294901760
      %4269 = vmatprep.subr.mxu0 %v4268
      %v4270 = vand.u32 %v301, 4294901760
      %v4271 = vsub.f32 %v301, %v4270
      %v4272 = vand.u32 %v4271, 4294901760
      %v4273 = vsub.f32 %v4271, %v4272
      %v4274 = vand.u32 %v4273, 4294901760
      %4275 = vmatpush1.msra.mxu0 %v4274
      %4276 = vmatprep.subr.mxu0 0.0
      %4277 = vmatpush1.msra.mxu0 0.0
      %4278 = vmatprep.subr.mxu0 0.0
      %4279 = vmatpush1.msra.mxu0 0.0
      %4280 = vmatprep.subr.mxu0 0.0
      %4281 = vmatpush1.msra.mxu0 0.0
      %4282 = vmatprep.subr.mxu0 0.0
      %4283 = vmatpush1.msra.mxu0 0.0
      %4284 = vmatprep.subr.mxu0 0.0
      %4285 = vmatpush1.msra.mxu0 0.0
      %4286 = vmatprep.subr.mxu0 0.0
      %4287 = vmatpush1.msra.mxu0 0.0
      %4288 = vmatprep.subr.mxu0 0.0
      %4289 = vmatpush1.msra.mxu0 0.0
      %4290 = vmatprep.subr.mxu0 0.0
      %4291 = vmatpush1.msra.mxu0 0.0
      %4292 = vmatprep.subr.mxu0 0.0
      %4293 = vmatpush1.msra.mxu0 0.0
      %4294 = vmatprep.subr.mxu0 0.0
      %4295 = vmatpush1.msra.mxu0 0.0
      %4296 = vmatprep.subr.mxu0 0.0
      %4297 = vmatpush1.msra.mxu0 0.0
      %4298 = vmatprep.subr.mxu0 0.0
      %4299 = vmatpush1.msra.mxu0 0.0
      %4300 = vmatprep.subr.mxu0 0.0
      %4301 = vmatpush1.msra.mxu0 0.0
      %4302 = vmatprep.subr.mxu0 0.0
      %4303 = vmatpush1.msra.mxu0 0.0
      %4304 = vmatprep.subr.mxu0 0.0
      %4305 = vmatpush1.msra.mxu0 0.0
      %4306 = vmatprep.subr.mxu0 0.0
      %4307 = vmatpush1.msra.mxu0 0.0
      %4308 = vmatprep.subr.mxu0 0.0
      %4309 = vmatpush1.msra.mxu0 0.0
      %4310 = vmatprep.subr.mxu0 0.0
      %4311 = vmatpush1.msra.mxu0 0.0
      %4312 = vmatprep.subr.mxu0 0.0
      %4313 = vmatpush1.msra.mxu0 0.0
      %4314 = vmatprep.subr.mxu0 0.0
      %4315 = vmatpush1.msra.mxu0 0.0
      %4316 = vmatprep.subr.mxu0 0.0
      %4317 = vmatpush1.msra.mxu0 0.0
      %4318 = vmatprep.subr.mxu0 0.0
      %4319 = vmatpush1.msra.mxu0 0.0
      %4320 = vmatprep.subr.mxu0 0.0
      %4321 = vmatpush1.msra.mxu0 0.0
      %4322 = vmatprep.subr.mxu0 0.0
      %4323 = vmatpush1.msra.mxu0 0.0
      %4324 = vmatprep.subr.mxu0 0.0
      %4325 = vmatpush1.msra.mxu0 0.0
      %4326 = vmatprep.subr.mxu0 0.0
      %4327 = vmatpush1.msra.mxu0 0.0
      %4328 = vmatprep.subr.mxu0 0.0
      %4329 = vmatpush1.msra.mxu0 0.0
      %4330 = vmatprep.subr.mxu0 0.0
      %4331 = vmatpush1.msra.mxu0 0.0
      %4332 = vmatprep.subr.mxu0 0.0
      %4333 = vmatpush1.msra.mxu0 0.0
      %4334 = vmatprep.subr.mxu0 0.0
      %4335 = vmatpush1.msra.mxu0 0.0
      %4336 = vmatprep.mubr.f32.mxu0 0.0
      %v4337 = vand.u32 %v3616, 4294901760
      %4338 = vmatmul.mubr.f32.gmra.mrb[0].mxu0 %v4337
      %v4339 = vpop.f32.mrb[0].mxu0
      %v4340 = vadd.f32 %v4237, %v4339
      %v4341 = vpop.f32.mrb[0].mxu0
      %v4342 = vadd.f32 %v4239, %v4341
      %4343 = vmatprep.mubr.f32.mxu0 0.0
      %v4344 = vand.u32 %v3619, 4294901760
      %4345 = vmatmul.mubr.f32.gmra.mrb[0].mxu0 %v4344
      %v4346 = vpop.f32.mrb[0].mxu0
      %v4347 = vadd.f32 %v4248, %v4346
      %v4348 = vpop.f32.mrb[0].mxu0
      %v4349 = vadd.f32 %v4250, %v4348
      %4350 = vdwg.mxu0
      %v4351 = vand.u32 %v294, 4294901760
      %v4352 = vsub.f32 %v294, %v4351
      %4353 = vmatprep.subr.mxu0 %v4352
      %v4354 = vand.u32 %v293, 4294901760
      %v4355 = vsub.f32 %v293, %v4354
      %4356 = vmatpush1.msra.mxu0 %v4355
      %v4357 = vand.u32 %v302, 4294901760
      %v4358 = vsub.f32 %v302, %v4357
      %4359 = vmatprep.subr.mxu0 %v4358
      %v4360 = vand.u32 %v301, 4294901760
      %v4361 = vsub.f32 %v301, %v4360
      %4362 = vmatpush1.msra.mxu0 %v4361
      %4363 = vmatprep.subr.mxu0 0.0
      %4364 = vmatpush1.msra.mxu0 0.0
      %4365 = vmatprep.subr.mxu0 0.0
      %4366 = vmatpush1.msra.mxu0 0.0
      %4367 = vmatprep.subr.mxu0 0.0
      %4368 = vmatpush1.msra.mxu0 0.0
      %4369 = vmatprep.subr.mxu0 0.0
      %4370 = vmatpush1.msra.mxu0 0.0
      %4371 = vmatprep.subr.mxu0 0.0
      %4372 = vmatpush1.msra.mxu0 0.0
      %4373 = vmatprep.subr.mxu0 0.0
      %4374 = vmatpush1.msra.mxu0 0.0
      %4375 = vmatprep.subr.mxu0 0.0
      %4376 = vmatpush1.msra.mxu0 0.0
      %4377 = vmatprep.subr.mxu0 0.0
      %4378 = vmatpush1.msra.mxu0 0.0
      %4379 = vmatprep.subr.mxu0 0.0
      %4380 = vmatpush1.msra.mxu0 0.0
      %4381 = vmatprep.subr.mxu0 0.0
      %4382 = vmatpush1.msra.mxu0 0.0
      %4383 = vmatprep.subr.mxu0 0.0
      %4384 = vmatpush1.msra.mxu0 0.0
      %4385 = vmatprep.subr.mxu0 0.0
      %4386 = vmatpush1.msra.mxu0 0.0
      %4387 = vmatprep.subr.mxu0 0.0
      %4388 = vmatpush1.msra.mxu0 0.0
      %4389 = vmatprep.subr.mxu0 0.0
      %4390 = vmatpush1.msra.mxu0 0.0
      %4391 = vmatprep.subr.mxu0 0.0
      %4392 = vmatpush1.msra.mxu0 0.0
      %4393 = vmatprep.subr.mxu0 0.0
      %4394 = vmatpush1.msra.mxu0 0.0
      %4395 = vmatprep.subr.mxu0 0.0
      %4396 = vmatpush1.msra.mxu0 0.0
      %4397 = vmatprep.subr.mxu0 0.0
      %4398 = vmatpush1.msra.mxu0 0.0
      %4399 = vmatprep.subr.mxu0 0.0
      %4400 = vmatpush1.msra.mxu0 0.0
      %4401 = vmatprep.subr.mxu0 0.0
      %4402 = vmatpush1.msra.mxu0 0.0
      %4403 = vmatprep.subr.mxu0 0.0
      %4404 = vmatpush1.msra.mxu0 0.0
      %4405 = vmatprep.subr.mxu0 0.0
      %4406 = vmatpush1.msra.mxu0 0.0
      %4407 = vmatprep.subr.mxu0 0.0
      %4408 = vmatpush1.msra.mxu0 0.0
      %4409 = vmatprep.subr.mxu0 0.0
      %4410 = vmatpush1.msra.mxu0 0.0
      %4411 = vmatprep.subr.mxu0 0.0
      %4412 = vmatpush1.msra.mxu0 0.0
      %4413 = vmatprep.subr.mxu0 0.0
      %4414 = vmatpush1.msra.mxu0 0.0
      %4415 = vmatprep.subr.mxu0 0.0
      %4416 = vmatpush1.msra.mxu0 0.0
      %4417 = vmatprep.subr.mxu0 0.0
      %4418 = vmatpush1.msra.mxu0 0.0
      %4419 = vmatprep.subr.mxu0 0.0
      %4420 = vmatpush1.msra.mxu0 0.0
      %4421 = vmatprep.subr.mxu0 0.0
      %4422 = vmatpush1.msra.mxu0 0.0
      %4423 = vmatprep.mubr.f32.mxu0 0.0
      %v4424 = vand.u32 %v3616, 4294901760
      %v4425 = vsub.f32 %v3616, %v4424
      %4426 = vmatmul.mubr.f32.gmra.mrb[0].mxu0 %v4425
      %v4427 = vpop.f32.mrb[0].mxu0
      %v4428 = vadd.f32 %v4340, %v4427
      %v4429 = vpop.f32.mrb[0].mxu0
      %v4430 = vadd.f32 %v4342, %v4429
      %4431 = vmatprep.mubr.f32.mxu0 0.0
      %v4432 = vand.u32 %v3619, 4294901760
      %v4433 = vsub.f32 %v3619, %v4432
      %4434 = vmatmul.mubr.f32.gmra.mrb[0].mxu0 %v4433
      %v4435 = vpop.f32.mrb[0].mxu0
      %v4436 = vadd.f32 %v4347, %v4435
      %v4437 = vpop.f32.mrb[0].mxu0
      %v4438 = vadd.f32 %v4349, %v4437
      %4439 = vdwg.mxu0
      %v4440 = vand.u32 %v294, 4294901760
      %4441 = vmatprep.subr.mxu0 %v4440
      %v4442 = vand.u32 %v293, 4294901760
      %4443 = vmatpush1.msra.mxu0 %v4442
      %v4444 = vand.u32 %v302, 4294901760
      %4445 = vmatprep.subr.mxu0 %v4444
      %v4446 = vand.u32 %v301, 4294901760
      %4447 = vmatpush1.msra.mxu0 %v4446
      %4448 = vmatprep.subr.mxu0 0.0
      %4449 = vmatpush1.msra.mxu0 0.0
      %4450 = vmatprep.subr.mxu0 0.0
      %4451 = vmatpush1.msra.mxu0 0.0
      %4452 = vmatprep.subr.mxu0 0.0
      %4453 = vmatpush1.msra.mxu0 0.0
      %4454 = vmatprep.subr.mxu0 0.0
      %4455 = vmatpush1.msra.mxu0 0.0
      %4456 = vmatprep.subr.mxu0 0.0
      %4457 = vmatpush1.msra.mxu0 0.0
      %4458 = vmatprep.subr.mxu0 0.0
      %4459 = vmatpush1.msra.mxu0 0.0
      %4460 = vmatprep.subr.mxu0 0.0
      %4461 = vmatpush1.msra.mxu0 0.0
      %4462 = vmatprep.subr.mxu0 0.0
      %4463 = vmatpush1.msra.mxu0 0.0
      %4464 = vmatprep.subr.mxu0 0.0
      %4465 = vmatpush1.msra.mxu0 0.0
      %4466 = vmatprep.subr.mxu0 0.0
      %4467 = vmatpush1.msra.mxu0 0.0
      %4468 = vmatprep.subr.mxu0 0.0
      %4469 = vmatpush1.msra.mxu0 0.0
      %4470 = vmatprep.subr.mxu0 0.0
      %4471 = vmatpush1.msra.mxu0 0.0
      %4472 = vmatprep.subr.mxu0 0.0
      %4473 = vmatpush1.msra.mxu0 0.0
      %4474 = vmatprep.subr.mxu0 0.0
      %4475 = vmatpush1.msra.mxu0 0.0
      %4476 = vmatprep.subr.mxu0 0.0
      %4477 = vmatpush1.msra.mxu0 0.0
      %4478 = vmatprep.subr.mxu0 0.0
      %4479 = vmatpush1.msra.mxu0 0.0
      %4480 = vmatprep.subr.mxu0 0.0
      %4481 = vmatpush1.msra.mxu0 0.0
      %4482 = vmatprep.subr.mxu0 0.0
      %4483 = vmatpush1.msra.mxu0 0.0
      %4484 = vmatprep.subr.mxu0 0.0
      %4485 = vmatpush1.msra.mxu0 0.0
      %4486 = vmatprep.subr.mxu0 0.0
      %4487 = vmatpush1.msra.mxu0 0.0
      %4488 = vmatprep.subr.mxu0 0.0
      %4489 = vmatpush1.msra.mxu0 0.0
      %4490 = vmatprep.subr.mxu0 0.0
      %4491 = vmatpush1.msra.mxu0 0.0
      %4492 = vmatprep.subr.mxu0 0.0
      %4493 = vmatpush1.msra.mxu0 0.0
      %4494 = vmatprep.subr.mxu0 0.0
      %4495 = vmatpush1.msra.mxu0 0.0
      %4496 = vmatprep.subr.mxu0 0.0
      %4497 = vmatpush1.msra.mxu0 0.0
      %4498 = vmatprep.subr.mxu0 0.0
      %4499 = vmatpush1.msra.mxu0 0.0
      %4500 = vmatprep.subr.mxu0 0.0
      %4501 = vmatpush1.msra.mxu0 0.0
      %4502 = vmatprep.subr.mxu0 0.0
      %4503 = vmatpush1.msra.mxu0 0.0
      %4504 = vmatprep.subr.mxu0 0.0
      %4505 = vmatpush1.msra.mxu0 0.0
      %4506 = vmatprep.subr.mxu0 0.0
      %4507 = vmatpush1.msra.mxu0 0.0
      %4508 = vmatprep.mubr.f32.mxu0 0.0
      %v4509 = vand.u32 %v3616, 4294901760
      %v4510 = vsub.f32 %v3616, %v4509
      %v4511 = vand.u32 %v4510, 4294901760
      %4512 = vmatmul.mubr.f32.gmra.mrb[0].mxu0 %v4511
      %v4513 = vpop.f32.mrb[0].mxu0
      %v4514 = vadd.f32 %v4428, %v4513
      %v4515 = vpop.f32.mrb[0].mxu0
      %v4516 = vadd.f32 %v4430, %v4515
      %4517 = vmatprep.mubr.f32.mxu0 0.0
      %v4518 = vand.u32 %v3619, 4294901760
      %v4519 = vsub.f32 %v3619, %v4518
      %v4520 = vand.u32 %v4519, 4294901760
      %4521 = vmatmul.mubr.f32.gmra.mrb[0].mxu0 %v4520
      %v4522 = vpop.f32.mrb[0].mxu0
      %v4523 = vadd.f32 %v4436, %v4522
      %v4524 = vpop.f32.mrb[0].mxu0
      %v4525 = vadd.f32 %v4438, %v4524
      %4526 = vdwg.mxu0
      %v4527 = vand.u32 %v294, 4294901760
      %v4528 = vsub.f32 %v294, %v4527
      %v4529 = vand.u32 %v4528, 4294901760
      %4530 = vmatprep.subr.mxu0 %v4529
      %v4531 = vand.u32 %v293, 4294901760
      %v4532 = vsub.f32 %v293, %v4531
      %v4533 = vand.u32 %v4532, 4294901760
      %4534 = vmatpush1.msra.mxu0 %v4533
      %v4535 = vand.u32 %v302, 4294901760
      %v4536 = vsub.f32 %v302, %v4535
      %v4537 = vand.u32 %v4536, 4294901760
      %4538 = vmatprep.subr.mxu0 %v4537
      %v4539 = vand.u32 %v301, 4294901760
      %v4540 = vsub.f32 %v301, %v4539
      %v4541 = vand.u32 %v4540, 4294901760
      %4542 = vmatpush1.msra.mxu0 %v4541
      %4543 = vmatprep.subr.mxu0 0.0
      %4544 = vmatpush1.msra.mxu0 0.0
      %4545 = vmatprep.subr.mxu0 0.0
      %4546 = vmatpush1.msra.mxu0 0.0
      %4547 = vmatprep.subr.mxu0 0.0
      %4548 = vmatpush1.msra.mxu0 0.0
      %4549 = vmatprep.subr.mxu0 0.0
      %4550 = vmatpush1.msra.mxu0 0.0
      %4551 = vmatprep.subr.mxu0 0.0
      %4552 = vmatpush1.msra.mxu0 0.0
      %4553 = vmatprep.subr.mxu0 0.0
      %4554 = vmatpush1.msra.mxu0 0.0
      %4555 = vmatprep.subr.mxu0 0.0
      %4556 = vmatpush1.msra.mxu0 0.0
      %4557 = vmatprep.subr.mxu0 0.0
      %4558 = vmatpush1.msra.mxu0 0.0
      %4559 = vmatprep.subr.mxu0 0.0
      %4560 = vmatpush1.msra.mxu0 0.0
      %4561 = vmatprep.subr.mxu0 0.0
      %4562 = vmatpush1.msra.mxu0 0.0
      %4563 = vmatprep.subr.mxu0 0.0
      %4564 = vmatpush1.msra.mxu0 0.0
      %4565 = vmatprep.subr.mxu0 0.0
      %4566 = vmatpush1.msra.mxu0 0.0
      %4567 = vmatprep.subr.mxu0 0.0
      %4568 = vmatpush1.msra.mxu0 0.0
      %4569 = vmatprep.subr.mxu0 0.0
      %4570 = vmatpush1.msra.mxu0 0.0
      %4571 = vmatprep.subr.mxu0 0.0
      %4572 = vmatpush1.msra.mxu0 0.0
      %4573 = vmatprep.subr.mxu0 0.0
      %4574 = vmatpush1.msra.mxu0 0.0
      %4575 = vmatprep.subr.mxu0 0.0
      %4576 = vmatpush1.msra.mxu0 0.0
      %4577 = vmatprep.subr.mxu0 0.0
      %4578 = vmatpush1.msra.mxu0 0.0
      %4579 = vmatprep.subr.mxu0 0.0
      %4580 = vmatpush1.msra.mxu0 0.0
      %4581 = vmatprep.subr.mxu0 0.0
      %4582 = vmatpush1.msra.mxu0 0.0
      %4583 = vmatprep.subr.mxu0 0.0
      %4584 = vmatpush1.msra.mxu0 0.0
      %4585 = vmatprep.subr.mxu0 0.0
      %4586 = vmatpush1.msra.mxu0 0.0
      %4587 = vmatprep.subr.mxu0 0.0
      %4588 = vmatpush1.msra.mxu0 0.0
      %4589 = vmatprep.subr.mxu0 0.0
      %4590 = vmatpush1.msra.mxu0 0.0
      %4591 = vmatprep.subr.mxu0 0.0
      %4592 = vmatpush1.msra.mxu0 0.0
      %4593 = vmatprep.subr.mxu0 0.0
      %4594 = vmatpush1.msra.mxu0 0.0
      %4595 = vmatprep.subr.mxu0 0.0
      %4596 = vmatpush1.msra.mxu0 0.0
      %4597 = vmatprep.subr.mxu0 0.0
      %4598 = vmatpush1.msra.mxu0 0.0
      %4599 = vmatprep.subr.mxu0 0.0
      %4600 = vmatpush1.msra.mxu0 0.0
      %4601 = vmatprep.subr.mxu0 0.0
      %4602 = vmatpush1.msra.mxu0 0.0
      %4603 = vmatprep.mubr.f32.mxu0 0.0
      %v4604 = vand.u32 %v3616, 4294901760
      %4605 = vmatmul.mubr.f32.gmra.mrb[0].mxu0 %v4604
      %v4606 = vpop.f32.mrb[0].mxu0
      %v4607 = vadd.f32 %v4514, %v4606
      %v4608 = vpop.f32.mrb[0].mxu0
      %v4609 = vadd.f32 %v4516, %v4608
      %4610 = vmatprep.mubr.f32.mxu0 0.0
      %v4611 = vand.u32 %v3619, 4294901760
      %4612 = vmatmul.mubr.f32.gmra.mrb[0].mxu0 %v4611
      %v4613 = vpop.f32.mrb[0].mxu0
      %v4614 = vadd.f32 %v4523, %v4613
      %v4615 = vpop.f32.mrb[0].mxu0
      %v4616 = vadd.f32 %v4525, %v4615
      %4617 = vdwg.mxu0
      %v4618 = vand.u32 %v294, 4294901760
      %4619 = vmatprep.subr.mxu0 %v4618
      %v4620 = vand.u32 %v293, 4294901760
      %4621 = vmatpush1.msra.mxu0 %v4620
      %v4622 = vand.u32 %v302, 4294901760
      %4623 = vmatprep.subr.mxu0 %v4622
      %v4624 = vand.u32 %v301, 4294901760
      %4625 = vmatpush1.msra.mxu0 %v4624
      %4626 = vmatprep.subr.mxu0 0.0
      %4627 = vmatpush1.msra.mxu0 0.0
      %4628 = vmatprep.subr.mxu0 0.0
      %4629 = vmatpush1.msra.mxu0 0.0
      %4630 = vmatprep.subr.mxu0 0.0
      %4631 = vmatpush1.msra.mxu0 0.0
      %4632 = vmatprep.subr.mxu0 0.0
      %4633 = vmatpush1.msra.mxu0 0.0
      %4634 = vmatprep.subr.mxu0 0.0
      %4635 = vmatpush1.msra.mxu0 0.0
      %4636 = vmatprep.subr.mxu0 0.0
      %4637 = vmatpush1.msra.mxu0 0.0
      %4638 = vmatprep.subr.mxu0 0.0
      %4639 = vmatpush1.msra.mxu0 0.0
      %4640 = vmatprep.subr.mxu0 0.0
      %4641 = vmatpush1.msra.mxu0 0.0
      %4642 = vmatprep.subr.mxu0 0.0
      %4643 = vmatpush1.msra.mxu0 0.0
      %4644 = vmatprep.subr.mxu0 0.0
      %4645 = vmatpush1.msra.mxu0 0.0
      %4646 = vmatprep.subr.mxu0 0.0
      %4647 = vmatpush1.msra.mxu0 0.0
      %4648 = vmatprep.subr.mxu0 0.0
      %4649 = vmatpush1.msra.mxu0 0.0
      %4650 = vmatprep.subr.mxu0 0.0
      %4651 = vmatpush1.msra.mxu0 0.0
      %4652 = vmatprep.subr.mxu0 0.0
      %4653 = vmatpush1.msra.mxu0 0.0
      %4654 = vmatprep.subr.mxu0 0.0
      %4655 = vmatpush1.msra.mxu0 0.0
      %4656 = vmatprep.subr.mxu0 0.0
      %4657 = vmatpush1.msra.mxu0 0.0
      %4658 = vmatprep.subr.mxu0 0.0
      %4659 = vmatpush1.msra.mxu0 0.0
      %4660 = vmatprep.subr.mxu0 0.0
      %4661 = vmatpush1.msra.mxu0 0.0
      %4662 = vmatprep.subr.mxu0 0.0
      %4663 = vmatpush1.msra.mxu0 0.0
      %4664 = vmatprep.subr.mxu0 0.0
      %4665 = vmatpush1.msra.mxu0 0.0
      %4666 = vmatprep.subr.mxu0 0.0
      %4667 = vmatpush1.msra.mxu0 0.0
      %4668 = vmatprep.subr.mxu0 0.0
      %4669 = vmatpush1.msra.mxu0 0.0
      %4670 = vmatprep.subr.mxu0 0.0
      %4671 = vmatpush1.msra.mxu0 0.0
      %4672 = vmatprep.subr.mxu0 0.0
      %4673 = vmatpush1.msra.mxu0 0.0
      %4674 = vmatprep.subr.mxu0 0.0
      %4675 = vmatpush1.msra.mxu0 0.0
      %4676 = vmatprep.subr.mxu0 0.0
      %4677 = vmatpush1.msra.mxu0 0.0
      %4678 = vmatprep.subr.mxu0 0.0
      %4679 = vmatpush1.msra.mxu0 0.0
      %4680 = vmatprep.subr.mxu0 0.0
      %4681 = vmatpush1.msra.mxu0 0.0
      %4682 = vmatprep.subr.mxu0 0.0
      %4683 = vmatpush1.msra.mxu0 0.0
      %4684 = vmatprep.subr.mxu0 0.0
      %4685 = vmatpush1.msra.mxu0 0.0
      %4686 = vmatprep.mubr.f32.mxu0 0.0
      %v4687 = vand.u32 %v3616, 4294901760
      %4688 = vmatmul.mubr.f32.gmra.mrb[0].mxu0 %v4687
      %v4689 = vpop.f32.mrb[0].mxu0
      %v4690 = vadd.f32 %v4607, %v4689
      %v4691 = vpop.f32.mrb[0].mxu0
      %v4692 = vadd.f32 %v4609, %v4691
      %4693 = vmatprep.mubr.f32.mxu0 0.0
      %v4694 = vand.u32 %v3619, 4294901760
      %4695 = vmatmul.mubr.f32.gmra.mrb[0].mxu0 %v4694
      %v4696 = vpop.f32.mrb[0].mxu0
      %v4697 = vadd.f32 %v4614, %v4696
      %v4698 = vpop.f32.mrb[0].mxu0
      %v4699 = vadd.f32 %v4616, %v4698
      %4700 = vdwg.mxu0
      %v4701 = vand.u32 %v296, 4294901760
      %4702 = vmatprep.subr.mxu0 %v4701
      %v4703 = vand.u32 %v295, 4294901760
      %4704 = vmatpush1.msra.mxu0 %v4703
      %v4705 = vand.u32 %v304, 4294901760
      %4706 = vmatprep.subr.mxu0 %v4705
      %v4707 = vand.u32 %v303, 4294901760
      %4708 = vmatpush1.msra.mxu0 %v4707
      %4709 = vmatprep.subr.mxu0 0.0
      %4710 = vmatpush1.msra.mxu0 0.0
      %4711 = vmatprep.subr.mxu0 0.0
      %4712 = vmatpush1.msra.mxu0 0.0
      %4713 = vmatprep.subr.mxu0 0.0
      %4714 = vmatpush1.msra.mxu0 0.0
      %4715 = vmatprep.subr.mxu0 0.0
      %4716 = vmatpush1.msra.mxu0 0.0
      %4717 = vmatprep.subr.mxu0 0.0
      %4718 = vmatpush1.msra.mxu0 0.0
      %4719 = vmatprep.subr.mxu0 0.0
      %4720 = vmatpush1.msra.mxu0 0.0
      %4721 = vmatprep.subr.mxu0 0.0
      %4722 = vmatpush1.msra.mxu0 0.0
      %4723 = vmatprep.subr.mxu0 0.0
      %4724 = vmatpush1.msra.mxu0 0.0
      %4725 = vmatprep.subr.mxu0 0.0
      %4726 = vmatpush1.msra.mxu0 0.0
      %4727 = vmatprep.subr.mxu0 0.0
      %4728 = vmatpush1.msra.mxu0 0.0
      %4729 = vmatprep.subr.mxu0 0.0
      %4730 = vmatpush1.msra.mxu0 0.0
      %4731 = vmatprep.subr.mxu0 0.0
      %4732 = vmatpush1.msra.mxu0 0.0
      %4733 = vmatprep.subr.mxu0 0.0
      %4734 = vmatpush1.msra.mxu0 0.0
      %4735 = vmatprep.subr.mxu0 0.0
      %4736 = vmatpush1.msra.mxu0 0.0
      %4737 = vmatprep.subr.mxu0 0.0
      %4738 = vmatpush1.msra.mxu0 0.0
      %4739 = vmatprep.subr.mxu0 0.0
      %4740 = vmatpush1.msra.mxu0 0.0
      %4741 = vmatprep.subr.mxu0 0.0
      %4742 = vmatpush1.msra.mxu0 0.0
      %4743 = vmatprep.subr.mxu0 0.0
      %4744 = vmatpush1.msra.mxu0 0.0
      %4745 = vmatprep.subr.mxu0 0.0
      %4746 = vmatpush1.msra.mxu0 0.0
      %4747 = vmatprep.subr.mxu0 0.0
      %4748 = vmatpush1.msra.mxu0 0.0
      %4749 = vmatprep.subr.mxu0 0.0
      %4750 = vmatpush1.msra.mxu0 0.0
      %4751 = vmatprep.subr.mxu0 0.0
      %4752 = vmatpush1.msra.mxu0 0.0
      %4753 = vmatprep.subr.mxu0 0.0
      %4754 = vmatpush1.msra.mxu0 0.0
      %4755 = vmatprep.subr.mxu0 0.0
      %4756 = vmatpush1.msra.mxu0 0.0
      %4757 = vmatprep.subr.mxu0 0.0
      %4758 = vmatpush1.msra.mxu0 0.0
      %4759 = vmatprep.subr.mxu0 0.0
      %4760 = vmatpush1.msra.mxu0 0.0
      %4761 = vmatprep.subr.mxu0 0.0
      %4762 = vmatpush1.msra.mxu0 0.0
      %4763 = vmatprep.subr.mxu0 0.0
      %4764 = vmatpush1.msra.mxu0 0.0
      %4765 = vmatprep.subr.mxu0 0.0
      %4766 = vmatpush1.msra.mxu0 0.0
      %4767 = vmatprep.subr.mxu0 0.0
      %4768 = vmatpush1.msra.mxu0 0.0
      %4769 = vmatprep.mubr.f32.mxu0 0.0
      %v4770 = vand.u32 %v3616, 4294901760
      %v4771 = vsub.f32 %v3616, %v4770
      %v4772 = vand.u32 %v4771, 4294901760
      %v4773 = vsub.f32 %v4771, %v4772
      %v4774 = vand.u32 %v4773, 4294901760
      %4775 = vmatmul.mubr.f32.gmra.mrb[0].mxu0 %v4774
      %v4776 = vpop.f32.mrb[0].mxu0
      %v4777 = vadd.f32 %v2803, %v4776
      %v4778 = vpop.f32.mrb[0].mxu0
      %v4779 = vadd.f32 %v2805, %v4778
      %4780 = vmatprep.mubr.f32.mxu0 0.0
      %v4781 = vand.u32 %v3619, 4294901760
      %v4782 = vsub.f32 %v3619, %v4781
      %v4783 = vand.u32 %v4782, 4294901760
      %v4784 = vsub.f32 %v4782, %v4783
      %v4785 = vand.u32 %v4784, 4294901760
      %4786 = vmatmul.mubr.f32.gmra.mrb[0].mxu0 %v4785
      %v4787 = vpop.f32.mrb[0].mxu0
      %v4788 = vadd.f32 %v2810, %v4787
      %v4789 = vpop.f32.mrb[0].mxu0
      %v4790 = vadd.f32 %v2812, %v4789
      %4791 = vdwg.mxu0
      %v4792 = vand.u32 %v296, 4294901760
      %v4793 = vsub.f32 %v296, %v4792
      %v4794 = vand.u32 %v4793, 4294901760
      %v4795 = vsub.f32 %v4793, %v4794
      %v4796 = vand.u32 %v4795, 4294901760
      %4797 = vmatprep.subr.mxu0 %v4796
      %v4798 = vand.u32 %v295, 4294901760
      %v4799 = vsub.f32 %v295, %v4798
      %v4800 = vand.u32 %v4799, 4294901760
      %v4801 = vsub.f32 %v4799, %v4800
      %v4802 = vand.u32 %v4801, 4294901760
      %4803 = vmatpush1.msra.mxu0 %v4802
      %v4804 = vand.u32 %v304, 4294901760
      %v4805 = vsub.f32 %v304, %v4804
      %v4806 = vand.u32 %v4805, 4294901760
      %v4807 = vsub.f32 %v4805, %v4806
      %v4808 = vand.u32 %v4807, 4294901760
      %4809 = vmatprep.subr.mxu0 %v4808
      %v4810 = vand.u32 %v303, 4294901760
      %v4811 = vsub.f32 %v303, %v4810
      %v4812 = vand.u32 %v4811, 4294901760
      %v4813 = vsub.f32 %v4811, %v4812
      %v4814 = vand.u32 %v4813, 4294901760
      %4815 = vmatpush1.msra.mxu0 %v4814
      %4816 = vmatprep.subr.mxu0 0.0
      %4817 = vmatpush1.msra.mxu0 0.0
      %4818 = vmatprep.subr.mxu0 0.0
      %4819 = vmatpush1.msra.mxu0 0.0
      %4820 = vmatprep.subr.mxu0 0.0
      %4821 = vmatpush1.msra.mxu0 0.0
      %4822 = vmatprep.subr.mxu0 0.0
      %4823 = vmatpush1.msra.mxu0 0.0
      %4824 = vmatprep.subr.mxu0 0.0
      %4825 = vmatpush1.msra.mxu0 0.0
      %4826 = vmatprep.subr.mxu0 0.0
      %4827 = vmatpush1.msra.mxu0 0.0
      %4828 = vmatprep.subr.mxu0 0.0
      %4829 = vmatpush1.msra.mxu0 0.0
      %4830 = vmatprep.subr.mxu0 0.0
      %4831 = vmatpush1.msra.mxu0 0.0
      %4832 = vmatprep.subr.mxu0 0.0
      %4833 = vmatpush1.msra.mxu0 0.0
      %4834 = vmatprep.subr.mxu0 0.0
      %4835 = vmatpush1.msra.mxu0 0.0
      %4836 = vmatprep.subr.mxu0 0.0
      %4837 = vmatpush1.msra.mxu0 0.0
      %4838 = vmatprep.subr.mxu0 0.0
      %4839 = vmatpush1.msra.mxu0 0.0
      %4840 = vmatprep.subr.mxu0 0.0
      %4841 = vmatpush1.msra.mxu0 0.0
      %4842 = vmatprep.subr.mxu0 0.0
      %4843 = vmatpush1.msra.mxu0 0.0
      %4844 = vmatprep.subr.mxu0 0.0
      %4845 = vmatpush1.msra.mxu0 0.0
      %4846 = vmatprep.subr.mxu0 0.0
      %4847 = vmatpush1.msra.mxu0 0.0
      %4848 = vmatprep.subr.mxu0 0.0
      %4849 = vmatpush1.msra.mxu0 0.0
      %4850 = vmatprep.subr.mxu0 0.0
      %4851 = vmatpush1.msra.mxu0 0.0
      %4852 = vmatprep.subr.mxu0 0.0
      %4853 = vmatpush1.msra.mxu0 0.0
      %4854 = vmatprep.subr.mxu0 0.0
      %4855 = vmatpush1.msra.mxu0 0.0
      %4856 = vmatprep.subr.mxu0 0.0
      %4857 = vmatpush1.msra.mxu0 0.0
      %4858 = vmatprep.subr.mxu0 0.0
      %4859 = vmatpush1.msra.mxu0 0.0
      %4860 = vmatprep.subr.mxu0 0.0
      %4861 = vmatpush1.msra.mxu0 0.0
      %4862 = vmatprep.subr.mxu0 0.0
      %4863 = vmatpush1.msra.mxu0 0.0
      %4864 = vmatprep.subr.mxu0 0.0
      %4865 = vmatpush1.msra.mxu0 0.0
      %4866 = vmatprep.subr.mxu0 0.0
      %4867 = vmatpush1.msra.mxu0 0.0
      %4868 = vmatprep.subr.mxu0 0.0
      %4869 = vmatpush1.msra.mxu0 0.0
      %4870 = vmatprep.subr.mxu0 0.0
      %4871 = vmatpush1.msra.mxu0 0.0
      %4872 = vmatprep.subr.mxu0 0.0
      %4873 = vmatpush1.msra.mxu0 0.0
      %4874 = vmatprep.subr.mxu0 0.0
      %4875 = vmatpush1.msra.mxu0 0.0
      %4876 = vmatprep.mubr.f32.mxu0 0.0
      %v4877 = vand.u32 %v3616, 4294901760
      %4878 = vmatmul.mubr.f32.gmra.mrb[0].mxu0 %v4877
      %v4879 = vpop.f32.mrb[0].mxu0
      %v4880 = vadd.f32 %v4777, %v4879
      %v4881 = vpop.f32.mrb[0].mxu0
      %v4882 = vadd.f32 %v4779, %v4881
      %4883 = vmatprep.mubr.f32.mxu0 0.0
      %v4884 = vand.u32 %v3619, 4294901760
      %4885 = vmatmul.mubr.f32.gmra.mrb[0].mxu0 %v4884
      %v4886 = vpop.f32.mrb[0].mxu0
      %v4887 = vadd.f32 %v4788, %v4886
      %v4888 = vpop.f32.mrb[0].mxu0
      %v4889 = vadd.f32 %v4790, %v4888
      %4890 = vdwg.mxu0
      %v4891 = vand.u32 %v296, 4294901760
      %v4892 = vsub.f32 %v296, %v4891
      %4893 = vmatprep.subr.mxu0 %v4892
      %v4894 = vand.u32 %v295, 4294901760
      %v4895 = vsub.f32 %v295, %v4894
      %4896 = vmatpush1.msra.mxu0 %v4895
      %v4897 = vand.u32 %v304, 4294901760
      %v4898 = vsub.f32 %v304, %v4897
      %4899 = vmatprep.subr.mxu0 %v4898
      %v4900 = vand.u32 %v303, 4294901760
      %v4901 = vsub.f32 %v303, %v4900
      %4902 = vmatpush1.msra.mxu0 %v4901
      %4903 = vmatprep.subr.mxu0 0.0
      %4904 = vmatpush1.msra.mxu0 0.0
      %4905 = vmatprep.subr.mxu0 0.0
      %4906 = vmatpush1.msra.mxu0 0.0
      %4907 = vmatprep.subr.mxu0 0.0
      %4908 = vmatpush1.msra.mxu0 0.0
      %4909 = vmatprep.subr.mxu0 0.0
      %4910 = vmatpush1.msra.mxu0 0.0
      %4911 = vmatprep.subr.mxu0 0.0
      %4912 = vmatpush1.msra.mxu0 0.0
      %4913 = vmatprep.subr.mxu0 0.0
      %4914 = vmatpush1.msra.mxu0 0.0
      %4915 = vmatprep.subr.mxu0 0.0
      %4916 = vmatpush1.msra.mxu0 0.0
      %4917 = vmatprep.subr.mxu0 0.0
      %4918 = vmatpush1.msra.mxu0 0.0
      %4919 = vmatprep.subr.mxu0 0.0
      %4920 = vmatpush1.msra.mxu0 0.0
      %4921 = vmatprep.subr.mxu0 0.0
      %4922 = vmatpush1.msra.mxu0 0.0
      %4923 = vmatprep.subr.mxu0 0.0
      %4924 = vmatpush1.msra.mxu0 0.0
      %4925 = vmatprep.subr.mxu0 0.0
      %4926 = vmatpush1.msra.mxu0 0.0
      %4927 = vmatprep.subr.mxu0 0.0
      %4928 = vmatpush1.msra.mxu0 0.0
      %4929 = vmatprep.subr.mxu0 0.0
      %4930 = vmatpush1.msra.mxu0 0.0
      %4931 = vmatprep.subr.mxu0 0.0
      %4932 = vmatpush1.msra.mxu0 0.0
      %4933 = vmatprep.subr.mxu0 0.0
      %4934 = vmatpush1.msra.mxu0 0.0
      %4935 = vmatprep.subr.mxu0 0.0
      %4936 = vmatpush1.msra.mxu0 0.0
      %4937 = vmatprep.subr.mxu0 0.0
      %4938 = vmatpush1.msra.mxu0 0.0
      %4939 = vmatprep.subr.mxu0 0.0
      %4940 = vmatpush1.msra.mxu0 0.0
      %4941 = vmatprep.subr.mxu0 0.0
      %4942 = vmatpush1.msra.mxu0 0.0
      %4943 = vmatprep.subr.mxu0 0.0
      %4944 = vmatpush1.msra.mxu0 0.0
      %4945 = vmatprep.subr.mxu0 0.0
      %4946 = vmatpush1.msra.mxu0 0.0
      %4947 = vmatprep.subr.mxu0 0.0
      %4948 = vmatpush1.msra.mxu0 0.0
      %4949 = vmatprep.subr.mxu0 0.0
      %4950 = vmatpush1.msra.mxu0 0.0
      %4951 = vmatprep.subr.mxu0 0.0
      %4952 = vmatpush1.msra.mxu0 0.0
      %4953 = vmatprep.subr.mxu0 0.0
      %4954 = vmatpush1.msra.mxu0 0.0
      %4955 = vmatprep.subr.mxu0 0.0
      %4956 = vmatpush1.msra.mxu0 0.0
      %4957 = vmatprep.subr.mxu0 0.0
      %4958 = vmatpush1.msra.mxu0 0.0
      %4959 = vmatprep.subr.mxu0 0.0
      %4960 = vmatpush1.msra.mxu0 0.0
      %4961 = vmatprep.subr.mxu0 0.0
      %4962 = vmatpush1.msra.mxu0 0.0
      %4963 = vmatprep.mubr.f32.mxu0 0.0
      %v4964 = vand.u32 %v3616, 4294901760
      %v4965 = vsub.f32 %v3616, %v4964
      %4966 = vmatmul.mubr.f32.gmra.mrb[0].mxu0 %v4965
      %v4967 = vpop.f32.mrb[0].mxu0
      %v4968 = vadd.f32 %v4880, %v4967
      %v4969 = vpop.f32.mrb[0].mxu0
      %v4970 = vadd.f32 %v4882, %v4969
      %4971 = vmatprep.mubr.f32.mxu0 0.0
      %v4972 = vand.u32 %v3619, 4294901760
      %v4973 = vsub.f32 %v3619, %v4972
      %4974 = vmatmul.mubr.f32.gmra.mrb[0].mxu0 %v4973
      %v4975 = vpop.f32.mrb[0].mxu0
      %v4976 = vadd.f32 %v4887, %v4975
      %v4977 = vpop.f32.mrb[0].mxu0
      %v4978 = vadd.f32 %v4889, %v4977
      %4979 = vdwg.mxu0
      %v4980 = vand.u32 %v296, 4294901760
      %4981 = vmatprep.subr.mxu0 %v4980
      %v4982 = vand.u32 %v295, 4294901760
      %4983 = vmatpush1.msra.mxu0 %v4982
      %v4984 = vand.u32 %v304, 4294901760
      %4985 = vmatprep.subr.mxu0 %v4984
      %v4986 = vand.u32 %v303, 4294901760
      %4987 = vmatpush1.msra.mxu0 %v4986
      %4988 = vmatprep.subr.mxu0 0.0
      %4989 = vmatpush1.msra.mxu0 0.0
      %4990 = vmatprep.subr.mxu0 0.0
      %4991 = vmatpush1.msra.mxu0 0.0
      %4992 = vmatprep.subr.mxu0 0.0
      %4993 = vmatpush1.msra.mxu0 0.0
      %4994 = vmatprep.subr.mxu0 0.0
      %4995 = vmatpush1.msra.mxu0 0.0
      %4996 = vmatprep.subr.mxu0 0.0
      %4997 = vmatpush1.msra.mxu0 0.0
      %4998 = vmatprep.subr.mxu0 0.0
      %4999 = vmatpush1.msra.mxu0 0.0
      %5000 = vmatprep.subr.mxu0 0.0
      %5001 = vmatpush1.msra.mxu0 0.0
      %5002 = vmatprep.subr.mxu0 0.0
      %5003 = vmatpush1.msra.mxu0 0.0
      %5004 = vmatprep.subr.mxu0 0.0
      %5005 = vmatpush1.msra.mxu0 0.0
      %5006 = vmatprep.subr.mxu0 0.0
      %5007 = vmatpush1.msra.mxu0 0.0
      %5008 = vmatprep.subr.mxu0 0.0
      %5009 = vmatpush1.msra.mxu0 0.0
      %5010 = vmatprep.subr.mxu0 0.0
      %5011 = vmatpush1.msra.mxu0 0.0
      %5012 = vmatprep.subr.mxu0 0.0
      %5013 = vmatpush1.msra.mxu0 0.0
      %5014 = vmatprep.subr.mxu0 0.0
      %5015 = vmatpush1.msra.mxu0 0.0
      %5016 = vmatprep.subr.mxu0 0.0
      %5017 = vmatpush1.msra.mxu0 0.0
      %5018 = vmatprep.subr.mxu0 0.0
      %5019 = vmatpush1.msra.mxu0 0.0
      %5020 = vmatprep.subr.mxu0 0.0
      %5021 = vmatpush1.msra.mxu0 0.0
      %5022 = vmatprep.subr.mxu0 0.0
      %5023 = vmatpush1.msra.mxu0 0.0
      %5024 = vmatprep.subr.mxu0 0.0
      %5025 = vmatpush1.msra.mxu0 0.0
      %5026 = vmatprep.subr.mxu0 0.0
      %5027 = vmatpush1.msra.mxu0 0.0
      %5028 = vmatprep.subr.mxu0 0.0
      %5029 = vmatpush1.msra.mxu0 0.0
      %5030 = vmatprep.subr.mxu0 0.0
      %5031 = vmatpush1.msra.mxu0 0.0
      %5032 = vmatprep.subr.mxu0 0.0
      %5033 = vmatpush1.msra.mxu0 0.0
      %5034 = vmatprep.subr.mxu0 0.0
      %5035 = vmatpush1.msra.mxu0 0.0
      %5036 = vmatprep.subr.mxu0 0.0
      %5037 = vmatpush1.msra.mxu0 0.0
      %5038 = vmatprep.subr.mxu0 0.0
      %5039 = vmatpush1.msra.mxu0 0.0
      %5040 = vmatprep.subr.mxu0 0.0
      %5041 = vmatpush1.msra.mxu0 0.0
      %5042 = vmatprep.subr.mxu0 0.0
      %5043 = vmatpush1.msra.mxu0 0.0
      %5044 = vmatprep.subr.mxu0 0.0
      %5045 = vmatpush1.msra.mxu0 0.0
      %5046 = vmatprep.subr.mxu0 0.0
      %5047 = vmatpush1.msra.mxu0 0.0
      %5048 = vmatprep.mubr.f32.mxu0 0.0
      %v5049 = vand.u32 %v3616, 4294901760
      %v5050 = vsub.f32 %v3616, %v5049
      %v5051 = vand.u32 %v5050, 4294901760
      %5052 = vmatmul.mubr.f32.gmra.mrb[0].mxu0 %v5051
      %v5053 = vpop.f32.mrb[0].mxu0
      %v5054 = vadd.f32 %v4968, %v5053
      %v5055 = vpop.f32.mrb[0].mxu0
      %v5056 = vadd.f32 %v4970, %v5055
      %5057 = vmatprep.mubr.f32.mxu0 0.0
      %v5058 = vand.u32 %v3619, 4294901760
      %v5059 = vsub.f32 %v3619, %v5058
      %v5060 = vand.u32 %v5059, 4294901760
      %5061 = vmatmul.mubr.f32.gmra.mrb[0].mxu0 %v5060
      %v5062 = vpop.f32.mrb[0].mxu0
      %v5063 = vadd.f32 %v4976, %v5062
      %v5064 = vpop.f32.mrb[0].mxu0
      %v5065 = vadd.f32 %v4978, %v5064
      %5066 = vdwg.mxu0
      %v5067 = vand.u32 %v296, 4294901760
      %v5068 = vsub.f32 %v296, %v5067
      %v5069 = vand.u32 %v5068, 4294901760
      %5070 = vmatprep.subr.mxu0 %v5069
      %v5071 = vand.u32 %v295, 4294901760
      %v5072 = vsub.f32 %v295, %v5071
      %v5073 = vand.u32 %v5072, 4294901760
      %5074 = vmatpush1.msra.mxu0 %v5073
      %v5075 = vand.u32 %v304, 4294901760
      %v5076 = vsub.f32 %v304, %v5075
      %v5077 = vand.u32 %v5076, 4294901760
      %5078 = vmatprep.subr.mxu0 %v5077
      %v5079 = vand.u32 %v303, 4294901760
      %v5080 = vsub.f32 %v303, %v5079
      %v5081 = vand.u32 %v5080, 4294901760
      %5082 = vmatpush1.msra.mxu0 %v5081
      %5083 = vmatprep.subr.mxu0 0.0
      %5084 = vmatpush1.msra.mxu0 0.0
      %5085 = vmatprep.subr.mxu0 0.0
      %5086 = vmatpush1.msra.mxu0 0.0
      %5087 = vmatprep.subr.mxu0 0.0
      %5088 = vmatpush1.msra.mxu0 0.0
      %5089 = vmatprep.subr.mxu0 0.0
      %5090 = vmatpush1.msra.mxu0 0.0
      %5091 = vmatprep.subr.mxu0 0.0
      %5092 = vmatpush1.msra.mxu0 0.0
      %5093 = vmatprep.subr.mxu0 0.0
      %5094 = vmatpush1.msra.mxu0 0.0
      %5095 = vmatprep.subr.mxu0 0.0
      %5096 = vmatpush1.msra.mxu0 0.0
      %5097 = vmatprep.subr.mxu0 0.0
      %5098 = vmatpush1.msra.mxu0 0.0
      %5099 = vmatprep.subr.mxu0 0.0
      %5100 = vmatpush1.msra.mxu0 0.0
      %5101 = vmatprep.subr.mxu0 0.0
      %5102 = vmatpush1.msra.mxu0 0.0
      %5103 = vmatprep.subr.mxu0 0.0
      %5104 = vmatpush1.msra.mxu0 0.0
      %5105 = vmatprep.subr.mxu0 0.0
      %5106 = vmatpush1.msra.mxu0 0.0
      %5107 = vmatprep.subr.mxu0 0.0
      %5108 = vmatpush1.msra.mxu0 0.0
      %5109 = vmatprep.subr.mxu0 0.0
      %5110 = vmatpush1.msra.mxu0 0.0
      %5111 = vmatprep.subr.mxu0 0.0
      %5112 = vmatpush1.msra.mxu0 0.0
      %5113 = vmatprep.subr.mxu0 0.0
      %5114 = vmatpush1.msra.mxu0 0.0
      %5115 = vmatprep.subr.mxu0 0.0
      %5116 = vmatpush1.msra.mxu0 0.0
      %5117 = vmatprep.subr.mxu0 0.0
      %5118 = vmatpush1.msra.mxu0 0.0
      %5119 = vmatprep.subr.mxu0 0.0
      %5120 = vmatpush1.msra.mxu0 0.0
      %5121 = vmatprep.subr.mxu0 0.0
      %5122 = vmatpush1.msra.mxu0 0.0
      %5123 = vmatprep.subr.mxu0 0.0
      %5124 = vmatpush1.msra.mxu0 0.0
      %5125 = vmatprep.subr.mxu0 0.0
      %5126 = vmatpush1.msra.mxu0 0.0
      %5127 = vmatprep.subr.mxu0 0.0
      %5128 = vmatpush1.msra.mxu0 0.0
      %5129 = vmatprep.subr.mxu0 0.0
      %5130 = vmatpush1.msra.mxu0 0.0
      %5131 = vmatprep.subr.mxu0 0.0
      %5132 = vmatpush1.msra.mxu0 0.0
      %5133 = vmatprep.subr.mxu0 0.0
      %5134 = vmatpush1.msra.mxu0 0.0
      %5135 = vmatprep.subr.mxu0 0.0
      %5136 = vmatpush1.msra.mxu0 0.0
      %5137 = vmatprep.subr.mxu0 0.0
      %5138 = vmatpush1.msra.mxu0 0.0
      %5139 = vmatprep.subr.mxu0 0.0
      %5140 = vmatpush1.msra.mxu0 0.0
      %5141 = vmatprep.subr.mxu0 0.0
      %5142 = vmatpush1.msra.mxu0 0.0
      %5143 = vmatprep.mubr.f32.mxu0 0.0
      %v5144 = vand.u32 %v3616, 4294901760
      %5145 = vmatmul.mubr.f32.gmra.mrb[0].mxu0 %v5144
      %v5146 = vpop.f32.mrb[0].mxu0
      %v5147 = vadd.f32 %v5054, %v5146
      %v5148 = vpop.f32.mrb[0].mxu0
      %v5149 = vadd.f32 %v5056, %v5148
      %5150 = vmatprep.mubr.f32.mxu0 0.0
      %v5151 = vand.u32 %v3619, 4294901760
      %5152 = vmatmul.mubr.f32.gmra.mrb[0].mxu0 %v5151
      %v5153 = vpop.f32.mrb[0].mxu0
      %v5154 = vadd.f32 %v5063, %v5153
      %v5155 = vpop.f32.mrb[0].mxu0
      %v5156 = vadd.f32 %v5065, %v5155
      %5157 = vdwg.mxu0
      %v5158 = vand.u32 %v296, 4294901760
      %5159 = vmatprep.subr.mxu0 %v5158
      %v5160 = vand.u32 %v295, 4294901760
      %5161 = vmatpush1.msra.mxu0 %v5160
      %v5162 = vand.u32 %v304, 4294901760
      %5163 = vmatprep.subr.mxu0 %v5162
      %v5164 = vand.u32 %v303, 4294901760
      %5165 = vmatpush1.msra.mxu0 %v5164
      %5166 = vmatprep.subr.mxu0 0.0
      %5167 = vmatpush1.msra.mxu0 0.0
      %5168 = vmatprep.subr.mxu0 0.0
      %5169 = vmatpush1.msra.mxu0 0.0
      %5170 = vmatprep.subr.mxu0 0.0
      %5171 = vmatpush1.msra.mxu0 0.0
      %5172 = vmatprep.subr.mxu0 0.0
      %5173 = vmatpush1.msra.mxu0 0.0
      %5174 = vmatprep.subr.mxu0 0.0
      %5175 = vmatpush1.msra.mxu0 0.0
      %5176 = vmatprep.subr.mxu0 0.0
      %5177 = vmatpush1.msra.mxu0 0.0
      %5178 = vmatprep.subr.mxu0 0.0
      %5179 = vmatpush1.msra.mxu0 0.0
      %5180 = vmatprep.subr.mxu0 0.0
      %5181 = vmatpush1.msra.mxu0 0.0
      %5182 = vmatprep.subr.mxu0 0.0
      %5183 = vmatpush1.msra.mxu0 0.0
      %5184 = vmatprep.subr.mxu0 0.0
      %5185 = vmatpush1.msra.mxu0 0.0
      %5186 = vmatprep.subr.mxu0 0.0
      %5187 = vmatpush1.msra.mxu0 0.0
      %5188 = vmatprep.subr.mxu0 0.0
      %5189 = vmatpush1.msra.mxu0 0.0
      %5190 = vmatprep.subr.mxu0 0.0
      %5191 = vmatpush1.msra.mxu0 0.0
      %5192 = vmatprep.subr.mxu0 0.0
      %5193 = vmatpush1.msra.mxu0 0.0
      %5194 = vmatprep.subr.mxu0 0.0
      %5195 = vmatpush1.msra.mxu0 0.0
      %5196 = vmatprep.subr.mxu0 0.0
      %5197 = vmatpush1.msra.mxu0 0.0
      %5198 = vmatprep.subr.mxu0 0.0
      %5199 = vmatpush1.msra.mxu0 0.0
      %5200 = vmatprep.subr.mxu0 0.0
      %5201 = vmatpush1.msra.mxu0 0.0
      %5202 = vmatprep.subr.mxu0 0.0
      %5203 = vmatpush1.msra.mxu0 0.0
      %5204 = vmatprep.subr.mxu0 0.0
      %5205 = vmatpush1.msra.mxu0 0.0
      %5206 = vmatprep.subr.mxu0 0.0
      %5207 = vmatpush1.msra.mxu0 0.0
      %5208 = vmatprep.subr.mxu0 0.0
      %5209 = vmatpush1.msra.mxu0 0.0
      %5210 = vmatprep.subr.mxu0 0.0
      %5211 = vmatpush1.msra.mxu0 0.0
      %5212 = vmatprep.subr.mxu0 0.0
      %5213 = vmatpush1.msra.mxu0 0.0
      %5214 = vmatprep.subr.mxu0 0.0
      %5215 = vmatpush1.msra.mxu0 0.0
      %5216 = vmatprep.subr.mxu0 0.0
      %5217 = vmatpush1.msra.mxu0 0.0
      %5218 = vmatprep.subr.mxu0 0.0
      %5219 = vmatpush1.msra.mxu0 0.0
      %5220 = vmatprep.subr.mxu0 0.0
      %5221 = vmatpush1.msra.mxu0 0.0
      %5222 = vmatprep.subr.mxu0 0.0
      %5223 = vmatpush1.msra.mxu0 0.0
      %5224 = vmatprep.subr.mxu0 0.0
      %5225 = vmatpush1.msra.mxu0 0.0
      %5226 = vmatprep.mubr.f32.mxu0 0.0
      %v5227 = vand.u32 %v3616, 4294901760
      %5228 = vmatmul.mubr.f32.gmra.mrb[0].mxu0 %v5227
      %v5229 = vpop.f32.mrb[0].mxu0
      %v5230 = vadd.f32 %v5147, %v5229
      %v5231 = vpop.f32.mrb[0].mxu0
      %v5232 = vadd.f32 %v5149, %v5231
      %5233 = vmatprep.mubr.f32.mxu0 0.0
      %v5234 = vand.u32 %v3619, 4294901760
      %5235 = vmatmul.mubr.f32.gmra.mrb[0].mxu0 %v5234
      %v5236 = vpop.f32.mrb[0].mxu0
      %v5237 = vadd.f32 %v5154, %v5236
      %v5238 = vpop.f32.mrb[0].mxu0
      %v5239 = vadd.f32 %v5156, %v5238
      %5240 = vdwg.mxu0
      %v5241 = vand.u32 %v298, 4294901760
      %5242 = vmatprep.subr.mxu0 %v5241
      %v5243 = vand.u32 %v297, 4294901760
      %5244 = vmatpush1.msra.mxu0 %v5243
      %v5245 = vand.u32 %v306, 4294901760
      %5246 = vmatprep.subr.mxu0 %v5245
      %v5247 = vand.u32 %v305, 4294901760
      %5248 = vmatpush1.msra.mxu0 %v5247
      %5249 = vmatprep.subr.mxu0 0.0
      %5250 = vmatpush1.msra.mxu0 0.0
      %5251 = vmatprep.subr.mxu0 0.0
      %5252 = vmatpush1.msra.mxu0 0.0
      %5253 = vmatprep.subr.mxu0 0.0
      %5254 = vmatpush1.msra.mxu0 0.0
      %5255 = vmatprep.subr.mxu0 0.0
      %5256 = vmatpush1.msra.mxu0 0.0
      %5257 = vmatprep.subr.mxu0 0.0
      %5258 = vmatpush1.msra.mxu0 0.0
      %5259 = vmatprep.subr.mxu0 0.0
      %5260 = vmatpush1.msra.mxu0 0.0
      %5261 = vmatprep.subr.mxu0 0.0
      %5262 = vmatpush1.msra.mxu0 0.0
      %5263 = vmatprep.subr.mxu0 0.0
      %5264 = vmatpush1.msra.mxu0 0.0
      %5265 = vmatprep.subr.mxu0 0.0
      %5266 = vmatpush1.msra.mxu0 0.0
      %5267 = vmatprep.subr.mxu0 0.0
      %5268 = vmatpush1.msra.mxu0 0.0
      %5269 = vmatprep.subr.mxu0 0.0
      %5270 = vmatpush1.msra.mxu0 0.0
      %5271 = vmatprep.subr.mxu0 0.0
      %5272 = vmatpush1.msra.mxu0 0.0
      %5273 = vmatprep.subr.mxu0 0.0
      %5274 = vmatpush1.msra.mxu0 0.0
      %5275 = vmatprep.subr.mxu0 0.0
      %5276 = vmatpush1.msra.mxu0 0.0
      %5277 = vmatprep.subr.mxu0 0.0
      %5278 = vmatpush1.msra.mxu0 0.0
      %5279 = vmatprep.subr.mxu0 0.0
      %5280 = vmatpush1.msra.mxu0 0.0
      %5281 = vmatprep.subr.mxu0 0.0
      %5282 = vmatpush1.msra.mxu0 0.0
      %5283 = vmatprep.subr.mxu0 0.0
      %5284 = vmatpush1.msra.mxu0 0.0
      %5285 = vmatprep.subr.mxu0 0.0
      %5286 = vmatpush1.msra.mxu0 0.0
      %5287 = vmatprep.subr.mxu0 0.0
      %5288 = vmatpush1.msra.mxu0 0.0
      %5289 = vmatprep.subr.mxu0 0.0
      %5290 = vmatpush1.msra.mxu0 0.0
      %5291 = vmatprep.subr.mxu0 0.0
      %5292 = vmatpush1.msra.mxu0 0.0
      %5293 = vmatprep.subr.mxu0 0.0
      %5294 = vmatpush1.msra.mxu0 0.0
      %5295 = vmatprep.subr.mxu0 0.0
      %5296 = vmatpush1.msra.mxu0 0.0
      %5297 = vmatprep.subr.mxu0 0.0
      %5298 = vmatpush1.msra.mxu0 0.0
      %5299 = vmatprep.subr.mxu0 0.0
      %5300 = vmatpush1.msra.mxu0 0.0
      %5301 = vmatprep.subr.mxu0 0.0
      %5302 = vmatpush1.msra.mxu0 0.0
      %5303 = vmatprep.subr.mxu0 0.0
      %5304 = vmatpush1.msra.mxu0 0.0
      %5305 = vmatprep.subr.mxu0 0.0
      %5306 = vmatpush1.msra.mxu0 0.0
      %5307 = vmatprep.subr.mxu0 0.0
      %5308 = vmatpush1.msra.mxu0 0.0
      %5309 = vmatprep.mubr.f32.mxu0 0.0
      %v5310 = vand.u32 %v3616, 4294901760
      %v5311 = vsub.f32 %v3616, %v5310
      %v5312 = vand.u32 %v5311, 4294901760
      %v5313 = vsub.f32 %v5311, %v5312
      %v5314 = vand.u32 %v5313, 4294901760
      %5315 = vmatmul.mubr.f32.gmra.mrb[0].mxu0 %v5314
      %v5316 = vpop.f32.mrb[0].mxu0
      %v5317 = vadd.f32 %v3603, %v5316
      %v5318 = vpop.f32.mrb[0].mxu0
      %v5319 = vadd.f32 %v3605, %v5318
      %5320 = vmatprep.mubr.f32.mxu0 0.0
      %v5321 = vand.u32 %v3619, 4294901760
      %v5322 = vsub.f32 %v3619, %v5321
      %v5323 = vand.u32 %v5322, 4294901760
      %v5324 = vsub.f32 %v5322, %v5323
      %v5325 = vand.u32 %v5324, 4294901760
      %5326 = vmatmul.mubr.f32.gmra.mrb[0].mxu0 %v5325
      %v5327 = vpop.f32.mrb[0].mxu0
      %v5328 = vadd.f32 %v3610, %v5327
      %v5329 = vpop.f32.mrb[0].mxu0
      %v5330 = vadd.f32 %v3612, %v5329
      %5331 = vdwg.mxu0
      %v5332 = vand.u32 %v298, 4294901760
      %v5333 = vsub.f32 %v298, %v5332
      %v5334 = vand.u32 %v5333, 4294901760
      %v5335 = vsub.f32 %v5333, %v5334
      %v5336 = vand.u32 %v5335, 4294901760
      %5337 = vmatprep.subr.mxu0 %v5336
      %v5338 = vand.u32 %v297, 4294901760
      %v5339 = vsub.f32 %v297, %v5338
      %v5340 = vand.u32 %v5339, 4294901760
      %v5341 = vsub.f32 %v5339, %v5340
      %v5342 = vand.u32 %v5341, 4294901760
      %5343 = vmatpush1.msra.mxu0 %v5342
      %v5344 = vand.u32 %v306, 4294901760
      %v5345 = vsub.f32 %v306, %v5344
      %v5346 = vand.u32 %v5345, 4294901760
      %v5347 = vsub.f32 %v5345, %v5346
      %v5348 = vand.u32 %v5347, 4294901760
      %5349 = vmatprep.subr.mxu0 %v5348
      %v5350 = vand.u32 %v305, 4294901760
      %v5351 = vsub.f32 %v305, %v5350
      %v5352 = vand.u32 %v5351, 4294901760
      %v5353 = vsub.f32 %v5351, %v5352
      %v5354 = vand.u32 %v5353, 4294901760
      %5355 = vmatpush1.msra.mxu0 %v5354
      %5356 = vmatprep.subr.mxu0 0.0
      %5357 = vmatpush1.msra.mxu0 0.0
      %5358 = vmatprep.subr.mxu0 0.0
      %5359 = vmatpush1.msra.mxu0 0.0
      %5360 = vmatprep.subr.mxu0 0.0
      %5361 = vmatpush1.msra.mxu0 0.0
      %5362 = vmatprep.subr.mxu0 0.0
      %5363 = vmatpush1.msra.mxu0 0.0
      %5364 = vmatprep.subr.mxu0 0.0
      %5365 = vmatpush1.msra.mxu0 0.0
      %5366 = vmatprep.subr.mxu0 0.0
      %5367 = vmatpush1.msra.mxu0 0.0
      %5368 = vmatprep.subr.mxu0 0.0
      %5369 = vmatpush1.msra.mxu0 0.0
      %5370 = vmatprep.subr.mxu0 0.0
      %5371 = vmatpush1.msra.mxu0 0.0
      %5372 = vmatprep.subr.mxu0 0.0
      %5373 = vmatpush1.msra.mxu0 0.0
      %5374 = vmatprep.subr.mxu0 0.0
      %5375 = vmatpush1.msra.mxu0 0.0
      %5376 = vmatprep.subr.mxu0 0.0
      %5377 = vmatpush1.msra.mxu0 0.0
      %5378 = vmatprep.subr.mxu0 0.0
      %5379 = vmatpush1.msra.mxu0 0.0
      %5380 = vmatprep.subr.mxu0 0.0
      %5381 = vmatpush1.msra.mxu0 0.0
      %5382 = vmatprep.subr.mxu0 0.0
      %5383 = vmatpush1.msra.mxu0 0.0
      %5384 = vmatprep.subr.mxu0 0.0
      %5385 = vmatpush1.msra.mxu0 0.0
      %5386 = vmatprep.subr.mxu0 0.0
      %5387 = vmatpush1.msra.mxu0 0.0
      %5388 = vmatprep.subr.mxu0 0.0
      %5389 = vmatpush1.msra.mxu0 0.0
      %5390 = vmatprep.subr.mxu0 0.0
      %5391 = vmatpush1.msra.mxu0 0.0
      %5392 = vmatprep.subr.mxu0 0.0
      %5393 = vmatpush1.msra.mxu0 0.0
      %5394 = vmatprep.subr.mxu0 0.0
      %5395 = vmatpush1.msra.mxu0 0.0
      %5396 = vmatprep.subr.mxu0 0.0
      %5397 = vmatpush1.msra.mxu0 0.0
      %5398 = vmatprep.subr.mxu0 0.0
      %5399 = vmatpush1.msra.mxu0 0.0
      %5400 = vmatprep.subr.mxu0 0.0
      %5401 = vmatpush1.msra.mxu0 0.0
      %5402 = vmatprep.subr.mxu0 0.0
      %5403 = vmatpush1.msra.mxu0 0.0
      %5404 = vmatprep.subr.mxu0 0.0
      %5405 = vmatpush1.msra.mxu0 0.0
      %5406 = vmatprep.subr.mxu0 0.0
      %5407 = vmatpush1.msra.mxu0 0.0
      %5408 = vmatprep.subr.mxu0 0.0
      %5409 = vmatpush1.msra.mxu0 0.0
      %5410 = vmatprep.subr.mxu0 0.0
      %5411 = vmatpush1.msra.mxu0 0.0
      %5412 = vmatprep.subr.mxu0 0.0
      %5413 = vmatpush1.msra.mxu0 0.0
      %5414 = vmatprep.subr.mxu0 0.0
      %5415 = vmatpush1.msra.mxu0 0.0
      %5416 = vmatprep.mubr.f32.mxu0 0.0
      %v5417 = vand.u32 %v3616, 4294901760
      %5418 = vmatmul.mubr.f32.gmra.mrb[0].mxu0 %v5417
      %v5419 = vpop.f32.mrb[0].mxu0
      %v5420 = vadd.f32 %v5317, %v5419
      %v5421 = vpop.f32.mrb[0].mxu0
      %v5422 = vadd.f32 %v5319, %v5421
      %5423 = vmatprep.mubr.f32.mxu0 0.0
      %v5424 = vand.u32 %v3619, 4294901760
      %5425 = vmatmul.mubr.f32.gmra.mrb[0].mxu0 %v5424
      %v5426 = vpop.f32.mrb[0].mxu0
      %v5427 = vadd.f32 %v5328, %v5426
      %v5428 = vpop.f32.mrb[0].mxu0
      %v5429 = vadd.f32 %v5330, %v5428
      %5430 = vdwg.mxu0
      %v5431 = vand.u32 %v298, 4294901760
      %v5432 = vsub.f32 %v298, %v5431
      %5433 = vmatprep.subr.mxu0 %v5432
      %v5434 = vand.u32 %v297, 4294901760
      %v5435 = vsub.f32 %v297, %v5434
      %5436 = vmatpush1.msra.mxu0 %v5435
      %v5437 = vand.u32 %v306, 4294901760
      %v5438 = vsub.f32 %v306, %v5437
      %5439 = vmatprep.subr.mxu0 %v5438
      %v5440 = vand.u32 %v305, 4294901760
      %v5441 = vsub.f32 %v305, %v5440
      %5442 = vmatpush1.msra.mxu0 %v5441
      %5443 = vmatprep.subr.mxu0 0.0
      %5444 = vmatpush1.msra.mxu0 0.0
      %5445 = vmatprep.subr.mxu0 0.0
      %5446 = vmatpush1.msra.mxu0 0.0
      %5447 = vmatprep.subr.mxu0 0.0
      %5448 = vmatpush1.msra.mxu0 0.0
      %5449 = vmatprep.subr.mxu0 0.0
      %5450 = vmatpush1.msra.mxu0 0.0
      %5451 = vmatprep.subr.mxu0 0.0
      %5452 = vmatpush1.msra.mxu0 0.0
      %5453 = vmatprep.subr.mxu0 0.0
      %5454 = vmatpush1.msra.mxu0 0.0
      %5455 = vmatprep.subr.mxu0 0.0
      %5456 = vmatpush1.msra.mxu0 0.0
      %5457 = vmatprep.subr.mxu0 0.0
      %5458 = vmatpush1.msra.mxu0 0.0
      %5459 = vmatprep.subr.mxu0 0.0
      %5460 = vmatpush1.msra.mxu0 0.0
      %5461 = vmatprep.subr.mxu0 0.0
      %5462 = vmatpush1.msra.mxu0 0.0
      %5463 = vmatprep.subr.mxu0 0.0
      %5464 = vmatpush1.msra.mxu0 0.0
      %5465 = vmatprep.subr.mxu0 0.0
      %5466 = vmatpush1.msra.mxu0 0.0
      %5467 = vmatprep.subr.mxu0 0.0
      %5468 = vmatpush1.msra.mxu0 0.0
      %5469 = vmatprep.subr.mxu0 0.0
      %5470 = vmatpush1.msra.mxu0 0.0
      %5471 = vmatprep.subr.mxu0 0.0
      %5472 = vmatpush1.msra.mxu0 0.0
      %5473 = vmatprep.subr.mxu0 0.0
      %5474 = vmatpush1.msra.mxu0 0.0
      %5475 = vmatprep.subr.mxu0 0.0
      %5476 = vmatpush1.msra.mxu0 0.0
      %5477 = vmatprep.subr.mxu0 0.0
      %5478 = vmatpush1.msra.mxu0 0.0
      %5479 = vmatprep.subr.mxu0 0.0
      %5480 = vmatpush1.msra.mxu0 0.0
      %5481 = vmatprep.subr.mxu0 0.0
      %5482 = vmatpush1.msra.mxu0 0.0
      %5483 = vmatprep.subr.mxu0 0.0
      %5484 = vmatpush1.msra.mxu0 0.0
      %5485 = vmatprep.subr.mxu0 0.0
      %5486 = vmatpush1.msra.mxu0 0.0
      %5487 = vmatprep.subr.mxu0 0.0
      %5488 = vmatpush1.msra.mxu0 0.0
      %5489 = vmatprep.subr.mxu0 0.0
      %5490 = vmatpush1.msra.mxu0 0.0
      %5491 = vmatprep.subr.mxu0 0.0
      %5492 = vmatpush1.msra.mxu0 0.0
      %5493 = vmatprep.subr.mxu0 0.0
      %5494 = vmatpush1.msra.mxu0 0.0
      %5495 = vmatprep.subr.mxu0 0.0
      %5496 = vmatpush1.msra.mxu0 0.0
      %5497 = vmatprep.subr.mxu0 0.0
      %5498 = vmatpush1.msra.mxu0 0.0
      %5499 = vmatprep.subr.mxu0 0.0
      %5500 = vmatpush1.msra.mxu0 0.0
      %5501 = vmatprep.subr.mxu0 0.0
      %5502 = vmatpush1.msra.mxu0 0.0
      %5503 = vmatprep.mubr.f32.mxu0 0.0
      %v5504 = vand.u32 %v3616, 4294901760
      %v5505 = vsub.f32 %v3616, %v5504
      %5506 = vmatmul.mubr.f32.gmra.mrb[0].mxu0 %v5505
      %v5507 = vpop.f32.mrb[0].mxu0
      %v5508 = vadd.f32 %v5420, %v5507
      %v5509 = vpop.f32.mrb[0].mxu0
      %v5510 = vadd.f32 %v5422, %v5509
      %5511 = vmatprep.mubr.f32.mxu0 0.0
      %v5512 = vand.u32 %v3619, 4294901760
      %v5513 = vsub.f32 %v3619, %v5512
      %5514 = vmatmul.mubr.f32.gmra.mrb[0].mxu0 %v5513
      %v5515 = vpop.f32.mrb[0].mxu0
      %v5516 = vadd.f32 %v5427, %v5515
      %v5517 = vpop.f32.mrb[0].mxu0
      %v5518 = vadd.f32 %v5429, %v5517
      %5519 = vdwg.mxu0
      %v5520 = vand.u32 %v298, 4294901760
      %5521 = vmatprep.subr.mxu0 %v5520
      %v5522 = vand.u32 %v297, 4294901760
      %5523 = vmatpush1.msra.mxu0 %v5522
      %v5524 = vand.u32 %v306, 4294901760
      %5525 = vmatprep.subr.mxu0 %v5524
      %v5526 = vand.u32 %v305, 4294901760
      %5527 = vmatpush1.msra.mxu0 %v5526
      %5528 = vmatprep.subr.mxu0 0.0
      %5529 = vmatpush1.msra.mxu0 0.0
      %5530 = vmatprep.subr.mxu0 0.0
      %5531 = vmatpush1.msra.mxu0 0.0
      %5532 = vmatprep.subr.mxu0 0.0
      %5533 = vmatpush1.msra.mxu0 0.0
      %5534 = vmatprep.subr.mxu0 0.0
      %5535 = vmatpush1.msra.mxu0 0.0
      %5536 = vmatprep.subr.mxu0 0.0
      %5537 = vmatpush1.msra.mxu0 0.0
      %5538 = vmatprep.subr.mxu0 0.0
      %5539 = vmatpush1.msra.mxu0 0.0
      %5540 = vmatprep.subr.mxu0 0.0
      %5541 = vmatpush1.msra.mxu0 0.0
      %5542 = vmatprep.subr.mxu0 0.0
      %5543 = vmatpush1.msra.mxu0 0.0
      %5544 = vmatprep.subr.mxu0 0.0
      %5545 = vmatpush1.msra.mxu0 0.0
      %5546 = vmatprep.subr.mxu0 0.0
      %5547 = vmatpush1.msra.mxu0 0.0
      %5548 = vmatprep.subr.mxu0 0.0
      %5549 = vmatpush1.msra.mxu0 0.0
      %5550 = vmatprep.subr.mxu0 0.0
      %5551 = vmatpush1.msra.mxu0 0.0
      %5552 = vmatprep.subr.mxu0 0.0
      %5553 = vmatpush1.msra.mxu0 0.0
      %5554 = vmatprep.subr.mxu0 0.0
      %5555 = vmatpush1.msra.mxu0 0.0
      %5556 = vmatprep.subr.mxu0 0.0
      %5557 = vmatpush1.msra.mxu0 0.0
      %5558 = vmatprep.subr.mxu0 0.0
      %5559 = vmatpush1.msra.mxu0 0.0
      %5560 = vmatprep.subr.mxu0 0.0
      %5561 = vmatpush1.msra.mxu0 0.0
      %5562 = vmatprep.subr.mxu0 0.0
      %5563 = vmatpush1.msra.mxu0 0.0
      %5564 = vmatprep.subr.mxu0 0.0
      %5565 = vmatpush1.msra.mxu0 0.0
      %5566 = vmatprep.subr.mxu0 0.0
      %5567 = vmatpush1.msra.mxu0 0.0
      %5568 = vmatprep.subr.mxu0 0.0
      %5569 = vmatpush1.msra.mxu0 0.0
      %5570 = vmatprep.subr.mxu0 0.0
      %5571 = vmatpush1.msra.mxu0 0.0
      %5572 = vmatprep.subr.mxu0 0.0
      %5573 = vmatpush1.msra.mxu0 0.0
      %5574 = vmatprep.subr.mxu0 0.0
      %5575 = vmatpush1.msra.mxu0 0.0
      %5576 = vmatprep.subr.mxu0 0.0
      %5577 = vmatpush1.msra.mxu0 0.0
      %5578 = vmatprep.subr.mxu0 0.0
      %5579 = vmatpush1.msra.mxu0 0.0
      %5580 = vmatprep.subr.mxu0 0.0
      %5581 = vmatpush1.msra.mxu0 0.0
      %5582 = vmatprep.subr.mxu0 0.0
      %5583 = vmatpush1.msra.mxu0 0.0
      %5584 = vmatprep.subr.mxu0 0.0
      %5585 = vmatpush1.msra.mxu0 0.0
      %5586 = vmatprep.subr.mxu0 0.0
      %5587 = vmatpush1.msra.mxu0 0.0
      %5588 = vmatprep.mubr.f32.mxu0 0.0
      %v5589 = vand.u32 %v3616, 4294901760
      %v5590 = vsub.f32 %v3616, %v5589
      %v5591 = vand.u32 %v5590, 4294901760
      %5592 = vmatmul.mubr.f32.gmra.mrb[0].mxu0 %v5591
      %v5593 = vpop.f32.mrb[0].mxu0
      %v5594 = vadd.f32 %v5508, %v5593
      %v5595 = vpop.f32.mrb[0].mxu0
      %v5596 = vadd.f32 %v5510, %v5595
      %5597 = vmatprep.mubr.f32.mxu0 0.0
      %v5598 = vand.u32 %v3619, 4294901760
      %v5599 = vsub.f32 %v3619, %v5598
      %v5600 = vand.u32 %v5599, 4294901760
      %5601 = vmatmul.mubr.f32.gmra.mrb[0].mxu0 %v5600
      %v5602 = vpop.f32.mrb[0].mxu0
      %v5603 = vadd.f32 %v5516, %v5602
      %v5604 = vpop.f32.mrb[0].mxu0
      %v5605 = vadd.f32 %v5518, %v5604
      %5606 = vdwg.mxu0
      %v5607 = vand.u32 %v298, 4294901760
      %v5608 = vsub.f32 %v298, %v5607
      %v5609 = vand.u32 %v5608, 4294901760
      %5610 = vmatprep.subr.mxu0 %v5609
      %v5611 = vand.u32 %v297, 4294901760
      %v5612 = vsub.f32 %v297, %v5611
      %v5613 = vand.u32 %v5612, 4294901760
      %5614 = vmatpush1.msra.mxu0 %v5613
      %v5615 = vand.u32 %v306, 4294901760
      %v5616 = vsub.f32 %v306, %v5615
      %v5617 = vand.u32 %v5616, 4294901760
      %5618 = vmatprep.subr.mxu0 %v5617
      %v5619 = vand.u32 %v305, 4294901760
      %v5620 = vsub.f32 %v305, %v5619
      %v5621 = vand.u32 %v5620, 4294901760
      %5622 = vmatpush1.msra.mxu0 %v5621
      %5623 = vmatprep.subr.mxu0 0.0
      %5624 = vmatpush1.msra.mxu0 0.0
      %5625 = vmatprep.subr.mxu0 0.0
      %5626 = vmatpush1.msra.mxu0 0.0
      %5627 = vmatprep.subr.mxu0 0.0
      %5628 = vmatpush1.msra.mxu0 0.0
      %5629 = vmatprep.subr.mxu0 0.0
      %5630 = vmatpush1.msra.mxu0 0.0
      %5631 = vmatprep.subr.mxu0 0.0
      %5632 = vmatpush1.msra.mxu0 0.0
      %5633 = vmatprep.subr.mxu0 0.0
      %5634 = vmatpush1.msra.mxu0 0.0
      %5635 = vmatprep.subr.mxu0 0.0
      %5636 = vmatpush1.msra.mxu0 0.0
      %5637 = vmatprep.subr.mxu0 0.0
      %5638 = vmatpush1.msra.mxu0 0.0
      %5639 = vmatprep.subr.mxu0 0.0
      %5640 = vmatpush1.msra.mxu0 0.0
      %5641 = vmatprep.subr.mxu0 0.0
      %5642 = vmatpush1.msra.mxu0 0.0
      %5643 = vmatprep.subr.mxu0 0.0
      %5644 = vmatpush1.msra.mxu0 0.0
      %5645 = vmatprep.subr.mxu0 0.0
      %5646 = vmatpush1.msra.mxu0 0.0
      %5647 = vmatprep.subr.mxu0 0.0
      %5648 = vmatpush1.msra.mxu0 0.0
      %5649 = vmatprep.subr.mxu0 0.0
      %5650 = vmatpush1.msra.mxu0 0.0
      %5651 = vmatprep.subr.mxu0 0.0
      %5652 = vmatpush1.msra.mxu0 0.0
      %5653 = vmatprep.subr.mxu0 0.0
      %5654 = vmatpush1.msra.mxu0 0.0
      %5655 = vmatprep.subr.mxu0 0.0
      %5656 = vmatpush1.msra.mxu0 0.0
      %5657 = vmatprep.subr.mxu0 0.0
      %5658 = vmatpush1.msra.mxu0 0.0
      %5659 = vmatprep.subr.mxu0 0.0
      %5660 = vmatpush1.msra.mxu0 0.0
      %5661 = vmatprep.subr.mxu0 0.0
      %5662 = vmatpush1.msra.mxu0 0.0
      %5663 = vmatprep.subr.mxu0 0.0
      %5664 = vmatpush1.msra.mxu0 0.0
      %5665 = vmatprep.subr.mxu0 0.0
      %5666 = vmatpush1.msra.mxu0 0.0
      %5667 = vmatprep.subr.mxu0 0.0
      %5668 = vmatpush1.msra.mxu0 0.0
      %5669 = vmatprep.subr.mxu0 0.0
      %5670 = vmatpush1.msra.mxu0 0.0
      %5671 = vmatprep.subr.mxu0 0.0
      %5672 = vmatpush1.msra.mxu0 0.0
      %5673 = vmatprep.subr.mxu0 0.0
      %5674 = vmatpush1.msra.mxu0 0.0
      %5675 = vmatprep.subr.mxu0 0.0
      %5676 = vmatpush1.msra.mxu0 0.0
      %5677 = vmatprep.subr.mxu0 0.0
      %5678 = vmatpush1.msra.mxu0 0.0
      %5679 = vmatprep.subr.mxu0 0.0
      %5680 = vmatpush1.msra.mxu0 0.0
      %5681 = vmatprep.subr.mxu0 0.0
      %5682 = vmatpush1.msra.mxu0 0.0
      %5683 = vmatprep.mubr.f32.mxu0 0.0
      %v5684 = vand.u32 %v3616, 4294901760
      %5685 = vmatmul.mubr.f32.gmra.mrb[0].mxu0 %v5684
      %v5686 = vpop.f32.mrb[0].mxu0
      %v5687 = vadd.f32 %v5594, %v5686
      %v5688 = vpop.f32.mrb[0].mxu0
      %v5689 = vadd.f32 %v5596, %v5688
      %5690 = vmatprep.mubr.f32.mxu0 0.0
      %v5691 = vand.u32 %v3619, 4294901760
      %5692 = vmatmul.mubr.f32.gmra.mrb[0].mxu0 %v5691
      %v5693 = vpop.f32.mrb[0].mxu0
      %v5694 = vadd.f32 %v5603, %v5693
      %v5695 = vpop.f32.mrb[0].mxu0
      %v5696 = vadd.f32 %v5605, %v5695
      %5697 = vdwg.mxu0
      %v5698 = vand.u32 %v298, 4294901760
      %5699 = vmatprep.subr.mxu0 %v5698
      %v5700 = vand.u32 %v297, 4294901760
      %5701 = vmatpush1.msra.mxu0 %v5700
      %v5702 = vand.u32 %v306, 4294901760
      %5703 = vmatprep.subr.mxu0 %v5702
      %v5704 = vand.u32 %v305, 4294901760
      %5705 = vmatpush1.msra.mxu0 %v5704
      %5706 = vmatprep.subr.mxu0 0.0
      %5707 = vmatpush1.msra.mxu0 0.0
      %5708 = vmatprep.subr.mxu0 0.0
      %5709 = vmatpush1.msra.mxu0 0.0
      %5710 = vmatprep.subr.mxu0 0.0
      %5711 = vmatpush1.msra.mxu0 0.0
      %5712 = vmatprep.subr.mxu0 0.0
      %5713 = vmatpush1.msra.mxu0 0.0
      %5714 = vmatprep.subr.mxu0 0.0
      %5715 = vmatpush1.msra.mxu0 0.0
      %5716 = vmatprep.subr.mxu0 0.0
      %5717 = vmatpush1.msra.mxu0 0.0
      %5718 = vmatprep.subr.mxu0 0.0
      %5719 = vmatpush1.msra.mxu0 0.0
      %5720 = vmatprep.subr.mxu0 0.0
      %5721 = vmatpush1.msra.mxu0 0.0
      %5722 = vmatprep.subr.mxu0 0.0
      %5723 = vmatpush1.msra.mxu0 0.0
      %5724 = vmatprep.subr.mxu0 0.0
      %5725 = vmatpush1.msra.mxu0 0.0
      %5726 = vmatprep.subr.mxu0 0.0
      %5727 = vmatpush1.msra.mxu0 0.0
      %5728 = vmatprep.subr.mxu0 0.0
      %5729 = vmatpush1.msra.mxu0 0.0
      %5730 = vmatprep.subr.mxu0 0.0
      %5731 = vmatpush1.msra.mxu0 0.0
      %5732 = vmatprep.subr.mxu0 0.0
      %5733 = vmatpush1.msra.mxu0 0.0
      %5734 = vmatprep.subr.mxu0 0.0
      %5735 = vmatpush1.msra.mxu0 0.0
      %5736 = vmatprep.subr.mxu0 0.0
      %5737 = vmatpush1.msra.mxu0 0.0
      %5738 = vmatprep.subr.mxu0 0.0
      %5739 = vmatpush1.msra.mxu0 0.0
      %5740 = vmatprep.subr.mxu0 0.0
      %5741 = vmatpush1.msra.mxu0 0.0
      %5742 = vmatprep.subr.mxu0 0.0
      %5743 = vmatpush1.msra.mxu0 0.0
      %5744 = vmatprep.subr.mxu0 0.0
      %5745 = vmatpush1.msra.mxu0 0.0
      %5746 = vmatprep.subr.mxu0 0.0
      %5747 = vmatpush1.msra.mxu0 0.0
      %5748 = vmatprep.subr.mxu0 0.0
      %5749 = vmatpush1.msra.mxu0 0.0
      %5750 = vmatprep.subr.mxu0 0.0
      %5751 = vmatpush1.msra.mxu0 0.0
      %5752 = vmatprep.subr.mxu0 0.0
      %5753 = vmatpush1.msra.mxu0 0.0
      %5754 = vmatprep.subr.mxu0 0.0
      %5755 = vmatpush1.msra.mxu0 0.0
      %5756 = vmatprep.subr.mxu0 0.0
      %5757 = vmatpush1.msra.mxu0 0.0
      %5758 = vmatprep.subr.mxu0 0.0
      %5759 = vmatpush1.msra.mxu0 0.0
      %5760 = vmatprep.subr.mxu0 0.0
      %5761 = vmatpush1.msra.mxu0 0.0
      %5762 = vmatprep.subr.mxu0 0.0
      %5763 = vmatpush1.msra.mxu0 0.0
      %5764 = vmatprep.subr.mxu0 0.0
      %5765 = vmatpush1.msra.mxu0 0.0
      %5766 = vmatprep.mubr.f32.mxu0 0.0
      %v5767 = vand.u32 %v3616, 4294901760
      %5768 = vmatmul.mubr.f32.gmra.mrb[0].mxu0 %v5767
      %v5769 = vpop.f32.mrb[0].mxu0
      %v5770 = vadd.f32 %v5687, %v5769
      %v5771 = vpop.f32.mrb[0].mxu0
      %v5772 = vadd.f32 %v5689, %v5771
      %5773 = vmatprep.mubr.f32.mxu0 0.0
      %v5774 = vand.u32 %v3619, 4294901760
      %5775 = vmatmul.mubr.f32.gmra.mrb[0].mxu0 %v5774
      %v5776 = vpop.f32.mrb[0].mxu0
      %v5777 = vadd.f32 %v5694, %v5776
      %v5778 = vpop.f32.mrb[0].mxu0
      %v5779 = vadd.f32 %v5696, %v5778
      %5780 = vdwg.mxu0
      %v5781 = vld [vmem:[%s4] sm:$0xff]
      %v5782 = vld [vmem:[%s4 + $0x8] sm:$0xff]
      %5784 = vset.pattern.permute.xlu0 0
      %5785 = vperm.xlu0 %5784, %v5781
      %v5786 = vpop.permute.xlu0 %5785
      %5789 = vset.pattern.permute.xlu0 0
      %5790 = vperm.xlu0 %5789, %v5782
      %v5791 = vpop.permute.xlu0 %5790
      %v5793 = vadd.f32 %v4150, %v5786
      %v5794 = vadd.f32 %v4152, %v5786
      %v5795 = vadd.f32 %v4690, %v5786
      %v5796 = vadd.f32 %v4692, %v5786
      %v5797 = vadd.f32 %v5230, %v5786
      %v5798 = vadd.f32 %v5232, %v5786
      %v5799 = vadd.f32 %v5770, %v5786
      %v5800 = vadd.f32 %v5772, %v5786
      %v5801 = vadd.f32 %v4157, %v5791
      %v5802 = vadd.f32 %v4159, %v5791
      %v5803 = vadd.f32 %v4697, %v5791
      %v5804 = vadd.f32 %v4699, %v5791
      %v5805 = vadd.f32 %v5237, %v5791
      %v5806 = vadd.f32 %v5239, %v5791
      %v5807 = vadd.f32 %v5777, %v5791
      %v5808 = vadd.f32 %v5779, %v5791
      %v5809 = vsub.f32 0.0, %v5793
      %v5810 = vsub.f32 0.0, %v5794
      %v5811 = vsub.f32 0.0, %v5795
      %v5812 = vsub.f32 0.0, %v5796
      %v5813 = vsub.f32 0.0, %v5797
      %v5814 = vsub.f32 0.0, %v5798
      %v5815 = vsub.f32 0.0, %v5799
      %v5816 = vsub.f32 0.0, %v5800
      %v5817 = vsub.f32 0.0, %v5801
      %v5818 = vsub.f32 0.0, %v5802
      %v5819 = vsub.f32 0.0, %v5803
      %v5820 = vsub.f32 0.0, %v5804
      %v5821 = vsub.f32 0.0, %v5805
      %v5822 = vsub.f32 0.0, %v5806
      %v5823 = vsub.f32 0.0, %v5807
      %v5824 = vsub.f32 0.0, %v5808
      %v5825 = vmul.f32 %v5809, 1.442695
      %v5826 = vpow.pop %v5825
      %v5827 = vmul.f32 %v5810, 1.442695
      %v5828 = vpow.pop %v5827
      %v5829 = vmul.f32 %v5811, 1.442695
      %v5830 = vpow.pop %v5829
      %v5831 = vmul.f32 %v5812, 1.442695
      %v5832 = vpow.pop %v5831
      %v5833 = vmul.f32 %v5813, 1.442695
      %v5834 = vpow.pop %v5833
      %v5835 = vmul.f32 %v5814, 1.442695
      %v5836 = vpow.pop %v5835
      %v5837 = vmul.f32 %v5815, 1.442695
      %v5838 = vpow.pop %v5837
      %v5839 = vmul.f32 %v5816, 1.442695
      %v5840 = vpow.pop %v5839
      %v5841 = vmul.f32 %v5817, 1.442695
      %v5842 = vpow.pop %v5841
      %v5843 = vmul.f32 %v5818, 1.442695
      %v5844 = vpow.pop %v5843
      %v5845 = vmul.f32 %v5819, 1.442695
      %v5846 = vpow.pop %v5845
      %v5847 = vmul.f32 %v5820, 1.442695
      %v5848 = vpow.pop %v5847
      %v5849 = vmul.f32 %v5821, 1.442695
      %v5850 = vpow.pop %v5849
      %v5851 = vmul.f32 %v5822, 1.442695
      %v5852 = vpow.pop %v5851
      %v5853 = vmul.f32 %v5823, 1.442695
      %v5854 = vpow.pop %v5853
      %v5855 = vmul.f32 %v5824, 1.442695
      %v5856 = vpow.pop %v5855
      %v5857 = vadd.f32 %v5826, 1.0
      %v5858 = vadd.f32 %v5828, 1.0
      %v5859 = vadd.f32 %v5830, 1.0
      %v5860 = vadd.f32 %v5832, 1.0
      %v5861 = vadd.f32 %v5834, 1.0
      %v5862 = vadd.f32 %v5836, 1.0
      %v5863 = vadd.f32 %v5838, 1.0
      %v5864 = vadd.f32 %v5840, 1.0
      %v5865 = vadd.f32 %v5842, 1.0
      %v5866 = vadd.f32 %v5844, 1.0
      %v5867 = vadd.f32 %v5846, 1.0
      %v5868 = vadd.f32 %v5848, 1.0
      %v5869 = vadd.f32 %v5850, 1.0
      %v5870 = vadd.f32 %v5852, 1.0
      %v5871 = vadd.f32 %v5854, 1.0
      %v5872 = vadd.f32 %v5856, 1.0
      %v5873 = vrcp.pop %v5857
      %v5874 = vmul.f32 1.0, %v5873
      %v5875 = vrcp.pop %v5858
      %v5876 = vmul.f32 1.0, %v5875
      %v5877 = vrcp.pop %v5859
      %v5878 = vmul.f32 1.0, %v5877
      %v5879 = vrcp.pop %v5860
      %v5880 = vmul.f32 1.0, %v5879
      %v5881 = vrcp.pop %v5861
      %v5882 = vmul.f32 1.0, %v5881
      %v5883 = vrcp.pop %v5862
      %v5884 = vmul.f32 1.0, %v5883
      %v5885 = vrcp.pop %v5863
      %v5886 = vmul.f32 1.0, %v5885
      %v5887 = vrcp.pop %v5864
      %v5888 = vmul.f32 1.0, %v5887
      %v5889 = vrcp.pop %v5865
      %v5890 = vmul.f32 1.0, %v5889
      %v5891 = vrcp.pop %v5866
      %v5892 = vmul.f32 1.0, %v5891
      %v5893 = vrcp.pop %v5867
      %v5894 = vmul.f32 1.0, %v5893
      %v5895 = vrcp.pop %v5868
      %v5896 = vmul.f32 1.0, %v5895
      %v5897 = vrcp.pop %v5869
      %v5898 = vmul.f32 1.0, %v5897
      %v5899 = vrcp.pop %v5870
      %v5900 = vmul.f32 1.0, %v5899
      %v5901 = vrcp.pop %v5871
      %v5902 = vmul.f32 1.0, %v5901
      %v5903 = vrcp.pop %v5872
      %v5904 = vmul.f32 1.0, %v5903
      %v5905 = vmul.f32 %v291, %v5874
      %v5906 = vmul.f32 %v292, %v5876
      %v5907 = vmul.f32 %v293, %v5878
      %v5908 = vmul.f32 %v294, %v5880
      %v5909 = vmul.f32 %v295, %v5882
      %v5910 = vmul.f32 %v296, %v5884
      %v5911 = vmul.f32 %v297, %v5886
      %v5912 = vmul.f32 %v298, %v5888
      %v5913 = vmul.f32 %v299, %v5890
      %v5914 = vmul.f32 %v300, %v5892
      %v5915 = vmul.f32 %v301, %v5894
      %v5916 = vmul.f32 %v302, %v5896
      %v5917 = vmul.f32 %v303, %v5898
      %v5918 = vmul.f32 %v304, %v5900
      %v5919 = vmul.f32 %v305, %v5902
      %v5920 = vmul.f32 %v306, %v5904
      %5921 = vst [vmem:[%s289] sm:$0xff] %v5905
      %5922 = vst [vmem:[%s289 + $0x8] sm:$0xff] %v5906
      %5923 = vst [vmem:[%s289 + $0x10] sm:$0xff] %v5907
      %5924 = vst [vmem:[%s289 + $0x18] sm:$0xff] %v5908
      %5925 = vst [vmem:[%s289 + $0x20] sm:$0xff] %v5909
      %5926 = vst [vmem:[%s289 + $0x28] sm:$0xff] %v5910
      %5927 = vst [vmem:[%s289 + $0x30] sm:$0xff] %v5911
      %5928 = vst [vmem:[%s289 + $0x38] sm:$0xff] %v5912
      %5929 = vst [vmem:[%s289 + $0x40] sm:$0xff] %v5913
      %5930 = vst [vmem:[%s289 + $0x48] sm:$0xff] %v5914
      %5931 = vst [vmem:[%s289 + $0x50] sm:$0xff] %v5915
      %5932 = vst [vmem:[%s289 + $0x58] sm:$0xff] %v5916
      %5933 = vst [vmem:[%s289 + $0x60] sm:$0xff] %v5917
      %5934 = vst [vmem:[%s289 + $0x68] sm:$0xff] %v5918
      %5935 = vst [vmem:[%s289 + $0x70] sm:$0xff] %v5919
      %5936 = vst [vmem:[%s289 + $0x78] sm:$0xff] %v5920
      %s5937 = smul.u32 8, %s21
      %p5938 = scmp.lt.s32.totalorder %s20, 1
      %s5939 = scalar_select %p5938, %s20, 1
      %p5940 = scmp.lt.s32.totalorder %s5937, 7
      %s5941 = scalar_select %p5940, %s5937, 7
      %s5942 = smul.addr %s5939, 16
      %s5943 = sadd.s32 %s5941, %s5942
      %s5944 = smul.addr %s5943, 8
      %s5945 = scalar_lea.vmem %s5, %s5944
      // Predicated region
      $region41: #{esa_forward.3} parent=39 // pred_check
        %p5946 = pneg %p167
      $region42: #{esa_forward.3} parent=39 // pred_check_branch
        %5948 = sbr.rel (%p5946) target = $region44
      $region43: #{esa_forward.3} parent=39 // pred_region
        %s5949 = smul.u32 8, %s21
      $region44: #{esa_forward.3} parent=39 // pred_fallthru
        _
    $region40: #{esa_forward.3} parent=5 // pred_fallthru
      _
    %p5950 = scmp.le.s32.totalorder 2, %s11
    // Predicated region
    $region45: #{esa_forward.3} parent=5 // pred_check
      %p5951 = pneg %p5950
    $region46: #{esa_forward.3} parent=5 // pred_check_branch
      %5953 = sbr.rel (%p5951) target = $region48
    $region47: #{esa_forward.3} parent=5 // pred_region
      %s5954 = ssub.s32 %s11, 2
      // Predicated region
      $region49: #{esa_forward.3} parent=47 // pred_check
        %p5955 = pneg %p173
      $region50: #{esa_forward.3} parent=47 // pred_check_branch
        %5957 = sbr.rel (%p5955) target = $region52
      $region51: #{esa_forward.3} parent=47 // pred_region
        %s5958 = smul.u32 8, %s23
        %p5959 = scmp.lt.s32.totalorder %s22, 1
        %s5960 = scalar_select %p5959, %s22, 1
        %p5961 = scmp.lt.s32.totalorder %s5958, 7
        %s5962 = scalar_select %p5961, %s5958, 7
        %s5963 = smul.addr %s5960, 16
        %s5964 = sadd.s32 %s5962, %s5963
        %s5965 = smul.addr %s5964, 8
        %s5966 = scalar_lea.vmem %s5, %s5965
      $region52: #{esa_forward.3} parent=47 // pred_fallthru
        _
    $region48: #{esa_forward.3} parent=5 // pred_fallthru
      _
  $region6: #{esa_forward.3} parent=0 // loop_footer
    %s15 = sadd.s32 1, %s11
  $region7: #{esa_forward.3} parent=0 // loop_footer_branch
    %10 = sbr.rel target = $region3
  $region8: #{esa_forward.3} parent=0 // loop_exit
    _

</llo_original>
